<compile_context>
chip_gen: v7x
topology: tpu7x:2x2x1
jax: 0.10.0
libtpu: 0.0.40
codegen_flags: <defaults>
</compile_context>

<pallas_src>
import functools

import jax
import jax.numpy as jnp
from jax import lax
from jax.experimental import pallas as pl
from jax.experimental.pallas import tpu as pltpu

_LANE = 128
_SUBLANE = 8


def _round_up(x, m):
    return ((x + m - 1) // m) * m


def _pack_lstm(w_ih, w_hh, b_ih, b_hh, d_in, h, d_pad, h_pad):
    """Gate-pad PyTorch LSTM weights for 128-lane-aligned gate blocks.

    Returns:
      wih : (d_pad, 4*h_pad) bf16  -- W_ih^T, each gate in its own lane block
      whh : (h_pad, 4*h_pad) bf16  -- W_hh^T, same layout
      b   : (1, 4*h_pad)     f32   -- b_ih + b_hh, same layout
    Zero-padded gate columns give i=f=o=sigmoid(0), g=tanh(0)=0, so padded h/c
    lanes stay exactly 0 through the recurrence.
    """
    wih_t = jnp.asarray(w_ih, jnp.float32).T        # (d_in, 4h)
    whh_t = jnp.asarray(w_hh, jnp.float32).T        # (h,    4h)
    bias = jnp.asarray(b_ih, jnp.float32) + jnp.asarray(b_hh, jnp.float32)

    wih = jnp.zeros((d_pad, 4 * h_pad), jnp.float32)
    whh = jnp.zeros((h_pad, 4 * h_pad), jnp.float32)
    b = jnp.zeros((1, 4 * h_pad), jnp.float32)
    for g in range(4):
        wih = wih.at[:d_in, g * h_pad:g * h_pad + h].set(wih_t[:, g * h:(g + 1) * h])
        whh = whh.at[:h, g * h_pad:g * h_pad + h].set(whh_t[:, g * h:(g + 1) * h])
        b = b.at[0, g * h_pad:g * h_pad + h].set(bias[g * h:(g + 1) * h])
    return wih.astype(jnp.bfloat16), whh.astype(jnp.bfloat16), b


def _fused_decoder_kernel(x_ref, wih1_ref, whh1_ref, b1_ref,
                          wih2_ref, whh2_ref, b2_ref,
                          out_ref, cn_ref,
                          h1_sc, c1_sc, h2_sc, c2_sc,
                          gx1_sc, h1buf_sc, gx2_sc,
                          *, tc, b_pad, h1_pad, ho_pad, t_real,
                          needs_mask, unroll):
    """Both LSTM layers over one time chunk of Tc steps.

    x_ref   : (Tc*B_pad, D1_pad) bf16  -- flattened (time-major) input chunk
    w*_ref  : bf16 gate-padded weights; b*_ref : (1, 4H_pad) f32 summed bias
    out_ref : (Tc*B_pad, Ho_pad) f32   -- layer-2 hidden states for this chunk
    cn_ref  : (B_pad, Ho_pad)    f32   -- layer-2 final cell state (resident)
    *_sc    : VMEM scratch (recurrent state carried across grid + chunk buffers)
    """
    chunk = pl.program_id(0)

    @pl.when(chunk == 0)
    def _():
        h1_sc[...] = jnp.zeros_like(h1_sc)
        c1_sc[...] = jnp.zeros_like(c1_sc)
        h2_sc[...] = jnp.zeros_like(h2_sc)
        c2_sc[...] = jnp.zeros_like(c2_sc)
        cn_ref[...] = jnp.zeros_like(cn_ref)

    # ---- hoisted layer-1 input projection (bias folded), one big bf16 GEMM ----
    gx1_sc[...] = jnp.dot(x_ref[...], wih1_ref[...],
                          preferred_element_type=jnp.float32) + b1_ref[...]

    def gates_to_hc(gates, c_prev, hp):
        # Each slice is a whole 128-lane-aligned block (no relayout).
        i_g = jax.nn.sigmoid(gates[:, 0 * hp:1 * hp])
        f_g = jax.nn.sigmoid(gates[:, 1 * hp:2 * hp])
        g_g = jnp.tanh(gates[:, 2 * hp:3 * hp])
        o_g = jax.nn.sigmoid(gates[:, 3 * hp:4 * hp])
        c_new = f_g * c_prev + i_g * g_g
        h_new = o_g * jnp.tanh(c_new)
        return h_new, c_new

    def keep_valid(t, new, prev):
        # Freeze state on time steps past the real sequence length (T padding).
        if not needs_mask:
            return new
        valid = (chunk * tc + t) < t_real
        return jnp.where(valid, new, prev)

    # ---- layer-1 recurrence: only h_prev @ W_hh per step, state in registers ----
    def step1(t, carry):
        h_prev, c_prev = carry
        base = pl.multiple_of(t * b_pad, b_pad)
        gates = gx1_sc[pl.ds(base, b_pad), :] + jnp.dot(
            h_prev.astype(jnp.bfloat16), whh1_ref[...],
            preferred_element_type=jnp.float32)
        h_new, c_new = gates_to_hc(gates, c_prev, h1_pad)
        h_new = keep_valid(t, h_new, h_prev)
        c_new = keep_valid(t, c_new, c_prev)
        h1buf_sc[pl.ds(base, b_pad), :] = h_new
        return h_new, c_new

    h1, c1 = lax.fori_loop(0, tc, step1, (h1_sc[...], c1_sc[...]),
                           unroll=unroll)
    h1_sc[...] = h1
    c1_sc[...] = c1

    # ---- hoisted layer-2 input projection, one big bf16 GEMM ----
    gx2_sc[...] = jnp.dot(h1buf_sc[...].astype(jnp.bfloat16), wih2_ref[...],
                          preferred_element_type=jnp.float32) + b2_ref[...]

    # ---- layer-2 recurrence ----
    def step2(t, carry):
        h_prev, c_prev = carry
        base = pl.multiple_of(t * b_pad, b_pad)
        gates = gx2_sc[pl.ds(base, b_pad), :] + jnp.dot(
            h_prev.astype(jnp.bfloat16), whh2_ref[...],
            preferred_element_type=jnp.float32)
        h_new, c_new = gates_to_hc(gates, c_prev, ho_pad)
        h_new = keep_valid(t, h_new, h_prev)
        c_new = keep_valid(t, c_new, c_prev)
        out_ref[pl.ds(base, b_pad), :] = h_new     # lane-dense unmasked store
        return h_new, c_new

    h2, c2 = lax.fori_loop(0, tc, step2, (h2_sc[...], c2_sc[...]),
                           unroll=unroll)
    h2_sc[...] = h2
    c2_sc[...] = c2

    @pl.when(chunk == pl.num_programs(0) - 1)
    def _():
        cn_ref[...] = c2_sc[...]


@functools.partial(jax.jit, static_argnums=(2, 3, 4))
def decoder_forward(z, params, input_size, hidden_size_1, hidden_size_2):
    """Mirror of PyTorch Decoder.forward: lstm_1 (H2->H1) then lstm_2 (H1->input_size).

    z: (B, T, hidden_size_2), batch_first.
    Returns (output, (h_n, c_n)) of lstm_2 with PyTorch shapes
    ((B, T, input_size), ((1, B, input_size), (1, B, input_size))).
    """
    B, T, H2 = z.shape
    H1 = hidden_size_1
    Ho = input_size
    assert H2 == hidden_size_2

    B_pad = _round_up(B, _SUBLANE)
    D1_pad = _round_up(H2, _LANE)
    H1_pad = _round_up(H1, _LANE)
    Ho_pad = _round_up(Ho, _LANE)

    Tc = min(T, 64)                       # big chunks -> big hoisted GEMMs
    T_pad = _round_up(T, Tc)              # pad T instead of shrinking Tc
    n_chunks = T_pad // Tc
    needs_mask = (T_pad != T)
    unroll = min(Tc, 8)                   # cap unroll to avoid regalloc spills
    rows = Tc * B_pad

    # Time-major, batch/feature zero-padded input, bf16 for the MXU.
    x_tm = jnp.transpose(z, (1, 0, 2)).astype(jnp.bfloat16)      # (T, B, H2)
    x_pad = jnp.zeros((T_pad, B_pad, D1_pad), jnp.bfloat16)
    x_pad = x_pad.at[:T, :B, :H2].set(x_tm)
    x_flat = x_pad.reshape(T_pad * B_pad, D1_pad)

    wih1, whh1, b1 = _pack_lstm(params["w_ih1"], params["w_hh1"],
                                params["b_ih1"], params["b_hh1"],
                                H2, H1, D1_pad, H1_pad)
    wih2, whh2, b2 = _pack_lstm(params["w_ih2"], params["w_hh2"],
                                params["b_ih2"], params["b_hh2"],
                                H1, Ho, H1_pad, Ho_pad)

    kernel = functools.partial(
        _fused_decoder_kernel, tc=Tc, b_pad=B_pad, h1_pad=H1_pad,
        ho_pad=Ho_pad, t_real=T, needs_mask=needs_mask, unroll=unroll)

    out_flat, cn_pad = pl.pallas_call(
        kernel,
        out_shape=(
            jax.ShapeDtypeStruct((T_pad * B_pad, Ho_pad), jnp.float32),
            jax.ShapeDtypeStruct((B_pad, Ho_pad), jnp.float32),
        ),
        grid_spec=pltpu.PrefetchScalarGridSpec(
            num_scalar_prefetch=0,
            grid=(n_chunks,),
            in_specs=[
                pl.BlockSpec((rows, D1_pad), lambda i: (i, 0)),
                # Constant-index weight/bias blocks: DMA'd once, VMEM-resident.
                # TODO(synk): at production hidden sizes on v7x, single-buffer
                # these with pipeline_mode=pl.Buffered(1) (bf16 already halves
                # their VMEM residency).
                pl.BlockSpec((D1_pad, 4 * H1_pad), lambda i: (0, 0)),
                pl.BlockSpec((H1_pad, 4 * H1_pad), lambda i: (0, 0)),
                pl.BlockSpec((1, 4 * H1_pad), lambda i: (0, 0)),
                pl.BlockSpec((H1_pad, 4 * Ho_pad), lambda i: (0, 0)),
                pl.BlockSpec((Ho_pad, 4 * Ho_pad), lambda i: (0, 0)),
                pl.BlockSpec((1, 4 * Ho_pad), lambda i: (0, 0)),
            ],
            out_specs=[
                pl.BlockSpec((rows, Ho_pad), lambda i: (i, 0)),
                pl.BlockSpec((B_pad, Ho_pad), lambda i: (0, 0)),
            ],
            scratch_shapes=[
                pltpu.VMEM((B_pad, H1_pad), jnp.float32),      # h1 state
                pltpu.VMEM((B_pad, H1_pad), jnp.float32),      # c1 state
                pltpu.VMEM((B_pad, Ho_pad), jnp.float32),      # h2 state
                pltpu.VMEM((B_pad, Ho_pad), jnp.float32),      # c2 state
                pltpu.VMEM((rows, 4 * H1_pad), jnp.float32),   # layer-1 x-gates
                pltpu.VMEM((rows, H1_pad), jnp.float32),       # layer-1 h buffer
                pltpu.VMEM((rows, 4 * Ho_pad), jnp.float32),   # layer-2 x-gates
            ],
        ),
        compiler_params=pltpu.CompilerParams(
            dimension_semantics=("arbitrary",),        # sequential recurrence
            vmem_limit_bytes=64 * 1024 * 1024),
    )(x_flat, wih1, whh1, b1, wih2, whh2, b2)

    out_pad = out_flat.reshape(T_pad, B_pad, Ho_pad)
    out = jnp.transpose(out_pad[:T, :B, :Ho], (1, 0, 2))          # (B, T, Ho)
    h_n = out[:, -1, :][None, :, :]                               # (1, B, Ho)
    c_n = cn_pad[:B, :Ho][None, :, :]                             # (1, B, Ho)
    return out, (h_n, c_n)


def init_lstm_params(key, input_size, hidden_size):
    """Deterministic PyTorch-style init: U(-1/sqrt(H), 1/sqrt(H))."""
    k = 1.0 / jnp.sqrt(jnp.float32(hidden_size))
    k1, k2, k3, k4 = jax.random.split(key, 4)
    w_ih = jax.random.uniform(k1, (4 * hidden_size, input_size), jnp.float32, -k, k)
    w_hh = jax.random.uniform(k2, (4 * hidden_size, hidden_size), jnp.float32, -k, k)
    b_ih = jax.random.uniform(k3, (4 * hidden_size,), jnp.float32, -k, k)
    b_hh = jax.random.uniform(k4, (4 * hidden_size,), jnp.float32, -k, k)
    return w_ih, w_hh, b_ih, b_hh


class DecoderPallas:
    """Pallas mirror of the PyTorch Decoder (num_layers=1 per nn.LSTM)."""

    def __init__(self, input_size, hidden_size_1, hidden_size_2, key):
        self.input_size = input_size
        self.hidden_size_1 = hidden_size_1
        self.hidden_size_2 = hidden_size_2
        k1, k2 = jax.random.split(key)
        w_ih1, w_hh1, b_ih1, b_hh1 = init_lstm_params(k1, hidden_size_2, hidden_size_1)
        w_ih2, w_hh2, b_ih2, b_hh2 = init_lstm_params(k2, hidden_size_1, input_size)
        self.params = dict(w_ih1=w_ih1, w_hh1=w_hh1, b_ih1=b_ih1, b_hh1=b_hh1,
                           w_ih2=w_ih2, w_hh2=w_hh2, b_ih2=b_ih2, b_hh2=b_hh2)

    def __call__(self, z):
        return decoder_forward(z, self.params, self.input_size,
                               self.hidden_size_1, self.hidden_size_2)


def _ref_lstm(x, w_ih, w_hh, b_ih, b_hh):
    """Pure-JAX f32 single-layer batch_first LSTM (PyTorch gate order), zero init."""
    B, T, _ = x.shape
    H = w_hh.shape[1]

    def step(carry, x_t):
        h, c = carry
        gates = x_t @ w_ih.T + h @ w_hh.T + b_ih + b_hh
        i, f, g, o = jnp.split(gates, 4, axis=-1)
        i = jax.nn.sigmoid(i)
        f = jax.nn.sigmoid(f)
        g = jnp.tanh(g)
        o = jax.nn.sigmoid(o)
        c = f * c + i * g
        h = o * jnp.tanh(c)
        return (h, c), h

    (h_n, c_n), ys = lax.scan(step,
                              (jnp.zeros((B, H), jnp.float32),
                               jnp.zeros((B, H), jnp.float32)),
                              jnp.transpose(x, (1, 0, 2)))
    return jnp.transpose(ys, (1, 0, 2)), h_n, c_n


if __name__ == "__main__":
    key = jax.random.PRNGKey(0)
    k_param, k_data = jax.random.split(key)

    # Small shapes consistent with the module: z has feature dim hidden_size_2.
    batch, seq = 2, 8
    input_size, hidden_size_1, hidden_size_2 = 16, 32, 8

    decoder = DecoderPallas(input_size, hidden_size_1, hidden_size_2, k_param)
    z = jax.random.normal(k_data, (batch, seq, hidden_size_2), dtype=jnp.float32)

    out, (h_n, c_n) = decoder(z)
    jax.block_until_ready((out, h_n, c_n))

    assert out.shape == (batch, seq, input_size)
    assert h_n.shape == (1, batch, input_size)
    assert c_n.shape == (1, batch, input_size)

    # Numerical check against a pure-JAX f32 reference of the same two-layer LSTM.
    # Tolerance loosened slightly for bf16 MXU operands (state/activations are f32).
    p = decoder.params
    ref1, _, _ = _ref_lstm(z, p["w_ih1"], p["w_hh1"], p["b_ih1"], p["b_hh1"])
    ref2, rh, rc = _ref_lstm(ref1, p["w_ih2"], p["w_hh2"], p["b_ih2"], p["b_hh2"])
    assert jnp.allclose(out, ref2, atol=3e-2, rtol=3e-2), "output mismatch"
    assert jnp.allclose(h_n[0], rh, atol=3e-2, rtol=3e-2), "h_n mismatch"
    assert jnp.allclose(c_n[0], rc, atol=3e-2, rtol=3e-2), "c_n mismatch"

    print("KERNEL_OK")
</pallas_src>

<mosaic_0001>
module attributes {stable_mosaic.version = 11 : i64} {
  func.func @_fused_decoder_kernel(%arg0: i32, %arg1: memref<64x128xbf16, #tpu.memory_space<vmem>>, %arg2: memref<128x512xbf16, #tpu.memory_space<vmem>>, %arg3: memref<128x512xbf16, #tpu.memory_space<vmem>>, %arg4: memref<1x512xf32, #tpu.memory_space<vmem>>, %arg5: memref<128x512xbf16, #tpu.memory_space<vmem>>, %arg6: memref<128x512xbf16, #tpu.memory_space<vmem>>, %arg7: memref<1x512xf32, #tpu.memory_space<vmem>>, %arg8: memref<64x128xf32, #tpu.memory_space<vmem>>, %arg9: memref<8x128xf32, #tpu.memory_space<vmem>>, %arg10: memref<8x128xf32, #tpu.memory_space<vmem>>, %arg11: memref<8x128xf32, #tpu.memory_space<vmem>>, %arg12: memref<8x128xf32, #tpu.memory_space<vmem>>, %arg13: memref<8x128xf32, #tpu.memory_space<vmem>>, %arg14: memref<64x512xf32, #tpu.memory_space<vmem>>, %arg15: memref<64x128xf32, #tpu.memory_space<vmem>>, %arg16: memref<64x512xf32, #tpu.memory_space<vmem>>) attributes {dimension_semantics = [#tpu.dimension_semantics<arbitrary>], iteration_bounds = array<i64: 1>, scalar_prefetch = 0 : i64, scratch_operands = 7 : i64, tpu.core_type = #tpu.core_type<tc>, window_params = [{transform_indices = @transform_0, window_bounds = array<i64: 64, 128>}, {pipeline_mode = #tpu.pipeline_mode<synchronous>, transform_indices = @transform_1, window_bounds = array<i64: 128, 512>}, {pipeline_mode = #tpu.pipeline_mode<synchronous>, transform_indices = @transform_2, window_bounds = array<i64: 128, 512>}, {pipeline_mode = #tpu.pipeline_mode<synchronous>, transform_indices = @transform_3, window_bounds = array<i64: 1, 512>}, {pipeline_mode = #tpu.pipeline_mode<synchronous>, transform_indices = @transform_4, window_bounds = array<i64: 128, 512>}, {pipeline_mode = #tpu.pipeline_mode<synchronous>, transform_indices = @transform_5, window_bounds = array<i64: 128, 512>}, {pipeline_mode = #tpu.pipeline_mode<synchronous>, transform_indices = @transform_6, window_bounds = array<i64: 1, 512>}, {transform_indices = @transform_7, window_bounds = array<i64: 64, 128>}, {pipeline_mode = #tpu.pipeline_mode<synchronous>, transform_indices = @transform_8, window_bounds = array<i64: 8, 128>}]} {
    %c0_i32 = arith.constant 0 : i32
    %0 = arith.cmpi eq, %arg0, %c0_i32 : i32
    %1 = arith.extui %0 : i1 to i32
    %c0_i32_0 = arith.constant 0 : i32
    %2 = arith.cmpi ne, %1, %c0_i32_0 : i32
    scf.if %2 {
      %cst_189 = arith.constant 0.000000e+00 : f32
      %589 = vector.broadcast %cst_189 : f32 to vector<8x128xf32>
      %c0_190 = arith.constant 0 : index
      %c0_191 = arith.constant 0 : index
      %590 = vector.load %arg10[%c0_190, %c0_191] : memref<8x128xf32, #tpu.memory_space<vmem>>, vector<8x128xf32>
      tpu.vector_store %arg10[%c0_190, %c0_191], %589 {strides = array<i32>} : memref<8x128xf32, #tpu.memory_space<vmem>>, vector<8x128xf32>,
      %cst_192 = arith.constant 0.000000e+00 : f32
      %591 = vector.broadcast %cst_192 : f32 to vector<8x128xf32>
      %c0_193 = arith.constant 0 : index
      %c0_194 = arith.constant 0 : index
      %592 = vector.load %arg11[%c0_193, %c0_194] : memref<8x128xf32, #tpu.memory_space<vmem>>, vector<8x128xf32>
      tpu.vector_store %arg11[%c0_193, %c0_194], %591 {strides = array<i32>} : memref<8x128xf32, #tpu.memory_space<vmem>>, vector<8x128xf32>,
      %cst_195 = arith.constant 0.000000e+00 : f32
      %593 = vector.broadcast %cst_195 : f32 to vector<8x128xf32>
      %c0_196 = arith.constant 0 : index
      %c0_197 = arith.constant 0 : index
      %594 = vector.load %arg12[%c0_196, %c0_197] : memref<8x128xf32, #tpu.memory_space<vmem>>, vector<8x128xf32>
      tpu.vector_store %arg12[%c0_196, %c0_197], %593 {strides = array<i32>} : memref<8x128xf32, #tpu.memory_space<vmem>>, vector<8x128xf32>,
      %cst_198 = arith.constant 0.000000e+00 : f32
      %595 = vector.broadcast %cst_198 : f32 to vector<8x128xf32>
      %c0_199 = arith.constant 0 : index
      %c0_200 = arith.constant 0 : index
      %596 = vector.load %arg13[%c0_199, %c0_200] : memref<8x128xf32, #tpu.memory_space<vmem>>, vector<8x128xf32>
      tpu.vector_store %arg13[%c0_199, %c0_200], %595 {strides = array<i32>} : memref<8x128xf32, #tpu.memory_space<vmem>>, vector<8x128xf32>,
      %cst_201 = arith.constant 0.000000e+00 : f32
      %597 = vector.broadcast %cst_201 : f32 to vector<8x128xf32>
      %c0_202 = arith.constant 0 : index
      %c0_203 = arith.constant 0 : index
      %598 = vector.load %arg9[%c0_202, %c0_203] : memref<8x128xf32, #tpu.memory_space<vmem>>, vector<8x128xf32>
      tpu.vector_store %arg9[%c0_202, %c0_203], %597 {strides = array<i32>} : memref<8x128xf32, #tpu.memory_space<vmem>>, vector<8x128xf32>,
    } else {
    }
    %c0 = arith.constant 0 : index
    %c0_1 = arith.constant 0 : index
    %3 = vector.load %arg1[%c0, %c0_1] : memref<64x128xbf16, #tpu.memory_space<vmem>>, vector<64x128xbf16>
    %c0_2 = arith.constant 0 : index
    %c0_3 = arith.constant 0 : index
    %4 = vector.load %arg2[%c0_2, %c0_3] : memref<128x512xbf16, #tpu.memory_space<vmem>>, vector<128x512xbf16>
    %cst = arith.constant dense<0.000000e+00> : vector<64x512xf32>
    %5 = tpu.matmul %3, %4, %cst {dimension_numbers = #tpu.dot_dimension_numbers<[1], [0], [0], [1], [0, 0, 1, 1], [], []>} : vector<64x128xbf16>, vector<128x512xbf16>, vector<64x512xf32> -> vector<64x512xf32>
    %c0_4 = arith.constant 0 : index
    %c0_5 = arith.constant 0 : index
    %6 = vector.load %arg4[%c0_4, %c0_5] : memref<1x512xf32, #tpu.memory_space<vmem>>, vector<1x512xf32>
    %7 = vector.broadcast %6 : vector<1x512xf32> to vector<64x512xf32>
    %8 = arith.addf %5, %7 : vector<64x512xf32>
    %c0_6 = arith.constant 0 : index
    %c0_7 = arith.constant 0 : index
    %9 = vector.load %arg14[%c0_6, %c0_7] : memref<64x512xf32, #tpu.memory_space<vmem>>, vector<64x512xf32>
    tpu.vector_store %arg14[%c0_6, %c0_7], %8 {strides = array<i32>} : memref<64x512xf32, #tpu.memory_space<vmem>>, vector<64x512xf32>,
    %c0_8 = arith.constant 0 : index
    %c0_9 = arith.constant 0 : index
    %10 = vector.load %arg10[%c0_8, %c0_9] : memref<8x128xf32, #tpu.memory_space<vmem>>, vector<8x128xf32>
    %c0_10 = arith.constant 0 : index
    %c0_11 = arith.constant 0 : index
    %11 = vector.load %arg11[%c0_10, %c0_11] : memref<8x128xf32, #tpu.memory_space<vmem>>, vector<8x128xf32>
    %c0_i32_12 = arith.constant 0 : i32
    %c8_i32 = arith.constant 8 : i32
    %12 = arith.muli %c0_i32_12, %c8_i32 : i32
    %13 = tpu.assume_multiple %12, 8 : i32
    %14 = arith.index_cast %13 : i32 to index
    %c0_13 = arith.constant 0 : index
    %15 = vector.load %arg14[%14, %c0_13] : memref<64x512xf32, #tpu.memory_space<vmem>>, vector<8x512xf32>
    %16 = arith.truncf %10 : vector<8x128xf32> to vector<8x128xbf16>
    %c0_14 = arith.constant 0 : index
    %c0_15 = arith.constant 0 : index
    %17 = vector.load %arg3[%c0_14, %c0_15] : memref<128x512xbf16, #tpu.memory_space<vmem>>, vector<128x512xbf16>
    %cst_16 = arith.constant dense<0.000000e+00> : vector<8x512xf32>
    %18 = tpu.matmul %16, %17, %cst_16 {dimension_numbers = #tpu.dot_dimension_numbers<[1], [0], [0], [1], [0, 0, 1, 1], [], []>} : vector<8x128xbf16>, vector<128x512xbf16>, vector<8x512xf32> -> vector<8x512xf32>
    %19 = arith.addf %15, %18 : vector<8x512xf32>
    %20 = vector.extract_strided_slice %19 {offsets = [0, 0], sizes = [8, 128], strides = [1, 1]} : vector<8x512xf32> to vector<8x128xf32>
    %21 = arith.negf %20 : vector<8x128xf32>
    %22 = math.exp %21 : vector<8x128xf32>
    %cst_17 = arith.constant 1.000000e+00 : f32
    %23 = vector.broadcast %cst_17 : f32 to vector<8x128xf32>
    %24 = arith.addf %23, %22 : vector<8x128xf32>
    %25 = arith.divf %23, %24 : vector<8x128xf32>
    %26 = vector.extract_strided_slice %19 {offsets = [0, 128], sizes = [8, 128], strides = [1, 1]} : vector<8x512xf32> to vector<8x128xf32>
    %27 = arith.negf %26 : vector<8x128xf32>
    %28 = math.exp %27 : vector<8x128xf32>
    %cst_18 = arith.constant 1.000000e+00 : f32
    %29 = vector.broadcast %cst_18 : f32 to vector<8x128xf32>
    %30 = arith.addf %29, %28 : vector<8x128xf32>
    %31 = arith.divf %29, %30 : vector<8x128xf32>
    %32 = vector.extract_strided_slice %19 {offsets = [0, 256], sizes = [8, 128], strides = [1, 1]} : vector<8x512xf32> to vector<8x128xf32>
    %33 = math.tanh %32 : vector<8x128xf32>
    %34 = vector.extract_strided_slice %19 {offsets = [0, 384], sizes = [8, 128], strides = [1, 1]} : vector<8x512xf32> to vector<8x128xf32>
    %35 = arith.negf %34 : vector<8x128xf32>
    %36 = math.exp %35 : vector<8x128xf32>
    %cst_19 = arith.constant 1.000000e+00 : f32
    %37 = vector.broadcast %cst_19 : f32 to vector<8x128xf32>
    %38 = arith.addf %37, %36 : vector<8x128xf32>
    %39 = arith.divf %37, %38 : vector<8x128xf32>
    %40 = arith.mulf %31, %11 : vector<8x128xf32>
    %41 = arith.mulf %25, %33 : vector<8x128xf32>
    %42 = arith.addf %40, %41 : vector<8x128xf32>
    %43 = math.tanh %42 : vector<8x128xf32>
    %44 = arith.mulf %39, %43 : vector<8x128xf32>
    %45 = arith.index_cast %13 : i32 to index
    %c0_20 = arith.constant 0 : index
    %46 = vector.load %arg15[%45, %c0_20] : memref<64x128xf32, #tpu.memory_space<vmem>>, vector<8x128xf32>
    tpu.vector_store %arg15[%45, %c0_20], %44 {strides = array<i32>} : memref<64x128xf32, #tpu.memory_space<vmem>>, vector<8x128xf32>,
    %c1_i32 = arith.constant 1 : i32
    %c8_i32_21 = arith.constant 8 : i32
    %47 = arith.muli %c1_i32, %c8_i32_21 : i32
    %48 = tpu.assume_multiple %47, 8 : i32
    %49 = arith.index_cast %48 : i32 to index
    %c0_22 = arith.constant 0 : index
    %50 = vector.load %arg14[%49, %c0_22] : memref<64x512xf32, #tpu.memory_space<vmem>>, vector<8x512xf32>
    %51 = arith.truncf %44 : vector<8x128xf32> to vector<8x128xbf16>
    %c0_23 = arith.constant 0 : index
    %c0_24 = arith.constant 0 : index
    %52 = vector.load %arg3[%c0_23, %c0_24] : memref<128x512xbf16, #tpu.memory_space<vmem>>, vector<128x512xbf16>
    %cst_25 = arith.constant dense<0.000000e+00> : vector<8x512xf32>
    %53 = tpu.matmul %51, %52, %cst_25 {dimension_numbers = #tpu.dot_dimension_numbers<[1], [0], [0], [1], [0, 0, 1, 1], [], []>} : vector<8x128xbf16>, vector<128x512xbf16>, vector<8x512xf32> -> vector<8x512xf32>
    %54 = arith.addf %50, %53 : vector<8x512xf32>
    %55 = vector.extract_strided_slice %54 {offsets = [0, 0], sizes = [8, 128], strides = [1, 1]} : vector<8x512xf32> to vector<8x128xf32>
    %56 = arith.negf %55 : vector<8x128xf32>
    %57 = math.exp %56 : vector<8x128xf32>
    %cst_26 = arith.constant 1.000000e+00 : f32
    %58 = vector.broadcast %cst_26 : f32 to vector<8x128xf32>
    %59 = arith.addf %58, %57 : vector<8x128xf32>
    %60 = arith.divf %58, %59 : vector<8x128xf32>
    %61 = vector.extract_strided_slice %54 {offsets = [0, 128], sizes = [8, 128], strides = [1, 1]} : vector<8x512xf32> to vector<8x128xf32>
    %62 = arith.negf %61 : vector<8x128xf32>
    %63 = math.exp %62 : vector<8x128xf32>
    %cst_27 = arith.constant 1.000000e+00 : f32
    %64 = vector.broadcast %cst_27 : f32 to vector<8x128xf32>
    %65 = arith.addf %64, %63 : vector<8x128xf32>
    %66 = arith.divf %64, %65 : vector<8x128xf32>
    %67 = vector.extract_strided_slice %54 {offsets = [0, 256], sizes = [8, 128], strides = [1, 1]} : vector<8x512xf32> to vector<8x128xf32>
    %68 = math.tanh %67 : vector<8x128xf32>
    %69 = vector.extract_strided_slice %54 {offsets = [0, 384], sizes = [8, 128], strides = [1, 1]} : vector<8x512xf32> to vector<8x128xf32>
    %70 = arith.negf %69 : vector<8x128xf32>
    %71 = math.exp %70 : vector<8x128xf32>
    %cst_28 = arith.constant 1.000000e+00 : f32
    %72 = vector.broadcast %cst_28 : f32 to vector<8x128xf32>
    %73 = arith.addf %72, %71 : vector<8x128xf32>
    %74 = arith.divf %72, %73 : vector<8x128xf32>
    %75 = arith.mulf %66, %42 : vector<8x128xf32>
    %76 = arith.mulf %60, %68 : vector<8x128xf32>
    %77 = arith.addf %75, %76 : vector<8x128xf32>
    %78 = math.tanh %77 : vector<8x128xf32>
    %79 = arith.mulf %74, %78 : vector<8x128xf32>
    %80 = arith.index_cast %48 : i32 to index
    %c0_29 = arith.constant 0 : index
    %81 = vector.load %arg15[%80, %c0_29] : memref<64x128xf32, #tpu.memory_space<vmem>>, vector<8x128xf32>
    tpu.vector_store %arg15[%80, %c0_29], %79 {strides = array<i32>} : memref<64x128xf32, #tpu.memory_space<vmem>>, vector<8x128xf32>,
    %c2_i32 = arith.constant 2 : i32
    %c8_i32_30 = arith.constant 8 : i32
    %82 = arith.muli %c2_i32, %c8_i32_30 : i32
    %83 = tpu.assume_multiple %82, 8 : i32
    %84 = arith.index_cast %83 : i32 to index
    %c0_31 = arith.constant 0 : index
    %85 = vector.load %arg14[%84, %c0_31] : memref<64x512xf32, #tpu.memory_space<vmem>>, vector<8x512xf32>
    %86 = arith.truncf %79 : vector<8x128xf32> to vector<8x128xbf16>
    %c0_32 = arith.constant 0 : index
    %c0_33 = arith.constant 0 : index
    %87 = vector.load %arg3[%c0_32, %c0_33] : memref<128x512xbf16, #tpu.memory_space<vmem>>, vector<128x512xbf16>
    %cst_34 = arith.constant dense<0.000000e+00> : vector<8x512xf32>
    %88 = tpu.matmul %86, %87, %cst_34 {dimension_numbers = #tpu.dot_dimension_numbers<[1], [0], [0], [1], [0, 0, 1, 1], [], []>} : vector<8x128xbf16>, vector<128x512xbf16>, vector<8x512xf32> -> vector<8x512xf32>
    %89 = arith.addf %85, %88 : vector<8x512xf32>
    %90 = vector.extract_strided_slice %89 {offsets = [0, 0], sizes = [8, 128], strides = [1, 1]} : vector<8x512xf32> to vector<8x128xf32>
    %91 = arith.negf %90 : vector<8x128xf32>
    %92 = math.exp %91 : vector<8x128xf32>
    %cst_35 = arith.constant 1.000000e+00 : f32
    %93 = vector.broadcast %cst_35 : f32 to vector<8x128xf32>
    %94 = arith.addf %93, %92 : vector<8x128xf32>
    %95 = arith.divf %93, %94 : vector<8x128xf32>
    %96 = vector.extract_strided_slice %89 {offsets = [0, 128], sizes = [8, 128], strides = [1, 1]} : vector<8x512xf32> to vector<8x128xf32>
    %97 = arith.negf %96 : vector<8x128xf32>
    %98 = math.exp %97 : vector<8x128xf32>
    %cst_36 = arith.constant 1.000000e+00 : f32
    %99 = vector.broadcast %cst_36 : f32 to vector<8x128xf32>
    %100 = arith.addf %99, %98 : vector<8x128xf32>
    %101 = arith.divf %99, %100 : vector<8x128xf32>
    %102 = vector.extract_strided_slice %89 {offsets = [0, 256], sizes = [8, 128], strides = [1, 1]} : vector<8x512xf32> to vector<8x128xf32>
    %103 = math.tanh %102 : vector<8x128xf32>
    %104 = vector.extract_strided_slice %89 {offsets = [0, 384], sizes = [8, 128], strides = [1, 1]} : vector<8x512xf32> to vector<8x128xf32>
    %105 = arith.negf %104 : vector<8x128xf32>
    %106 = math.exp %105 : vector<8x128xf32>
    %cst_37 = arith.constant 1.000000e+00 : f32
    %107 = vector.broadcast %cst_37 : f32 to vector<8x128xf32>
    %108 = arith.addf %107, %106 : vector<8x128xf32>
    %109 = arith.divf %107, %108 : vector<8x128xf32>
    %110 = arith.mulf %101, %77 : vector<8x128xf32>
    %111 = arith.mulf %95, %103 : vector<8x128xf32>
    %112 = arith.addf %110, %111 : vector<8x128xf32>
    %113 = math.tanh %112 : vector<8x128xf32>
    %114 = arith.mulf %109, %113 : vector<8x128xf32>
    %115 = arith.index_cast %83 : i32 to index
    %c0_38 = arith.constant 0 : index
    %116 = vector.load %arg15[%115, %c0_38] : memref<64x128xf32, #tpu.memory_space<vmem>>, vector<8x128xf32>
    tpu.vector_store %arg15[%115, %c0_38], %114 {strides = array<i32>} : memref<64x128xf32, #tpu.memory_space<vmem>>, vector<8x128xf32>,
    %c3_i32 = arith.constant 3 : i32
    %c8_i32_39 = arith.constant 8 : i32
    %117 = arith.muli %c3_i32, %c8_i32_39 : i32
    %118 = tpu.assume_multiple %117, 8 : i32
    %119 = arith.index_cast %118 : i32 to index
    %c0_40 = arith.constant 0 : index
    %120 = vector.load %arg14[%119, %c0_40] : memref<64x512xf32, #tpu.memory_space<vmem>>, vector<8x512xf32>
    %121 = arith.truncf %114 : vector<8x128xf32> to vector<8x128xbf16>
    %c0_41 = arith.constant 0 : index
    %c0_42 = arith.constant 0 : index
    %122 = vector.load %arg3[%c0_41, %c0_42] : memref<128x512xbf16, #tpu.memory_space<vmem>>, vector<128x512xbf16>
    %cst_43 = arith.constant dense<0.000000e+00> : vector<8x512xf32>
    %123 = tpu.matmul %121, %122, %cst_43 {dimension_numbers = #tpu.dot_dimension_numbers<[1], [0], [0], [1], [0, 0, 1, 1], [], []>} : vector<8x128xbf16>, vector<128x512xbf16>, vector<8x512xf32> -> vector<8x512xf32>
    %124 = arith.addf %120, %123 : vector<8x512xf32>
    %125 = vector.extract_strided_slice %124 {offsets = [0, 0], sizes = [8, 128], strides = [1, 1]} : vector<8x512xf32> to vector<8x128xf32>
    %126 = arith.negf %125 : vector<8x128xf32>
    %127 = math.exp %126 : vector<8x128xf32>
    %cst_44 = arith.constant 1.000000e+00 : f32
    %128 = vector.broadcast %cst_44 : f32 to vector<8x128xf32>
    %129 = arith.addf %128, %127 : vector<8x128xf32>
    %130 = arith.divf %128, %129 : vector<8x128xf32>
    %131 = vector.extract_strided_slice %124 {offsets = [0, 128], sizes = [8, 128], strides = [1, 1]} : vector<8x512xf32> to vector<8x128xf32>
    %132 = arith.negf %131 : vector<8x128xf32>
    %133 = math.exp %132 : vector<8x128xf32>
    %cst_45 = arith.constant 1.000000e+00 : f32
    %134 = vector.broadcast %cst_45 : f32 to vector<8x128xf32>
    %135 = arith.addf %134, %133 : vector<8x128xf32>
    %136 = arith.divf %134, %135 : vector<8x128xf32>
    %137 = vector.extract_strided_slice %124 {offsets = [0, 256], sizes = [8, 128], strides = [1, 1]} : vector<8x512xf32> to vector<8x128xf32>
    %138 = math.tanh %137 : vector<8x128xf32>
    %139 = vector.extract_strided_slice %124 {offsets = [0, 384], sizes = [8, 128], strides = [1, 1]} : vector<8x512xf32> to vector<8x128xf32>
    %140 = arith.negf %139 : vector<8x128xf32>
    %141 = math.exp %140 : vector<8x128xf32>
    %cst_46 = arith.constant 1.000000e+00 : f32
    %142 = vector.broadcast %cst_46 : f32 to vector<8x128xf32>
    %143 = arith.addf %142, %141 : vector<8x128xf32>
    %144 = arith.divf %142, %143 : vector<8x128xf32>
    %145 = arith.mulf %136, %112 : vector<8x128xf32>
    %146 = arith.mulf %130, %138 : vector<8x128xf32>
    %147 = arith.addf %145, %146 : vector<8x128xf32>
    %148 = math.tanh %147 : vector<8x128xf32>
    %149 = arith.mulf %144, %148 : vector<8x128xf32>
    %150 = arith.index_cast %118 : i32 to index
    %c0_47 = arith.constant 0 : index
    %151 = vector.load %arg15[%150, %c0_47] : memref<64x128xf32, #tpu.memory_space<vmem>>, vector<8x128xf32>
    tpu.vector_store %arg15[%150, %c0_47], %149 {strides = array<i32>} : memref<64x128xf32, #tpu.memory_space<vmem>>, vector<8x128xf32>,
    %c4_i32 = arith.constant 4 : i32
    %c8_i32_48 = arith.constant 8 : i32
    %152 = arith.muli %c4_i32, %c8_i32_48 : i32
    %153 = tpu.assume_multiple %152, 8 : i32
    %154 = arith.index_cast %153 : i32 to index
    %c0_49 = arith.constant 0 : index
    %155 = vector.load %arg14[%154, %c0_49] : memref<64x512xf32, #tpu.memory_space<vmem>>, vector<8x512xf32>
    %156 = arith.truncf %149 : vector<8x128xf32> to vector<8x128xbf16>
    %c0_50 = arith.constant 0 : index
    %c0_51 = arith.constant 0 : index
    %157 = vector.load %arg3[%c0_50, %c0_51] : memref<128x512xbf16, #tpu.memory_space<vmem>>, vector<128x512xbf16>
    %cst_52 = arith.constant dense<0.000000e+00> : vector<8x512xf32>
    %158 = tpu.matmul %156, %157, %cst_52 {dimension_numbers = #tpu.dot_dimension_numbers<[1], [0], [0], [1], [0, 0, 1, 1], [], []>} : vector<8x128xbf16>, vector<128x512xbf16>, vector<8x512xf32> -> vector<8x512xf32>
    %159 = arith.addf %155, %158 : vector<8x512xf32>
    %160 = vector.extract_strided_slice %159 {offsets = [0, 0], sizes = [8, 128], strides = [1, 1]} : vector<8x512xf32> to vector<8x128xf32>
    %161 = arith.negf %160 : vector<8x128xf32>
    %162 = math.exp %161 : vector<8x128xf32>
    %cst_53 = arith.constant 1.000000e+00 : f32
    %163 = vector.broadcast %cst_53 : f32 to vector<8x128xf32>
    %164 = arith.addf %163, %162 : vector<8x128xf32>
    %165 = arith.divf %163, %164 : vector<8x128xf32>
    %166 = vector.extract_strided_slice %159 {offsets = [0, 128], sizes = [8, 128], strides = [1, 1]} : vector<8x512xf32> to vector<8x128xf32>
    %167 = arith.negf %166 : vector<8x128xf32>
    %168 = math.exp %167 : vector<8x128xf32>
    %cst_54 = arith.constant 1.000000e+00 : f32
    %169 = vector.broadcast %cst_54 : f32 to vector<8x128xf32>
    %170 = arith.addf %169, %168 : vector<8x128xf32>
    %171 = arith.divf %169, %170 : vector<8x128xf32>
    %172 = vector.extract_strided_slice %159 {offsets = [0, 256], sizes = [8, 128], strides = [1, 1]} : vector<8x512xf32> to vector<8x128xf32>
    %173 = math.tanh %172 : vector<8x128xf32>
    %174 = vector.extract_strided_slice %159 {offsets = [0, 384], sizes = [8, 128], strides = [1, 1]} : vector<8x512xf32> to vector<8x128xf32>
    %175 = arith.negf %174 : vector<8x128xf32>
    %176 = math.exp %175 : vector<8x128xf32>
    %cst_55 = arith.constant 1.000000e+00 : f32
    %177 = vector.broadcast %cst_55 : f32 to vector<8x128xf32>
    %178 = arith.addf %177, %176 : vector<8x128xf32>
    %179 = arith.divf %177, %178 : vector<8x128xf32>
    %180 = arith.mulf %171, %147 : vector<8x128xf32>
    %181 = arith.mulf %165, %173 : vector<8x128xf32>
    %182 = arith.addf %180, %181 : vector<8x128xf32>
    %183 = math.tanh %182 : vector<8x128xf32>
    %184 = arith.mulf %179, %183 : vector<8x128xf32>
    %185 = arith.index_cast %153 : i32 to index
    %c0_56 = arith.constant 0 : index
    %186 = vector.load %arg15[%185, %c0_56] : memref<64x128xf32, #tpu.memory_space<vmem>>, vector<8x128xf32>
    tpu.vector_store %arg15[%185, %c0_56], %184 {strides = array<i32>} : memref<64x128xf32, #tpu.memory_space<vmem>>, vector<8x128xf32>,
    %c5_i32 = arith.constant 5 : i32
    %c8_i32_57 = arith.constant 8 : i32
    %187 = arith.muli %c5_i32, %c8_i32_57 : i32
    %188 = tpu.assume_multiple %187, 8 : i32
    %189 = arith.index_cast %188 : i32 to index
    %c0_58 = arith.constant 0 : index
    %190 = vector.load %arg14[%189, %c0_58] : memref<64x512xf32, #tpu.memory_space<vmem>>, vector<8x512xf32>
    %191 = arith.truncf %184 : vector<8x128xf32> to vector<8x128xbf16>
    %c0_59 = arith.constant 0 : index
    %c0_60 = arith.constant 0 : index
    %192 = vector.load %arg3[%c0_59, %c0_60] : memref<128x512xbf16, #tpu.memory_space<vmem>>, vector<128x512xbf16>
    %cst_61 = arith.constant dense<0.000000e+00> : vector<8x512xf32>
    %193 = tpu.matmul %191, %192, %cst_61 {dimension_numbers = #tpu.dot_dimension_numbers<[1], [0], [0], [1], [0, 0, 1, 1], [], []>} : vector<8x128xbf16>, vector<128x512xbf16>, vector<8x512xf32> -> vector<8x512xf32>
    %194 = arith.addf %190, %193 : vector<8x512xf32>
    %195 = vector.extract_strided_slice %194 {offsets = [0, 0], sizes = [8, 128], strides = [1, 1]} : vector<8x512xf32> to vector<8x128xf32>
    %196 = arith.negf %195 : vector<8x128xf32>
    %197 = math.exp %196 : vector<8x128xf32>
    %cst_62 = arith.constant 1.000000e+00 : f32
    %198 = vector.broadcast %cst_62 : f32 to vector<8x128xf32>
    %199 = arith.addf %198, %197 : vector<8x128xf32>
    %200 = arith.divf %198, %199 : vector<8x128xf32>
    %201 = vector.extract_strided_slice %194 {offsets = [0, 128], sizes = [8, 128], strides = [1, 1]} : vector<8x512xf32> to vector<8x128xf32>
    %202 = arith.negf %201 : vector<8x128xf32>
    %203 = math.exp %202 : vector<8x128xf32>
    %cst_63 = arith.constant 1.000000e+00 : f32
    %204 = vector.broadcast %cst_63 : f32 to vector<8x128xf32>
    %205 = arith.addf %204, %203 : vector<8x128xf32>
    %206 = arith.divf %204, %205 : vector<8x128xf32>
    %207 = vector.extract_strided_slice %194 {offsets = [0, 256], sizes = [8, 128], strides = [1, 1]} : vector<8x512xf32> to vector<8x128xf32>
    %208 = math.tanh %207 : vector<8x128xf32>
    %209 = vector.extract_strided_slice %194 {offsets = [0, 384], sizes = [8, 128], strides = [1, 1]} : vector<8x512xf32> to vector<8x128xf32>
    %210 = arith.negf %209 : vector<8x128xf32>
    %211 = math.exp %210 : vector<8x128xf32>
    %cst_64 = arith.constant 1.000000e+00 : f32
    %212 = vector.broadcast %cst_64 : f32 to vector<8x128xf32>
    %213 = arith.addf %212, %211 : vector<8x128xf32>
    %214 = arith.divf %212, %213 : vector<8x128xf32>
    %215 = arith.mulf %206, %182 : vector<8x128xf32>
    %216 = arith.mulf %200, %208 : vector<8x128xf32>
    %217 = arith.addf %215, %216 : vector<8x128xf32>
    %218 = math.tanh %217 : vector<8x128xf32>
    %219 = arith.mulf %214, %218 : vector<8x128xf32>
    %220 = arith.index_cast %188 : i32 to index
    %c0_65 = arith.constant 0 : index
    %221 = vector.load %arg15[%220, %c0_65] : memref<64x128xf32, #tpu.memory_space<vmem>>, vector<8x128xf32>
    tpu.vector_store %arg15[%220, %c0_65], %219 {strides = array<i32>} : memref<64x128xf32, #tpu.memory_space<vmem>>, vector<8x128xf32>,
    %c6_i32 = arith.constant 6 : i32
    %c8_i32_66 = arith.constant 8 : i32
    %222 = arith.muli %c6_i32, %c8_i32_66 : i32
    %223 = tpu.assume_multiple %222, 8 : i32
    %224 = arith.index_cast %223 : i32 to index
    %c0_67 = arith.constant 0 : index
    %225 = vector.load %arg14[%224, %c0_67] : memref<64x512xf32, #tpu.memory_space<vmem>>, vector<8x512xf32>
    %226 = arith.truncf %219 : vector<8x128xf32> to vector<8x128xbf16>
    %c0_68 = arith.constant 0 : index
    %c0_69 = arith.constant 0 : index
    %227 = vector.load %arg3[%c0_68, %c0_69] : memref<128x512xbf16, #tpu.memory_space<vmem>>, vector<128x512xbf16>
    %cst_70 = arith.constant dense<0.000000e+00> : vector<8x512xf32>
    %228 = tpu.matmul %226, %227, %cst_70 {dimension_numbers = #tpu.dot_dimension_numbers<[1], [0], [0], [1], [0, 0, 1, 1], [], []>} : vector<8x128xbf16>, vector<128x512xbf16>, vector<8x512xf32> -> vector<8x512xf32>
    %229 = arith.addf %225, %228 : vector<8x512xf32>
    %230 = vector.extract_strided_slice %229 {offsets = [0, 0], sizes = [8, 128], strides = [1, 1]} : vector<8x512xf32> to vector<8x128xf32>
    %231 = arith.negf %230 : vector<8x128xf32>
    %232 = math.exp %231 : vector<8x128xf32>
    %cst_71 = arith.constant 1.000000e+00 : f32
    %233 = vector.broadcast %cst_71 : f32 to vector<8x128xf32>
    %234 = arith.addf %233, %232 : vector<8x128xf32>
    %235 = arith.divf %233, %234 : vector<8x128xf32>
    %236 = vector.extract_strided_slice %229 {offsets = [0, 128], sizes = [8, 128], strides = [1, 1]} : vector<8x512xf32> to vector<8x128xf32>
    %237 = arith.negf %236 : vector<8x128xf32>
    %238 = math.exp %237 : vector<8x128xf32>
    %cst_72 = arith.constant 1.000000e+00 : f32
    %239 = vector.broadcast %cst_72 : f32 to vector<8x128xf32>
    %240 = arith.addf %239, %238 : vector<8x128xf32>
    %241 = arith.divf %239, %240 : vector<8x128xf32>
    %242 = vector.extract_strided_slice %229 {offsets = [0, 256], sizes = [8, 128], strides = [1, 1]} : vector<8x512xf32> to vector<8x128xf32>
    %243 = math.tanh %242 : vector<8x128xf32>
    %244 = vector.extract_strided_slice %229 {offsets = [0, 384], sizes = [8, 128], strides = [1, 1]} : vector<8x512xf32> to vector<8x128xf32>
    %245 = arith.negf %244 : vector<8x128xf32>
    %246 = math.exp %245 : vector<8x128xf32>
    %cst_73 = arith.constant 1.000000e+00 : f32
    %247 = vector.broadcast %cst_73 : f32 to vector<8x128xf32>
    %248 = arith.addf %247, %246 : vector<8x128xf32>
    %249 = arith.divf %247, %248 : vector<8x128xf32>
    %250 = arith.mulf %241, %217 : vector<8x128xf32>
    %251 = arith.mulf %235, %243 : vector<8x128xf32>
    %252 = arith.addf %250, %251 : vector<8x128xf32>
    %253 = math.tanh %252 : vector<8x128xf32>
    %254 = arith.mulf %249, %253 : vector<8x128xf32>
    %255 = arith.index_cast %223 : i32 to index
    %c0_74 = arith.constant 0 : index
    %256 = vector.load %arg15[%255, %c0_74] : memref<64x128xf32, #tpu.memory_space<vmem>>, vector<8x128xf32>
    tpu.vector_store %arg15[%255, %c0_74], %254 {strides = array<i32>} : memref<64x128xf32, #tpu.memory_space<vmem>>, vector<8x128xf32>,
    %c7_i32 = arith.constant 7 : i32
    %c8_i32_75 = arith.constant 8 : i32
    %257 = arith.muli %c7_i32, %c8_i32_75 : i32
    %258 = tpu.assume_multiple %257, 8 : i32
    %259 = arith.index_cast %258 : i32 to index
    %c0_76 = arith.constant 0 : index
    %260 = vector.load %arg14[%259, %c0_76] : memref<64x512xf32, #tpu.memory_space<vmem>>, vector<8x512xf32>
    %261 = arith.truncf %254 : vector<8x128xf32> to vector<8x128xbf16>
    %c0_77 = arith.constant 0 : index
    %c0_78 = arith.constant 0 : index
    %262 = vector.load %arg3[%c0_77, %c0_78] : memref<128x512xbf16, #tpu.memory_space<vmem>>, vector<128x512xbf16>
    %cst_79 = arith.constant dense<0.000000e+00> : vector<8x512xf32>
    %263 = tpu.matmul %261, %262, %cst_79 {dimension_numbers = #tpu.dot_dimension_numbers<[1], [0], [0], [1], [0, 0, 1, 1], [], []>} : vector<8x128xbf16>, vector<128x512xbf16>, vector<8x512xf32> -> vector<8x512xf32>
    %264 = arith.addf %260, %263 : vector<8x512xf32>
    %265 = vector.extract_strided_slice %264 {offsets = [0, 0], sizes = [8, 128], strides = [1, 1]} : vector<8x512xf32> to vector<8x128xf32>
    %266 = arith.negf %265 : vector<8x128xf32>
    %267 = math.exp %266 : vector<8x128xf32>
    %cst_80 = arith.constant 1.000000e+00 : f32
    %268 = vector.broadcast %cst_80 : f32 to vector<8x128xf32>
    %269 = arith.addf %268, %267 : vector<8x128xf32>
    %270 = arith.divf %268, %269 : vector<8x128xf32>
    %271 = vector.extract_strided_slice %264 {offsets = [0, 128], sizes = [8, 128], strides = [1, 1]} : vector<8x512xf32> to vector<8x128xf32>
    %272 = arith.negf %271 : vector<8x128xf32>
    %273 = math.exp %272 : vector<8x128xf32>
    %cst_81 = arith.constant 1.000000e+00 : f32
    %274 = vector.broadcast %cst_81 : f32 to vector<8x128xf32>
    %275 = arith.addf %274, %273 : vector<8x128xf32>
    %276 = arith.divf %274, %275 : vector<8x128xf32>
    %277 = vector.extract_strided_slice %264 {offsets = [0, 256], sizes = [8, 128], strides = [1, 1]} : vector<8x512xf32> to vector<8x128xf32>
    %278 = math.tanh %277 : vector<8x128xf32>
    %279 = vector.extract_strided_slice %264 {offsets = [0, 384], sizes = [8, 128], strides = [1, 1]} : vector<8x512xf32> to vector<8x128xf32>
    %280 = arith.negf %279 : vector<8x128xf32>
    %281 = math.exp %280 : vector<8x128xf32>
    %cst_82 = arith.constant 1.000000e+00 : f32
    %282 = vector.broadcast %cst_82 : f32 to vector<8x128xf32>
    %283 = arith.addf %282, %281 : vector<8x128xf32>
    %284 = arith.divf %282, %283 : vector<8x128xf32>
    %285 = arith.mulf %276, %252 : vector<8x128xf32>
    %286 = arith.mulf %270, %278 : vector<8x128xf32>
    %287 = arith.addf %285, %286 : vector<8x128xf32>
    %288 = math.tanh %287 : vector<8x128xf32>
    %289 = arith.mulf %284, %288 : vector<8x128xf32>
    %290 = arith.index_cast %258 : i32 to index
    %c0_83 = arith.constant 0 : index
    %291 = vector.load %arg15[%290, %c0_83] : memref<64x128xf32, #tpu.memory_space<vmem>>, vector<8x128xf32>
    tpu.vector_store %arg15[%290, %c0_83], %289 {strides = array<i32>} : memref<64x128xf32, #tpu.memory_space<vmem>>, vector<8x128xf32>,
    %c8_i32_84 = arith.constant 8 : i32
    %c0_85 = arith.constant 0 : index
    %c0_86 = arith.constant 0 : index
    %292 = vector.load %arg10[%c0_85, %c0_86] : memref<8x128xf32, #tpu.memory_space<vmem>>, vector<8x128xf32>
    tpu.vector_store %arg10[%c0_85, %c0_86], %289 {strides = array<i32>} : memref<8x128xf32, #tpu.memory_space<vmem>>, vector<8x128xf32>,
    %c0_87 = arith.constant 0 : index
    %c0_88 = arith.constant 0 : index
    %293 = vector.load %arg11[%c0_87, %c0_88] : memref<8x128xf32, #tpu.memory_space<vmem>>, vector<8x128xf32>
    tpu.vector_store %arg11[%c0_87, %c0_88], %287 {strides = array<i32>} : memref<8x128xf32, #tpu.memory_space<vmem>>, vector<8x128xf32>,
    %c0_89 = arith.constant 0 : index
    %c0_90 = arith.constant 0 : index
    %294 = vector.load %arg15[%c0_89, %c0_90] : memref<64x128xf32, #tpu.memory_space<vmem>>, vector<64x128xf32>
    %295 = arith.truncf %294 : vector<64x128xf32> to vector<64x128xbf16>
    %c0_91 = arith.constant 0 : index
    %c0_92 = arith.constant 0 : index
    %296 = vector.load %arg5[%c0_91, %c0_92] : memref<128x512xbf16, #tpu.memory_space<vmem>>, vector<128x512xbf16>
    %cst_93 = arith.constant dense<0.000000e+00> : vector<64x512xf32>
    %297 = tpu.matmul %295, %296, %cst_93 {dimension_numbers = #tpu.dot_dimension_numbers<[1], [0], [0], [1], [0, 0, 1, 1], [], []>} : vector<64x128xbf16>, vector<128x512xbf16>, vector<64x512xf32> -> vector<64x512xf32>
    %c0_94 = arith.constant 0 : index
    %c0_95 = arith.constant 0 : index
    %298 = vector.load %arg7[%c0_94, %c0_95] : memref<1x512xf32, #tpu.memory_space<vmem>>, vector<1x512xf32>
    %299 = vector.broadcast %298 : vector<1x512xf32> to vector<64x512xf32>
    %300 = arith.addf %297, %299 : vector<64x512xf32>
    %c0_96 = arith.constant 0 : index
    %c0_97 = arith.constant 0 : index
    %301 = vector.load %arg16[%c0_96, %c0_97] : memref<64x512xf32, #tpu.memory_space<vmem>>, vector<64x512xf32>
    tpu.vector_store %arg16[%c0_96, %c0_97], %300 {strides = array<i32>} : memref<64x512xf32, #tpu.memory_space<vmem>>, vector<64x512xf32>,
    %c0_98 = arith.constant 0 : index
    %c0_99 = arith.constant 0 : index
    %302 = vector.load %arg12[%c0_98, %c0_99] : memref<8x128xf32, #tpu.memory_space<vmem>>, vector<8x128xf32>
    %c0_100 = arith.constant 0 : index
    %c0_101 = arith.constant 0 : index
    %303 = vector.load %arg13[%c0_100, %c0_101] : memref<8x128xf32, #tpu.memory_space<vmem>>, vector<8x128xf32>
    %c0_i32_102 = arith.constant 0 : i32
    %c8_i32_103 = arith.constant 8 : i32
    %304 = arith.muli %c0_i32_102, %c8_i32_103 : i32
    %305 = tpu.assume_multiple %304, 8 : i32
    %306 = arith.index_cast %305 : i32 to index
    %c0_104 = arith.constant 0 : index
    %307 = vector.load %arg16[%306, %c0_104] : memref<64x512xf32, #tpu.memory_space<vmem>>, vector<8x512xf32>
    %308 = arith.truncf %302 : vector<8x128xf32> to vector<8x128xbf16>
    %c0_105 = arith.constant 0 : index
    %c0_106 = arith.constant 0 : index
    %309 = vector.load %arg6[%c0_105, %c0_106] : memref<128x512xbf16, #tpu.memory_space<vmem>>, vector<128x512xbf16>
    %cst_107 = arith.constant dense<0.000000e+00> : vector<8x512xf32>
    %310 = tpu.matmul %308, %309, %cst_107 {dimension_numbers = #tpu.dot_dimension_numbers<[1], [0], [0], [1], [0, 0, 1, 1], [], []>} : vector<8x128xbf16>, vector<128x512xbf16>, vector<8x512xf32> -> vector<8x512xf32>
    %311 = arith.addf %307, %310 : vector<8x512xf32>
    %312 = vector.extract_strided_slice %311 {offsets = [0, 0], sizes = [8, 128], strides = [1, 1]} : vector<8x512xf32> to vector<8x128xf32>
    %313 = arith.negf %312 : vector<8x128xf32>
    %314 = math.exp %313 : vector<8x128xf32>
    %cst_108 = arith.constant 1.000000e+00 : f32
    %315 = vector.broadcast %cst_108 : f32 to vector<8x128xf32>
    %316 = arith.addf %315, %314 : vector<8x128xf32>
    %317 = arith.divf %315, %316 : vector<8x128xf32>
    %318 = vector.extract_strided_slice %311 {offsets = [0, 128], sizes = [8, 128], strides = [1, 1]} : vector<8x512xf32> to vector<8x128xf32>
    %319 = arith.negf %318 : vector<8x128xf32>
    %320 = math.exp %319 : vector<8x128xf32>
    %cst_109 = arith.constant 1.000000e+00 : f32
    %321 = vector.broadcast %cst_109 : f32 to vector<8x128xf32>
    %322 = arith.addf %321, %320 : vector<8x128xf32>
    %323 = arith.divf %321, %322 : vector<8x128xf32>
    %324 = vector.extract_strided_slice %311 {offsets = [0, 256], sizes = [8, 128], strides = [1, 1]} : vector<8x512xf32> to vector<8x128xf32>
    %325 = math.tanh %324 : vector<8x128xf32>
    %326 = vector.extract_strided_slice %311 {offsets = [0, 384], sizes = [8, 128], strides = [1, 1]} : vector<8x512xf32> to vector<8x128xf32>
    %327 = arith.negf %326 : vector<8x128xf32>
    %328 = math.exp %327 : vector<8x128xf32>
    %cst_110 = arith.constant 1.000000e+00 : f32
    %329 = vector.broadcast %cst_110 : f32 to vector<8x128xf32>
    %330 = arith.addf %329, %328 : vector<8x128xf32>
    %331 = arith.divf %329, %330 : vector<8x128xf32>
    %332 = arith.mulf %323, %303 : vector<8x128xf32>
    %333 = arith.mulf %317, %325 : vector<8x128xf32>
    %334 = arith.addf %332, %333 : vector<8x128xf32>
    %335 = math.tanh %334 : vector<8x128xf32>
    %336 = arith.mulf %331, %335 : vector<8x128xf32>
    %337 = arith.index_cast %305 : i32 to index
    %c0_111 = arith.constant 0 : index
    %338 = vector.load %arg8[%337, %c0_111] : memref<64x128xf32, #tpu.memory_space<vmem>>, vector<8x128xf32>
    tpu.vector_store %arg8[%337, %c0_111], %336 {strides = array<i32>} : memref<64x128xf32, #tpu.memory_space<vmem>>, vector<8x128xf32>,
    %c1_i32_112 = arith.constant 1 : i32
    %c8_i32_113 = arith.constant 8 : i32
    %339 = arith.muli %c1_i32_112, %c8_i32_113 : i32
    %340 = tpu.assume_multiple %339, 8 : i32
    %341 = arith.index_cast %340 : i32 to index
    %c0_114 = arith.constant 0 : index
    %342 = vector.load %arg16[%341, %c0_114] : memref<64x512xf32, #tpu.memory_space<vmem>>, vector<8x512xf32>
    %343 = arith.truncf %336 : vector<8x128xf32> to vector<8x128xbf16>
    %c0_115 = arith.constant 0 : index
    %c0_116 = arith.constant 0 : index
    %344 = vector.load %arg6[%c0_115, %c0_116] : memref<128x512xbf16, #tpu.memory_space<vmem>>, vector<128x512xbf16>
    %cst_117 = arith.constant dense<0.000000e+00> : vector<8x512xf32>
    %345 = tpu.matmul %343, %344, %cst_117 {dimension_numbers = #tpu.dot_dimension_numbers<[1], [0], [0], [1], [0, 0, 1, 1], [], []>} : vector<8x128xbf16>, vector<128x512xbf16>, vector<8x512xf32> -> vector<8x512xf32>
    %346 = arith.addf %342, %345 : vector<8x512xf32>
    %347 = vector.extract_strided_slice %346 {offsets = [0, 0], sizes = [8, 128], strides = [1, 1]} : vector<8x512xf32> to vector<8x128xf32>
    %348 = arith.negf %347 : vector<8x128xf32>
    %349 = math.exp %348 : vector<8x128xf32>
    %cst_118 = arith.constant 1.000000e+00 : f32
    %350 = vector.broadcast %cst_118 : f32 to vector<8x128xf32>
    %351 = arith.addf %350, %349 : vector<8x128xf32>
    %352 = arith.divf %350, %351 : vector<8x128xf32>
    %353 = vector.extract_strided_slice %346 {offsets = [0, 128], sizes = [8, 128], strides = [1, 1]} : vector<8x512xf32> to vector<8x128xf32>
    %354 = arith.negf %353 : vector<8x128xf32>
    %355 = math.exp %354 : vector<8x128xf32>
    %cst_119 = arith.constant 1.000000e+00 : f32
    %356 = vector.broadcast %cst_119 : f32 to vector<8x128xf32>
    %357 = arith.addf %356, %355 : vector<8x128xf32>
    %358 = arith.divf %356, %357 : vector<8x128xf32>
    %359 = vector.extract_strided_slice %346 {offsets = [0, 256], sizes = [8, 128], strides = [1, 1]} : vector<8x512xf32> to vector<8x128xf32>
    %360 = math.tanh %359 : vector<8x128xf32>
    %361 = vector.extract_strided_slice %346 {offsets = [0, 384], sizes = [8, 128], strides = [1, 1]} : vector<8x512xf32> to vector<8x128xf32>
    %362 = arith.negf %361 : vector<8x128xf32>
    %363 = math.exp %362 : vector<8x128xf32>
    %cst_120 = arith.constant 1.000000e+00 : f32
    %364 = vector.broadcast %cst_120 : f32 to vector<8x128xf32>
    %365 = arith.addf %364, %363 : vector<8x128xf32>
    %366 = arith.divf %364, %365 : vector<8x128xf32>
    %367 = arith.mulf %358, %334 : vector<8x128xf32>
    %368 = arith.mulf %352, %360 : vector<8x128xf32>
    %369 = arith.addf %367, %368 : vector<8x128xf32>
    %370 = math.tanh %369 : vector<8x128xf32>
    %371 = arith.mulf %366, %370 : vector<8x128xf32>
    %372 = arith.index_cast %340 : i32 to index
    %c0_121 = arith.constant 0 : index
    %373 = vector.load %arg8[%372, %c0_121] : memref<64x128xf32, #tpu.memory_space<vmem>>, vector<8x128xf32>
    tpu.vector_store %arg8[%372, %c0_121], %371 {strides = array<i32>} : memref<64x128xf32, #tpu.memory_space<vmem>>, vector<8x128xf32>,
    %c2_i32_122 = arith.constant 2 : i32
    %c8_i32_123 = arith.constant 8 : i32
    %374 = arith.muli %c2_i32_122, %c8_i32_123 : i32
    %375 = tpu.assume_multiple %374, 8 : i32
    %376 = arith.index_cast %375 : i32 to index
    %c0_124 = arith.constant 0 : index
    %377 = vector.load %arg16[%376, %c0_124] : memref<64x512xf32, #tpu.memory_space<vmem>>, vector<8x512xf32>
    %378 = arith.truncf %371 : vector<8x128xf32> to vector<8x128xbf16>
    %c0_125 = arith.constant 0 : index
    %c0_126 = arith.constant 0 : index
    %379 = vector.load %arg6[%c0_125, %c0_126] : memref<128x512xbf16, #tpu.memory_space<vmem>>, vector<128x512xbf16>
    %cst_127 = arith.constant dense<0.000000e+00> : vector<8x512xf32>
    %380 = tpu.matmul %378, %379, %cst_127 {dimension_numbers = #tpu.dot_dimension_numbers<[1], [0], [0], [1], [0, 0, 1, 1], [], []>} : vector<8x128xbf16>, vector<128x512xbf16>, vector<8x512xf32> -> vector<8x512xf32>
    %381 = arith.addf %377, %380 : vector<8x512xf32>
    %382 = vector.extract_strided_slice %381 {offsets = [0, 0], sizes = [8, 128], strides = [1, 1]} : vector<8x512xf32> to vector<8x128xf32>
    %383 = arith.negf %382 : vector<8x128xf32>
    %384 = math.exp %383 : vector<8x128xf32>
    %cst_128 = arith.constant 1.000000e+00 : f32
    %385 = vector.broadcast %cst_128 : f32 to vector<8x128xf32>
    %386 = arith.addf %385, %384 : vector<8x128xf32>
    %387 = arith.divf %385, %386 : vector<8x128xf32>
    %388 = vector.extract_strided_slice %381 {offsets = [0, 128], sizes = [8, 128], strides = [1, 1]} : vector<8x512xf32> to vector<8x128xf32>
    %389 = arith.negf %388 : vector<8x128xf32>
    %390 = math.exp %389 : vector<8x128xf32>
    %cst_129 = arith.constant 1.000000e+00 : f32
    %391 = vector.broadcast %cst_129 : f32 to vector<8x128xf32>
    %392 = arith.addf %391, %390 : vector<8x128xf32>
    %393 = arith.divf %391, %392 : vector<8x128xf32>
    %394 = vector.extract_strided_slice %381 {offsets = [0, 256], sizes = [8, 128], strides = [1, 1]} : vector<8x512xf32> to vector<8x128xf32>
    %395 = math.tanh %394 : vector<8x128xf32>
    %396 = vector.extract_strided_slice %381 {offsets = [0, 384], sizes = [8, 128], strides = [1, 1]} : vector<8x512xf32> to vector<8x128xf32>
    %397 = arith.negf %396 : vector<8x128xf32>
    %398 = math.exp %397 : vector<8x128xf32>
    %cst_130 = arith.constant 1.000000e+00 : f32
    %399 = vector.broadcast %cst_130 : f32 to vector<8x128xf32>
    %400 = arith.addf %399, %398 : vector<8x128xf32>
    %401 = arith.divf %399, %400 : vector<8x128xf32>
    %402 = arith.mulf %393, %369 : vector<8x128xf32>
    %403 = arith.mulf %387, %395 : vector<8x128xf32>
    %404 = arith.addf %402, %403 : vector<8x128xf32>
    %405 = math.tanh %404 : vector<8x128xf32>
    %406 = arith.mulf %401, %405 : vector<8x128xf32>
    %407 = arith.index_cast %375 : i32 to index
    %c0_131 = arith.constant 0 : index
    %408 = vector.load %arg8[%407, %c0_131] : memref<64x128xf32, #tpu.memory_space<vmem>>, vector<8x128xf32>
    tpu.vector_store %arg8[%407, %c0_131], %406 {strides = array<i32>} : memref<64x128xf32, #tpu.memory_space<vmem>>, vector<8x128xf32>,
    %c3_i32_132 = arith.constant 3 : i32
    %c8_i32_133 = arith.constant 8 : i32
    %409 = arith.muli %c3_i32_132, %c8_i32_133 : i32
    %410 = tpu.assume_multiple %409, 8 : i32
    %411 = arith.index_cast %410 : i32 to index
    %c0_134 = arith.constant 0 : index
    %412 = vector.load %arg16[%411, %c0_134] : memref<64x512xf32, #tpu.memory_space<vmem>>, vector<8x512xf32>
    %413 = arith.truncf %406 : vector<8x128xf32> to vector<8x128xbf16>
    %c0_135 = arith.constant 0 : index
    %c0_136 = arith.constant 0 : index
    %414 = vector.load %arg6[%c0_135, %c0_136] : memref<128x512xbf16, #tpu.memory_space<vmem>>, vector<128x512xbf16>
    %cst_137 = arith.constant dense<0.000000e+00> : vector<8x512xf32>
    %415 = tpu.matmul %413, %414, %cst_137 {dimension_numbers = #tpu.dot_dimension_numbers<[1], [0], [0], [1], [0, 0, 1, 1], [], []>} : vector<8x128xbf16>, vector<128x512xbf16>, vector<8x512xf32> -> vector<8x512xf32>
    %416 = arith.addf %412, %415 : vector<8x512xf32>
    %417 = vector.extract_strided_slice %416 {offsets = [0, 0], sizes = [8, 128], strides = [1, 1]} : vector<8x512xf32> to vector<8x128xf32>
    %418 = arith.negf %417 : vector<8x128xf32>
    %419 = math.exp %418 : vector<8x128xf32>
    %cst_138 = arith.constant 1.000000e+00 : f32
    %420 = vector.broadcast %cst_138 : f32 to vector<8x128xf32>
    %421 = arith.addf %420, %419 : vector<8x128xf32>
    %422 = arith.divf %420, %421 : vector<8x128xf32>
    %423 = vector.extract_strided_slice %416 {offsets = [0, 128], sizes = [8, 128], strides = [1, 1]} : vector<8x512xf32> to vector<8x128xf32>
    %424 = arith.negf %423 : vector<8x128xf32>
    %425 = math.exp %424 : vector<8x128xf32>
    %cst_139 = arith.constant 1.000000e+00 : f32
    %426 = vector.broadcast %cst_139 : f32 to vector<8x128xf32>
    %427 = arith.addf %426, %425 : vector<8x128xf32>
    %428 = arith.divf %426, %427 : vector<8x128xf32>
    %429 = vector.extract_strided_slice %416 {offsets = [0, 256], sizes = [8, 128], strides = [1, 1]} : vector<8x512xf32> to vector<8x128xf32>
    %430 = math.tanh %429 : vector<8x128xf32>
    %431 = vector.extract_strided_slice %416 {offsets = [0, 384], sizes = [8, 128], strides = [1, 1]} : vector<8x512xf32> to vector<8x128xf32>
    %432 = arith.negf %431 : vector<8x128xf32>
    %433 = math.exp %432 : vector<8x128xf32>
    %cst_140 = arith.constant 1.000000e+00 : f32
    %434 = vector.broadcast %cst_140 : f32 to vector<8x128xf32>
    %435 = arith.addf %434, %433 : vector<8x128xf32>
    %436 = arith.divf %434, %435 : vector<8x128xf32>
    %437 = arith.mulf %428, %404 : vector<8x128xf32>
    %438 = arith.mulf %422, %430 : vector<8x128xf32>
    %439 = arith.addf %437, %438 : vector<8x128xf32>
    %440 = math.tanh %439 : vector<8x128xf32>
    %441 = arith.mulf %436, %440 : vector<8x128xf32>
    %442 = arith.index_cast %410 : i32 to index
    %c0_141 = arith.constant 0 : index
    %443 = vector.load %arg8[%442, %c0_141] : memref<64x128xf32, #tpu.memory_space<vmem>>, vector<8x128xf32>
    tpu.vector_store %arg8[%442, %c0_141], %441 {strides = array<i32>} : memref<64x128xf32, #tpu.memory_space<vmem>>, vector<8x128xf32>,
    %c4_i32_142 = arith.constant 4 : i32
    %c8_i32_143 = arith.constant 8 : i32
    %444 = arith.muli %c4_i32_142, %c8_i32_143 : i32
    %445 = tpu.assume_multiple %444, 8 : i32
    %446 = arith.index_cast %445 : i32 to index
    %c0_144 = arith.constant 0 : index
    %447 = vector.load %arg16[%446, %c0_144] : memref<64x512xf32, #tpu.memory_space<vmem>>, vector<8x512xf32>
    %448 = arith.truncf %441 : vector<8x128xf32> to vector<8x128xbf16>
    %c0_145 = arith.constant 0 : index
    %c0_146 = arith.constant 0 : index
    %449 = vector.load %arg6[%c0_145, %c0_146] : memref<128x512xbf16, #tpu.memory_space<vmem>>, vector<128x512xbf16>
    %cst_147 = arith.constant dense<0.000000e+00> : vector<8x512xf32>
    %450 = tpu.matmul %448, %449, %cst_147 {dimension_numbers = #tpu.dot_dimension_numbers<[1], [0], [0], [1], [0, 0, 1, 1], [], []>} : vector<8x128xbf16>, vector<128x512xbf16>, vector<8x512xf32> -> vector<8x512xf32>
    %451 = arith.addf %447, %450 : vector<8x512xf32>
    %452 = vector.extract_strided_slice %451 {offsets = [0, 0], sizes = [8, 128], strides = [1, 1]} : vector<8x512xf32> to vector<8x128xf32>
    %453 = arith.negf %452 : vector<8x128xf32>
    %454 = math.exp %453 : vector<8x128xf32>
    %cst_148 = arith.constant 1.000000e+00 : f32
    %455 = vector.broadcast %cst_148 : f32 to vector<8x128xf32>
    %456 = arith.addf %455, %454 : vector<8x128xf32>
    %457 = arith.divf %455, %456 : vector<8x128xf32>
    %458 = vector.extract_strided_slice %451 {offsets = [0, 128], sizes = [8, 128], strides = [1, 1]} : vector<8x512xf32> to vector<8x128xf32>
    %459 = arith.negf %458 : vector<8x128xf32>
    %460 = math.exp %459 : vector<8x128xf32>
    %cst_149 = arith.constant 1.000000e+00 : f32
    %461 = vector.broadcast %cst_149 : f32 to vector<8x128xf32>
    %462 = arith.addf %461, %460 : vector<8x128xf32>
    %463 = arith.divf %461, %462 : vector<8x128xf32>
    %464 = vector.extract_strided_slice %451 {offsets = [0, 256], sizes = [8, 128], strides = [1, 1]} : vector<8x512xf32> to vector<8x128xf32>
    %465 = math.tanh %464 : vector<8x128xf32>
    %466 = vector.extract_strided_slice %451 {offsets = [0, 384], sizes = [8, 128], strides = [1, 1]} : vector<8x512xf32> to vector<8x128xf32>
    %467 = arith.negf %466 : vector<8x128xf32>
    %468 = math.exp %467 : vector<8x128xf32>
    %cst_150 = arith.constant 1.000000e+00 : f32
    %469 = vector.broadcast %cst_150 : f32 to vector<8x128xf32>
    %470 = arith.addf %469, %468 : vector<8x128xf32>
    %471 = arith.divf %469, %470 : vector<8x128xf32>
    %472 = arith.mulf %463, %439 : vector<8x128xf32>
    %473 = arith.mulf %457, %465 : vector<8x128xf32>
    %474 = arith.addf %472, %473 : vector<8x128xf32>
    %475 = math.tanh %474 : vector<8x128xf32>
    %476 = arith.mulf %471, %475 : vector<8x128xf32>
    %477 = arith.index_cast %445 : i32 to index
    %c0_151 = arith.constant 0 : index
    %478 = vector.load %arg8[%477, %c0_151] : memref<64x128xf32, #tpu.memory_space<vmem>>, vector<8x128xf32>
    tpu.vector_store %arg8[%477, %c0_151], %476 {strides = array<i32>} : memref<64x128xf32, #tpu.memory_space<vmem>>, vector<8x128xf32>,
    %c5_i32_152 = arith.constant 5 : i32
    %c8_i32_153 = arith.constant 8 : i32
    %479 = arith.muli %c5_i32_152, %c8_i32_153 : i32
    %480 = tpu.assume_multiple %479, 8 : i32
    %481 = arith.index_cast %480 : i32 to index
    %c0_154 = arith.constant 0 : index
    %482 = vector.load %arg16[%481, %c0_154] : memref<64x512xf32, #tpu.memory_space<vmem>>, vector<8x512xf32>
    %483 = arith.truncf %476 : vector<8x128xf32> to vector<8x128xbf16>
    %c0_155 = arith.constant 0 : index
    %c0_156 = arith.constant 0 : index
    %484 = vector.load %arg6[%c0_155, %c0_156] : memref<128x512xbf16, #tpu.memory_space<vmem>>, vector<128x512xbf16>
    %cst_157 = arith.constant dense<0.000000e+00> : vector<8x512xf32>
    %485 = tpu.matmul %483, %484, %cst_157 {dimension_numbers = #tpu.dot_dimension_numbers<[1], [0], [0], [1], [0, 0, 1, 1], [], []>} : vector<8x128xbf16>, vector<128x512xbf16>, vector<8x512xf32> -> vector<8x512xf32>
    %486 = arith.addf %482, %485 : vector<8x512xf32>
    %487 = vector.extract_strided_slice %486 {offsets = [0, 0], sizes = [8, 128], strides = [1, 1]} : vector<8x512xf32> to vector<8x128xf32>
    %488 = arith.negf %487 : vector<8x128xf32>
    %489 = math.exp %488 : vector<8x128xf32>
    %cst_158 = arith.constant 1.000000e+00 : f32
    %490 = vector.broadcast %cst_158 : f32 to vector<8x128xf32>
    %491 = arith.addf %490, %489 : vector<8x128xf32>
    %492 = arith.divf %490, %491 : vector<8x128xf32>
    %493 = vector.extract_strided_slice %486 {offsets = [0, 128], sizes = [8, 128], strides = [1, 1]} : vector<8x512xf32> to vector<8x128xf32>
    %494 = arith.negf %493 : vector<8x128xf32>
    %495 = math.exp %494 : vector<8x128xf32>
    %cst_159 = arith.constant 1.000000e+00 : f32
    %496 = vector.broadcast %cst_159 : f32 to vector<8x128xf32>
    %497 = arith.addf %496, %495 : vector<8x128xf32>
    %498 = arith.divf %496, %497 : vector<8x128xf32>
    %499 = vector.extract_strided_slice %486 {offsets = [0, 256], sizes = [8, 128], strides = [1, 1]} : vector<8x512xf32> to vector<8x128xf32>
    %500 = math.tanh %499 : vector<8x128xf32>
    %501 = vector.extract_strided_slice %486 {offsets = [0, 384], sizes = [8, 128], strides = [1, 1]} : vector<8x512xf32> to vector<8x128xf32>
    %502 = arith.negf %501 : vector<8x128xf32>
    %503 = math.exp %502 : vector<8x128xf32>
    %cst_160 = arith.constant 1.000000e+00 : f32
    %504 = vector.broadcast %cst_160 : f32 to vector<8x128xf32>
    %505 = arith.addf %504, %503 : vector<8x128xf32>
    %506 = arith.divf %504, %505 : vector<8x128xf32>
    %507 = arith.mulf %498, %474 : vector<8x128xf32>
    %508 = arith.mulf %492, %500 : vector<8x128xf32>
    %509 = arith.addf %507, %508 : vector<8x128xf32>
    %510 = math.tanh %509 : vector<8x128xf32>
    %511 = arith.mulf %506, %510 : vector<8x128xf32>
    %512 = arith.index_cast %480 : i32 to index
    %c0_161 = arith.constant 0 : index
    %513 = vector.load %arg8[%512, %c0_161] : memref<64x128xf32, #tpu.memory_space<vmem>>, vector<8x128xf32>
    tpu.vector_store %arg8[%512, %c0_161], %511 {strides = array<i32>} : memref<64x128xf32, #tpu.memory_space<vmem>>, vector<8x128xf32>,
    %c6_i32_162 = arith.constant 6 : i32
    %c8_i32_163 = arith.constant 8 : i32
    %514 = arith.muli %c6_i32_162, %c8_i32_163 : i32
    %515 = tpu.assume_multiple %514, 8 : i32
    %516 = arith.index_cast %515 : i32 to index
    %c0_164 = arith.constant 0 : index
    %517 = vector.load %arg16[%516, %c0_164] : memref<64x512xf32, #tpu.memory_space<vmem>>, vector<8x512xf32>
    %518 = arith.truncf %511 : vector<8x128xf32> to vector<8x128xbf16>
    %c0_165 = arith.constant 0 : index
    %c0_166 = arith.constant 0 : index
    %519 = vector.load %arg6[%c0_165, %c0_166] : memref<128x512xbf16, #tpu.memory_space<vmem>>, vector<128x512xbf16>
    %cst_167 = arith.constant dense<0.000000e+00> : vector<8x512xf32>
    %520 = tpu.matmul %518, %519, %cst_167 {dimension_numbers = #tpu.dot_dimension_numbers<[1], [0], [0], [1], [0, 0, 1, 1], [], []>} : vector<8x128xbf16>, vector<128x512xbf16>, vector<8x512xf32> -> vector<8x512xf32>
    %521 = arith.addf %517, %520 : vector<8x512xf32>
    %522 = vector.extract_strided_slice %521 {offsets = [0, 0], sizes = [8, 128], strides = [1, 1]} : vector<8x512xf32> to vector<8x128xf32>
    %523 = arith.negf %522 : vector<8x128xf32>
    %524 = math.exp %523 : vector<8x128xf32>
    %cst_168 = arith.constant 1.000000e+00 : f32
    %525 = vector.broadcast %cst_168 : f32 to vector<8x128xf32>
    %526 = arith.addf %525, %524 : vector<8x128xf32>
    %527 = arith.divf %525, %526 : vector<8x128xf32>
    %528 = vector.extract_strided_slice %521 {offsets = [0, 128], sizes = [8, 128], strides = [1, 1]} : vector<8x512xf32> to vector<8x128xf32>
    %529 = arith.negf %528 : vector<8x128xf32>
    %530 = math.exp %529 : vector<8x128xf32>
    %cst_169 = arith.constant 1.000000e+00 : f32
    %531 = vector.broadcast %cst_169 : f32 to vector<8x128xf32>
    %532 = arith.addf %531, %530 : vector<8x128xf32>
    %533 = arith.divf %531, %532 : vector<8x128xf32>
    %534 = vector.extract_strided_slice %521 {offsets = [0, 256], sizes = [8, 128], strides = [1, 1]} : vector<8x512xf32> to vector<8x128xf32>
    %535 = math.tanh %534 : vector<8x128xf32>
    %536 = vector.extract_strided_slice %521 {offsets = [0, 384], sizes = [8, 128], strides = [1, 1]} : vector<8x512xf32> to vector<8x128xf32>
    %537 = arith.negf %536 : vector<8x128xf32>
    %538 = math.exp %537 : vector<8x128xf32>
    %cst_170 = arith.constant 1.000000e+00 : f32
    %539 = vector.broadcast %cst_170 : f32 to vector<8x128xf32>
    %540 = arith.addf %539, %538 : vector<8x128xf32>
    %541 = arith.divf %539, %540 : vector<8x128xf32>
    %542 = arith.mulf %533, %509 : vector<8x128xf32>
    %543 = arith.mulf %527, %535 : vector<8x128xf32>
    %544 = arith.addf %542, %543 : vector<8x128xf32>
    %545 = math.tanh %544 : vector<8x128xf32>
    %546 = arith.mulf %541, %545 : vector<8x128xf32>
    %547 = arith.index_cast %515 : i32 to index
    %c0_171 = arith.constant 0 : index
    %548 = vector.load %arg8[%547, %c0_171] : memref<64x128xf32, #tpu.memory_space<vmem>>, vector<8x128xf32>
    tpu.vector_store %arg8[%547, %c0_171], %546 {strides = array<i32>} : memref<64x128xf32, #tpu.memory_space<vmem>>, vector<8x128xf32>,
    %c7_i32_172 = arith.constant 7 : i32
    %c8_i32_173 = arith.constant 8 : i32
    %549 = arith.muli %c7_i32_172, %c8_i32_173 : i32
    %550 = tpu.assume_multiple %549, 8 : i32
    %551 = arith.index_cast %550 : i32 to index
    %c0_174 = arith.constant 0 : index
    %552 = vector.load %arg16[%551, %c0_174] : memref<64x512xf32, #tpu.memory_space<vmem>>, vector<8x512xf32>
    %553 = arith.truncf %546 : vector<8x128xf32> to vector<8x128xbf16>
    %c0_175 = arith.constant 0 : index
    %c0_176 = arith.constant 0 : index
    %554 = vector.load %arg6[%c0_175, %c0_176] : memref<128x512xbf16, #tpu.memory_space<vmem>>, vector<128x512xbf16>
    %cst_177 = arith.constant dense<0.000000e+00> : vector<8x512xf32>
    %555 = tpu.matmul %553, %554, %cst_177 {dimension_numbers = #tpu.dot_dimension_numbers<[1], [0], [0], [1], [0, 0, 1, 1], [], []>} : vector<8x128xbf16>, vector<128x512xbf16>, vector<8x512xf32> -> vector<8x512xf32>
    %556 = arith.addf %552, %555 : vector<8x512xf32>
    %557 = vector.extract_strided_slice %556 {offsets = [0, 0], sizes = [8, 128], strides = [1, 1]} : vector<8x512xf32> to vector<8x128xf32>
    %558 = arith.negf %557 : vector<8x128xf32>
    %559 = math.exp %558 : vector<8x128xf32>
    %cst_178 = arith.constant 1.000000e+00 : f32
    %560 = vector.broadcast %cst_178 : f32 to vector<8x128xf32>
    %561 = arith.addf %560, %559 : vector<8x128xf32>
    %562 = arith.divf %560, %561 : vector<8x128xf32>
    %563 = vector.extract_strided_slice %556 {offsets = [0, 128], sizes = [8, 128], strides = [1, 1]} : vector<8x512xf32> to vector<8x128xf32>
    %564 = arith.negf %563 : vector<8x128xf32>
    %565 = math.exp %564 : vector<8x128xf32>
    %cst_179 = arith.constant 1.000000e+00 : f32
    %566 = vector.broadcast %cst_179 : f32 to vector<8x128xf32>
    %567 = arith.addf %566, %565 : vector<8x128xf32>
    %568 = arith.divf %566, %567 : vector<8x128xf32>
    %569 = vector.extract_strided_slice %556 {offsets = [0, 256], sizes = [8, 128], strides = [1, 1]} : vector<8x512xf32> to vector<8x128xf32>
    %570 = math.tanh %569 : vector<8x128xf32>
    %571 = vector.extract_strided_slice %556 {offsets = [0, 384], sizes = [8, 128], strides = [1, 1]} : vector<8x512xf32> to vector<8x128xf32>
    %572 = arith.negf %571 : vector<8x128xf32>
    %573 = math.exp %572 : vector<8x128xf32>
    %cst_180 = arith.constant 1.000000e+00 : f32
    %574 = vector.broadcast %cst_180 : f32 to vector<8x128xf32>
    %575 = arith.addf %574, %573 : vector<8x128xf32>
    %576 = arith.divf %574, %575 : vector<8x128xf32>
    %577 = arith.mulf %568, %544 : vector<8x128xf32>
    %578 = arith.mulf %562, %570 : vector<8x128xf32>
    %579 = arith.addf %577, %578 : vector<8x128xf32>
    %580 = math.tanh %579 : vector<8x128xf32>
    %581 = arith.mulf %576, %580 : vector<8x128xf32>
    %582 = arith.index_cast %550 : i32 to index
    %c0_181 = arith.constant 0 : index
    %583 = vector.load %arg8[%582, %c0_181] : memref<64x128xf32, #tpu.memory_space<vmem>>, vector<8x128xf32>
    tpu.vector_store %arg8[%582, %c0_181], %581 {strides = array<i32>} : memref<64x128xf32, #tpu.memory_space<vmem>>, vector<8x128xf32>,
    %c8_i32_182 = arith.constant 8 : i32
    %c0_183 = arith.constant 0 : index
    %c0_184 = arith.constant 0 : index
    %584 = vector.load %arg12[%c0_183, %c0_184] : memref<8x128xf32, #tpu.memory_space<vmem>>, vector<8x128xf32>
    tpu.vector_store %arg12[%c0_183, %c0_184], %581 {strides = array<i32>} : memref<8x128xf32, #tpu.memory_space<vmem>>, vector<8x128xf32>,
    %c0_185 = arith.constant 0 : index
    %c0_186 = arith.constant 0 : index
    %585 = vector.load %arg13[%c0_185, %c0_186] : memref<8x128xf32, #tpu.memory_space<vmem>>, vector<8x128xf32>
    tpu.vector_store %arg13[%c0_185, %c0_186], %579 {strides = array<i32>} : memref<8x128xf32, #tpu.memory_space<vmem>>, vector<8x128xf32>,
    %c0_i32_187 = arith.constant 0 : i32
    %586 = arith.cmpi eq, %arg0, %c0_i32_187 : i32
    %587 = arith.extui %586 : i1 to i32
    %c0_i32_188 = arith.constant 0 : i32
    %588 = arith.cmpi ne, %587, %c0_i32_188 : i32
    scf.if %588 {
      %c0_189 = arith.constant 0 : index
      %c0_190 = arith.constant 0 : index
      %589 = vector.load %arg13[%c0_189, %c0_190] : memref<8x128xf32, #tpu.memory_space<vmem>>, vector<8x128xf32>
      %c0_191 = arith.constant 0 : index
      %c0_192 = arith.constant 0 : index
      %590 = vector.load %arg9[%c0_191, %c0_192] : memref<8x128xf32, #tpu.memory_space<vmem>>, vector<8x128xf32>
      tpu.vector_store %arg9[%c0_191, %c0_192], %589 {strides = array<i32>} : memref<8x128xf32, #tpu.memory_space<vmem>>, vector<8x128xf32>,
    } else {
    }
    return
  }
  func.func @transform_0(%arg0: i32) -> (i32, i32) {
    %c0_i32 = arith.constant 0 : i32
    %c0_i32_0 = arith.constant 0 : i32
    return %arg0, %c0_i32 : i32, i32
  }
  func.func @transform_1(%arg0: i32) -> (i32, i32) {
    %c0_i32 = arith.constant 0 : i32
    %c0_i32_0 = arith.constant 0 : i32
    %c0_i32_1 = arith.constant 0 : i32
    return %c0_i32, %c0_i32_0 : i32, i32
  }
  func.func @transform_2(%arg0: i32) -> (i32, i32) {
    %c0_i32 = arith.constant 0 : i32
    %c0_i32_0 = arith.constant 0 : i32
    %c0_i32_1 = arith.constant 0 : i32
    return %c0_i32, %c0_i32_0 : i32, i32
  }
  func.func @transform_3(%arg0: i32) -> (i32, i32) {
    %c0_i32 = arith.constant 0 : i32
    %c0_i32_0 = arith.constant 0 : i32
    %c0_i32_1 = arith.constant 0 : i32
    return %c0_i32, %c0_i32_0 : i32, i32
  }
  func.func @transform_4(%arg0: i32) -> (i32, i32) {
    %c0_i32 = arith.constant 0 : i32
    %c0_i32_0 = arith.constant 0 : i32
    %c0_i32_1 = arith.constant 0 : i32
    return %c0_i32, %c0_i32_0 : i32, i32
  }
  func.func @transform_5(%arg0: i32) -> (i32, i32) {
    %c0_i32 = arith.constant 0 : i32
    %c0_i32_0 = arith.constant 0 : i32
    %c0_i32_1 = arith.constant 0 : i32
    return %c0_i32, %c0_i32_0 : i32, i32
  }
  func.func @transform_6(%arg0: i32) -> (i32, i32) {
    %c0_i32 = arith.constant 0 : i32
    %c0_i32_0 = arith.constant 0 : i32
    %c0_i32_1 = arith.constant 0 : i32
    return %c0_i32, %c0_i32_0 : i32, i32
  }
  func.func @transform_7(%arg0: i32) -> (i32, i32) {
    %c0_i32 = arith.constant 0 : i32
    %c0_i32_0 = arith.constant 0 : i32
    return %arg0, %c0_i32 : i32, i32
  }
  func.func @transform_8(%arg0: i32) -> (i32, i32) {
    %c0_i32 = arith.constant 0 : i32
    %c0_i32_0 = arith.constant 0 : i32
    %c0_i32_1 = arith.constant 0 : i32
    return %c0_i32, %c0_i32_0 : i32, i32
  }
}

</mosaic_0001>

<llo_original>
// kernel: decoder_forward.1
$region0: #{decoder_forward.1}
  #allocation0 [shape = 'u32[]', space=smem, size = 0x4, offset = 0x4, fixed_abs, tag = 'smem constant byte address 0x4 - core index']
  #allocation1 [shape = 'u32[144,128]{1,0:T(1,128)}', space=vmem, size = 0x12000, scoped, tag = 'internal scratch']
  #allocation2 [shape = 'f32[8,128]{1,0:T(8,128)}', space=vmem, size = 0x1000, scoped, tag = 'scratch operand']
  #allocation3 [shape = 'f32[8,128]{1,0:T(8,128)}', space=vmem, size = 0x1000, scoped, tag = 'scratch operand']
  #allocation4 [shape = 'f32[8,128]{1,0:T(8,128)}', space=vmem, size = 0x1000, scoped, tag = 'scratch operand']
  #allocation5 [shape = 'f32[8,128]{1,0:T(8,128)}', space=vmem, size = 0x1000, scoped, tag = 'scratch operand']
  #allocation6 [shape = 'f32[64,512]{1,0:T(8,128)}', space=vmem, size = 0x20000, scoped, tag = 'scratch operand']
  #allocation7 [shape = 'f32[64,128]{1,0:T(8,128)}', space=vmem, size = 0x8000, scoped, tag = 'scratch operand']
  #allocation8 [shape = 'f32[64,512]{1,0:T(8,128)}', space=vmem, size = 0x20000, scoped, tag = 'scratch operand']
  %s0 = inlined_call_operand.hbm [shape: bf16[64,128], index: 0, kind: input, shape index: {}]
  %s1 = inlined_call_operand.hbm [shape: bf16[128,512], index: 1, kind: input, shape index: {}]
  %s2 = inlined_call_operand.hbm [shape: bf16[128,512], index: 2, kind: input, shape index: {}]
  %s3 = inlined_call_operand.hbm [shape: f32[1,512], index: 3, kind: input, shape index: {}]
  %s4 = inlined_call_operand.hbm [shape: bf16[128,512], index: 4, kind: input, shape index: {}]
  %s5 = inlined_call_operand.hbm [shape: bf16[128,512], index: 5, kind: input, shape index: {}]
  %s6 = inlined_call_operand.hbm [shape: f32[1,512], index: 6, kind: input, shape index: {}]
  %s7 = inlined_call_operand.hbm [shape: f32[64,128], index: 7, kind: output, shape index: {0}]
  %s8 = inlined_call_operand.hbm [shape: f32[8,128], index: 8, kind: output, shape index: {1}]
  %9 = xla_tuple %s7, %s8
  %s10 = sld [smem:[#allocation0]]
  $region82: #{decoder_forward.1} parent=0
    _
  %s12 = ssub.s32 1, %s10
  %s13 = scalar_select 0, %s12, %s10
  $region1: #{decoder_forward.1} parent=0
    #allocation9 [shape = 'u8[16384]{0}', space=vmem, size = 0x4000, scoped, tag = 'input window, operand 0, single buffered']
    #allocation10 [shape = 's32[1]{0}', space=sflag, size = 0x4, scoped, tag = 'scoped memory for decoder_forward.1']
    #allocation11 [shape = 's32[1]{0}', space=sflag, size = 0x4, scoped, tag = 'scoped memory for decoder_forward.1']
    #allocation12 [shape = 'u8[131072]{0}', space=vmem, size = 0x20000, scoped, tag = 'input window, operand 1, single buffered']
    #allocation13 [shape = 's32[1]{0}', space=sflag, size = 0x4, scoped, tag = 'scoped memory for decoder_forward.1']
    #allocation14 [shape = 'u8[131072]{0}', space=vmem, size = 0x20000, scoped, tag = 'input window, operand 2, single buffered']
    #allocation15 [shape = 'u8[2048]{0}', space=vmem, size = 0x800, scoped, tag = 'input window, operand 3, single buffered']
    #allocation16 [shape = 's32[1]{0}', space=sflag, size = 0x4, scoped, tag = 'scoped memory for decoder_forward.1']
    #allocation17 [shape = 'u8[131072]{0}', space=vmem, size = 0x20000, scoped, tag = 'input window, operand 4, single buffered']
    #allocation18 [shape = 'u8[131072]{0}', space=vmem, size = 0x20000, scoped, tag = 'input window, operand 5, single buffered']
    #allocation19 [shape = 's32[1]{0}', space=sflag, size = 0x4, scoped, tag = 'scoped memory for decoder_forward.1']
    #allocation20 [shape = 'u8[2048]{0}', space=vmem, size = 0x800, scoped, tag = 'input window, operand 6, single buffered']
    #allocation21 [shape = 'u8[32768]{0}', space=vmem, size = 0x8000, scoped, tag = 'output window, operand 0, single buffered']
    #allocation22 [shape = 'u8[4096]{0}', space=vmem, size = 0x1000, scoped, tag = 'output window, operand 1, single buffered']
    #allocation23 [shape = 's32[1]{0}', space=sflag, size = 0x4, scoped, tag = 'scoped memory for decoder_forward.1']
    %14 = vsyncpa [#allocation10], 0
    %15 = vsyncpa [#allocation13], 0
    %16 = vsyncpa [#allocation16], 0
    %17 = vsyncpa [#allocation19], 0
    %18 = vsyncpa [#allocation11], 0
    %19 = vsyncpa [#allocation23], 0
    // Predicated region
    $region2: #{decoder_forward.1} parent=1 // pred_check
      _
    $region3: #{decoder_forward.1} parent=1 // pred_check_branch
      %21 = sbr.rel (0) target = $region5
    $region4: #{decoder_forward.1} parent=1 // pred_region
      %s23 = ssub.s32 512, 512
      %24 = vsyncadd [#allocation10], %s23
      %s25 = sshll.u32 [#allocation9], 4
      %s26 = int_to_ptr.vmem [resolvable:$true] %s25
      %31 = dma.hbm_to_vmem [thread:$0]  %s0, 512, %s26, [#allocation10], 64, 64, 4
    $region5: #{decoder_forward.1} parent=1 // pred_fallthru
      _
    // Predicated region
    $region6: #{decoder_forward.1} parent=1 // pred_check
      _
    $region7: #{decoder_forward.1} parent=1 // pred_check_branch
      %33 = sbr.rel (0) target = $region9
    $region8: #{decoder_forward.1} parent=1 // pred_region
      %s35 = ssub.s32 4096, 4096
      %36 = vsyncadd [#allocation13], %s35
      %s37 = sshll.u32 [#allocation12], 4
      %s38 = int_to_ptr.vmem [resolvable:$true] %s37
      %43 = dma.hbm_to_vmem [thread:$0]  %s1, 4096, %s38, [#allocation13], 256, 256, 16
    $region9: #{decoder_forward.1} parent=1 // pred_fallthru
      _
    // Predicated region
    $region10: #{decoder_forward.1} parent=1 // pred_check
      _
    $region11: #{decoder_forward.1} parent=1 // pred_check_branch
      %45 = sbr.rel (0) target = $region13
    $region12: #{decoder_forward.1} parent=1 // pred_region
      %s47 = ssub.s32 4096, 4096
      %48 = vsyncadd [#allocation13], %s47
      %s49 = sshll.u32 [#allocation14], 4
      %s50 = int_to_ptr.vmem [resolvable:$true] %s49
      %55 = dma.hbm_to_vmem [thread:$0]  %s2, 4096, %s50, [#allocation13], 256, 256, 16
    $region13: #{decoder_forward.1} parent=1 // pred_fallthru
      _
    // Predicated region
    $region14: #{decoder_forward.1} parent=1 // pred_check
      _
    $region15: #{decoder_forward.1} parent=1 // pred_check_branch
      %57 = sbr.rel (0) target = $region17
    $region16: #{decoder_forward.1} parent=1 // pred_region
      %s59 = ssub.s32 64, 64
      %60 = vsyncadd [#allocation16], %s59
      %s62 = sshll.u32 [#allocation15], 4
      %s63 = int_to_ptr.vmem [resolvable:$true] %s62
      %65 = dma.hbm_to_vmem [thread:$0]  %s3, 64, %s63, [#allocation16]
    $region17: #{decoder_forward.1} parent=1 // pred_fallthru
      _
    // Predicated region
    $region18: #{decoder_forward.1} parent=1 // pred_check
      _
    $region19: #{decoder_forward.1} parent=1 // pred_check_branch
      %67 = sbr.rel (0) target = $region21
    $region20: #{decoder_forward.1} parent=1 // pred_region
      %s69 = ssub.s32 4096, 4096
      %70 = vsyncadd [#allocation16], %s69
      %s71 = sshll.u32 [#allocation17], 4
      %s72 = int_to_ptr.vmem [resolvable:$true] %s71
      %77 = dma.hbm_to_vmem [thread:$0]  %s4, 4096, %s72, [#allocation16], 256, 256, 16
    $region21: #{decoder_forward.1} parent=1 // pred_fallthru
      _
    // Predicated region
    $region22: #{decoder_forward.1} parent=1 // pred_check
      _
    $region23: #{decoder_forward.1} parent=1 // pred_check_branch
      %79 = sbr.rel (0) target = $region25
    $region24: #{decoder_forward.1} parent=1 // pred_region
      %s81 = ssub.s32 4096, 4096
      %82 = vsyncadd [#allocation19], %s81
      %s83 = sshll.u32 [#allocation18], 4
      %s84 = int_to_ptr.vmem [resolvable:$true] %s83
      %89 = dma.hbm_to_vmem [thread:$0]  %s5, 4096, %s84, [#allocation19], 256, 256, 16
    $region25: #{decoder_forward.1} parent=1 // pred_fallthru
      _
    // Predicated region
    $region26: #{decoder_forward.1} parent=1 // pred_check
      _
    $region27: #{decoder_forward.1} parent=1 // pred_check_branch
      %91 = sbr.rel (0) target = $region29
    $region28: #{decoder_forward.1} parent=1 // pred_region
      %s93 = ssub.s32 64, 64
      %94 = vsyncadd [#allocation19], %s93
      %s96 = sshll.u32 [#allocation20], 4
      %s97 = int_to_ptr.vmem [resolvable:$true] %s96
      %99 = dma.hbm_to_vmem [thread:$0]  %s6, 64, %s97, [#allocation19]
    $region29: #{decoder_forward.1} parent=1 // pred_fallthru
      _
    // Predicated region
    $region30: #{decoder_forward.1} parent=1 // pred_check
      _
    $region31: #{decoder_forward.1} parent=1 // pred_check_branch
      %101 = sbr.rel (0) target = $region33
    $region32: #{decoder_forward.1} parent=1 // pred_region
      %102 = dma.done [#allocation10], 512
    $region33: #{decoder_forward.1} parent=1 // pred_fallthru
      _
    // Predicated region
    $region34: #{decoder_forward.1} parent=1 // pred_check
      _
    $region35: #{decoder_forward.1} parent=1 // pred_check_branch
      %104 = sbr.rel (0) target = $region37
    $region36: #{decoder_forward.1} parent=1 // pred_region
      %105 = dma.done [#allocation13], 4096
    $region37: #{decoder_forward.1} parent=1 // pred_fallthru
      _
    // Predicated region
    $region38: #{decoder_forward.1} parent=1 // pred_check
      _
    $region39: #{decoder_forward.1} parent=1 // pred_check_branch
      %107 = sbr.rel (0) target = $region41
    $region40: #{decoder_forward.1} parent=1 // pred_region
      %108 = dma.done [#allocation13], 4096
    $region41: #{decoder_forward.1} parent=1 // pred_fallthru
      _
    // Predicated region
    $region42: #{decoder_forward.1} parent=1 // pred_check
      _
    $region43: #{decoder_forward.1} parent=1 // pred_check_branch
      %110 = sbr.rel (0) target = $region45
    $region44: #{decoder_forward.1} parent=1 // pred_region
      %111 = dma.done [#allocation16], 64
    $region45: #{decoder_forward.1} parent=1 // pred_fallthru
      _
    // Predicated region
    $region46: #{decoder_forward.1} parent=1 // pred_check
      _
    $region47: #{decoder_forward.1} parent=1 // pred_check_branch
      %113 = sbr.rel (0) target = $region49
    $region48: #{decoder_forward.1} parent=1 // pred_region
      %114 = dma.done [#allocation16], 4096
    $region49: #{decoder_forward.1} parent=1 // pred_fallthru
      _
    // Predicated region
    $region50: #{decoder_forward.1} parent=1 // pred_check
      _
    $region51: #{decoder_forward.1} parent=1 // pred_check_branch
      %116 = sbr.rel (0) target = $region53
    $region52: #{decoder_forward.1} parent=1 // pred_region
      %117 = dma.done [#allocation19], 4096
    $region53: #{decoder_forward.1} parent=1 // pred_fallthru
      _
    // Predicated region
    $region54: #{decoder_forward.1} parent=1 // pred_check
      _
    $region55: #{decoder_forward.1} parent=1 // pred_check_branch
      %119 = sbr.rel (0) target = $region57
    $region56: #{decoder_forward.1} parent=1 // pred_region
      %120 = dma.done [#allocation19], 64
    $region57: #{decoder_forward.1} parent=1 // pred_fallthru
      _
    %p122 = scmp.eq.s32.totalorder 0, 0
    // Predicated region
    $region58: #{decoder_forward.1} parent=1 // pred_check
      %p123 = pneg %p122
    $region59: #{decoder_forward.1} parent=1 // pred_check_branch
      %125 = sbr.rel (%p123) target = $region61
    $region60: #{decoder_forward.1} parent=1 // pred_region
      %126 = vst [vmem:[#allocation2] sm:$0xff] 0.0
      %127 = vst [vmem:[#allocation3] sm:$0xff] 0.0
      %128 = vst [vmem:[#allocation4] sm:$0xff] 0.0
      %129 = vst [vmem:[#allocation5] sm:$0xff] 0.0
      %130 = vst [vmem:[#allocation22] sm:$0xff] 0.0
    $region61: #{decoder_forward.1} parent=1 // pred_fallthru
      _
    %v131 = vld [vmem:[#allocation9] sm:$0xf]
    %v132 = vld [vmem:[#allocation9 + $0x4] sm:$0xf]
    %v133 = vld [vmem:[#allocation9 + $0x8] sm:$0xf]
    %v134 = vld [vmem:[#allocation9 + $0xc] sm:$0xf]
    %v135 = vld [vmem:[#allocation9 + $0x10] sm:$0xf]
    %v136 = vld [vmem:[#allocation9 + $0x14] sm:$0xf]
    %v137 = vld [vmem:[#allocation9 + $0x18] sm:$0xf]
    %v138 = vld [vmem:[#allocation9 + $0x1c] sm:$0xf]
    %v139 = vld [vmem:[#allocation12] sm:$0xff]
    %v140 = vld [vmem:[#allocation12 + $0x8] sm:$0xff]
    %v141 = vld [vmem:[#allocation12 + $0x10] sm:$0xff]
    %v142 = vld [vmem:[#allocation12 + $0x18] sm:$0xff]
    %v143 = vld [vmem:[#allocation12 + $0x20] sm:$0xff]
    %v144 = vld [vmem:[#allocation12 + $0x28] sm:$0xff]
    %v145 = vld [vmem:[#allocation12 + $0x30] sm:$0xff]
    %v146 = vld [vmem:[#allocation12 + $0x38] sm:$0xff]
    %v147 = vld [vmem:[#allocation12 + $0x40] sm:$0xff]
    %v148 = vld [vmem:[#allocation12 + $0x48] sm:$0xff]
    %v149 = vld [vmem:[#allocation12 + $0x50] sm:$0xff]
    %v150 = vld [vmem:[#allocation12 + $0x58] sm:$0xff]
    %v151 = vld [vmem:[#allocation12 + $0x60] sm:$0xff]
    %v152 = vld [vmem:[#allocation12 + $0x68] sm:$0xff]
    %v153 = vld [vmem:[#allocation12 + $0x70] sm:$0xff]
    %v154 = vld [vmem:[#allocation12 + $0x78] sm:$0xff]
    %v155 = vld [vmem:[#allocation12 + $0x80] sm:$0xff]
    %v156 = vld [vmem:[#allocation12 + $0x88] sm:$0xff]
    %v157 = vld [vmem:[#allocation12 + $0x90] sm:$0xff]
    %v158 = vld [vmem:[#allocation12 + $0x98] sm:$0xff]
    %v159 = vld [vmem:[#allocation12 + $0xa0] sm:$0xff]
    %v160 = vld [vmem:[#allocation12 + $0xa8] sm:$0xff]
    %v161 = vld [vmem:[#allocation12 + $0xb0] sm:$0xff]
    %v162 = vld [vmem:[#allocation12 + $0xb8] sm:$0xff]
    %v163 = vld [vmem:[#allocation12 + $0xc0] sm:$0xff]
    %v164 = vld [vmem:[#allocation12 + $0xc8] sm:$0xff]
    %v165 = vld [vmem:[#allocation12 + $0xd0] sm:$0xff]
    %v166 = vld [vmem:[#allocation12 + $0xd8] sm:$0xff]
    %v167 = vld [vmem:[#allocation12 + $0xe0] sm:$0xff]
    %v168 = vld [vmem:[#allocation12 + $0xe8] sm:$0xff]
    %v169 = vld [vmem:[#allocation12 + $0xf0] sm:$0xff]
    %v170 = vld [vmem:[#allocation12 + $0xf8] sm:$0xff]
    %v171 = vld [vmem:[#allocation15] sm:$0xf]
    %v173 = vlaneseq
    %v174 = vshrl.u32 %v173, 7
    %v175 = vsub.s32 0, %v174
    %v176 = vrot.slane %v171, %v175
    %v177 = vlaneseq
    %v178 = vshrl.u32 %v177, 7
    %v179 = vsub.s32 1, %v178
    %v180 = vrot.slane %v171, %v179
    %v181 = vlaneseq
    %v182 = vshrl.u32 %v181, 7
    %v183 = vsub.s32 2, %v182
    %v184 = vrot.slane %v171, %v183
    %v185 = vlaneseq
    %v186 = vshrl.u32 %v185, 7
    %v187 = vsub.s32 3, %v186
    %v188 = vrot.slane %v171, %v187
    %v201 = vunpack.c.l.b16 %v131
    %v202 = vunpack.c.l.b16 %v132
    %v203 = vunpack.c.l.b16 %v133
    %v204 = vunpack.c.l.b16 %v134
    %v205 = vunpack.c.l.b16 %v135
    %v206 = vunpack.c.l.b16 %v136
    %v207 = vunpack.c.l.b16 %v137
    %v208 = vunpack.c.l.b16 %v138
    %v209 = vpack.c.b16 %v202, %v201
    %v210 = vpack.c.b16 %v204, %v203
    %v211 = vpack.c.b16 %v206, %v205
    %v212 = vpack.c.b16 %v208, %v207
    %v249 = vunpack.c.l.b16 %v139
    %v250 = vunpack.c.h.b16 %v139
    %v251 = vunpack.c.l.b16 %v140
    %v252 = vunpack.c.h.b16 %v140
    %v253 = vunpack.c.l.b16 %v141
    %v254 = vunpack.c.h.b16 %v141
    %v255 = vunpack.c.l.b16 %v142
    %v256 = vunpack.c.h.b16 %v142
    %v257 = vunpack.c.l.b16 %v143
    %v258 = vunpack.c.h.b16 %v143
    %v259 = vunpack.c.l.b16 %v144
    %v260 = vunpack.c.h.b16 %v144
    %v261 = vunpack.c.l.b16 %v145
    %v262 = vunpack.c.h.b16 %v145
    %v263 = vunpack.c.l.b16 %v146
    %v264 = vunpack.c.h.b16 %v146
    %v265 = vunpack.c.l.b16 %v147
    %v266 = vunpack.c.h.b16 %v147
    %v267 = vunpack.c.l.b16 %v148
    %v268 = vunpack.c.h.b16 %v148
    %v269 = vunpack.c.l.b16 %v149
    %v270 = vunpack.c.h.b16 %v149
    %v271 = vunpack.c.l.b16 %v150
    %v272 = vunpack.c.h.b16 %v150
    %v273 = vunpack.c.l.b16 %v151
    %v274 = vunpack.c.h.b16 %v151
    %v275 = vunpack.c.l.b16 %v152
    %v276 = vunpack.c.h.b16 %v152
    %v277 = vunpack.c.l.b16 %v153
    %v278 = vunpack.c.h.b16 %v153
    %v279 = vunpack.c.l.b16 %v154
    %v280 = vunpack.c.h.b16 %v154
    %v281 = vunpack.c.l.b16 %v155
    %v282 = vunpack.c.h.b16 %v155
    %v283 = vunpack.c.l.b16 %v156
    %v284 = vunpack.c.h.b16 %v156
    %v285 = vunpack.c.l.b16 %v157
    %v286 = vunpack.c.h.b16 %v157
    %v287 = vunpack.c.l.b16 %v158
    %v288 = vunpack.c.h.b16 %v158
    %v289 = vunpack.c.l.b16 %v159
    %v290 = vunpack.c.h.b16 %v159
    %v291 = vunpack.c.l.b16 %v160
    %v292 = vunpack.c.h.b16 %v160
    %v293 = vunpack.c.l.b16 %v161
    %v294 = vunpack.c.h.b16 %v161
    %v295 = vunpack.c.l.b16 %v162
    %v296 = vunpack.c.h.b16 %v162
    %v297 = vunpack.c.l.b16 %v163
    %v298 = vunpack.c.h.b16 %v163
    %v299 = vunpack.c.l.b16 %v164
    %v300 = vunpack.c.h.b16 %v164
    %v301 = vunpack.c.l.b16 %v165
    %v302 = vunpack.c.h.b16 %v165
    %v303 = vunpack.c.l.b16 %v166
    %v304 = vunpack.c.h.b16 %v166
    %v305 = vunpack.c.l.b16 %v167
    %v306 = vunpack.c.h.b16 %v167
    %v307 = vunpack.c.l.b16 %v168
    %v308 = vunpack.c.h.b16 %v168
    %v309 = vunpack.c.l.b16 %v169
    %v310 = vunpack.c.h.b16 %v169
    %v311 = vunpack.c.l.b16 %v170
    %v312 = vunpack.c.h.b16 %v170
    %v313 = vpack.c.b16 %v253, %v249
    %v314 = vpack.c.b16 %v254, %v250
    %v315 = vpack.c.b16 %v255, %v251
    %v316 = vpack.c.b16 %v256, %v252
    %v317 = vpack.c.b16 %v261, %v257
    %v318 = vpack.c.b16 %v262, %v258
    %v319 = vpack.c.b16 %v263, %v259
    %v320 = vpack.c.b16 %v264, %v260
    %v321 = vpack.c.b16 %v269, %v265
    %v322 = vpack.c.b16 %v270, %v266
    %v323 = vpack.c.b16 %v271, %v267
    %v324 = vpack.c.b16 %v272, %v268
    %v325 = vpack.c.b16 %v277, %v273
    %v326 = vpack.c.b16 %v278, %v274
    %v327 = vpack.c.b16 %v279, %v275
    %v328 = vpack.c.b16 %v280, %v276
    %v329 = vpack.c.b16 %v285, %v281
    %v330 = vpack.c.b16 %v286, %v282
    %v331 = vpack.c.b16 %v287, %v283
    %v332 = vpack.c.b16 %v288, %v284
    %v333 = vpack.c.b16 %v293, %v289
    %v334 = vpack.c.b16 %v294, %v290
    %v335 = vpack.c.b16 %v295, %v291
    %v336 = vpack.c.b16 %v296, %v292
    %v337 = vpack.c.b16 %v301, %v297
    %v338 = vpack.c.b16 %v302, %v298
    %v339 = vpack.c.b16 %v303, %v299
    %v340 = vpack.c.b16 %v304, %v300
    %v341 = vpack.c.b16 %v309, %v305
    %v342 = vpack.c.b16 %v310, %v306
    %v343 = vpack.c.b16 %v311, %v307
    %v344 = vpack.c.b16 %v312, %v308
    %377 = vmatprep.subr.bf16.mxu0 %v314
    %378 = vmatpush1.bf16.msra.mxu0 %v313
    %379 = vmatprep.subr.bf16.mxu0 %v318
    %380 = vmatpush1.bf16.msra.mxu0 %v317
    %381 = vmatprep.subr.bf16.mxu0 %v322
    %382 = vmatpush1.bf16.msra.mxu0 %v321
    %383 = vmatprep.subr.bf16.mxu0 %v326
    %384 = vmatpush1.bf16.msra.mxu0 %v325
    %385 = vmatprep.subr.bf16.mxu0 %v330
    %386 = vmatpush1.bf16.msra.mxu0 %v329
    %387 = vmatprep.subr.bf16.mxu0 %v334
    %388 = vmatpush1.bf16.msra.mxu0 %v333
    %389 = vmatprep.subr.bf16.mxu0 %v338
    %390 = vmatpush1.bf16.msra.mxu0 %v337
    %391 = vmatprep.subr.bf16.mxu0 %v342
    %392 = vmatpush1.bf16.msra.mxu0 %v341
    %393 = vmatprep.subr.bf16.mxu0 0
    %394 = vmatpush1.bf16.msra.mxu0 0
    %395 = vmatprep.subr.bf16.mxu0 0
    %396 = vmatpush1.bf16.msra.mxu0 0
    %397 = vmatprep.subr.bf16.mxu0 0
    %398 = vmatpush1.bf16.msra.mxu0 0
    %399 = vmatprep.subr.bf16.mxu0 0
    %400 = vmatpush1.bf16.msra.mxu0 0
    %401 = vmatprep.subr.bf16.mxu0 0
    %402 = vmatpush1.bf16.msra.mxu0 0
    %403 = vmatprep.subr.bf16.mxu0 0
    %404 = vmatpush1.bf16.msra.mxu0 0
    %405 = vmatprep.subr.bf16.mxu0 0
    %406 = vmatpush1.bf16.msra.mxu0 0
    %407 = vmatprep.subr.bf16.mxu0 0
    %408 = vmatpush1.bf16.msra.mxu0 0
    %409 = vmatprep.mubr.bf16.mxu0 0
    %410 = vmatmul.mubr.bf16.gmra.mrb[0].mxu0 %v209
    %v411 = vpop.f32.mrb[0].mxu0
    %v412 = vadd.f32 %v176, %v411
    %v413 = vpop.f32.mrb[0].mxu0
    %v414 = vadd.f32 %v180, %v413
    %v415 = vpop.f32.mrb[0].mxu0
    %v416 = vadd.f32 %v176, %v415
    %v417 = vpop.f32.mrb[0].mxu0
    %v418 = vadd.f32 %v180, %v417
    %419 = vmatprep.mubr.bf16.mxu0 0
    %420 = vmatmul.mubr.bf16.gmra.mrb[0].mxu0 %v210
    %v421 = vpop.f32.mrb[0].mxu0
    %v422 = vadd.f32 %v176, %v421
    %v423 = vpop.f32.mrb[0].mxu0
    %v424 = vadd.f32 %v180, %v423
    %v425 = vpop.f32.mrb[0].mxu0
    %v426 = vadd.f32 %v176, %v425
    %v427 = vpop.f32.mrb[0].mxu0
    %v428 = vadd.f32 %v180, %v427
    %429 = vmatprep.mubr.bf16.mxu0 0
    %430 = vmatmul.mubr.bf16.gmra.mrb[0].mxu0 %v211
    %v431 = vpop.f32.mrb[0].mxu0
    %v432 = vadd.f32 %v176, %v431
    %v433 = vpop.f32.mrb[0].mxu0
    %v434 = vadd.f32 %v180, %v433
    %v435 = vpop.f32.mrb[0].mxu0
    %v436 = vadd.f32 %v176, %v435
    %v437 = vpop.f32.mrb[0].mxu0
    %v438 = vadd.f32 %v180, %v437
    %439 = vmatprep.mubr.bf16.mxu0 0
    %440 = vmatmul.mubr.bf16.gmra.mrb[0].mxu0 %v212
    %v441 = vpop.f32.mrb[0].mxu0
    %v442 = vadd.f32 %v176, %v441
    %v443 = vpop.f32.mrb[0].mxu0
    %v444 = vadd.f32 %v180, %v443
    %v445 = vpop.f32.mrb[0].mxu0
    %v446 = vadd.f32 %v176, %v445
    %v447 = vpop.f32.mrb[0].mxu0
    %v448 = vadd.f32 %v180, %v447
    %449 = vdwg.mxu0
    %450 = vmatprep.subr.bf16.mxu0 %v316
    %451 = vmatpush1.bf16.msra.mxu0 %v315
    %452 = vmatprep.subr.bf16.mxu0 %v320
    %453 = vmatpush1.bf16.msra.mxu0 %v319
    %454 = vmatprep.subr.bf16.mxu0 %v324
    %455 = vmatpush1.bf16.msra.mxu0 %v323
    %456 = vmatprep.subr.bf16.mxu0 %v328
    %457 = vmatpush1.bf16.msra.mxu0 %v327
    %458 = vmatprep.subr.bf16.mxu0 %v332
    %459 = vmatpush1.bf16.msra.mxu0 %v331
    %460 = vmatprep.subr.bf16.mxu0 %v336
    %461 = vmatpush1.bf16.msra.mxu0 %v335
    %462 = vmatprep.subr.bf16.mxu0 %v340
    %463 = vmatpush1.bf16.msra.mxu0 %v339
    %464 = vmatprep.subr.bf16.mxu0 %v344
    %465 = vmatpush1.bf16.msra.mxu0 %v343
    %466 = vmatprep.subr.bf16.mxu0 0
    %467 = vmatpush1.bf16.msra.mxu0 0
    %468 = vmatprep.subr.bf16.mxu0 0
    %469 = vmatpush1.bf16.msra.mxu0 0
    %470 = vmatprep.subr.bf16.mxu0 0
    %471 = vmatpush1.bf16.msra.mxu0 0
    %472 = vmatprep.subr.bf16.mxu0 0
    %473 = vmatpush1.bf16.msra.mxu0 0
    %474 = vmatprep.subr.bf16.mxu0 0
    %475 = vmatpush1.bf16.msra.mxu0 0
    %476 = vmatprep.subr.bf16.mxu0 0
    %477 = vmatpush1.bf16.msra.mxu0 0
    %478 = vmatprep.subr.bf16.mxu0 0
    %479 = vmatpush1.bf16.msra.mxu0 0
    %480 = vmatprep.subr.bf16.mxu0 0
    %481 = vmatpush1.bf16.msra.mxu0 0
    %482 = vmatprep.mubr.bf16.mxu0 0
    %483 = vmatmul.mubr.bf16.gmra.mrb[0].mxu0 %v209
    %v484 = vpop.f32.mrb[0].mxu0
    %v485 = vadd.f32 %v184, %v484
    %v486 = vpop.f32.mrb[0].mxu0
    %v487 = vadd.f32 %v188, %v486
    %v488 = vpop.f32.mrb[0].mxu0
    %v489 = vadd.f32 %v184, %v488
    %v490 = vpop.f32.mrb[0].mxu0
    %v491 = vadd.f32 %v188, %v490
    %492 = vmatprep.mubr.bf16.mxu0 0
    %493 = vmatmul.mubr.bf16.gmra.mrb[0].mxu0 %v210
    %v494 = vpop.f32.mrb[0].mxu0
    %v495 = vadd.f32 %v184, %v494
    %v496 = vpop.f32.mrb[0].mxu0
    %v497 = vadd.f32 %v188, %v496
    %v498 = vpop.f32.mrb[0].mxu0
    %v499 = vadd.f32 %v184, %v498
    %v500 = vpop.f32.mrb[0].mxu0
    %v501 = vadd.f32 %v188, %v500
    %502 = vmatprep.mubr.bf16.mxu0 0
    %503 = vmatmul.mubr.bf16.gmra.mrb[0].mxu0 %v211
    %v504 = vpop.f32.mrb[0].mxu0
    %v505 = vadd.f32 %v184, %v504
    %v506 = vpop.f32.mrb[0].mxu0
    %v507 = vadd.f32 %v188, %v506
    %v508 = vpop.f32.mrb[0].mxu0
    %v509 = vadd.f32 %v184, %v508
    %v510 = vpop.f32.mrb[0].mxu0
    %v511 = vadd.f32 %v188, %v510
    %512 = vmatprep.mubr.bf16.mxu0 0
    %513 = vmatmul.mubr.bf16.gmra.mrb[0].mxu0 %v212
    %v514 = vpop.f32.mrb[0].mxu0
    %v515 = vadd.f32 %v184, %v514
    %v516 = vpop.f32.mrb[0].mxu0
    %v517 = vadd.f32 %v188, %v516
    %v518 = vpop.f32.mrb[0].mxu0
    %v519 = vadd.f32 %v184, %v518
    %v520 = vpop.f32.mrb[0].mxu0
    %v521 = vadd.f32 %v188, %v520
    %522 = vdwg.mxu0
    %523 = vst [vmem:[#allocation6] sm:$0xff] %v412
    %524 = vst [vmem:[#allocation6 + $0x8] sm:$0xff] %v414
    %525 = vst [vmem:[#allocation6 + $0x10] sm:$0xff] %v485
    %526 = vst [vmem:[#allocation6 + $0x18] sm:$0xff] %v487
    %527 = vst [vmem:[#allocation6 + $0x20] sm:$0xff] %v416
    %528 = vst [vmem:[#allocation6 + $0x28] sm:$0xff] %v418
    %529 = vst [vmem:[#allocation6 + $0x30] sm:$0xff] %v489
    %530 = vst [vmem:[#allocation6 + $0x38] sm:$0xff] %v491
    %531 = vst [vmem:[#allocation6 + $0x40] sm:$0xff] %v422
    %532 = vst [vmem:[#allocation6 + $0x48] sm:$0xff] %v424
    %533 = vst [vmem:[#allocation6 + $0x50] sm:$0xff] %v495
    %534 = vst [vmem:[#allocation6 + $0x58] sm:$0xff] %v497
    %535 = vst [vmem:[#allocation6 + $0x60] sm:$0xff] %v426
    %536 = vst [vmem:[#allocation6 + $0x68] sm:$0xff] %v428
    %537 = vst [vmem:[#allocation6 + $0x70] sm:$0xff] %v499
    %538 = vst [vmem:[#allocation6 + $0x78] sm:$0xff] %v501
    %539 = vst [vmem:[#allocation6 + $0x80] sm:$0xff] %v432
    %540 = vst [vmem:[#allocation6 + $0x88] sm:$0xff] %v434
    %541 = vst [vmem:[#allocation6 + $0x90] sm:$0xff] %v505
    %542 = vst [vmem:[#allocation6 + $0x98] sm:$0xff] %v507
    %543 = vst [vmem:[#allocation6 + $0xa0] sm:$0xff] %v436
    %544 = vst [vmem:[#allocation6 + $0xa8] sm:$0xff] %v438
    %545 = vst [vmem:[#allocation6 + $0xb0] sm:$0xff] %v509
    %546 = vst [vmem:[#allocation6 + $0xb8] sm:$0xff] %v511
    %547 = vst [vmem:[#allocation6 + $0xc0] sm:$0xff] %v442
    %548 = vst [vmem:[#allocation6 + $0xc8] sm:$0xff] %v444
    %549 = vst [vmem:[#allocation6 + $0xd0] sm:$0xff] %v515
    %550 = vst [vmem:[#allocation6 + $0xd8] sm:$0xff] %v517
    %551 = vst [vmem:[#allocation6 + $0xe0] sm:$0xff] %v446
    %552 = vst [vmem:[#allocation6 + $0xe8] sm:$0xff] %v448
    %553 = vst [vmem:[#allocation6 + $0xf0] sm:$0xff] %v519
    %554 = vst [vmem:[#allocation6 + $0xf8] sm:$0xff] %v521
    %v555 = vld [vmem:[#allocation2] sm:$0xff]
    %v556 = vld [vmem:[#allocation3] sm:$0xff]
    %s557 = smul.u32 0, 4
    %s558 = smul.addr %s557, 8
    %s559 = scalar_lea.vmem [#allocation6], %s558
    %v560 = vld [vmem:[%s559] sm:$0xff]
    %v561 = vld [vmem:[%s559 + $0x8] sm:$0xff]
    %v562 = vld [vmem:[%s559 + $0x10] sm:$0xff]
    %v563 = vld [vmem:[%s559 + $0x18] sm:$0xff]
    %v564 = vpack.c.bf16 %v555, %v555
    %v565 = vld [vmem:[#allocation14] sm:$0xff]
    %v566 = vld [vmem:[#allocation14 + $0x8] sm:$0xff]
    %v567 = vld [vmem:[#allocation14 + $0x10] sm:$0xff]
    %v568 = vld [vmem:[#allocation14 + $0x18] sm:$0xff]
    %v569 = vld [vmem:[#allocation14 + $0x20] sm:$0xff]
    %v570 = vld [vmem:[#allocation14 + $0x28] sm:$0xff]
    %v571 = vld [vmem:[#allocation14 + $0x30] sm:$0xff]
    %v572 = vld [vmem:[#allocation14 + $0x38] sm:$0xff]
    %v573 = vld [vmem:[#allocation14 + $0x40] sm:$0xff]
    %v574 = vld [vmem:[#allocation14 + $0x48] sm:$0xff]
    %v575 = vld [vmem:[#allocation14 + $0x50] sm:$0xff]
    %v576 = vld [vmem:[#allocation14 + $0x58] sm:$0xff]
    %v577 = vld [vmem:[#allocation14 + $0x60] sm:$0xff]
    %v578 = vld [vmem:[#allocation14 + $0x68] sm:$0xff]
    %v579 = vld [vmem:[#allocation14 + $0x70] sm:$0xff]
    %v580 = vld [vmem:[#allocation14 + $0x78] sm:$0xff]
    %v581 = vld [vmem:[#allocation14 + $0x80] sm:$0xff]
    %v582 = vld [vmem:[#allocation14 + $0x88] sm:$0xff]
    %v583 = vld [vmem:[#allocation14 + $0x90] sm:$0xff]
    %v584 = vld [vmem:[#allocation14 + $0x98] sm:$0xff]
    %v585 = vld [vmem:[#allocation14 + $0xa0] sm:$0xff]
    %v586 = vld [vmem:[#allocation14 + $0xa8] sm:$0xff]
    %v587 = vld [vmem:[#allocation14 + $0xb0] sm:$0xff]
    %v588 = vld [vmem:[#allocation14 + $0xb8] sm:$0xff]
    %v589 = vld [vmem:[#allocation14 + $0xc0] sm:$0xff]
    %v590 = vld [vmem:[#allocation14 + $0xc8] sm:$0xff]
    %v591 = vld [vmem:[#allocation14 + $0xd0] sm:$0xff]
    %v592 = vld [vmem:[#allocation14 + $0xd8] sm:$0xff]
    %v593 = vld [vmem:[#allocation14 + $0xe0] sm:$0xff]
    %v594 = vld [vmem:[#allocation14 + $0xe8] sm:$0xff]
    %v595 = vld [vmem:[#allocation14 + $0xf0] sm:$0xff]
    %v596 = vld [vmem:[#allocation14 + $0xf8] sm:$0xff]
    %v629 = vunpack.c.l.b16 %v565
    %v630 = vunpack.c.h.b16 %v565
    %v631 = vunpack.c.l.b16 %v566
    %v632 = vunpack.c.h.b16 %v566
    %v633 = vunpack.c.l.b16 %v567
    %v634 = vunpack.c.h.b16 %v567
    %v635 = vunpack.c.l.b16 %v568
    %v636 = vunpack.c.h.b16 %v568
    %v637 = vunpack.c.l.b16 %v569
    %v638 = vunpack.c.h.b16 %v569
    %v639 = vunpack.c.l.b16 %v570
    %v640 = vunpack.c.h.b16 %v570
    %v641 = vunpack.c.l.b16 %v571
    %v642 = vunpack.c.h.b16 %v571
    %v643 = vunpack.c.l.b16 %v572
    %v644 = vunpack.c.h.b16 %v572
    %v645 = vunpack.c.l.b16 %v573
    %v646 = vunpack.c.h.b16 %v573
    %v647 = vunpack.c.l.b16 %v574
    %v648 = vunpack.c.h.b16 %v574
    %v649 = vunpack.c.l.b16 %v575
    %v650 = vunpack.c.h.b16 %v575
    %v651 = vunpack.c.l.b16 %v576
    %v652 = vunpack.c.h.b16 %v576
    %v653 = vunpack.c.l.b16 %v577
    %v654 = vunpack.c.h.b16 %v577
    %v655 = vunpack.c.l.b16 %v578
    %v656 = vunpack.c.h.b16 %v578
    %v657 = vunpack.c.l.b16 %v579
    %v658 = vunpack.c.h.b16 %v579
    %v659 = vunpack.c.l.b16 %v580
    %v660 = vunpack.c.h.b16 %v580
    %v661 = vunpack.c.l.b16 %v581
    %v662 = vunpack.c.h.b16 %v581
    %v663 = vunpack.c.l.b16 %v582
    %v664 = vunpack.c.h.b16 %v582
    %v665 = vunpack.c.l.b16 %v583
    %v666 = vunpack.c.h.b16 %v583
    %v667 = vunpack.c.l.b16 %v584
    %v668 = vunpack.c.h.b16 %v584
    %v669 = vunpack.c.l.b16 %v585
    %v670 = vunpack.c.h.b16 %v585
    %v671 = vunpack.c.l.b16 %v586
    %v672 = vunpack.c.h.b16 %v586
    %v673 = vunpack.c.l.b16 %v587
    %v674 = vunpack.c.h.b16 %v587
    %v675 = vunpack.c.l.b16 %v588
    %v676 = vunpack.c.h.b16 %v588
    %v677 = vunpack.c.l.b16 %v589
    %v678 = vunpack.c.h.b16 %v589
    %v679 = vunpack.c.l.b16 %v590
    %v680 = vunpack.c.h.b16 %v590
    %v681 = vunpack.c.l.b16 %v591
    %v682 = vunpack.c.h.b16 %v591
    %v683 = vunpack.c.l.b16 %v592
    %v684 = vunpack.c.h.b16 %v592
    %v685 = vunpack.c.l.b16 %v593
    %v686 = vunpack.c.h.b16 %v593
    %v687 = vunpack.c.l.b16 %v594
    %v688 = vunpack.c.h.b16 %v594
    %v689 = vunpack.c.l.b16 %v595
    %v690 = vunpack.c.h.b16 %v595
    %v691 = vunpack.c.l.b16 %v596
    %v692 = vunpack.c.h.b16 %v596
    %v693 = vpack.c.b16 %v633, %v629
    %v694 = vpack.c.b16 %v634, %v630
    %v695 = vpack.c.b16 %v635, %v631
    %v696 = vpack.c.b16 %v636, %v632
    %v697 = vpack.c.b16 %v641, %v637
    %v698 = vpack.c.b16 %v642, %v638
    %v699 = vpack.c.b16 %v643, %v639
    %v700 = vpack.c.b16 %v644, %v640
    %v701 = vpack.c.b16 %v649, %v645
    %v702 = vpack.c.b16 %v650, %v646
    %v703 = vpack.c.b16 %v651, %v647
    %v704 = vpack.c.b16 %v652, %v648
    %v705 = vpack.c.b16 %v657, %v653
    %v706 = vpack.c.b16 %v658, %v654
    %v707 = vpack.c.b16 %v659, %v655
    %v708 = vpack.c.b16 %v660, %v656
    %v709 = vpack.c.b16 %v665, %v661
    %v710 = vpack.c.b16 %v666, %v662
    %v711 = vpack.c.b16 %v667, %v663
    %v712 = vpack.c.b16 %v668, %v664
    %v713 = vpack.c.b16 %v673, %v669
    %v714 = vpack.c.b16 %v674, %v670
    %v715 = vpack.c.b16 %v675, %v671
    %v716 = vpack.c.b16 %v676, %v672
    %v717 = vpack.c.b16 %v681, %v677
    %v718 = vpack.c.b16 %v682, %v678
    %v719 = vpack.c.b16 %v683, %v679
    %v720 = vpack.c.b16 %v684, %v680
    %v721 = vpack.c.b16 %v689, %v685
    %v722 = vpack.c.b16 %v690, %v686
    %v723 = vpack.c.b16 %v691, %v687
    %v724 = vpack.c.b16 %v692, %v688
    %757 = vmatprep.subr.bf16.mxu0 %v694
    %758 = vmatpush1.bf16.msra.mxu0 %v693
    %759 = vmatprep.subr.bf16.mxu0 %v698
    %760 = vmatpush1.bf16.msra.mxu0 %v697
    %761 = vmatprep.subr.bf16.mxu0 %v702
    %762 = vmatpush1.bf16.msra.mxu0 %v701
    %763 = vmatprep.subr.bf16.mxu0 %v706
    %764 = vmatpush1.bf16.msra.mxu0 %v705
    %765 = vmatprep.subr.bf16.mxu0 %v710
    %766 = vmatpush1.bf16.msra.mxu0 %v709
    %767 = vmatprep.subr.bf16.mxu0 %v714
    %768 = vmatpush1.bf16.msra.mxu0 %v713
    %769 = vmatprep.subr.bf16.mxu0 %v718
    %770 = vmatpush1.bf16.msra.mxu0 %v717
    %771 = vmatprep.subr.bf16.mxu0 %v722
    %772 = vmatpush1.bf16.msra.mxu0 %v721
    %773 = vmatprep.subr.bf16.mxu0 0
    %774 = vmatpush1.bf16.msra.mxu0 0
    %775 = vmatprep.subr.bf16.mxu0 0
    %776 = vmatpush1.bf16.msra.mxu0 0
    %777 = vmatprep.subr.bf16.mxu0 0
    %778 = vmatpush1.bf16.msra.mxu0 0
    %779 = vmatprep.subr.bf16.mxu0 0
    %780 = vmatpush1.bf16.msra.mxu0 0
    %781 = vmatprep.subr.bf16.mxu0 0
    %782 = vmatpush1.bf16.msra.mxu0 0
    %783 = vmatprep.subr.bf16.mxu0 0
    %784 = vmatpush1.bf16.msra.mxu0 0
    %785 = vmatprep.subr.bf16.mxu0 0
    %786 = vmatpush1.bf16.msra.mxu0 0
    %787 = vmatprep.subr.bf16.mxu0 0
    %788 = vmatpush1.bf16.msra.mxu0 0
    %789 = vmatprep.mubr.bf16.mxu0 0
    %790 = vmatmul.mubr.bf16.gmra.mrb[0].mxu0 %v564
    %v791 = vpop.f32.mrb[0].mxu0
    %v792 = vadd.f32 0.0, %v791
    %v793 = vpop.f32.mrb[0].mxu0
    %v794 = vadd.f32 0.0, %v793
    %v795 = vpop.f32.mrb[0].mxu0
    %v796 = vpop.f32.mrb[0].mxu0
    %797 = vdwg.mxu0
    %798 = vmatprep.subr.bf16.mxu0 %v696
    %799 = vmatpush1.bf16.msra.mxu0 %v695
    %800 = vmatprep.subr.bf16.mxu0 %v700
    %801 = vmatpush1.bf16.msra.mxu0 %v699
    %802 = vmatprep.subr.bf16.mxu0 %v704
    %803 = vmatpush1.bf16.msra.mxu0 %v703
    %804 = vmatprep.subr.bf16.mxu0 %v708
    %805 = vmatpush1.bf16.msra.mxu0 %v707
    %806 = vmatprep.subr.bf16.mxu0 %v712
    %807 = vmatpush1.bf16.msra.mxu0 %v711
    %808 = vmatprep.subr.bf16.mxu0 %v716
    %809 = vmatpush1.bf16.msra.mxu0 %v715
    %810 = vmatprep.subr.bf16.mxu0 %v720
    %811 = vmatpush1.bf16.msra.mxu0 %v719
    %812 = vmatprep.subr.bf16.mxu0 %v724
    %813 = vmatpush1.bf16.msra.mxu0 %v723
    %814 = vmatprep.subr.bf16.mxu0 0
    %815 = vmatpush1.bf16.msra.mxu0 0
    %816 = vmatprep.subr.bf16.mxu0 0
    %817 = vmatpush1.bf16.msra.mxu0 0
    %818 = vmatprep.subr.bf16.mxu0 0
    %819 = vmatpush1.bf16.msra.mxu0 0
    %820 = vmatprep.subr.bf16.mxu0 0
    %821 = vmatpush1.bf16.msra.mxu0 0
    %822 = vmatprep.subr.bf16.mxu0 0
    %823 = vmatpush1.bf16.msra.mxu0 0
    %824 = vmatprep.subr.bf16.mxu0 0
    %825 = vmatpush1.bf16.msra.mxu0 0
    %826 = vmatprep.subr.bf16.mxu0 0
    %827 = vmatpush1.bf16.msra.mxu0 0
    %828 = vmatprep.subr.bf16.mxu0 0
    %829 = vmatpush1.bf16.msra.mxu0 0
    %830 = vmatprep.mubr.bf16.mxu0 0
    %831 = vmatmul.mubr.bf16.gmra.mrb[0].mxu0 %v564
    %v832 = vpop.f32.mrb[0].mxu0
    %v833 = vadd.f32 0.0, %v832
    %v834 = vpop.f32.mrb[0].mxu0
    %v835 = vadd.f32 0.0, %v834
    %v836 = vpop.f32.mrb[0].mxu0
    %v837 = vpop.f32.mrb[0].mxu0
    %838 = vdwg.mxu0
    %v839 = vadd.f32 %v560, %v792
    %v840 = vadd.f32 %v561, %v794
    %v841 = vadd.f32 %v562, %v833
    %v842 = vadd.f32 %v563, %v835
    %v843 = vxor.u32 %v839, 2147483648
    %v844 = vmul.f32 %v843, 1.442695
    %v845 = vpow.pop %v844
    %v846 = vadd.f32 %v845, 1.0
    %v847 = vrcp.pop %v846
    %v848 = vmul.f32 1.0, %v847
    %v849 = vxor.u32 %v840, 2147483648
    %v850 = vmul.f32 %v849, 1.442695
    %v851 = vpow.pop %v850
    %v852 = vadd.f32 %v851, 1.0
    %v853 = vrcp.pop %v852
    %v854 = vmul.f32 1.0, %v853
    %v855 = vtanh.pop %v841
    %v856 = vxor.u32 %v842, 2147483648
    %v857 = vmul.f32 %v856, 1.442695
    %v858 = vpow.pop %v857
    %v859 = vadd.f32 %v858, 1.0
    %v860 = vrcp.pop %v859
    %v861 = vmul.f32 1.0, %v860
    %v862 = vmul.f32 %v854, %v556
    %v863 = vmul.f32 %v848, %v855
    %v864 = vadd.f32 %v862, %v863
    %v865 = vtanh.pop %v864
    %v866 = vmul.f32 %v861, %v865
    %867 = vst [vmem:[#allocation7] sm:$0xff] %v866
    %s868 = smul.u32 1, 4
    %s869 = smul.addr %s868, 8
    %s870 = scalar_lea.vmem [#allocation6], %s869
    %v871 = vld [vmem:[%s870] sm:$0xff]
    %v872 = vld [vmem:[%s870 + $0x8] sm:$0xff]
    %v873 = vld [vmem:[%s870 + $0x10] sm:$0xff]
    %v874 = vld [vmem:[%s870 + $0x18] sm:$0xff]
    %v875 = vpack.c.bf16 %v866, %v866
    %v876 = vld [vmem:[#allocation14] sm:$0xff]
    %v877 = vld [vmem:[#allocation14 + $0x8] sm:$0xff]
    %v878 = vld [vmem:[#allocation14 + $0x10] sm:$0xff]
    %v879 = vld [vmem:[#allocation14 + $0x18] sm:$0xff]
    %v880 = vld [vmem:[#allocation14 + $0x20] sm:$0xff]
    %v881 = vld [vmem:[#allocation14 + $0x28] sm:$0xff]
    %v882 = vld [vmem:[#allocation14 + $0x30] sm:$0xff]
    %v883 = vld [vmem:[#allocation14 + $0x38] sm:$0xff]
    %v884 = vld [vmem:[#allocation14 + $0x40] sm:$0xff]
    %v885 = vld [vmem:[#allocation14 + $0x48] sm:$0xff]
    %v886 = vld [vmem:[#allocation14 + $0x50] sm:$0xff]
    %v887 = vld [vmem:[#allocation14 + $0x58] sm:$0xff]
    %v888 = vld [vmem:[#allocation14 + $0x60] sm:$0xff]
    %v889 = vld [vmem:[#allocation14 + $0x68] sm:$0xff]
    %v890 = vld [vmem:[#allocation14 + $0x70] sm:$0xff]
    %v891 = vld [vmem:[#allocation14 + $0x78] sm:$0xff]
    %v892 = vld [vmem:[#allocation14 + $0x80] sm:$0xff]
    %v893 = vld [vmem:[#allocation14 + $0x88] sm:$0xff]
    %v894 = vld [vmem:[#allocation14 + $0x90] sm:$0xff]
    %v895 = vld [vmem:[#allocation14 + $0x98] sm:$0xff]
    %v896 = vld [vmem:[#allocation14 + $0xa0] sm:$0xff]
    %v897 = vld [vmem:[#allocation14 + $0xa8] sm:$0xff]
    %v898 = vld [vmem:[#allocation14 + $0xb0] sm:$0xff]
    %v899 = vld [vmem:[#allocation14 + $0xb8] sm:$0xff]
    %v900 = vld [vmem:[#allocation14 + $0xc0] sm:$0xff]
    %v901 = vld [vmem:[#allocation14 + $0xc8] sm:$0xff]
    %v902 = vld [vmem:[#allocation14 + $0xd0] sm:$0xff]
    %v903 = vld [vmem:[#allocation14 + $0xd8] sm:$0xff]
    %v904 = vld [vmem:[#allocation14 + $0xe0] sm:$0xff]
    %v905 = vld [vmem:[#allocation14 + $0xe8] sm:$0xff]
    %v906 = vld [vmem:[#allocation14 + $0xf0] sm:$0xff]
    %v907 = vld [vmem:[#allocation14 + $0xf8] sm:$0xff]
    %v940 = vunpack.c.l.b16 %v876
    %v941 = vunpack.c.h.b16 %v876
    %v942 = vunpack.c.l.b16 %v877
    %v943 = vunpack.c.h.b16 %v877
    %v944 = vunpack.c.l.b16 %v878
    %v945 = vunpack.c.h.b16 %v878
    %v946 = vunpack.c.l.b16 %v879
    %v947 = vunpack.c.h.b16 %v879
    %v948 = vunpack.c.l.b16 %v880
    %v949 = vunpack.c.h.b16 %v880
    %v950 = vunpack.c.l.b16 %v881
    %v951 = vunpack.c.h.b16 %v881
    %v952 = vunpack.c.l.b16 %v882
    %v953 = vunpack.c.h.b16 %v882
    %v954 = vunpack.c.l.b16 %v883
    %v955 = vunpack.c.h.b16 %v883
    %v956 = vunpack.c.l.b16 %v884
    %v957 = vunpack.c.h.b16 %v884
    %v958 = vunpack.c.l.b16 %v885
    %v959 = vunpack.c.h.b16 %v885
    %v960 = vunpack.c.l.b16 %v886
    %v961 = vunpack.c.h.b16 %v886
    %v962 = vunpack.c.l.b16 %v887
    %v963 = vunpack.c.h.b16 %v887
    %v964 = vunpack.c.l.b16 %v888
    %v965 = vunpack.c.h.b16 %v888
    %v966 = vunpack.c.l.b16 %v889
    %v967 = vunpack.c.h.b16 %v889
    %v968 = vunpack.c.l.b16 %v890
    %v969 = vunpack.c.h.b16 %v890
    %v970 = vunpack.c.l.b16 %v891
    %v971 = vunpack.c.h.b16 %v891
    %v972 = vunpack.c.l.b16 %v892
    %v973 = vunpack.c.h.b16 %v892
    %v974 = vunpack.c.l.b16 %v893
    %v975 = vunpack.c.h.b16 %v893
    %v976 = vunpack.c.l.b16 %v894
    %v977 = vunpack.c.h.b16 %v894
    %v978 = vunpack.c.l.b16 %v895
    %v979 = vunpack.c.h.b16 %v895
    %v980 = vunpack.c.l.b16 %v896
    %v981 = vunpack.c.h.b16 %v896
    %v982 = vunpack.c.l.b16 %v897
    %v983 = vunpack.c.h.b16 %v897
    %v984 = vunpack.c.l.b16 %v898
    %v985 = vunpack.c.h.b16 %v898
    %v986 = vunpack.c.l.b16 %v899
    %v987 = vunpack.c.h.b16 %v899
    %v988 = vunpack.c.l.b16 %v900
    %v989 = vunpack.c.h.b16 %v900
    %v990 = vunpack.c.l.b16 %v901
    %v991 = vunpack.c.h.b16 %v901
    %v992 = vunpack.c.l.b16 %v902
    %v993 = vunpack.c.h.b16 %v902
    %v994 = vunpack.c.l.b16 %v903
    %v995 = vunpack.c.h.b16 %v903
    %v996 = vunpack.c.l.b16 %v904
    %v997 = vunpack.c.h.b16 %v904
    %v998 = vunpack.c.l.b16 %v905
    %v999 = vunpack.c.h.b16 %v905
    %v1000 = vunpack.c.l.b16 %v906
    %v1001 = vunpack.c.h.b16 %v906
    %v1002 = vunpack.c.l.b16 %v907
    %v1003 = vunpack.c.h.b16 %v907
    %v1004 = vpack.c.b16 %v944, %v940
    %v1005 = vpack.c.b16 %v945, %v941
    %v1006 = vpack.c.b16 %v946, %v942
    %v1007 = vpack.c.b16 %v947, %v943
    %v1008 = vpack.c.b16 %v952, %v948
    %v1009 = vpack.c.b16 %v953, %v949
    %v1010 = vpack.c.b16 %v954, %v950
    %v1011 = vpack.c.b16 %v955, %v951
    %v1012 = vpack.c.b16 %v960, %v956
    %v1013 = vpack.c.b16 %v961, %v957
    %v1014 = vpack.c.b16 %v962, %v958
    %v1015 = vpack.c.b16 %v963, %v959
    %v1016 = vpack.c.b16 %v968, %v964
    %v1017 = vpack.c.b16 %v969, %v965
    %v1018 = vpack.c.b16 %v970, %v966
    %v1019 = vpack.c.b16 %v971, %v967
    %v1020 = vpack.c.b16 %v976, %v972
    %v1021 = vpack.c.b16 %v977, %v973
    %v1022 = vpack.c.b16 %v978, %v974
    %v1023 = vpack.c.b16 %v979, %v975
    %v1024 = vpack.c.b16 %v984, %v980
    %v1025 = vpack.c.b16 %v985, %v981
    %v1026 = vpack.c.b16 %v986, %v982
    %v1027 = vpack.c.b16 %v987, %v983
    %v1028 = vpack.c.b16 %v992, %v988
    %v1029 = vpack.c.b16 %v993, %v989
    %v1030 = vpack.c.b16 %v994, %v990
    %v1031 = vpack.c.b16 %v995, %v991
    %v1032 = vpack.c.b16 %v1000, %v996
    %v1033 = vpack.c.b16 %v1001, %v997
    %v1034 = vpack.c.b16 %v1002, %v998
    %v1035 = vpack.c.b16 %v1003, %v999
    %1068 = vmatprep.subr.bf16.mxu0 %v1005
    %1069 = vmatpush1.bf16.msra.mxu0 %v1004
    %1070 = vmatprep.subr.bf16.mxu0 %v1009
    %1071 = vmatpush1.bf16.msra.mxu0 %v1008
    %1072 = vmatprep.subr.bf16.mxu0 %v1013
    %1073 = vmatpush1.bf16.msra.mxu0 %v1012
    %1074 = vmatprep.subr.bf16.mxu0 %v1017
    %1075 = vmatpush1.bf16.msra.mxu0 %v1016
    %1076 = vmatprep.subr.bf16.mxu0 %v1021
    %1077 = vmatpush1.bf16.msra.mxu0 %v1020
    %1078 = vmatprep.subr.bf16.mxu0 %v1025
    %1079 = vmatpush1.bf16.msra.mxu0 %v1024
    %1080 = vmatprep.subr.bf16.mxu0 %v1029
    %1081 = vmatpush1.bf16.msra.mxu0 %v1028
    %1082 = vmatprep.subr.bf16.mxu0 %v1033
    %1083 = vmatpush1.bf16.msra.mxu0 %v1032
    %1084 = vmatprep.subr.bf16.mxu0 0
    %1085 = vmatpush1.bf16.msra.mxu0 0
    %1086 = vmatprep.subr.bf16.mxu0 0
    %1087 = vmatpush1.bf16.msra.mxu0 0
    %1088 = vmatprep.subr.bf16.mxu0 0
    %1089 = vmatpush1.bf16.msra.mxu0 0
    %1090 = vmatprep.subr.bf16.mxu0 0
    %1091 = vmatpush1.bf16.msra.mxu0 0
    %1092 = vmatprep.subr.bf16.mxu0 0
    %1093 = vmatpush1.bf16.msra.mxu0 0
    %1094 = vmatprep.subr.bf16.mxu0 0
    %1095 = vmatpush1.bf16.msra.mxu0 0
    %1096 = vmatprep.subr.bf16.mxu0 0
    %1097 = vmatpush1.bf16.msra.mxu0 0
    %1098 = vmatprep.subr.bf16.mxu0 0
    %1099 = vmatpush1.bf16.msra.mxu0 0
    %1100 = vmatprep.mubr.bf16.mxu0 0
    %1101 = vmatmul.mubr.bf16.gmra.mrb[0].mxu0 %v875
    %v1102 = vpop.f32.mrb[0].mxu0
    %v1103 = vadd.f32 0.0, %v1102
    %v1104 = vpop.f32.mrb[0].mxu0
    %v1105 = vadd.f32 0.0, %v1104
    %v1106 = vpop.f32.mrb[0].mxu0
    %v1107 = vpop.f32.mrb[0].mxu0
    %1108 = vdwg.mxu0
    %1109 = vmatprep.subr.bf16.mxu0 %v1007
    %1110 = vmatpush1.bf16.msra.mxu0 %v1006
    %1111 = vmatprep.subr.bf16.mxu0 %v1011
    %1112 = vmatpush1.bf16.msra.mxu0 %v1010
    %1113 = vmatprep.subr.bf16.mxu0 %v1015
    %1114 = vmatpush1.bf16.msra.mxu0 %v1014
    %1115 = vmatprep.subr.bf16.mxu0 %v1019
    %1116 = vmatpush1.bf16.msra.mxu0 %v1018
    %1117 = vmatprep.subr.bf16.mxu0 %v1023
    %1118 = vmatpush1.bf16.msra.mxu0 %v1022
    %1119 = vmatprep.subr.bf16.mxu0 %v1027
    %1120 = vmatpush1.bf16.msra.mxu0 %v1026
    %1121 = vmatprep.subr.bf16.mxu0 %v1031
    %1122 = vmatpush1.bf16.msra.mxu0 %v1030
    %1123 = vmatprep.subr.bf16.mxu0 %v1035
    %1124 = vmatpush1.bf16.msra.mxu0 %v1034
    %1125 = vmatprep.subr.bf16.mxu0 0
    %1126 = vmatpush1.bf16.msra.mxu0 0
    %1127 = vmatprep.subr.bf16.mxu0 0
    %1128 = vmatpush1.bf16.msra.mxu0 0
    %1129 = vmatprep.subr.bf16.mxu0 0
    %1130 = vmatpush1.bf16.msra.mxu0 0
    %1131 = vmatprep.subr.bf16.mxu0 0
    %1132 = vmatpush1.bf16.msra.mxu0 0
    %1133 = vmatprep.subr.bf16.mxu0 0
    %1134 = vmatpush1.bf16.msra.mxu0 0
    %1135 = vmatprep.subr.bf16.mxu0 0
    %1136 = vmatpush1.bf16.msra.mxu0 0
    %1137 = vmatprep.subr.bf16.mxu0 0
    %1138 = vmatpush1.bf16.msra.mxu0 0
    %1139 = vmatprep.subr.bf16.mxu0 0
    %1140 = vmatpush1.bf16.msra.mxu0 0
    %1141 = vmatprep.mubr.bf16.mxu0 0
    %1142 = vmatmul.mubr.bf16.gmra.mrb[0].mxu0 %v875
    %v1143 = vpop.f32.mrb[0].mxu0
    %v1144 = vadd.f32 0.0, %v1143
    %v1145 = vpop.f32.mrb[0].mxu0
    %v1146 = vadd.f32 0.0, %v1145
    %v1147 = vpop.f32.mrb[0].mxu0
    %v1148 = vpop.f32.mrb[0].mxu0
    %1149 = vdwg.mxu0
    %v1150 = vadd.f32 %v871, %v1103
    %v1151 = vadd.f32 %v872, %v1105
    %v1152 = vadd.f32 %v873, %v1144
    %v1153 = vadd.f32 %v874, %v1146
    %v1154 = vxor.u32 %v1150, 2147483648
    %v1155 = vmul.f32 %v1154, 1.442695
    %v1156 = vpow.pop %v1155
    %v1157 = vadd.f32 %v1156, 1.0
    %v1158 = vrcp.pop %v1157
    %v1159 = vmul.f32 1.0, %v1158
    %v1160 = vxor.u32 %v1151, 2147483648
    %v1161 = vmul.f32 %v1160, 1.442695
    %v1162 = vpow.pop %v1161
    %v1163 = vadd.f32 %v1162, 1.0
    %v1164 = vrcp.pop %v1163
    %v1165 = vmul.f32 1.0, %v1164
    %v1166 = vtanh.pop %v1152
    %v1167 = vxor.u32 %v1153, 2147483648
    %v1168 = vmul.f32 %v1167, 1.442695
    %v1169 = vpow.pop %v1168
    %v1170 = vadd.f32 %v1169, 1.0
    %v1171 = vrcp.pop %v1170
    %v1172 = vmul.f32 1.0, %v1171
    %v1173 = vmul.f32 %v1165, %v864
    %v1174 = vmul.f32 %v1159, %v1166
    %v1175 = vadd.f32 %v1173, %v1174
    %v1176 = vtanh.pop %v1175
    %v1177 = vmul.f32 %v1172, %v1176
    %s1178 = scalar_lea.vmem [#allocation7], 8
    %1179 = vst [vmem:[%s1178] sm:$0xff] %v1177
    %s1180 = smul.u32 2, 4
    %s1181 = smul.addr %s1180, 8
    %s1182 = scalar_lea.vmem [#allocation6], %s1181
    %v1183 = vld [vmem:[%s1182] sm:$0xff]
    %v1184 = vld [vmem:[%s1182 + $0x8] sm:$0xff]
    %v1185 = vld [vmem:[%s1182 + $0x10] sm:$0xff]
    %v1186 = vld [vmem:[%s1182 + $0x18] sm:$0xff]
    %v1187 = vpack.c.bf16 %v1177, %v1177
    %v1188 = vld [vmem:[#allocation14] sm:$0xff]
    %v1189 = vld [vmem:[#allocation14 + $0x8] sm:$0xff]
    %v1190 = vld [vmem:[#allocation14 + $0x10] sm:$0xff]
    %v1191 = vld [vmem:[#allocation14 + $0x18] sm:$0xff]
    %v1192 = vld [vmem:[#allocation14 + $0x20] sm:$0xff]
    %v1193 = vld [vmem:[#allocation14 + $0x28] sm:$0xff]
    %v1194 = vld [vmem:[#allocation14 + $0x30] sm:$0xff]
    %v1195 = vld [vmem:[#allocation14 + $0x38] sm:$0xff]
    %v1196 = vld [vmem:[#allocation14 + $0x40] sm:$0xff]
    %v1197 = vld [vmem:[#allocation14 + $0x48] sm:$0xff]
    %v1198 = vld [vmem:[#allocation14 + $0x50] sm:$0xff]
    %v1199 = vld [vmem:[#allocation14 + $0x58] sm:$0xff]
    %v1200 = vld [vmem:[#allocation14 + $0x60] sm:$0xff]
    %v1201 = vld [vmem:[#allocation14 + $0x68] sm:$0xff]
    %v1202 = vld [vmem:[#allocation14 + $0x70] sm:$0xff]
    %v1203 = vld [vmem:[#allocation14 + $0x78] sm:$0xff]
    %v1204 = vld [vmem:[#allocation14 + $0x80] sm:$0xff]
    %v1205 = vld [vmem:[#allocation14 + $0x88] sm:$0xff]
    %v1206 = vld [vmem:[#allocation14 + $0x90] sm:$0xff]
    %v1207 = vld [vmem:[#allocation14 + $0x98] sm:$0xff]
    %v1208 = vld [vmem:[#allocation14 + $0xa0] sm:$0xff]
    %v1209 = vld [vmem:[#allocation14 + $0xa8] sm:$0xff]
    %v1210 = vld [vmem:[#allocation14 + $0xb0] sm:$0xff]
    %v1211 = vld [vmem:[#allocation14 + $0xb8] sm:$0xff]
    %v1212 = vld [vmem:[#allocation14 + $0xc0] sm:$0xff]
    %v1213 = vld [vmem:[#allocation14 + $0xc8] sm:$0xff]
    %v1214 = vld [vmem:[#allocation14 + $0xd0] sm:$0xff]
    %v1215 = vld [vmem:[#allocation14 + $0xd8] sm:$0xff]
    %v1216 = vld [vmem:[#allocation14 + $0xe0] sm:$0xff]
    %v1217 = vld [vmem:[#allocation14 + $0xe8] sm:$0xff]
    %v1218 = vld [vmem:[#allocation14 + $0xf0] sm:$0xff]
    %v1219 = vld [vmem:[#allocation14 + $0xf8] sm:$0xff]
    %v1252 = vunpack.c.l.b16 %v1188
    %v1253 = vunpack.c.h.b16 %v1188
    %v1254 = vunpack.c.l.b16 %v1189
    %v1255 = vunpack.c.h.b16 %v1189
    %v1256 = vunpack.c.l.b16 %v1190
    %v1257 = vunpack.c.h.b16 %v1190
    %v1258 = vunpack.c.l.b16 %v1191
    %v1259 = vunpack.c.h.b16 %v1191
    %v1260 = vunpack.c.l.b16 %v1192
    %v1261 = vunpack.c.h.b16 %v1192
    %v1262 = vunpack.c.l.b16 %v1193
    %v1263 = vunpack.c.h.b16 %v1193
    %v1264 = vunpack.c.l.b16 %v1194
    %v1265 = vunpack.c.h.b16 %v1194
    %v1266 = vunpack.c.l.b16 %v1195
    %v1267 = vunpack.c.h.b16 %v1195
    %v1268 = vunpack.c.l.b16 %v1196
    %v1269 = vunpack.c.h.b16 %v1196
    %v1270 = vunpack.c.l.b16 %v1197
    %v1271 = vunpack.c.h.b16 %v1197
    %v1272 = vunpack.c.l.b16 %v1198
    %v1273 = vunpack.c.h.b16 %v1198
    %v1274 = vunpack.c.l.b16 %v1199
    %v1275 = vunpack.c.h.b16 %v1199
    %v1276 = vunpack.c.l.b16 %v1200
    %v1277 = vunpack.c.h.b16 %v1200
    %v1278 = vunpack.c.l.b16 %v1201
    %v1279 = vunpack.c.h.b16 %v1201
    %v1280 = vunpack.c.l.b16 %v1202
    %v1281 = vunpack.c.h.b16 %v1202
    %v1282 = vunpack.c.l.b16 %v1203
    %v1283 = vunpack.c.h.b16 %v1203
    %v1284 = vunpack.c.l.b16 %v1204
    %v1285 = vunpack.c.h.b16 %v1204
    %v1286 = vunpack.c.l.b16 %v1205
    %v1287 = vunpack.c.h.b16 %v1205
    %v1288 = vunpack.c.l.b16 %v1206
    %v1289 = vunpack.c.h.b16 %v1206
    %v1290 = vunpack.c.l.b16 %v1207
    %v1291 = vunpack.c.h.b16 %v1207
    %v1292 = vunpack.c.l.b16 %v1208
    %v1293 = vunpack.c.h.b16 %v1208
    %v1294 = vunpack.c.l.b16 %v1209
    %v1295 = vunpack.c.h.b16 %v1209
    %v1296 = vunpack.c.l.b16 %v1210
    %v1297 = vunpack.c.h.b16 %v1210
    %v1298 = vunpack.c.l.b16 %v1211
    %v1299 = vunpack.c.h.b16 %v1211
    %v1300 = vunpack.c.l.b16 %v1212
    %v1301 = vunpack.c.h.b16 %v1212
    %v1302 = vunpack.c.l.b16 %v1213
    %v1303 = vunpack.c.h.b16 %v1213
    %v1304 = vunpack.c.l.b16 %v1214
    %v1305 = vunpack.c.h.b16 %v1214
    %v1306 = vunpack.c.l.b16 %v1215
    %v1307 = vunpack.c.h.b16 %v1215
    %v1308 = vunpack.c.l.b16 %v1216
    %v1309 = vunpack.c.h.b16 %v1216
    %v1310 = vunpack.c.l.b16 %v1217
    %v1311 = vunpack.c.h.b16 %v1217
    %v1312 = vunpack.c.l.b16 %v1218
    %v1313 = vunpack.c.h.b16 %v1218
    %v1314 = vunpack.c.l.b16 %v1219
    %v1315 = vunpack.c.h.b16 %v1219
    %v1316 = vpack.c.b16 %v1256, %v1252
    %v1317 = vpack.c.b16 %v1257, %v1253
    %v1318 = vpack.c.b16 %v1258, %v1254
    %v1319 = vpack.c.b16 %v1259, %v1255
    %v1320 = vpack.c.b16 %v1264, %v1260
    %v1321 = vpack.c.b16 %v1265, %v1261
    %v1322 = vpack.c.b16 %v1266, %v1262
    %v1323 = vpack.c.b16 %v1267, %v1263
    %v1324 = vpack.c.b16 %v1272, %v1268
    %v1325 = vpack.c.b16 %v1273, %v1269
    %v1326 = vpack.c.b16 %v1274, %v1270
    %v1327 = vpack.c.b16 %v1275, %v1271
    %v1328 = vpack.c.b16 %v1280, %v1276
    %v1329 = vpack.c.b16 %v1281, %v1277
    %v1330 = vpack.c.b16 %v1282, %v1278
    %v1331 = vpack.c.b16 %v1283, %v1279
    %v1332 = vpack.c.b16 %v1288, %v1284
    %v1333 = vpack.c.b16 %v1289, %v1285
    %v1334 = vpack.c.b16 %v1290, %v1286
    %v1335 = vpack.c.b16 %v1291, %v1287
    %v1336 = vpack.c.b16 %v1296, %v1292
    %v1337 = vpack.c.b16 %v1297, %v1293
    %v1338 = vpack.c.b16 %v1298, %v1294
    %v1339 = vpack.c.b16 %v1299, %v1295
    %v1340 = vpack.c.b16 %v1304, %v1300
    %v1341 = vpack.c.b16 %v1305, %v1301
    %v1342 = vpack.c.b16 %v1306, %v1302
    %v1343 = vpack.c.b16 %v1307, %v1303
    %v1344 = vpack.c.b16 %v1312, %v1308
    %v1345 = vpack.c.b16 %v1313, %v1309
    %v1346 = vpack.c.b16 %v1314, %v1310
    %v1347 = vpack.c.b16 %v1315, %v1311
    %1380 = vmatprep.subr.bf16.mxu0 %v1317
    %1381 = vmatpush1.bf16.msra.mxu0 %v1316
    %1382 = vmatprep.subr.bf16.mxu0 %v1321
    %1383 = vmatpush1.bf16.msra.mxu0 %v1320
    %1384 = vmatprep.subr.bf16.mxu0 %v1325
    %1385 = vmatpush1.bf16.msra.mxu0 %v1324
    %1386 = vmatprep.subr.bf16.mxu0 %v1329
    %1387 = vmatpush1.bf16.msra.mxu0 %v1328
    %1388 = vmatprep.subr.bf16.mxu0 %v1333
    %1389 = vmatpush1.bf16.msra.mxu0 %v1332
    %1390 = vmatprep.subr.bf16.mxu0 %v1337
    %1391 = vmatpush1.bf16.msra.mxu0 %v1336
    %1392 = vmatprep.subr.bf16.mxu0 %v1341
    %1393 = vmatpush1.bf16.msra.mxu0 %v1340
    %1394 = vmatprep.subr.bf16.mxu0 %v1345
    %1395 = vmatpush1.bf16.msra.mxu0 %v1344
    %1396 = vmatprep.subr.bf16.mxu0 0
    %1397 = vmatpush1.bf16.msra.mxu0 0
    %1398 = vmatprep.subr.bf16.mxu0 0
    %1399 = vmatpush1.bf16.msra.mxu0 0
    %1400 = vmatprep.subr.bf16.mxu0 0
    %1401 = vmatpush1.bf16.msra.mxu0 0
    %1402 = vmatprep.subr.bf16.mxu0 0
    %1403 = vmatpush1.bf16.msra.mxu0 0
    %1404 = vmatprep.subr.bf16.mxu0 0
    %1405 = vmatpush1.bf16.msra.mxu0 0
    %1406 = vmatprep.subr.bf16.mxu0 0
    %1407 = vmatpush1.bf16.msra.mxu0 0
    %1408 = vmatprep.subr.bf16.mxu0 0
    %1409 = vmatpush1.bf16.msra.mxu0 0
    %1410 = vmatprep.subr.bf16.mxu0 0
    %1411 = vmatpush1.bf16.msra.mxu0 0
    %1412 = vmatprep.mubr.bf16.mxu0 0
    %1413 = vmatmul.mubr.bf16.gmra.mrb[0].mxu0 %v1187
    %v1414 = vpop.f32.mrb[0].mxu0
    %v1415 = vadd.f32 0.0, %v1414
    %v1416 = vpop.f32.mrb[0].mxu0
    %v1417 = vadd.f32 0.0, %v1416
    %v1418 = vpop.f32.mrb[0].mxu0
    %v1419 = vpop.f32.mrb[0].mxu0
    %1420 = vdwg.mxu0
    %1421 = vmatprep.subr.bf16.mxu0 %v1319
    %1422 = vmatpush1.bf16.msra.mxu0 %v1318
    %1423 = vmatprep.subr.bf16.mxu0 %v1323
    %1424 = vmatpush1.bf16.msra.mxu0 %v1322
    %1425 = vmatprep.subr.bf16.mxu0 %v1327
    %1426 = vmatpush1.bf16.msra.mxu0 %v1326
    %1427 = vmatprep.subr.bf16.mxu0 %v1331
    %1428 = vmatpush1.bf16.msra.mxu0 %v1330
    %1429 = vmatprep.subr.bf16.mxu0 %v1335
    %1430 = vmatpush1.bf16.msra.mxu0 %v1334
    %1431 = vmatprep.subr.bf16.mxu0 %v1339
    %1432 = vmatpush1.bf16.msra.mxu0 %v1338
    %1433 = vmatprep.subr.bf16.mxu0 %v1343
    %1434 = vmatpush1.bf16.msra.mxu0 %v1342
    %1435 = vmatprep.subr.bf16.mxu0 %v1347
    %1436 = vmatpush1.bf16.msra.mxu0 %v1346
    %1437 = vmatprep.subr.bf16.mxu0 0
    %1438 = vmatpush1.bf16.msra.mxu0 0
    %1439 = vmatprep.subr.bf16.mxu0 0
    %1440 = vmatpush1.bf16.msra.mxu0 0
    %1441 = vmatprep.subr.bf16.mxu0 0
    %1442 = vmatpush1.bf16.msra.mxu0 0
    %1443 = vmatprep.subr.bf16.mxu0 0
    %1444 = vmatpush1.bf16.msra.mxu0 0
    %1445 = vmatprep.subr.bf16.mxu0 0
    %1446 = vmatpush1.bf16.msra.mxu0 0
    %1447 = vmatprep.subr.bf16.mxu0 0
    %1448 = vmatpush1.bf16.msra.mxu0 0
    %1449 = vmatprep.subr.bf16.mxu0 0
    %1450 = vmatpush1.bf16.msra.mxu0 0
    %1451 = vmatprep.subr.bf16.mxu0 0
    %1452 = vmatpush1.bf16.msra.mxu0 0
    %1453 = vmatprep.mubr.bf16.mxu0 0
    %1454 = vmatmul.mubr.bf16.gmra.mrb[0].mxu0 %v1187
    %v1455 = vpop.f32.mrb[0].mxu0
    %v1456 = vadd.f32 0.0, %v1455
    %v1457 = vpop.f32.mrb[0].mxu0
    %v1458 = vadd.f32 0.0, %v1457
    %v1459 = vpop.f32.mrb[0].mxu0
    %v1460 = vpop.f32.mrb[0].mxu0
    %1461 = vdwg.mxu0
    %v1462 = vadd.f32 %v1183, %v1415
    %v1463 = vadd.f32 %v1184, %v1417
    %v1464 = vadd.f32 %v1185, %v1456
    %v1465 = vadd.f32 %v1186, %v1458
    %v1466 = vxor.u32 %v1462, 2147483648
    %v1467 = vmul.f32 %v1466, 1.442695
    %v1468 = vpow.pop %v1467
    %v1469 = vadd.f32 %v1468, 1.0
    %v1470 = vrcp.pop %v1469
    %v1471 = vmul.f32 1.0, %v1470
    %v1472 = vxor.u32 %v1463, 2147483648
    %v1473 = vmul.f32 %v1472, 1.442695
    %v1474 = vpow.pop %v1473
    %v1475 = vadd.f32 %v1474, 1.0
    %v1476 = vrcp.pop %v1475
    %v1477 = vmul.f32 1.0, %v1476
    %v1478 = vtanh.pop %v1464
    %v1479 = vxor.u32 %v1465, 2147483648
    %v1480 = vmul.f32 %v1479, 1.442695
    %v1481 = vpow.pop %v1480
    %v1482 = vadd.f32 %v1481, 1.0
    %v1483 = vrcp.pop %v1482
    %v1484 = vmul.f32 1.0, %v1483
    %v1485 = vmul.f32 %v1477, %v1175
    %v1486 = vmul.f32 %v1471, %v1478
    %v1487 = vadd.f32 %v1485, %v1486
    %v1488 = vtanh.pop %v1487
    %v1489 = vmul.f32 %v1484, %v1488
    %s1490 = scalar_lea.vmem [#allocation7], 16
    %1491 = vst [vmem:[%s1490] sm:$0xff] %v1489
    %s1492 = smul.u32 3, 4
    %s1493 = smul.addr %s1492, 8
    %s1494 = scalar_lea.vmem [#allocation6], %s1493
    %v1495 = vld [vmem:[%s1494] sm:$0xff]
    %v1496 = vld [vmem:[%s1494 + $0x8] sm:$0xff]
    %v1497 = vld [vmem:[%s1494 + $0x10] sm:$0xff]
    %v1498 = vld [vmem:[%s1494 + $0x18] sm:$0xff]
    %v1499 = vpack.c.bf16 %v1489, %v1489
    %v1500 = vld [vmem:[#allocation14] sm:$0xff]
    %v1501 = vld [vmem:[#allocation14 + $0x8] sm:$0xff]
    %v1502 = vld [vmem:[#allocation14 + $0x10] sm:$0xff]
    %v1503 = vld [vmem:[#allocation14 + $0x18] sm:$0xff]
    %v1504 = vld [vmem:[#allocation14 + $0x20] sm:$0xff]
    %v1505 = vld [vmem:[#allocation14 + $0x28] sm:$0xff]
    %v1506 = vld [vmem:[#allocation14 + $0x30] sm:$0xff]
    %v1507 = vld [vmem:[#allocation14 + $0x38] sm:$0xff]
    %v1508 = vld [vmem:[#allocation14 + $0x40] sm:$0xff]
    %v1509 = vld [vmem:[#allocation14 + $0x48] sm:$0xff]
    %v1510 = vld [vmem:[#allocation14 + $0x50] sm:$0xff]
    %v1511 = vld [vmem:[#allocation14 + $0x58] sm:$0xff]
    %v1512 = vld [vmem:[#allocation14 + $0x60] sm:$0xff]
    %v1513 = vld [vmem:[#allocation14 + $0x68] sm:$0xff]
    %v1514 = vld [vmem:[#allocation14 + $0x70] sm:$0xff]
    %v1515 = vld [vmem:[#allocation14 + $0x78] sm:$0xff]
    %v1516 = vld [vmem:[#allocation14 + $0x80] sm:$0xff]
    %v1517 = vld [vmem:[#allocation14 + $0x88] sm:$0xff]
    %v1518 = vld [vmem:[#allocation14 + $0x90] sm:$0xff]
    %v1519 = vld [vmem:[#allocation14 + $0x98] sm:$0xff]
    %v1520 = vld [vmem:[#allocation14 + $0xa0] sm:$0xff]
    %v1521 = vld [vmem:[#allocation14 + $0xa8] sm:$0xff]
    %v1522 = vld [vmem:[#allocation14 + $0xb0] sm:$0xff]
    %v1523 = vld [vmem:[#allocation14 + $0xb8] sm:$0xff]
    %v1524 = vld [vmem:[#allocation14 + $0xc0] sm:$0xff]
    %v1525 = vld [vmem:[#allocation14 + $0xc8] sm:$0xff]
    %v1526 = vld [vmem:[#allocation14 + $0xd0] sm:$0xff]
    %v1527 = vld [vmem:[#allocation14 + $0xd8] sm:$0xff]
    %v1528 = vld [vmem:[#allocation14 + $0xe0] sm:$0xff]
    %v1529 = vld [vmem:[#allocation14 + $0xe8] sm:$0xff]
    %v1530 = vld [vmem:[#allocation14 + $0xf0] sm:$0xff]
    %v1531 = vld [vmem:[#allocation14 + $0xf8] sm:$0xff]
    %v1564 = vunpack.c.l.b16 %v1500
    %v1565 = vunpack.c.h.b16 %v1500
    %v1566 = vunpack.c.l.b16 %v1501
    %v1567 = vunpack.c.h.b16 %v1501
    %v1568 = vunpack.c.l.b16 %v1502
    %v1569 = vunpack.c.h.b16 %v1502
    %v1570 = vunpack.c.l.b16 %v1503
    %v1571 = vunpack.c.h.b16 %v1503
    %v1572 = vunpack.c.l.b16 %v1504
    %v1573 = vunpack.c.h.b16 %v1504
    %v1574 = vunpack.c.l.b16 %v1505
    %v1575 = vunpack.c.h.b16 %v1505
    %v1576 = vunpack.c.l.b16 %v1506
    %v1577 = vunpack.c.h.b16 %v1506
    %v1578 = vunpack.c.l.b16 %v1507
    %v1579 = vunpack.c.h.b16 %v1507
    %v1580 = vunpack.c.l.b16 %v1508
    %v1581 = vunpack.c.h.b16 %v1508
    %v1582 = vunpack.c.l.b16 %v1509
    %v1583 = vunpack.c.h.b16 %v1509
    %v1584 = vunpack.c.l.b16 %v1510
    %v1585 = vunpack.c.h.b16 %v1510
    %v1586 = vunpack.c.l.b16 %v1511
    %v1587 = vunpack.c.h.b16 %v1511
    %v1588 = vunpack.c.l.b16 %v1512
    %v1589 = vunpack.c.h.b16 %v1512
    %v1590 = vunpack.c.l.b16 %v1513
    %v1591 = vunpack.c.h.b16 %v1513
    %v1592 = vunpack.c.l.b16 %v1514
    %v1593 = vunpack.c.h.b16 %v1514
    %v1594 = vunpack.c.l.b16 %v1515
    %v1595 = vunpack.c.h.b16 %v1515
    %v1596 = vunpack.c.l.b16 %v1516
    %v1597 = vunpack.c.h.b16 %v1516
    %v1598 = vunpack.c.l.b16 %v1517
    %v1599 = vunpack.c.h.b16 %v1517
    %v1600 = vunpack.c.l.b16 %v1518
    %v1601 = vunpack.c.h.b16 %v1518
    %v1602 = vunpack.c.l.b16 %v1519
    %v1603 = vunpack.c.h.b16 %v1519
    %v1604 = vunpack.c.l.b16 %v1520
    %v1605 = vunpack.c.h.b16 %v1520
    %v1606 = vunpack.c.l.b16 %v1521
    %v1607 = vunpack.c.h.b16 %v1521
    %v1608 = vunpack.c.l.b16 %v1522
    %v1609 = vunpack.c.h.b16 %v1522
    %v1610 = vunpack.c.l.b16 %v1523
    %v1611 = vunpack.c.h.b16 %v1523
    %v1612 = vunpack.c.l.b16 %v1524
    %v1613 = vunpack.c.h.b16 %v1524
    %v1614 = vunpack.c.l.b16 %v1525
    %v1615 = vunpack.c.h.b16 %v1525
    %v1616 = vunpack.c.l.b16 %v1526
    %v1617 = vunpack.c.h.b16 %v1526
    %v1618 = vunpack.c.l.b16 %v1527
    %v1619 = vunpack.c.h.b16 %v1527
    %v1620 = vunpack.c.l.b16 %v1528
    %v1621 = vunpack.c.h.b16 %v1528
    %v1622 = vunpack.c.l.b16 %v1529
    %v1623 = vunpack.c.h.b16 %v1529
    %v1624 = vunpack.c.l.b16 %v1530
    %v1625 = vunpack.c.h.b16 %v1530
    %v1626 = vunpack.c.l.b16 %v1531
    %v1627 = vunpack.c.h.b16 %v1531
    %v1628 = vpack.c.b16 %v1568, %v1564
    %v1629 = vpack.c.b16 %v1569, %v1565
    %v1630 = vpack.c.b16 %v1570, %v1566
    %v1631 = vpack.c.b16 %v1571, %v1567
    %v1632 = vpack.c.b16 %v1576, %v1572
    %v1633 = vpack.c.b16 %v1577, %v1573
    %v1634 = vpack.c.b16 %v1578, %v1574
    %v1635 = vpack.c.b16 %v1579, %v1575
    %v1636 = vpack.c.b16 %v1584, %v1580
    %v1637 = vpack.c.b16 %v1585, %v1581
    %v1638 = vpack.c.b16 %v1586, %v1582
    %v1639 = vpack.c.b16 %v1587, %v1583
    %v1640 = vpack.c.b16 %v1592, %v1588
    %v1641 = vpack.c.b16 %v1593, %v1589
    %v1642 = vpack.c.b16 %v1594, %v1590
    %v1643 = vpack.c.b16 %v1595, %v1591
    %v1644 = vpack.c.b16 %v1600, %v1596
    %v1645 = vpack.c.b16 %v1601, %v1597
    %v1646 = vpack.c.b16 %v1602, %v1598
    %v1647 = vpack.c.b16 %v1603, %v1599
    %v1648 = vpack.c.b16 %v1608, %v1604
    %v1649 = vpack.c.b16 %v1609, %v1605
    %v1650 = vpack.c.b16 %v1610, %v1606
    %v1651 = vpack.c.b16 %v1611, %v1607
    %v1652 = vpack.c.b16 %v1616, %v1612
    %v1653 = vpack.c.b16 %v1617, %v1613
    %v1654 = vpack.c.b16 %v1618, %v1614
    %v1655 = vpack.c.b16 %v1619, %v1615
    %v1656 = vpack.c.b16 %v1624, %v1620
    %v1657 = vpack.c.b16 %v1625, %v1621
    %v1658 = vpack.c.b16 %v1626, %v1622
    %v1659 = vpack.c.b16 %v1627, %v1623
    %1692 = vmatprep.subr.bf16.mxu0 %v1629
    %1693 = vmatpush1.bf16.msra.mxu0 %v1628
    %1694 = vmatprep.subr.bf16.mxu0 %v1633
    %1695 = vmatpush1.bf16.msra.mxu0 %v1632
    %1696 = vmatprep.subr.bf16.mxu0 %v1637
    %1697 = vmatpush1.bf16.msra.mxu0 %v1636
    %1698 = vmatprep.subr.bf16.mxu0 %v1641
    %1699 = vmatpush1.bf16.msra.mxu0 %v1640
    %1700 = vmatprep.subr.bf16.mxu0 %v1645
    %1701 = vmatpush1.bf16.msra.mxu0 %v1644
    %1702 = vmatprep.subr.bf16.mxu0 %v1649
    %1703 = vmatpush1.bf16.msra.mxu0 %v1648
    %1704 = vmatprep.subr.bf16.mxu0 %v1653
    %1705 = vmatpush1.bf16.msra.mxu0 %v1652
    %1706 = vmatprep.subr.bf16.mxu0 %v1657
    %1707 = vmatpush1.bf16.msra.mxu0 %v1656
    %1708 = vmatprep.subr.bf16.mxu0 0
    %1709 = vmatpush1.bf16.msra.mxu0 0
    %1710 = vmatprep.subr.bf16.mxu0 0
    %1711 = vmatpush1.bf16.msra.mxu0 0
    %1712 = vmatprep.subr.bf16.mxu0 0
    %1713 = vmatpush1.bf16.msra.mxu0 0
    %1714 = vmatprep.subr.bf16.mxu0 0
    %1715 = vmatpush1.bf16.msra.mxu0 0
    %1716 = vmatprep.subr.bf16.mxu0 0
    %1717 = vmatpush1.bf16.msra.mxu0 0
    %1718 = vmatprep.subr.bf16.mxu0 0
    %1719 = vmatpush1.bf16.msra.mxu0 0
    %1720 = vmatprep.subr.bf16.mxu0 0
    %1721 = vmatpush1.bf16.msra.mxu0 0
    %1722 = vmatprep.subr.bf16.mxu0 0
    %1723 = vmatpush1.bf16.msra.mxu0 0
    %1724 = vmatprep.mubr.bf16.mxu0 0
    %1725 = vmatmul.mubr.bf16.gmra.mrb[0].mxu0 %v1499
    %v1726 = vpop.f32.mrb[0].mxu0
    %v1727 = vadd.f32 0.0, %v1726
    %v1728 = vpop.f32.mrb[0].mxu0
    %v1729 = vadd.f32 0.0, %v1728
    %v1730 = vpop.f32.mrb[0].mxu0
    %v1731 = vpop.f32.mrb[0].mxu0
    %1732 = vdwg.mxu0
    %1733 = vmatprep.subr.bf16.mxu0 %v1631
    %1734 = vmatpush1.bf16.msra.mxu0 %v1630
    %1735 = vmatprep.subr.bf16.mxu0 %v1635
    %1736 = vmatpush1.bf16.msra.mxu0 %v1634
    %1737 = vmatprep.subr.bf16.mxu0 %v1639
    %1738 = vmatpush1.bf16.msra.mxu0 %v1638
    %1739 = vmatprep.subr.bf16.mxu0 %v1643
    %1740 = vmatpush1.bf16.msra.mxu0 %v1642
    %1741 = vmatprep.subr.bf16.mxu0 %v1647
    %1742 = vmatpush1.bf16.msra.mxu0 %v1646
    %1743 = vmatprep.subr.bf16.mxu0 %v1651
    %1744 = vmatpush1.bf16.msra.mxu0 %v1650
    %1745 = vmatprep.subr.bf16.mxu0 %v1655
    %1746 = vmatpush1.bf16.msra.mxu0 %v1654
    %1747 = vmatprep.subr.bf16.mxu0 %v1659
    %1748 = vmatpush1.bf16.msra.mxu0 %v1658
    %1749 = vmatprep.subr.bf16.mxu0 0
    %1750 = vmatpush1.bf16.msra.mxu0 0
    %1751 = vmatprep.subr.bf16.mxu0 0
    %1752 = vmatpush1.bf16.msra.mxu0 0
    %1753 = vmatprep.subr.bf16.mxu0 0
    %1754 = vmatpush1.bf16.msra.mxu0 0
    %1755 = vmatprep.subr.bf16.mxu0 0
    %1756 = vmatpush1.bf16.msra.mxu0 0
    %1757 = vmatprep.subr.bf16.mxu0 0
    %1758 = vmatpush1.bf16.msra.mxu0 0
    %1759 = vmatprep.subr.bf16.mxu0 0
    %1760 = vmatpush1.bf16.msra.mxu0 0
    %1761 = vmatprep.subr.bf16.mxu0 0
    %1762 = vmatpush1.bf16.msra.mxu0 0
    %1763 = vmatprep.subr.bf16.mxu0 0
    %1764 = vmatpush1.bf16.msra.mxu0 0
    %1765 = vmatprep.mubr.bf16.mxu0 0
    %1766 = vmatmul.mubr.bf16.gmra.mrb[0].mxu0 %v1499
    %v1767 = vpop.f32.mrb[0].mxu0
    %v1768 = vadd.f32 0.0, %v1767
    %v1769 = vpop.f32.mrb[0].mxu0
    %v1770 = vadd.f32 0.0, %v1769
    %v1771 = vpop.f32.mrb[0].mxu0
    %v1772 = vpop.f32.mrb[0].mxu0
    %1773 = vdwg.mxu0
    %v1774 = vadd.f32 %v1495, %v1727
    %v1775 = vadd.f32 %v1496, %v1729
    %v1776 = vadd.f32 %v1497, %v1768
    %v1777 = vadd.f32 %v1498, %v1770
    %v1778 = vxor.u32 %v1774, 2147483648
    %v1779 = vmul.f32 %v1778, 1.442695
    %v1780 = vpow.pop %v1779
    %v1781 = vadd.f32 %v1780, 1.0
    %v1782 = vrcp.pop %v1781
    %v1783 = vmul.f32 1.0, %v1782
    %v1784 = vxor.u32 %v1775, 2147483648
    %v1785 = vmul.f32 %v1784, 1.442695
    %v1786 = vpow.pop %v1785
    %v1787 = vadd.f32 %v1786, 1.0
    %v1788 = vrcp.pop %v1787
    %v1789 = vmul.f32 1.0, %v1788
    %v1790 = vtanh.pop %v1776
    %v1791 = vxor.u32 %v1777, 2147483648
    %v1792 = vmul.f32 %v1791, 1.442695
    %v1793 = vpow.pop %v1792
    %v1794 = vadd.f32 %v1793, 1.0
    %v1795 = vrcp.pop %v1794
    %v1796 = vmul.f32 1.0, %v1795
    %v1797 = vmul.f32 %v1789, %v1487
    %v1798 = vmul.f32 %v1783, %v1790
    %v1799 = vadd.f32 %v1797, %v1798
    %v1800 = vtanh.pop %v1799
    %v1801 = vmul.f32 %v1796, %v1800
    %s1802 = scalar_lea.vmem [#allocation7], 24
    %1803 = vst [vmem:[%s1802] sm:$0xff] %v1801
    %s1804 = smul.u32 4, 4
    %s1805 = smul.addr %s1804, 8
    %s1806 = scalar_lea.vmem [#allocation6], %s1805
    %v1807 = vld [vmem:[%s1806] sm:$0xff]
    %v1808 = vld [vmem:[%s1806 + $0x8] sm:$0xff]
    %v1809 = vld [vmem:[%s1806 + $0x10] sm:$0xff]
    %v1810 = vld [vmem:[%s1806 + $0x18] sm:$0xff]
    %v1811 = vpack.c.bf16 %v1801, %v1801
    %v1812 = vld [vmem:[#allocation14] sm:$0xff]
    %v1813 = vld [vmem:[#allocation14 + $0x8] sm:$0xff]
    %v1814 = vld [vmem:[#allocation14 + $0x10] sm:$0xff]
    %v1815 = vld [vmem:[#allocation14 + $0x18] sm:$0xff]
    %v1816 = vld [vmem:[#allocation14 + $0x20] sm:$0xff]
    %v1817 = vld [vmem:[#allocation14 + $0x28] sm:$0xff]
    %v1818 = vld [vmem:[#allocation14 + $0x30] sm:$0xff]
    %v1819 = vld [vmem:[#allocation14 + $0x38] sm:$0xff]
    %v1820 = vld [vmem:[#allocation14 + $0x40] sm:$0xff]
    %v1821 = vld [vmem:[#allocation14 + $0x48] sm:$0xff]
    %v1822 = vld [vmem:[#allocation14 + $0x50] sm:$0xff]
    %v1823 = vld [vmem:[#allocation14 + $0x58] sm:$0xff]
    %v1824 = vld [vmem:[#allocation14 + $0x60] sm:$0xff]
    %v1825 = vld [vmem:[#allocation14 + $0x68] sm:$0xff]
    %v1826 = vld [vmem:[#allocation14 + $0x70] sm:$0xff]
    %v1827 = vld [vmem:[#allocation14 + $0x78] sm:$0xff]
    %v1828 = vld [vmem:[#allocation14 + $0x80] sm:$0xff]
    %v1829 = vld [vmem:[#allocation14 + $0x88] sm:$0xff]
    %v1830 = vld [vmem:[#allocation14 + $0x90] sm:$0xff]
    %v1831 = vld [vmem:[#allocation14 + $0x98] sm:$0xff]
    %v1832 = vld [vmem:[#allocation14 + $0xa0] sm:$0xff]
    %v1833 = vld [vmem:[#allocation14 + $0xa8] sm:$0xff]
    %v1834 = vld [vmem:[#allocation14 + $0xb0] sm:$0xff]
    %v1835 = vld [vmem:[#allocation14 + $0xb8] sm:$0xff]
    %v1836 = vld [vmem:[#allocation14 + $0xc0] sm:$0xff]
    %v1837 = vld [vmem:[#allocation14 + $0xc8] sm:$0xff]
    %v1838 = vld [vmem:[#allocation14 + $0xd0] sm:$0xff]
    %v1839 = vld [vmem:[#allocation14 + $0xd8] sm:$0xff]
    %v1840 = vld [vmem:[#allocation14 + $0xe0] sm:$0xff]
    %v1841 = vld [vmem:[#allocation14 + $0xe8] sm:$0xff]
    %v1842 = vld [vmem:[#allocation14 + $0xf0] sm:$0xff]
    %v1843 = vld [vmem:[#allocation14 + $0xf8] sm:$0xff]
    %v1876 = vunpack.c.l.b16 %v1812
    %v1877 = vunpack.c.h.b16 %v1812
    %v1878 = vunpack.c.l.b16 %v1813
    %v1879 = vunpack.c.h.b16 %v1813
    %v1880 = vunpack.c.l.b16 %v1814
    %v1881 = vunpack.c.h.b16 %v1814
    %v1882 = vunpack.c.l.b16 %v1815
    %v1883 = vunpack.c.h.b16 %v1815
    %v1884 = vunpack.c.l.b16 %v1816
    %v1885 = vunpack.c.h.b16 %v1816
    %v1886 = vunpack.c.l.b16 %v1817
    %v1887 = vunpack.c.h.b16 %v1817
    %v1888 = vunpack.c.l.b16 %v1818
    %v1889 = vunpack.c.h.b16 %v1818
    %v1890 = vunpack.c.l.b16 %v1819
    %v1891 = vunpack.c.h.b16 %v1819
    %v1892 = vunpack.c.l.b16 %v1820
    %v1893 = vunpack.c.h.b16 %v1820
    %v1894 = vunpack.c.l.b16 %v1821
    %v1895 = vunpack.c.h.b16 %v1821
    %v1896 = vunpack.c.l.b16 %v1822
    %v1897 = vunpack.c.h.b16 %v1822
    %v1898 = vunpack.c.l.b16 %v1823
    %v1899 = vunpack.c.h.b16 %v1823
    %v1900 = vunpack.c.l.b16 %v1824
    %v1901 = vunpack.c.h.b16 %v1824
    %v1902 = vunpack.c.l.b16 %v1825
    %v1903 = vunpack.c.h.b16 %v1825
    %v1904 = vunpack.c.l.b16 %v1826
    %v1905 = vunpack.c.h.b16 %v1826
    %v1906 = vunpack.c.l.b16 %v1827
    %v1907 = vunpack.c.h.b16 %v1827
    %v1908 = vunpack.c.l.b16 %v1828
    %v1909 = vunpack.c.h.b16 %v1828
    %v1910 = vunpack.c.l.b16 %v1829
    %v1911 = vunpack.c.h.b16 %v1829
    %v1912 = vunpack.c.l.b16 %v1830
    %v1913 = vunpack.c.h.b16 %v1830
    %v1914 = vunpack.c.l.b16 %v1831
    %v1915 = vunpack.c.h.b16 %v1831
    %v1916 = vunpack.c.l.b16 %v1832
    %v1917 = vunpack.c.h.b16 %v1832
    %v1918 = vunpack.c.l.b16 %v1833
    %v1919 = vunpack.c.h.b16 %v1833
    %v1920 = vunpack.c.l.b16 %v1834
    %v1921 = vunpack.c.h.b16 %v1834
    %v1922 = vunpack.c.l.b16 %v1835
    %v1923 = vunpack.c.h.b16 %v1835
    %v1924 = vunpack.c.l.b16 %v1836
    %v1925 = vunpack.c.h.b16 %v1836
    %v1926 = vunpack.c.l.b16 %v1837
    %v1927 = vunpack.c.h.b16 %v1837
    %v1928 = vunpack.c.l.b16 %v1838
    %v1929 = vunpack.c.h.b16 %v1838
    %v1930 = vunpack.c.l.b16 %v1839
    %v1931 = vunpack.c.h.b16 %v1839
    %v1932 = vunpack.c.l.b16 %v1840
    %v1933 = vunpack.c.h.b16 %v1840
    %v1934 = vunpack.c.l.b16 %v1841
    %v1935 = vunpack.c.h.b16 %v1841
    %v1936 = vunpack.c.l.b16 %v1842
    %v1937 = vunpack.c.h.b16 %v1842
    %v1938 = vunpack.c.l.b16 %v1843
    %v1939 = vunpack.c.h.b16 %v1843
    %v1940 = vpack.c.b16 %v1880, %v1876
    %v1941 = vpack.c.b16 %v1881, %v1877
    %v1942 = vpack.c.b16 %v1882, %v1878
    %v1943 = vpack.c.b16 %v1883, %v1879
    %v1944 = vpack.c.b16 %v1888, %v1884
    %v1945 = vpack.c.b16 %v1889, %v1885
    %v1946 = vpack.c.b16 %v1890, %v1886
    %v1947 = vpack.c.b16 %v1891, %v1887
    %v1948 = vpack.c.b16 %v1896, %v1892
    %v1949 = vpack.c.b16 %v1897, %v1893
    %v1950 = vpack.c.b16 %v1898, %v1894
    %v1951 = vpack.c.b16 %v1899, %v1895
    %v1952 = vpack.c.b16 %v1904, %v1900
    %v1953 = vpack.c.b16 %v1905, %v1901
    %v1954 = vpack.c.b16 %v1906, %v1902
    %v1955 = vpack.c.b16 %v1907, %v1903
    %v1956 = vpack.c.b16 %v1912, %v1908
    %v1957 = vpack.c.b16 %v1913, %v1909
    %v1958 = vpack.c.b16 %v1914, %v1910
    %v1959 = vpack.c.b16 %v1915, %v1911
    %v1960 = vpack.c.b16 %v1920, %v1916
    %v1961 = vpack.c.b16 %v1921, %v1917
    %v1962 = vpack.c.b16 %v1922, %v1918
    %v1963 = vpack.c.b16 %v1923, %v1919
    %v1964 = vpack.c.b16 %v1928, %v1924
    %v1965 = vpack.c.b16 %v1929, %v1925
    %v1966 = vpack.c.b16 %v1930, %v1926
    %v1967 = vpack.c.b16 %v1931, %v1927
    %v1968 = vpack.c.b16 %v1936, %v1932
    %v1969 = vpack.c.b16 %v1937, %v1933
    %v1970 = vpack.c.b16 %v1938, %v1934
    %v1971 = vpack.c.b16 %v1939, %v1935
    %2004 = vmatprep.subr.bf16.mxu0 %v1941
    %2005 = vmatpush1.bf16.msra.mxu0 %v1940
    %2006 = vmatprep.subr.bf16.mxu0 %v1945
    %2007 = vmatpush1.bf16.msra.mxu0 %v1944
    %2008 = vmatprep.subr.bf16.mxu0 %v1949
    %2009 = vmatpush1.bf16.msra.mxu0 %v1948
    %2010 = vmatprep.subr.bf16.mxu0 %v1953
    %2011 = vmatpush1.bf16.msra.mxu0 %v1952
    %2012 = vmatprep.subr.bf16.mxu0 %v1957
    %2013 = vmatpush1.bf16.msra.mxu0 %v1956
    %2014 = vmatprep.subr.bf16.mxu0 %v1961
    %2015 = vmatpush1.bf16.msra.mxu0 %v1960
    %2016 = vmatprep.subr.bf16.mxu0 %v1965
    %2017 = vmatpush1.bf16.msra.mxu0 %v1964
    %2018 = vmatprep.subr.bf16.mxu0 %v1969
    %2019 = vmatpush1.bf16.msra.mxu0 %v1968
    %2020 = vmatprep.subr.bf16.mxu0 0
    %2021 = vmatpush1.bf16.msra.mxu0 0
    %2022 = vmatprep.subr.bf16.mxu0 0
    %2023 = vmatpush1.bf16.msra.mxu0 0
    %2024 = vmatprep.subr.bf16.mxu0 0
    %2025 = vmatpush1.bf16.msra.mxu0 0
    %2026 = vmatprep.subr.bf16.mxu0 0
    %2027 = vmatpush1.bf16.msra.mxu0 0
    %2028 = vmatprep.subr.bf16.mxu0 0
    %2029 = vmatpush1.bf16.msra.mxu0 0
    %2030 = vmatprep.subr.bf16.mxu0 0
    %2031 = vmatpush1.bf16.msra.mxu0 0
    %2032 = vmatprep.subr.bf16.mxu0 0
    %2033 = vmatpush1.bf16.msra.mxu0 0
    %2034 = vmatprep.subr.bf16.mxu0 0
    %2035 = vmatpush1.bf16.msra.mxu0 0
    %2036 = vmatprep.mubr.bf16.mxu0 0
    %2037 = vmatmul.mubr.bf16.gmra.mrb[0].mxu0 %v1811
    %v2038 = vpop.f32.mrb[0].mxu0
    %v2039 = vadd.f32 0.0, %v2038
    %v2040 = vpop.f32.mrb[0].mxu0
    %v2041 = vadd.f32 0.0, %v2040
    %v2042 = vpop.f32.mrb[0].mxu0
    %v2043 = vpop.f32.mrb[0].mxu0
    %2044 = vdwg.mxu0
    %2045 = vmatprep.subr.bf16.mxu0 %v1943
    %2046 = vmatpush1.bf16.msra.mxu0 %v1942
    %2047 = vmatprep.subr.bf16.mxu0 %v1947
    %2048 = vmatpush1.bf16.msra.mxu0 %v1946
    %2049 = vmatprep.subr.bf16.mxu0 %v1951
    %2050 = vmatpush1.bf16.msra.mxu0 %v1950
    %2051 = vmatprep.subr.bf16.mxu0 %v1955
    %2052 = vmatpush1.bf16.msra.mxu0 %v1954
    %2053 = vmatprep.subr.bf16.mxu0 %v1959
    %2054 = vmatpush1.bf16.msra.mxu0 %v1958
    %2055 = vmatprep.subr.bf16.mxu0 %v1963
    %2056 = vmatpush1.bf16.msra.mxu0 %v1962
    %2057 = vmatprep.subr.bf16.mxu0 %v1967
    %2058 = vmatpush1.bf16.msra.mxu0 %v1966
    %2059 = vmatprep.subr.bf16.mxu0 %v1971
    %2060 = vmatpush1.bf16.msra.mxu0 %v1970
    %2061 = vmatprep.subr.bf16.mxu0 0
    %2062 = vmatpush1.bf16.msra.mxu0 0
    %2063 = vmatprep.subr.bf16.mxu0 0
    %2064 = vmatpush1.bf16.msra.mxu0 0
    %2065 = vmatprep.subr.bf16.mxu0 0
    %2066 = vmatpush1.bf16.msra.mxu0 0
    %2067 = vmatprep.subr.bf16.mxu0 0
    %2068 = vmatpush1.bf16.msra.mxu0 0
    %2069 = vmatprep.subr.bf16.mxu0 0
    %2070 = vmatpush1.bf16.msra.mxu0 0
    %2071 = vmatprep.subr.bf16.mxu0 0
    %2072 = vmatpush1.bf16.msra.mxu0 0
    %2073 = vmatprep.subr.bf16.mxu0 0
    %2074 = vmatpush1.bf16.msra.mxu0 0
    %2075 = vmatprep.subr.bf16.mxu0 0
    %2076 = vmatpush1.bf16.msra.mxu0 0
    %2077 = vmatprep.mubr.bf16.mxu0 0
    %2078 = vmatmul.mubr.bf16.gmra.mrb[0].mxu0 %v1811
    %v2079 = vpop.f32.mrb[0].mxu0
    %v2080 = vadd.f32 0.0, %v2079
    %v2081 = vpop.f32.mrb[0].mxu0
    %v2082 = vadd.f32 0.0, %v2081
    %v2083 = vpop.f32.mrb[0].mxu0
    %v2084 = vpop.f32.mrb[0].mxu0
    %2085 = vdwg.mxu0
    %v2086 = vadd.f32 %v1807, %v2039
    %v2087 = vadd.f32 %v1808, %v2041
    %v2088 = vadd.f32 %v1809, %v2080
    %v2089 = vadd.f32 %v1810, %v2082
    %v2090 = vxor.u32 %v2086, 2147483648
    %v2091 = vmul.f32 %v2090, 1.442695
    %v2092 = vpow.pop %v2091
    %v2093 = vadd.f32 %v2092, 1.0
    %v2094 = vrcp.pop %v2093
    %v2095 = vmul.f32 1.0, %v2094
    %v2096 = vxor.u32 %v2087, 2147483648
    %v2097 = vmul.f32 %v2096, 1.442695
    %v2098 = vpow.pop %v2097
    %v2099 = vadd.f32 %v2098, 1.0
    %v2100 = vrcp.pop %v2099
    %v2101 = vmul.f32 1.0, %v2100
    %v2102 = vtanh.pop %v2088
    %v2103 = vxor.u32 %v2089, 2147483648
    %v2104 = vmul.f32 %v2103, 1.442695
    %v2105 = vpow.pop %v2104
    %v2106 = vadd.f32 %v2105, 1.0
    %v2107 = vrcp.pop %v2106
    %v2108 = vmul.f32 1.0, %v2107
    %v2109 = vmul.f32 %v2101, %v1799
    %v2110 = vmul.f32 %v2095, %v2102
    %v2111 = vadd.f32 %v2109, %v2110
    %v2112 = vtanh.pop %v2111
    %v2113 = vmul.f32 %v2108, %v2112
    %s2114 = scalar_lea.vmem [#allocation7], 32
    %2115 = vst [vmem:[%s2114] sm:$0xff] %v2113
    %s2116 = smul.u32 5, 4
    %s2117 = smul.addr %s2116, 8
    %s2118 = scalar_lea.vmem [#allocation6], %s2117
    %v2119 = vld [vmem:[%s2118] sm:$0xff]
    %v2120 = vld [vmem:[%s2118 + $0x8] sm:$0xff]
    %v2121 = vld [vmem:[%s2118 + $0x10] sm:$0xff]
    %v2122 = vld [vmem:[%s2118 + $0x18] sm:$0xff]
    %v2123 = vpack.c.bf16 %v2113, %v2113
    %v2124 = vld [vmem:[#allocation14] sm:$0xff]
    %v2125 = vld [vmem:[#allocation14 + $0x8] sm:$0xff]
    %v2126 = vld [vmem:[#allocation14 + $0x10] sm:$0xff]
    %v2127 = vld [vmem:[#allocation14 + $0x18] sm:$0xff]
    %v2128 = vld [vmem:[#allocation14 + $0x20] sm:$0xff]
    %v2129 = vld [vmem:[#allocation14 + $0x28] sm:$0xff]
    %v2130 = vld [vmem:[#allocation14 + $0x30] sm:$0xff]
    %v2131 = vld [vmem:[#allocation14 + $0x38] sm:$0xff]
    %v2132 = vld [vmem:[#allocation14 + $0x40] sm:$0xff]
    %v2133 = vld [vmem:[#allocation14 + $0x48] sm:$0xff]
    %v2134 = vld [vmem:[#allocation14 + $0x50] sm:$0xff]
    %v2135 = vld [vmem:[#allocation14 + $0x58] sm:$0xff]
    %v2136 = vld [vmem:[#allocation14 + $0x60] sm:$0xff]
    %v2137 = vld [vmem:[#allocation14 + $0x68] sm:$0xff]
    %v2138 = vld [vmem:[#allocation14 + $0x70] sm:$0xff]
    %v2139 = vld [vmem:[#allocation14 + $0x78] sm:$0xff]
    %v2140 = vld [vmem:[#allocation14 + $0x80] sm:$0xff]
    %v2141 = vld [vmem:[#allocation14 + $0x88] sm:$0xff]
    %v2142 = vld [vmem:[#allocation14 + $0x90] sm:$0xff]
    %v2143 = vld [vmem:[#allocation14 + $0x98] sm:$0xff]
    %v2144 = vld [vmem:[#allocation14 + $0xa0] sm:$0xff]
    %v2145 = vld [vmem:[#allocation14 + $0xa8] sm:$0xff]
    %v2146 = vld [vmem:[#allocation14 + $0xb0] sm:$0xff]
    %v2147 = vld [vmem:[#allocation14 + $0xb8] sm:$0xff]
    %v2148 = vld [vmem:[#allocation14 + $0xc0] sm:$0xff]
    %v2149 = vld [vmem:[#allocation14 + $0xc8] sm:$0xff]
    %v2150 = vld [vmem:[#allocation14 + $0xd0] sm:$0xff]
    %v2151 = vld [vmem:[#allocation14 + $0xd8] sm:$0xff]
    %v2152 = vld [vmem:[#allocation14 + $0xe0] sm:$0xff]
    %v2153 = vld [vmem:[#allocation14 + $0xe8] sm:$0xff]
    %v2154 = vld [vmem:[#allocation14 + $0xf0] sm:$0xff]
    %v2155 = vld [vmem:[#allocation14 + $0xf8] sm:$0xff]
    %v2188 = vunpack.c.l.b16 %v2124
    %v2189 = vunpack.c.h.b16 %v2124
    %v2190 = vunpack.c.l.b16 %v2125
    %v2191 = vunpack.c.h.b16 %v2125
    %v2192 = vunpack.c.l.b16 %v2126
    %v2193 = vunpack.c.h.b16 %v2126
    %v2194 = vunpack.c.l.b16 %v2127
    %v2195 = vunpack.c.h.b16 %v2127
    %v2196 = vunpack.c.l.b16 %v2128
    %v2197 = vunpack.c.h.b16 %v2128
    %v2198 = vunpack.c.l.b16 %v2129
    %v2199 = vunpack.c.h.b16 %v2129
    %v2200 = vunpack.c.l.b16 %v2130
    %v2201 = vunpack.c.h.b16 %v2130
    %v2202 = vunpack.c.l.b16 %v2131
    %v2203 = vunpack.c.h.b16 %v2131
    %v2204 = vunpack.c.l.b16 %v2132
    %v2205 = vunpack.c.h.b16 %v2132
    %v2206 = vunpack.c.l.b16 %v2133
    %v2207 = vunpack.c.h.b16 %v2133
    %v2208 = vunpack.c.l.b16 %v2134
    %v2209 = vunpack.c.h.b16 %v2134
    %v2210 = vunpack.c.l.b16 %v2135
    %v2211 = vunpack.c.h.b16 %v2135
    %v2212 = vunpack.c.l.b16 %v2136
    %v2213 = vunpack.c.h.b16 %v2136
    %v2214 = vunpack.c.l.b16 %v2137
    %v2215 = vunpack.c.h.b16 %v2137
    %v2216 = vunpack.c.l.b16 %v2138
    %v2217 = vunpack.c.h.b16 %v2138
    %v2218 = vunpack.c.l.b16 %v2139
    %v2219 = vunpack.c.h.b16 %v2139
    %v2220 = vunpack.c.l.b16 %v2140
    %v2221 = vunpack.c.h.b16 %v2140
    %v2222 = vunpack.c.l.b16 %v2141
    %v2223 = vunpack.c.h.b16 %v2141
    %v2224 = vunpack.c.l.b16 %v2142
    %v2225 = vunpack.c.h.b16 %v2142
    %v2226 = vunpack.c.l.b16 %v2143
    %v2227 = vunpack.c.h.b16 %v2143
    %v2228 = vunpack.c.l.b16 %v2144
    %v2229 = vunpack.c.h.b16 %v2144
    %v2230 = vunpack.c.l.b16 %v2145
    %v2231 = vunpack.c.h.b16 %v2145
    %v2232 = vunpack.c.l.b16 %v2146
    %v2233 = vunpack.c.h.b16 %v2146
    %v2234 = vunpack.c.l.b16 %v2147
    %v2235 = vunpack.c.h.b16 %v2147
    %v2236 = vunpack.c.l.b16 %v2148
    %v2237 = vunpack.c.h.b16 %v2148
    %v2238 = vunpack.c.l.b16 %v2149
    %v2239 = vunpack.c.h.b16 %v2149
    %v2240 = vunpack.c.l.b16 %v2150
    %v2241 = vunpack.c.h.b16 %v2150
    %v2242 = vunpack.c.l.b16 %v2151
    %v2243 = vunpack.c.h.b16 %v2151
    %v2244 = vunpack.c.l.b16 %v2152
    %v2245 = vunpack.c.h.b16 %v2152
    %v2246 = vunpack.c.l.b16 %v2153
    %v2247 = vunpack.c.h.b16 %v2153
    %v2248 = vunpack.c.l.b16 %v2154
    %v2249 = vunpack.c.h.b16 %v2154
    %v2250 = vunpack.c.l.b16 %v2155
    %v2251 = vunpack.c.h.b16 %v2155
    %v2252 = vpack.c.b16 %v2192, %v2188
    %v2253 = vpack.c.b16 %v2193, %v2189
    %v2254 = vpack.c.b16 %v2194, %v2190
    %v2255 = vpack.c.b16 %v2195, %v2191
    %v2256 = vpack.c.b16 %v2200, %v2196
    %v2257 = vpack.c.b16 %v2201, %v2197
    %v2258 = vpack.c.b16 %v2202, %v2198
    %v2259 = vpack.c.b16 %v2203, %v2199
    %v2260 = vpack.c.b16 %v2208, %v2204
    %v2261 = vpack.c.b16 %v2209, %v2205
    %v2262 = vpack.c.b16 %v2210, %v2206
    %v2263 = vpack.c.b16 %v2211, %v2207
    %v2264 = vpack.c.b16 %v2216, %v2212
    %v2265 = vpack.c.b16 %v2217, %v2213
    %v2266 = vpack.c.b16 %v2218, %v2214
    %v2267 = vpack.c.b16 %v2219, %v2215
    %v2268 = vpack.c.b16 %v2224, %v2220
    %v2269 = vpack.c.b16 %v2225, %v2221
    %v2270 = vpack.c.b16 %v2226, %v2222
    %v2271 = vpack.c.b16 %v2227, %v2223
    %v2272 = vpack.c.b16 %v2232, %v2228
    %v2273 = vpack.c.b16 %v2233, %v2229
    %v2274 = vpack.c.b16 %v2234, %v2230
    %v2275 = vpack.c.b16 %v2235, %v2231
    %v2276 = vpack.c.b16 %v2240, %v2236
    %v2277 = vpack.c.b16 %v2241, %v2237
    %v2278 = vpack.c.b16 %v2242, %v2238
    %v2279 = vpack.c.b16 %v2243, %v2239
    %v2280 = vpack.c.b16 %v2248, %v2244
    %v2281 = vpack.c.b16 %v2249, %v2245
    %v2282 = vpack.c.b16 %v2250, %v2246
    %v2283 = vpack.c.b16 %v2251, %v2247
    %2316 = vmatprep.subr.bf16.mxu0 %v2253
    %2317 = vmatpush1.bf16.msra.mxu0 %v2252
    %2318 = vmatprep.subr.bf16.mxu0 %v2257
    %2319 = vmatpush1.bf16.msra.mxu0 %v2256
    %2320 = vmatprep.subr.bf16.mxu0 %v2261
    %2321 = vmatpush1.bf16.msra.mxu0 %v2260
    %2322 = vmatprep.subr.bf16.mxu0 %v2265
    %2323 = vmatpush1.bf16.msra.mxu0 %v2264
    %2324 = vmatprep.subr.bf16.mxu0 %v2269
    %2325 = vmatpush1.bf16.msra.mxu0 %v2268
    %2326 = vmatprep.subr.bf16.mxu0 %v2273
    %2327 = vmatpush1.bf16.msra.mxu0 %v2272
    %2328 = vmatprep.subr.bf16.mxu0 %v2277
    %2329 = vmatpush1.bf16.msra.mxu0 %v2276
    %2330 = vmatprep.subr.bf16.mxu0 %v2281
    %2331 = vmatpush1.bf16.msra.mxu0 %v2280
    %2332 = vmatprep.subr.bf16.mxu0 0
    %2333 = vmatpush1.bf16.msra.mxu0 0
    %2334 = vmatprep.subr.bf16.mxu0 0
    %2335 = vmatpush1.bf16.msra.mxu0 0
    %2336 = vmatprep.subr.bf16.mxu0 0
    %2337 = vmatpush1.bf16.msra.mxu0 0
    %2338 = vmatprep.subr.bf16.mxu0 0
    %2339 = vmatpush1.bf16.msra.mxu0 0
    %2340 = vmatprep.subr.bf16.mxu0 0
    %2341 = vmatpush1.bf16.msra.mxu0 0
    %2342 = vmatprep.subr.bf16.mxu0 0
    %2343 = vmatpush1.bf16.msra.mxu0 0
    %2344 = vmatprep.subr.bf16.mxu0 0
    %2345 = vmatpush1.bf16.msra.mxu0 0
    %2346 = vmatprep.subr.bf16.mxu0 0
    %2347 = vmatpush1.bf16.msra.mxu0 0
    %2348 = vmatprep.mubr.bf16.mxu0 0
    %2349 = vmatmul.mubr.bf16.gmra.mrb[0].mxu0 %v2123
    %v2350 = vpop.f32.mrb[0].mxu0
    %v2351 = vadd.f32 0.0, %v2350
    %v2352 = vpop.f32.mrb[0].mxu0
    %v2353 = vadd.f32 0.0, %v2352
    %v2354 = vpop.f32.mrb[0].mxu0
    %v2355 = vpop.f32.mrb[0].mxu0
    %2356 = vdwg.mxu0
    %2357 = vmatprep.subr.bf16.mxu0 %v2255
    %2358 = vmatpush1.bf16.msra.mxu0 %v2254
    %2359 = vmatprep.subr.bf16.mxu0 %v2259
    %2360 = vmatpush1.bf16.msra.mxu0 %v2258
    %2361 = vmatprep.subr.bf16.mxu0 %v2263
    %2362 = vmatpush1.bf16.msra.mxu0 %v2262
    %2363 = vmatprep.subr.bf16.mxu0 %v2267
    %2364 = vmatpush1.bf16.msra.mxu0 %v2266
    %2365 = vmatprep.subr.bf16.mxu0 %v2271
    %2366 = vmatpush1.bf16.msra.mxu0 %v2270
    %2367 = vmatprep.subr.bf16.mxu0 %v2275
    %2368 = vmatpush1.bf16.msra.mxu0 %v2274
    %2369 = vmatprep.subr.bf16.mxu0 %v2279
    %2370 = vmatpush1.bf16.msra.mxu0 %v2278
    %2371 = vmatprep.subr.bf16.mxu0 %v2283
    %2372 = vmatpush1.bf16.msra.mxu0 %v2282
    %2373 = vmatprep.subr.bf16.mxu0 0
    %2374 = vmatpush1.bf16.msra.mxu0 0
    %2375 = vmatprep.subr.bf16.mxu0 0
    %2376 = vmatpush1.bf16.msra.mxu0 0
    %2377 = vmatprep.subr.bf16.mxu0 0
    %2378 = vmatpush1.bf16.msra.mxu0 0
    %2379 = vmatprep.subr.bf16.mxu0 0
    %2380 = vmatpush1.bf16.msra.mxu0 0
    %2381 = vmatprep.subr.bf16.mxu0 0
    %2382 = vmatpush1.bf16.msra.mxu0 0
    %2383 = vmatprep.subr.bf16.mxu0 0
    %2384 = vmatpush1.bf16.msra.mxu0 0
    %2385 = vmatprep.subr.bf16.mxu0 0
    %2386 = vmatpush1.bf16.msra.mxu0 0
    %2387 = vmatprep.subr.bf16.mxu0 0
    %2388 = vmatpush1.bf16.msra.mxu0 0
    %2389 = vmatprep.mubr.bf16.mxu0 0
    %2390 = vmatmul.mubr.bf16.gmra.mrb[0].mxu0 %v2123
    %v2391 = vpop.f32.mrb[0].mxu0
    %v2392 = vadd.f32 0.0, %v2391
    %v2393 = vpop.f32.mrb[0].mxu0
    %v2394 = vadd.f32 0.0, %v2393
    %v2395 = vpop.f32.mrb[0].mxu0
    %v2396 = vpop.f32.mrb[0].mxu0
    %2397 = vdwg.mxu0
    %v2398 = vadd.f32 %v2119, %v2351
    %v2399 = vadd.f32 %v2120, %v2353
    %v2400 = vadd.f32 %v2121, %v2392
    %v2401 = vadd.f32 %v2122, %v2394
    %v2402 = vxor.u32 %v2398, 2147483648
    %v2403 = vmul.f32 %v2402, 1.442695
    %v2404 = vpow.pop %v2403
    %v2405 = vadd.f32 %v2404, 1.0
    %v2406 = vrcp.pop %v2405
    %v2407 = vmul.f32 1.0, %v2406
    %v2408 = vxor.u32 %v2399, 2147483648
    %v2409 = vmul.f32 %v2408, 1.442695
    %v2410 = vpow.pop %v2409
    %v2411 = vadd.f32 %v2410, 1.0
    %v2412 = vrcp.pop %v2411
    %v2413 = vmul.f32 1.0, %v2412
    %v2414 = vtanh.pop %v2400
    %v2415 = vxor.u32 %v2401, 2147483648
    %v2416 = vmul.f32 %v2415, 1.442695
    %v2417 = vpow.pop %v2416
    %v2418 = vadd.f32 %v2417, 1.0
    %v2419 = vrcp.pop %v2418
    %v2420 = vmul.f32 1.0, %v2419
    %v2421 = vmul.f32 %v2413, %v2111
    %v2422 = vmul.f32 %v2407, %v2414
    %v2423 = vadd.f32 %v2421, %v2422
    %v2424 = vtanh.pop %v2423
    %v2425 = vmul.f32 %v2420, %v2424
    %s2426 = scalar_lea.vmem [#allocation7], 40
    %2427 = vst [vmem:[%s2426] sm:$0xff] %v2425
    %s2428 = smul.u32 6, 4
    %s2429 = smul.addr %s2428, 8
    %s2430 = scalar_lea.vmem [#allocation6], %s2429
    %v2431 = vld [vmem:[%s2430] sm:$0xff]
    %v2432 = vld [vmem:[%s2430 + $0x8] sm:$0xff]
    %v2433 = vld [vmem:[%s2430 + $0x10] sm:$0xff]
    %v2434 = vld [vmem:[%s2430 + $0x18] sm:$0xff]
    %v2435 = vpack.c.bf16 %v2425, %v2425
    %v2436 = vld [vmem:[#allocation14] sm:$0xff]
    %v2437 = vld [vmem:[#allocation14 + $0x8] sm:$0xff]
    %v2438 = vld [vmem:[#allocation14 + $0x10] sm:$0xff]
    %v2439 = vld [vmem:[#allocation14 + $0x18] sm:$0xff]
    %v2440 = vld [vmem:[#allocation14 + $0x20] sm:$0xff]
    %v2441 = vld [vmem:[#allocation14 + $0x28] sm:$0xff]
    %v2442 = vld [vmem:[#allocation14 + $0x30] sm:$0xff]
    %v2443 = vld [vmem:[#allocation14 + $0x38] sm:$0xff]
    %v2444 = vld [vmem:[#allocation14 + $0x40] sm:$0xff]
    %v2445 = vld [vmem:[#allocation14 + $0x48] sm:$0xff]
    %v2446 = vld [vmem:[#allocation14 + $0x50] sm:$0xff]
    %v2447 = vld [vmem:[#allocation14 + $0x58] sm:$0xff]
    %v2448 = vld [vmem:[#allocation14 + $0x60] sm:$0xff]
    %v2449 = vld [vmem:[#allocation14 + $0x68] sm:$0xff]
    %v2450 = vld [vmem:[#allocation14 + $0x70] sm:$0xff]
    %v2451 = vld [vmem:[#allocation14 + $0x78] sm:$0xff]
    %v2452 = vld [vmem:[#allocation14 + $0x80] sm:$0xff]
    %v2453 = vld [vmem:[#allocation14 + $0x88] sm:$0xff]
    %v2454 = vld [vmem:[#allocation14 + $0x90] sm:$0xff]
    %v2455 = vld [vmem:[#allocation14 + $0x98] sm:$0xff]
    %v2456 = vld [vmem:[#allocation14 + $0xa0] sm:$0xff]
    %v2457 = vld [vmem:[#allocation14 + $0xa8] sm:$0xff]
    %v2458 = vld [vmem:[#allocation14 + $0xb0] sm:$0xff]
    %v2459 = vld [vmem:[#allocation14 + $0xb8] sm:$0xff]
    %v2460 = vld [vmem:[#allocation14 + $0xc0] sm:$0xff]
    %v2461 = vld [vmem:[#allocation14 + $0xc8] sm:$0xff]
    %v2462 = vld [vmem:[#allocation14 + $0xd0] sm:$0xff]
    %v2463 = vld [vmem:[#allocation14 + $0xd8] sm:$0xff]
    %v2464 = vld [vmem:[#allocation14 + $0xe0] sm:$0xff]
    %v2465 = vld [vmem:[#allocation14 + $0xe8] sm:$0xff]
    %v2466 = vld [vmem:[#allocation14 + $0xf0] sm:$0xff]
    %v2467 = vld [vmem:[#allocation14 + $0xf8] sm:$0xff]
    %v2500 = vunpack.c.l.b16 %v2436
    %v2501 = vunpack.c.h.b16 %v2436
    %v2502 = vunpack.c.l.b16 %v2437
    %v2503 = vunpack.c.h.b16 %v2437
    %v2504 = vunpack.c.l.b16 %v2438
    %v2505 = vunpack.c.h.b16 %v2438
    %v2506 = vunpack.c.l.b16 %v2439
    %v2507 = vunpack.c.h.b16 %v2439
    %v2508 = vunpack.c.l.b16 %v2440
    %v2509 = vunpack.c.h.b16 %v2440
    %v2510 = vunpack.c.l.b16 %v2441
    %v2511 = vunpack.c.h.b16 %v2441
    %v2512 = vunpack.c.l.b16 %v2442
    %v2513 = vunpack.c.h.b16 %v2442
    %v2514 = vunpack.c.l.b16 %v2443
    %v2515 = vunpack.c.h.b16 %v2443
    %v2516 = vunpack.c.l.b16 %v2444
    %v2517 = vunpack.c.h.b16 %v2444
    %v2518 = vunpack.c.l.b16 %v2445
    %v2519 = vunpack.c.h.b16 %v2445
    %v2520 = vunpack.c.l.b16 %v2446
    %v2521 = vunpack.c.h.b16 %v2446
    %v2522 = vunpack.c.l.b16 %v2447
    %v2523 = vunpack.c.h.b16 %v2447
    %v2524 = vunpack.c.l.b16 %v2448
    %v2525 = vunpack.c.h.b16 %v2448
    %v2526 = vunpack.c.l.b16 %v2449
    %v2527 = vunpack.c.h.b16 %v2449
    %v2528 = vunpack.c.l.b16 %v2450
    %v2529 = vunpack.c.h.b16 %v2450
    %v2530 = vunpack.c.l.b16 %v2451
    %v2531 = vunpack.c.h.b16 %v2451
    %v2532 = vunpack.c.l.b16 %v2452
    %v2533 = vunpack.c.h.b16 %v2452
    %v2534 = vunpack.c.l.b16 %v2453
    %v2535 = vunpack.c.h.b16 %v2453
    %v2536 = vunpack.c.l.b16 %v2454
    %v2537 = vunpack.c.h.b16 %v2454
    %v2538 = vunpack.c.l.b16 %v2455
    %v2539 = vunpack.c.h.b16 %v2455
    %v2540 = vunpack.c.l.b16 %v2456
    %v2541 = vunpack.c.h.b16 %v2456
    %v2542 = vunpack.c.l.b16 %v2457
    %v2543 = vunpack.c.h.b16 %v2457
    %v2544 = vunpack.c.l.b16 %v2458
    %v2545 = vunpack.c.h.b16 %v2458
    %v2546 = vunpack.c.l.b16 %v2459
    %v2547 = vunpack.c.h.b16 %v2459
    %v2548 = vunpack.c.l.b16 %v2460
    %v2549 = vunpack.c.h.b16 %v2460
    %v2550 = vunpack.c.l.b16 %v2461
    %v2551 = vunpack.c.h.b16 %v2461
    %v2552 = vunpack.c.l.b16 %v2462
    %v2553 = vunpack.c.h.b16 %v2462
    %v2554 = vunpack.c.l.b16 %v2463
    %v2555 = vunpack.c.h.b16 %v2463
    %v2556 = vunpack.c.l.b16 %v2464
    %v2557 = vunpack.c.h.b16 %v2464
    %v2558 = vunpack.c.l.b16 %v2465
    %v2559 = vunpack.c.h.b16 %v2465
    %v2560 = vunpack.c.l.b16 %v2466
    %v2561 = vunpack.c.h.b16 %v2466
    %v2562 = vunpack.c.l.b16 %v2467
    %v2563 = vunpack.c.h.b16 %v2467
    %v2564 = vpack.c.b16 %v2504, %v2500
    %v2565 = vpack.c.b16 %v2505, %v2501
    %v2566 = vpack.c.b16 %v2506, %v2502
    %v2567 = vpack.c.b16 %v2507, %v2503
    %v2568 = vpack.c.b16 %v2512, %v2508
    %v2569 = vpack.c.b16 %v2513, %v2509
    %v2570 = vpack.c.b16 %v2514, %v2510
    %v2571 = vpack.c.b16 %v2515, %v2511
    %v2572 = vpack.c.b16 %v2520, %v2516
    %v2573 = vpack.c.b16 %v2521, %v2517
    %v2574 = vpack.c.b16 %v2522, %v2518
    %v2575 = vpack.c.b16 %v2523, %v2519
    %v2576 = vpack.c.b16 %v2528, %v2524
    %v2577 = vpack.c.b16 %v2529, %v2525
    %v2578 = vpack.c.b16 %v2530, %v2526
    %v2579 = vpack.c.b16 %v2531, %v2527
    %v2580 = vpack.c.b16 %v2536, %v2532
    %v2581 = vpack.c.b16 %v2537, %v2533
    %v2582 = vpack.c.b16 %v2538, %v2534
    %v2583 = vpack.c.b16 %v2539, %v2535
    %v2584 = vpack.c.b16 %v2544, %v2540
    %v2585 = vpack.c.b16 %v2545, %v2541
    %v2586 = vpack.c.b16 %v2546, %v2542
    %v2587 = vpack.c.b16 %v2547, %v2543
    %v2588 = vpack.c.b16 %v2552, %v2548
    %v2589 = vpack.c.b16 %v2553, %v2549
    %v2590 = vpack.c.b16 %v2554, %v2550
    %v2591 = vpack.c.b16 %v2555, %v2551
    %v2592 = vpack.c.b16 %v2560, %v2556
    %v2593 = vpack.c.b16 %v2561, %v2557
    %v2594 = vpack.c.b16 %v2562, %v2558
    %v2595 = vpack.c.b16 %v2563, %v2559
    %2628 = vmatprep.subr.bf16.mxu0 %v2565
    %2629 = vmatpush1.bf16.msra.mxu0 %v2564
    %2630 = vmatprep.subr.bf16.mxu0 %v2569
    %2631 = vmatpush1.bf16.msra.mxu0 %v2568
    %2632 = vmatprep.subr.bf16.mxu0 %v2573
    %2633 = vmatpush1.bf16.msra.mxu0 %v2572
    %2634 = vmatprep.subr.bf16.mxu0 %v2577
    %2635 = vmatpush1.bf16.msra.mxu0 %v2576
    %2636 = vmatprep.subr.bf16.mxu0 %v2581
    %2637 = vmatpush1.bf16.msra.mxu0 %v2580
    %2638 = vmatprep.subr.bf16.mxu0 %v2585
    %2639 = vmatpush1.bf16.msra.mxu0 %v2584
    %2640 = vmatprep.subr.bf16.mxu0 %v2589
    %2641 = vmatpush1.bf16.msra.mxu0 %v2588
    %2642 = vmatprep.subr.bf16.mxu0 %v2593
    %2643 = vmatpush1.bf16.msra.mxu0 %v2592
    %2644 = vmatprep.subr.bf16.mxu0 0
    %2645 = vmatpush1.bf16.msra.mxu0 0
    %2646 = vmatprep.subr.bf16.mxu0 0
    %2647 = vmatpush1.bf16.msra.mxu0 0
    %2648 = vmatprep.subr.bf16.mxu0 0
    %2649 = vmatpush1.bf16.msra.mxu0 0
    %2650 = vmatprep.subr.bf16.mxu0 0
    %2651 = vmatpush1.bf16.msra.mxu0 0
    %2652 = vmatprep.subr.bf16.mxu0 0
    %2653 = vmatpush1.bf16.msra.mxu0 0
    %2654 = vmatprep.subr.bf16.mxu0 0
    %2655 = vmatpush1.bf16.msra.mxu0 0
    %2656 = vmatprep.subr.bf16.mxu0 0
    %2657 = vmatpush1.bf16.msra.mxu0 0
    %2658 = vmatprep.subr.bf16.mxu0 0
    %2659 = vmatpush1.bf16.msra.mxu0 0
    %2660 = vmatprep.mubr.bf16.mxu0 0
    %2661 = vmatmul.mubr.bf16.gmra.mrb[0].mxu0 %v2435
    %v2662 = vpop.f32.mrb[0].mxu0
    %v2663 = vadd.f32 0.0, %v2662
    %v2664 = vpop.f32.mrb[0].mxu0
    %v2665 = vadd.f32 0.0, %v2664
    %v2666 = vpop.f32.mrb[0].mxu0
    %v2667 = vpop.f32.mrb[0].mxu0
    %2668 = vdwg.mxu0
    %2669 = vmatprep.subr.bf16.mxu0 %v2567
    %2670 = vmatpush1.bf16.msra.mxu0 %v2566
    %2671 = vmatprep.subr.bf16.mxu0 %v2571
    %2672 = vmatpush1.bf16.msra.mxu0 %v2570
    %2673 = vmatprep.subr.bf16.mxu0 %v2575
    %2674 = vmatpush1.bf16.msra.mxu0 %v2574
    %2675 = vmatprep.subr.bf16.mxu0 %v2579
    %2676 = vmatpush1.bf16.msra.mxu0 %v2578
    %2677 = vmatprep.subr.bf16.mxu0 %v2583
    %2678 = vmatpush1.bf16.msra.mxu0 %v2582
    %2679 = vmatprep.subr.bf16.mxu0 %v2587
    %2680 = vmatpush1.bf16.msra.mxu0 %v2586
    %2681 = vmatprep.subr.bf16.mxu0 %v2591
    %2682 = vmatpush1.bf16.msra.mxu0 %v2590
    %2683 = vmatprep.subr.bf16.mxu0 %v2595
    %2684 = vmatpush1.bf16.msra.mxu0 %v2594
    %2685 = vmatprep.subr.bf16.mxu0 0
    %2686 = vmatpush1.bf16.msra.mxu0 0
    %2687 = vmatprep.subr.bf16.mxu0 0
    %2688 = vmatpush1.bf16.msra.mxu0 0
    %2689 = vmatprep.subr.bf16.mxu0 0
    %2690 = vmatpush1.bf16.msra.mxu0 0
    %2691 = vmatprep.subr.bf16.mxu0 0
    %2692 = vmatpush1.bf16.msra.mxu0 0
    %2693 = vmatprep.subr.bf16.mxu0 0
    %2694 = vmatpush1.bf16.msra.mxu0 0
    %2695 = vmatprep.subr.bf16.mxu0 0
    %2696 = vmatpush1.bf16.msra.mxu0 0
    %2697 = vmatprep.subr.bf16.mxu0 0
    %2698 = vmatpush1.bf16.msra.mxu0 0
    %2699 = vmatprep.subr.bf16.mxu0 0
    %2700 = vmatpush1.bf16.msra.mxu0 0
    %2701 = vmatprep.mubr.bf16.mxu0 0
    %2702 = vmatmul.mubr.bf16.gmra.mrb[0].mxu0 %v2435
    %v2703 = vpop.f32.mrb[0].mxu0
    %v2704 = vadd.f32 0.0, %v2703
    %v2705 = vpop.f32.mrb[0].mxu0
    %v2706 = vadd.f32 0.0, %v2705
    %v2707 = vpop.f32.mrb[0].mxu0
    %v2708 = vpop.f32.mrb[0].mxu0
    %2709 = vdwg.mxu0
    %v2710 = vadd.f32 %v2431, %v2663
    %v2711 = vadd.f32 %v2432, %v2665
    %v2712 = vadd.f32 %v2433, %v2704
    %v2713 = vadd.f32 %v2434, %v2706
    %v2714 = vxor.u32 %v2710, 2147483648
    %v2715 = vmul.f32 %v2714, 1.442695
    %v2716 = vpow.pop %v2715
    %v2717 = vadd.f32 %v2716, 1.0
    %v2718 = vrcp.pop %v2717
    %v2719 = vmul.f32 1.0, %v2718
    %v2720 = vxor.u32 %v2711, 2147483648
    %v2721 = vmul.f32 %v2720, 1.442695
    %v2722 = vpow.pop %v2721
    %v2723 = vadd.f32 %v2722, 1.0
    %v2724 = vrcp.pop %v2723
    %v2725 = vmul.f32 1.0, %v2724
    %v2726 = vtanh.pop %v2712
    %v2727 = vxor.u32 %v2713, 2147483648
    %v2728 = vmul.f32 %v2727, 1.442695
    %v2729 = vpow.pop %v2728
    %v2730 = vadd.f32 %v2729, 1.0
    %v2731 = vrcp.pop %v2730
    %v2732 = vmul.f32 1.0, %v2731
    %v2733 = vmul.f32 %v2725, %v2423
    %v2734 = vmul.f32 %v2719, %v2726
    %v2735 = vadd.f32 %v2733, %v2734
    %v2736 = vtanh.pop %v2735
    %v2737 = vmul.f32 %v2732, %v2736
    %s2738 = scalar_lea.vmem [#allocation7], 48
    %2739 = vst [vmem:[%s2738] sm:$0xff] %v2737
    %s2740 = smul.u32 7, 4
    %s2741 = smul.addr %s2740, 8
    %s2742 = scalar_lea.vmem [#allocation6], %s2741
    %v2743 = vld [vmem:[%s2742] sm:$0xff]
    %v2744 = vld [vmem:[%s2742 + $0x8] sm:$0xff]
    %v2745 = vld [vmem:[%s2742 + $0x10] sm:$0xff]
    %v2746 = vld [vmem:[%s2742 + $0x18] sm:$0xff]
    %v2747 = vpack.c.bf16 %v2737, %v2737
    %v2748 = vld [vmem:[#allocation14] sm:$0xff]
    %v2749 = vld [vmem:[#allocation14 + $0x8] sm:$0xff]
    %v2750 = vld [vmem:[#allocation14 + $0x10] sm:$0xff]
    %v2751 = vld [vmem:[#allocation14 + $0x18] sm:$0xff]
    %v2752 = vld [vmem:[#allocation14 + $0x20] sm:$0xff]
    %v2753 = vld [vmem:[#allocation14 + $0x28] sm:$0xff]
    %v2754 = vld [vmem:[#allocation14 + $0x30] sm:$0xff]
    %v2755 = vld [vmem:[#allocation14 + $0x38] sm:$0xff]
    %v2756 = vld [vmem:[#allocation14 + $0x40] sm:$0xff]
    %v2757 = vld [vmem:[#allocation14 + $0x48] sm:$0xff]
    %v2758 = vld [vmem:[#allocation14 + $0x50] sm:$0xff]
    %v2759 = vld [vmem:[#allocation14 + $0x58] sm:$0xff]
    %v2760 = vld [vmem:[#allocation14 + $0x60] sm:$0xff]
    %v2761 = vld [vmem:[#allocation14 + $0x68] sm:$0xff]
    %v2762 = vld [vmem:[#allocation14 + $0x70] sm:$0xff]
    %v2763 = vld [vmem:[#allocation14 + $0x78] sm:$0xff]
    %v2764 = vld [vmem:[#allocation14 + $0x80] sm:$0xff]
    %v2765 = vld [vmem:[#allocation14 + $0x88] sm:$0xff]
    %v2766 = vld [vmem:[#allocation14 + $0x90] sm:$0xff]
    %v2767 = vld [vmem:[#allocation14 + $0x98] sm:$0xff]
    %v2768 = vld [vmem:[#allocation14 + $0xa0] sm:$0xff]
    %v2769 = vld [vmem:[#allocation14 + $0xa8] sm:$0xff]
    %v2770 = vld [vmem:[#allocation14 + $0xb0] sm:$0xff]
    %v2771 = vld [vmem:[#allocation14 + $0xb8] sm:$0xff]
    %v2772 = vld [vmem:[#allocation14 + $0xc0] sm:$0xff]
    %v2773 = vld [vmem:[#allocation14 + $0xc8] sm:$0xff]
    %v2774 = vld [vmem:[#allocation14 + $0xd0] sm:$0xff]
    %v2775 = vld [vmem:[#allocation14 + $0xd8] sm:$0xff]
    %v2776 = vld [vmem:[#allocation14 + $0xe0] sm:$0xff]
    %v2777 = vld [vmem:[#allocation14 + $0xe8] sm:$0xff]
    %v2778 = vld [vmem:[#allocation14 + $0xf0] sm:$0xff]
    %v2779 = vld [vmem:[#allocation14 + $0xf8] sm:$0xff]
    %v2812 = vunpack.c.l.b16 %v2748
    %v2813 = vunpack.c.h.b16 %v2748
    %v2814 = vunpack.c.l.b16 %v2749
    %v2815 = vunpack.c.h.b16 %v2749
    %v2816 = vunpack.c.l.b16 %v2750
    %v2817 = vunpack.c.h.b16 %v2750
    %v2818 = vunpack.c.l.b16 %v2751
    %v2819 = vunpack.c.h.b16 %v2751
    %v2820 = vunpack.c.l.b16 %v2752
    %v2821 = vunpack.c.h.b16 %v2752
    %v2822 = vunpack.c.l.b16 %v2753
    %v2823 = vunpack.c.h.b16 %v2753
    %v2824 = vunpack.c.l.b16 %v2754
    %v2825 = vunpack.c.h.b16 %v2754
    %v2826 = vunpack.c.l.b16 %v2755
    %v2827 = vunpack.c.h.b16 %v2755
    %v2828 = vunpack.c.l.b16 %v2756
    %v2829 = vunpack.c.h.b16 %v2756
    %v2830 = vunpack.c.l.b16 %v2757
    %v2831 = vunpack.c.h.b16 %v2757
    %v2832 = vunpack.c.l.b16 %v2758
    %v2833 = vunpack.c.h.b16 %v2758
    %v2834 = vunpack.c.l.b16 %v2759
    %v2835 = vunpack.c.h.b16 %v2759
    %v2836 = vunpack.c.l.b16 %v2760
    %v2837 = vunpack.c.h.b16 %v2760
    %v2838 = vunpack.c.l.b16 %v2761
    %v2839 = vunpack.c.h.b16 %v2761
    %v2840 = vunpack.c.l.b16 %v2762
    %v2841 = vunpack.c.h.b16 %v2762
    %v2842 = vunpack.c.l.b16 %v2763
    %v2843 = vunpack.c.h.b16 %v2763
    %v2844 = vunpack.c.l.b16 %v2764
    %v2845 = vunpack.c.h.b16 %v2764
    %v2846 = vunpack.c.l.b16 %v2765
    %v2847 = vunpack.c.h.b16 %v2765
    %v2848 = vunpack.c.l.b16 %v2766
    %v2849 = vunpack.c.h.b16 %v2766
    %v2850 = vunpack.c.l.b16 %v2767
    %v2851 = vunpack.c.h.b16 %v2767
    %v2852 = vunpack.c.l.b16 %v2768
    %v2853 = vunpack.c.h.b16 %v2768
    %v2854 = vunpack.c.l.b16 %v2769
    %v2855 = vunpack.c.h.b16 %v2769
    %v2856 = vunpack.c.l.b16 %v2770
    %v2857 = vunpack.c.h.b16 %v2770
    %v2858 = vunpack.c.l.b16 %v2771
    %v2859 = vunpack.c.h.b16 %v2771
    %v2860 = vunpack.c.l.b16 %v2772
    %v2861 = vunpack.c.h.b16 %v2772
    %v2862 = vunpack.c.l.b16 %v2773
    %v2863 = vunpack.c.h.b16 %v2773
    %v2864 = vunpack.c.l.b16 %v2774
    %v2865 = vunpack.c.h.b16 %v2774
    %v2866 = vunpack.c.l.b16 %v2775
    %v2867 = vunpack.c.h.b16 %v2775
    %v2868 = vunpack.c.l.b16 %v2776
    %v2869 = vunpack.c.h.b16 %v2776
    %v2870 = vunpack.c.l.b16 %v2777
    %v2871 = vunpack.c.h.b16 %v2777
    %v2872 = vunpack.c.l.b16 %v2778
    %v2873 = vunpack.c.h.b16 %v2778
    %v2874 = vunpack.c.l.b16 %v2779
    %v2875 = vunpack.c.h.b16 %v2779
    %v2876 = vpack.c.b16 %v2816, %v2812
    %v2877 = vpack.c.b16 %v2817, %v2813
    %v2878 = vpack.c.b16 %v2818, %v2814
    %v2879 = vpack.c.b16 %v2819, %v2815
    %v2880 = vpack.c.b16 %v2824, %v2820
    %v2881 = vpack.c.b16 %v2825, %v2821
    %v2882 = vpack.c.b16 %v2826, %v2822
    %v2883 = vpack.c.b16 %v2827, %v2823
    %v2884 = vpack.c.b16 %v2832, %v2828
    %v2885 = vpack.c.b16 %v2833, %v2829
    %v2886 = vpack.c.b16 %v2834, %v2830
    %v2887 = vpack.c.b16 %v2835, %v2831
    %v2888 = vpack.c.b16 %v2840, %v2836
    %v2889 = vpack.c.b16 %v2841, %v2837
    %v2890 = vpack.c.b16 %v2842, %v2838
    %v2891 = vpack.c.b16 %v2843, %v2839
    %v2892 = vpack.c.b16 %v2848, %v2844
    %v2893 = vpack.c.b16 %v2849, %v2845
    %v2894 = vpack.c.b16 %v2850, %v2846
    %v2895 = vpack.c.b16 %v2851, %v2847
    %v2896 = vpack.c.b16 %v2856, %v2852
    %v2897 = vpack.c.b16 %v2857, %v2853
    %v2898 = vpack.c.b16 %v2858, %v2854
    %v2899 = vpack.c.b16 %v2859, %v2855
    %v2900 = vpack.c.b16 %v2864, %v2860
    %v2901 = vpack.c.b16 %v2865, %v2861
    %v2902 = vpack.c.b16 %v2866, %v2862
    %v2903 = vpack.c.b16 %v2867, %v2863
    %v2904 = vpack.c.b16 %v2872, %v2868
    %v2905 = vpack.c.b16 %v2873, %v2869
    %v2906 = vpack.c.b16 %v2874, %v2870
    %v2907 = vpack.c.b16 %v2875, %v2871
    %2940 = vmatprep.subr.bf16.mxu0 %v2877
    %2941 = vmatpush1.bf16.msra.mxu0 %v2876
    %2942 = vmatprep.subr.bf16.mxu0 %v2881
    %2943 = vmatpush1.bf16.msra.mxu0 %v2880
    %2944 = vmatprep.subr.bf16.mxu0 %v2885
    %2945 = vmatpush1.bf16.msra.mxu0 %v2884
    %2946 = vmatprep.subr.bf16.mxu0 %v2889
    %2947 = vmatpush1.bf16.msra.mxu0 %v2888
    %2948 = vmatprep.subr.bf16.mxu0 %v2893
    %2949 = vmatpush1.bf16.msra.mxu0 %v2892
    %2950 = vmatprep.subr.bf16.mxu0 %v2897
    %2951 = vmatpush1.bf16.msra.mxu0 %v2896
    %2952 = vmatprep.subr.bf16.mxu0 %v2901
    %2953 = vmatpush1.bf16.msra.mxu0 %v2900
    %2954 = vmatprep.subr.bf16.mxu0 %v2905
    %2955 = vmatpush1.bf16.msra.mxu0 %v2904
    %2956 = vmatprep.subr.bf16.mxu0 0
    %2957 = vmatpush1.bf16.msra.mxu0 0
    %2958 = vmatprep.subr.bf16.mxu0 0
    %2959 = vmatpush1.bf16.msra.mxu0 0
    %2960 = vmatprep.subr.bf16.mxu0 0
    %2961 = vmatpush1.bf16.msra.mxu0 0
    %2962 = vmatprep.subr.bf16.mxu0 0
    %2963 = vmatpush1.bf16.msra.mxu0 0
    %2964 = vmatprep.subr.bf16.mxu0 0
    %2965 = vmatpush1.bf16.msra.mxu0 0
    %2966 = vmatprep.subr.bf16.mxu0 0
    %2967 = vmatpush1.bf16.msra.mxu0 0
    %2968 = vmatprep.subr.bf16.mxu0 0
    %2969 = vmatpush1.bf16.msra.mxu0 0
    %2970 = vmatprep.subr.bf16.mxu0 0
    %2971 = vmatpush1.bf16.msra.mxu0 0
    %2972 = vmatprep.mubr.bf16.mxu0 0
    %2973 = vmatmul.mubr.bf16.gmra.mrb[0].mxu0 %v2747
    %v2974 = vpop.f32.mrb[0].mxu0
    %v2975 = vadd.f32 0.0, %v2974
    %v2976 = vpop.f32.mrb[0].mxu0
    %v2977 = vadd.f32 0.0, %v2976
    %v2978 = vpop.f32.mrb[0].mxu0
    %v2979 = vpop.f32.mrb[0].mxu0
    %2980 = vdwg.mxu0
    %2981 = vmatprep.subr.bf16.mxu0 %v2879
    %2982 = vmatpush1.bf16.msra.mxu0 %v2878
    %2983 = vmatprep.subr.bf16.mxu0 %v2883
    %2984 = vmatpush1.bf16.msra.mxu0 %v2882
    %2985 = vmatprep.subr.bf16.mxu0 %v2887
    %2986 = vmatpush1.bf16.msra.mxu0 %v2886
    %2987 = vmatprep.subr.bf16.mxu0 %v2891
    %2988 = vmatpush1.bf16.msra.mxu0 %v2890
    %2989 = vmatprep.subr.bf16.mxu0 %v2895
    %2990 = vmatpush1.bf16.msra.mxu0 %v2894
    %2991 = vmatprep.subr.bf16.mxu0 %v2899
    %2992 = vmatpush1.bf16.msra.mxu0 %v2898
    %2993 = vmatprep.subr.bf16.mxu0 %v2903
    %2994 = vmatpush1.bf16.msra.mxu0 %v2902
    %2995 = vmatprep.subr.bf16.mxu0 %v2907
    %2996 = vmatpush1.bf16.msra.mxu0 %v2906
    %2997 = vmatprep.subr.bf16.mxu0 0
    %2998 = vmatpush1.bf16.msra.mxu0 0
    %2999 = vmatprep.subr.bf16.mxu0 0
    %3000 = vmatpush1.bf16.msra.mxu0 0
    %3001 = vmatprep.subr.bf16.mxu0 0
    %3002 = vmatpush1.bf16.msra.mxu0 0
    %3003 = vmatprep.subr.bf16.mxu0 0
    %3004 = vmatpush1.bf16.msra.mxu0 0
    %3005 = vmatprep.subr.bf16.mxu0 0
    %3006 = vmatpush1.bf16.msra.mxu0 0
    %3007 = vmatprep.subr.bf16.mxu0 0
    %3008 = vmatpush1.bf16.msra.mxu0 0
    %3009 = vmatprep.subr.bf16.mxu0 0
    %3010 = vmatpush1.bf16.msra.mxu0 0
    %3011 = vmatprep.subr.bf16.mxu0 0
    %3012 = vmatpush1.bf16.msra.mxu0 0
    %3013 = vmatprep.mubr.bf16.mxu0 0
    %3014 = vmatmul.mubr.bf16.gmra.mrb[0].mxu0 %v2747
    %v3015 = vpop.f32.mrb[0].mxu0
    %v3016 = vadd.f32 0.0, %v3015
    %v3017 = vpop.f32.mrb[0].mxu0
    %v3018 = vadd.f32 0.0, %v3017
    %v3019 = vpop.f32.mrb[0].mxu0
    %v3020 = vpop.f32.mrb[0].mxu0
    %3021 = vdwg.mxu0
    %v3022 = vadd.f32 %v2743, %v2975
    %v3023 = vadd.f32 %v2744, %v2977
    %v3024 = vadd.f32 %v2745, %v3016
    %v3025 = vadd.f32 %v2746, %v3018
    %v3026 = vxor.u32 %v3022, 2147483648
    %v3027 = vmul.f32 %v3026, 1.442695
    %v3028 = vpow.pop %v3027
    %v3029 = vadd.f32 %v3028, 1.0
    %v3030 = vrcp.pop %v3029
    %v3031 = vmul.f32 1.0, %v3030
    %v3032 = vxor.u32 %v3023, 2147483648
    %v3033 = vmul.f32 %v3032, 1.442695
    %v3034 = vpow.pop %v3033
    %v3035 = vadd.f32 %v3034, 1.0
    %v3036 = vrcp.pop %v3035
    %v3037 = vmul.f32 1.0, %v3036
    %v3038 = vtanh.pop %v3024
    %v3039 = vxor.u32 %v3025, 2147483648
    %v3040 = vmul.f32 %v3039, 1.442695
    %v3041 = vpow.pop %v3040
    %v3042 = vadd.f32 %v3041, 1.0
    %v3043 = vrcp.pop %v3042
    %v3044 = vmul.f32 1.0, %v3043
    %v3045 = vmul.f32 %v3037, %v2735
    %v3046 = vmul.f32 %v3031, %v3038
    %v3047 = vadd.f32 %v3045, %v3046
    %v3048 = vtanh.pop %v3047
    %v3049 = vmul.f32 %v3044, %v3048
    %s3050 = scalar_lea.vmem [#allocation7], 56
    %3051 = vst [vmem:[%s3050] sm:$0xff] %v3049
    %3052 = vst [vmem:[#allocation2] sm:$0xff] %v3049
    %3053 = vst [vmem:[#allocation3] sm:$0xff] %v3047
    %v3054 = vld [vmem:[#allocation7] sm:$0xff]
    %v3055 = vld [vmem:[#allocation7 + $0x8] sm:$0xff]
    %v3056 = vld [vmem:[#allocation7 + $0x10] sm:$0xff]
    %v3057 = vld [vmem:[#allocation7 + $0x18] sm:$0xff]
    %v3058 = vld [vmem:[#allocation7 + $0x20] sm:$0xff]
    %v3059 = vld [vmem:[#allocation7 + $0x28] sm:$0xff]
    %v3060 = vld [vmem:[#allocation7 + $0x30] sm:$0xff]
    %v3061 = vld [vmem:[#allocation7 + $0x38] sm:$0xff]
    %v3062 = vpack.c.bf16 %v3055, %v3054
    %v3063 = vpack.c.bf16 %v3057, %v3056
    %v3064 = vpack.c.bf16 %v3059, %v3058
    %v3065 = vpack.c.bf16 %v3061, %v3060
    %v3066 = vld [vmem:[#allocation17] sm:$0xff]
    %v3067 = vld [vmem:[#allocation17 + $0x8] sm:$0xff]
    %v3068 = vld [vmem:[#allocation17 + $0x10] sm:$0xff]
    %v3069 = vld [vmem:[#allocation17 + $0x18] sm:$0xff]
    %v3070 = vld [vmem:[#allocation17 + $0x20] sm:$0xff]
    %v3071 = vld [vmem:[#allocation17 + $0x28] sm:$0xff]
    %v3072 = vld [vmem:[#allocation17 + $0x30] sm:$0xff]
    %v3073 = vld [vmem:[#allocation17 + $0x38] sm:$0xff]
    %v3074 = vld [vmem:[#allocation17 + $0x40] sm:$0xff]
    %v3075 = vld [vmem:[#allocation17 + $0x48] sm:$0xff]
    %v3076 = vld [vmem:[#allocation17 + $0x50] sm:$0xff]
    %v3077 = vld [vmem:[#allocation17 + $0x58] sm:$0xff]
    %v3078 = vld [vmem:[#allocation17 + $0x60] sm:$0xff]
    %v3079 = vld [vmem:[#allocation17 + $0x68] sm:$0xff]
    %v3080 = vld [vmem:[#allocation17 + $0x70] sm:$0xff]
    %v3081 = vld [vmem:[#allocation17 + $0x78] sm:$0xff]
    %v3082 = vld [vmem:[#allocation17 + $0x80] sm:$0xff]
    %v3083 = vld [vmem:[#allocation17 + $0x88] sm:$0xff]
    %v3084 = vld [vmem:[#allocation17 + $0x90] sm:$0xff]
    %v3085 = vld [vmem:[#allocation17 + $0x98] sm:$0xff]
    %v3086 = vld [vmem:[#allocation17 + $0xa0] sm:$0xff]
    %v3087 = vld [vmem:[#allocation17 + $0xa8] sm:$0xff]
    %v3088 = vld [vmem:[#allocation17 + $0xb0] sm:$0xff]
    %v3089 = vld [vmem:[#allocation17 + $0xb8] sm:$0xff]
    %v3090 = vld [vmem:[#allocation17 + $0xc0] sm:$0xff]
    %v3091 = vld [vmem:[#allocation17 + $0xc8] sm:$0xff]
    %v3092 = vld [vmem:[#allocation17 + $0xd0] sm:$0xff]
    %v3093 = vld [vmem:[#allocation17 + $0xd8] sm:$0xff]
    %v3094 = vld [vmem:[#allocation17 + $0xe0] sm:$0xff]
    %v3095 = vld [vmem:[#allocation17 + $0xe8] sm:$0xff]
    %v3096 = vld [vmem:[#allocation17 + $0xf0] sm:$0xff]
    %v3097 = vld [vmem:[#allocation17 + $0xf8] sm:$0xff]
    %v3098 = vld [vmem:[#allocation20] sm:$0xf]
    %v3100 = vlaneseq
    %v3101 = vshrl.u32 %v3100, 7
    %v3102 = vsub.s32 0, %v3101
    %v3103 = vrot.slane %v3098, %v3102
    %v3104 = vlaneseq
    %v3105 = vshrl.u32 %v3104, 7
    %v3106 = vsub.s32 1, %v3105
    %v3107 = vrot.slane %v3098, %v3106
    %v3108 = vlaneseq
    %v3109 = vshrl.u32 %v3108, 7
    %v3110 = vsub.s32 2, %v3109
    %v3111 = vrot.slane %v3098, %v3110
    %v3112 = vlaneseq
    %v3113 = vshrl.u32 %v3112, 7
    %v3114 = vsub.s32 3, %v3113
    %v3115 = vrot.slane %v3098, %v3114
    %v3152 = vunpack.c.l.b16 %v3066
    %v3153 = vunpack.c.h.b16 %v3066
    %v3154 = vunpack.c.l.b16 %v3067
    %v3155 = vunpack.c.h.b16 %v3067
    %v3156 = vunpack.c.l.b16 %v3068
    %v3157 = vunpack.c.h.b16 %v3068
    %v3158 = vunpack.c.l.b16 %v3069
    %v3159 = vunpack.c.h.b16 %v3069
    %v3160 = vunpack.c.l.b16 %v3070
    %v3161 = vunpack.c.h.b16 %v3070
    %v3162 = vunpack.c.l.b16 %v3071
    %v3163 = vunpack.c.h.b16 %v3071
    %v3164 = vunpack.c.l.b16 %v3072
    %v3165 = vunpack.c.h.b16 %v3072
    %v3166 = vunpack.c.l.b16 %v3073
    %v3167 = vunpack.c.h.b16 %v3073
    %v3168 = vunpack.c.l.b16 %v3074
    %v3169 = vunpack.c.h.b16 %v3074
    %v3170 = vunpack.c.l.b16 %v3075
    %v3171 = vunpack.c.h.b16 %v3075
    %v3172 = vunpack.c.l.b16 %v3076
    %v3173 = vunpack.c.h.b16 %v3076
    %v3174 = vunpack.c.l.b16 %v3077
    %v3175 = vunpack.c.h.b16 %v3077
    %v3176 = vunpack.c.l.b16 %v3078
    %v3177 = vunpack.c.h.b16 %v3078
    %v3178 = vunpack.c.l.b16 %v3079
    %v3179 = vunpack.c.h.b16 %v3079
    %v3180 = vunpack.c.l.b16 %v3080
    %v3181 = vunpack.c.h.b16 %v3080
    %v3182 = vunpack.c.l.b16 %v3081
    %v3183 = vunpack.c.h.b16 %v3081
    %v3184 = vunpack.c.l.b16 %v3082
    %v3185 = vunpack.c.h.b16 %v3082
    %v3186 = vunpack.c.l.b16 %v3083
    %v3187 = vunpack.c.h.b16 %v3083
    %v3188 = vunpack.c.l.b16 %v3084
    %v3189 = vunpack.c.h.b16 %v3084
    %v3190 = vunpack.c.l.b16 %v3085
    %v3191 = vunpack.c.h.b16 %v3085
    %v3192 = vunpack.c.l.b16 %v3086
    %v3193 = vunpack.c.h.b16 %v3086
    %v3194 = vunpack.c.l.b16 %v3087
    %v3195 = vunpack.c.h.b16 %v3087
    %v3196 = vunpack.c.l.b16 %v3088
    %v3197 = vunpack.c.h.b16 %v3088
    %v3198 = vunpack.c.l.b16 %v3089
    %v3199 = vunpack.c.h.b16 %v3089
    %v3200 = vunpack.c.l.b16 %v3090
    %v3201 = vunpack.c.h.b16 %v3090
    %v3202 = vunpack.c.l.b16 %v3091
    %v3203 = vunpack.c.h.b16 %v3091
    %v3204 = vunpack.c.l.b16 %v3092
    %v3205 = vunpack.c.h.b16 %v3092
    %v3206 = vunpack.c.l.b16 %v3093
    %v3207 = vunpack.c.h.b16 %v3093
    %v3208 = vunpack.c.l.b16 %v3094
    %v3209 = vunpack.c.h.b16 %v3094
    %v3210 = vunpack.c.l.b16 %v3095
    %v3211 = vunpack.c.h.b16 %v3095
    %v3212 = vunpack.c.l.b16 %v3096
    %v3213 = vunpack.c.h.b16 %v3096
    %v3214 = vunpack.c.l.b16 %v3097
    %v3215 = vunpack.c.h.b16 %v3097
    %v3216 = vpack.c.b16 %v3156, %v3152
    %v3217 = vpack.c.b16 %v3157, %v3153
    %v3218 = vpack.c.b16 %v3158, %v3154
    %v3219 = vpack.c.b16 %v3159, %v3155
    %v3220 = vpack.c.b16 %v3164, %v3160
    %v3221 = vpack.c.b16 %v3165, %v3161
    %v3222 = vpack.c.b16 %v3166, %v3162
    %v3223 = vpack.c.b16 %v3167, %v3163
    %v3224 = vpack.c.b16 %v3172, %v3168
    %v3225 = vpack.c.b16 %v3173, %v3169
    %v3226 = vpack.c.b16 %v3174, %v3170
    %v3227 = vpack.c.b16 %v3175, %v3171
    %v3228 = vpack.c.b16 %v3180, %v3176
    %v3229 = vpack.c.b16 %v3181, %v3177
    %v3230 = vpack.c.b16 %v3182, %v3178
    %v3231 = vpack.c.b16 %v3183, %v3179
    %v3232 = vpack.c.b16 %v3188, %v3184
    %v3233 = vpack.c.b16 %v3189, %v3185
    %v3234 = vpack.c.b16 %v3190, %v3186
    %v3235 = vpack.c.b16 %v3191, %v3187
    %v3236 = vpack.c.b16 %v3196, %v3192
    %v3237 = vpack.c.b16 %v3197, %v3193
    %v3238 = vpack.c.b16 %v3198, %v3194
    %v3239 = vpack.c.b16 %v3199, %v3195
    %v3240 = vpack.c.b16 %v3204, %v3200
    %v3241 = vpack.c.b16 %v3205, %v3201
    %v3242 = vpack.c.b16 %v3206, %v3202
    %v3243 = vpack.c.b16 %v3207, %v3203
    %v3244 = vpack.c.b16 %v3212, %v3208
    %v3245 = vpack.c.b16 %v3213, %v3209
    %v3246 = vpack.c.b16 %v3214, %v3210
    %v3247 = vpack.c.b16 %v3215, %v3211
    %3280 = vmatprep.subr.bf16.mxu0 %v3217
    %3281 = vmatpush1.bf16.msra.mxu0 %v3216
    %3282 = vmatprep.subr.bf16.mxu0 %v3221
    %3283 = vmatpush1.bf16.msra.mxu0 %v3220
    %3284 = vmatprep.subr.bf16.mxu0 %v3225
    %3285 = vmatpush1.bf16.msra.mxu0 %v3224
    %3286 = vmatprep.subr.bf16.mxu0 %v3229
    %3287 = vmatpush1.bf16.msra.mxu0 %v3228
    %3288 = vmatprep.subr.bf16.mxu0 %v3233
    %3289 = vmatpush1.bf16.msra.mxu0 %v3232
    %3290 = vmatprep.subr.bf16.mxu0 %v3237
    %3291 = vmatpush1.bf16.msra.mxu0 %v3236
    %3292 = vmatprep.subr.bf16.mxu0 %v3241
    %3293 = vmatpush1.bf16.msra.mxu0 %v3240
    %3294 = vmatprep.subr.bf16.mxu0 %v3245
    %3295 = vmatpush1.bf16.msra.mxu0 %v3244
    %3296 = vmatprep.subr.bf16.mxu0 0
    %3297 = vmatpush1.bf16.msra.mxu0 0
    %3298 = vmatprep.subr.bf16.mxu0 0
    %3299 = vmatpush1.bf16.msra.mxu0 0
    %3300 = vmatprep.subr.bf16.mxu0 0
    %3301 = vmatpush1.bf16.msra.mxu0 0
    %3302 = vmatprep.subr.bf16.mxu0 0
    %3303 = vmatpush1.bf16.msra.mxu0 0
    %3304 = vmatprep.subr.bf16.mxu0 0
    %3305 = vmatpush1.bf16.msra.mxu0 0
    %3306 = vmatprep.subr.bf16.mxu0 0
    %3307 = vmatpush1.bf16.msra.mxu0 0
    %3308 = vmatprep.subr.bf16.mxu0 0
    %3309 = vmatpush1.bf16.msra.mxu0 0
    %3310 = vmatprep.subr.bf16.mxu0 0
    %3311 = vmatpush1.bf16.msra.mxu0 0
    %3312 = vmatprep.mubr.bf16.mxu0 0
    %3313 = vmatmul.mubr.bf16.gmra.mrb[0].mxu0 %v3062
    %v3314 = vpop.f32.mrb[0].mxu0
    %v3315 = vadd.f32 %v3103, %v3314
    %v3316 = vpop.f32.mrb[0].mxu0
    %v3317 = vadd.f32 %v3107, %v3316
    %v3318 = vpop.f32.mrb[0].mxu0
    %v3319 = vadd.f32 %v3103, %v3318
    %v3320 = vpop.f32.mrb[0].mxu0
    %v3321 = vadd.f32 %v3107, %v3320
    %3322 = vmatprep.mubr.bf16.mxu0 0
    %3323 = vmatmul.mubr.bf16.gmra.mrb[0].mxu0 %v3063
    %v3324 = vpop.f32.mrb[0].mxu0
    %v3325 = vadd.f32 %v3103, %v3324
    %v3326 = vpop.f32.mrb[0].mxu0
    %v3327 = vadd.f32 %v3107, %v3326
    %v3328 = vpop.f32.mrb[0].mxu0
    %v3329 = vadd.f32 %v3103, %v3328
    %v3330 = vpop.f32.mrb[0].mxu0
    %v3331 = vadd.f32 %v3107, %v3330
    %3332 = vmatprep.mubr.bf16.mxu0 0
    %3333 = vmatmul.mubr.bf16.gmra.mrb[0].mxu0 %v3064
    %v3334 = vpop.f32.mrb[0].mxu0
    %v3335 = vadd.f32 %v3103, %v3334
    %v3336 = vpop.f32.mrb[0].mxu0
    %v3337 = vadd.f32 %v3107, %v3336
    %v3338 = vpop.f32.mrb[0].mxu0
    %v3339 = vadd.f32 %v3103, %v3338
    %v3340 = vpop.f32.mrb[0].mxu0
    %v3341 = vadd.f32 %v3107, %v3340
    %3342 = vmatprep.mubr.bf16.mxu0 0
    %3343 = vmatmul.mubr.bf16.gmra.mrb[0].mxu0 %v3065
    %v3344 = vpop.f32.mrb[0].mxu0
    %v3345 = vadd.f32 %v3103, %v3344
    %v3346 = vpop.f32.mrb[0].mxu0
    %v3347 = vadd.f32 %v3107, %v3346
    %v3348 = vpop.f32.mrb[0].mxu0
    %v3349 = vadd.f32 %v3103, %v3348
    %v3350 = vpop.f32.mrb[0].mxu0
    %v3351 = vadd.f32 %v3107, %v3350
    %3352 = vdwg.mxu0
    %3353 = vmatprep.subr.bf16.mxu0 %v3219
    %3354 = vmatpush1.bf16.msra.mxu0 %v3218
    %3355 = vmatprep.subr.bf16.mxu0 %v3223
    %3356 = vmatpush1.bf16.msra.mxu0 %v3222
    %3357 = vmatprep.subr.bf16.mxu0 %v3227
    %3358 = vmatpush1.bf16.msra.mxu0 %v3226
    %3359 = vmatprep.subr.bf16.mxu0 %v3231
    %3360 = vmatpush1.bf16.msra.mxu0 %v3230
    %3361 = vmatprep.subr.bf16.mxu0 %v3235
    %3362 = vmatpush1.bf16.msra.mxu0 %v3234
    %3363 = vmatprep.subr.bf16.mxu0 %v3239
    %3364 = vmatpush1.bf16.msra.mxu0 %v3238
    %3365 = vmatprep.subr.bf16.mxu0 %v3243
    %3366 = vmatpush1.bf16.msra.mxu0 %v3242
    %3367 = vmatprep.subr.bf16.mxu0 %v3247
    %3368 = vmatpush1.bf16.msra.mxu0 %v3246
    %3369 = vmatprep.subr.bf16.mxu0 0
    %3370 = vmatpush1.bf16.msra.mxu0 0
    %3371 = vmatprep.subr.bf16.mxu0 0
    %3372 = vmatpush1.bf16.msra.mxu0 0
    %3373 = vmatprep.subr.bf16.mxu0 0
    %3374 = vmatpush1.bf16.msra.mxu0 0
    %3375 = vmatprep.subr.bf16.mxu0 0
    %3376 = vmatpush1.bf16.msra.mxu0 0
    %3377 = vmatprep.subr.bf16.mxu0 0
    %3378 = vmatpush1.bf16.msra.mxu0 0
    %3379 = vmatprep.subr.bf16.mxu0 0
    %3380 = vmatpush1.bf16.msra.mxu0 0
    %3381 = vmatprep.subr.bf16.mxu0 0
    %3382 = vmatpush1.bf16.msra.mxu0 0
    %3383 = vmatprep.subr.bf16.mxu0 0
    %3384 = vmatpush1.bf16.msra.mxu0 0
    %3385 = vmatprep.mubr.bf16.mxu0 0
    %3386 = vmatmul.mubr.bf16.gmra.mrb[0].mxu0 %v3062
    %v3387 = vpop.f32.mrb[0].mxu0
    %v3388 = vadd.f32 %v3111, %v3387
    %v3389 = vpop.f32.mrb[0].mxu0
    %v3390 = vadd.f32 %v3115, %v3389
    %v3391 = vpop.f32.mrb[0].mxu0
    %v3392 = vadd.f32 %v3111, %v3391
    %v3393 = vpop.f32.mrb[0].mxu0
    %v3394 = vadd.f32 %v3115, %v3393
    %3395 = vmatprep.mubr.bf16.mxu0 0
    %3396 = vmatmul.mubr.bf16.gmra.mrb[0].mxu0 %v3063
    %v3397 = vpop.f32.mrb[0].mxu0
    %v3398 = vadd.f32 %v3111, %v3397
    %v3399 = vpop.f32.mrb[0].mxu0
    %v3400 = vadd.f32 %v3115, %v3399
    %v3401 = vpop.f32.mrb[0].mxu0
    %v3402 = vadd.f32 %v3111, %v3401
    %v3403 = vpop.f32.mrb[0].mxu0
    %v3404 = vadd.f32 %v3115, %v3403
    %3405 = vmatprep.mubr.bf16.mxu0 0
    %3406 = vmatmul.mubr.bf16.gmra.mrb[0].mxu0 %v3064
    %v3407 = vpop.f32.mrb[0].mxu0
    %v3408 = vadd.f32 %v3111, %v3407
    %v3409 = vpop.f32.mrb[0].mxu0
    %v3410 = vadd.f32 %v3115, %v3409
    %v3411 = vpop.f32.mrb[0].mxu0
    %v3412 = vadd.f32 %v3111, %v3411
    %v3413 = vpop.f32.mrb[0].mxu0
    %v3414 = vadd.f32 %v3115, %v3413
    %3415 = vmatprep.mubr.bf16.mxu0 0
    %3416 = vmatmul.mubr.bf16.gmra.mrb[0].mxu0 %v3065
    %v3417 = vpop.f32.mrb[0].mxu0
    %v3418 = vadd.f32 %v3111, %v3417
    %v3419 = vpop.f32.mrb[0].mxu0
    %v3420 = vadd.f32 %v3115, %v3419
    %v3421 = vpop.f32.mrb[0].mxu0
    %v3422 = vadd.f32 %v3111, %v3421
    %v3423 = vpop.f32.mrb[0].mxu0
    %v3424 = vadd.f32 %v3115, %v3423
    %3425 = vdwg.mxu0
    %3426 = vst [vmem:[#allocation8] sm:$0xff] %v3315
    %3427 = vst [vmem:[#allocation8 + $0x8] sm:$0xff] %v3317
    %3428 = vst [vmem:[#allocation8 + $0x10] sm:$0xff] %v3388
    %3429 = vst [vmem:[#allocation8 + $0x18] sm:$0xff] %v3390
    %3430 = vst [vmem:[#allocation8 + $0x20] sm:$0xff] %v3319
    %3431 = vst [vmem:[#allocation8 + $0x28] sm:$0xff] %v3321
    %3432 = vst [vmem:[#allocation8 + $0x30] sm:$0xff] %v3392
    %3433 = vst [vmem:[#allocation8 + $0x38] sm:$0xff] %v3394
    %3434 = vst [vmem:[#allocation8 + $0x40] sm:$0xff] %v3325
    %3435 = vst [vmem:[#allocation8 + $0x48] sm:$0xff] %v3327
    %3436 = vst [vmem:[#allocation8 + $0x50] sm:$0xff] %v3398
    %3437 = vst [vmem:[#allocation8 + $0x58] sm:$0xff] %v3400
    %3438 = vst [vmem:[#allocation8 + $0x60] sm:$0xff] %v3329
    %3439 = vst [vmem:[#allocation8 + $0x68] sm:$0xff] %v3331
    %3440 = vst [vmem:[#allocation8 + $0x70] sm:$0xff] %v3402
    %3441 = vst [vmem:[#allocation8 + $0x78] sm:$0xff] %v3404
    %3442 = vst [vmem:[#allocation8 + $0x80] sm:$0xff] %v3335
    %3443 = vst [vmem:[#allocation8 + $0x88] sm:$0xff] %v3337
    %3444 = vst [vmem:[#allocation8 + $0x90] sm:$0xff] %v3408
    %3445 = vst [vmem:[#allocation8 + $0x98] sm:$0xff] %v3410
    %3446 = vst [vmem:[#allocation8 + $0xa0] sm:$0xff] %v3339
    %3447 = vst [vmem:[#allocation8 + $0xa8] sm:$0xff] %v3341
    %3448 = vst [vmem:[#allocation8 + $0xb0] sm:$0xff] %v3412
    %3449 = vst [vmem:[#allocation8 + $0xb8] sm:$0xff] %v3414
    %3450 = vst [vmem:[#allocation8 + $0xc0] sm:$0xff] %v3345
    %3451 = vst [vmem:[#allocation8 + $0xc8] sm:$0xff] %v3347
    %3452 = vst [vmem:[#allocation8 + $0xd0] sm:$0xff] %v3418
    %3453 = vst [vmem:[#allocation8 + $0xd8] sm:$0xff] %v3420
    %3454 = vst [vmem:[#allocation8 + $0xe0] sm:$0xff] %v3349
    %3455 = vst [vmem:[#allocation8 + $0xe8] sm:$0xff] %v3351
    %3456 = vst [vmem:[#allocation8 + $0xf0] sm:$0xff] %v3422
    %3457 = vst [vmem:[#allocation8 + $0xf8] sm:$0xff] %v3424
    %v3458 = vld [vmem:[#allocation4] sm:$0xff]
    %v3459 = vld [vmem:[#allocation5] sm:$0xff]
    %s3460 = smul.addr %s557, 8
    %s3461 = scalar_lea.vmem [#allocation8], %s3460
    %v3462 = vld [vmem:[%s3461] sm:$0xff]
    %v3463 = vld [vmem:[%s3461 + $0x8] sm:$0xff]
    %v3464 = vld [vmem:[%s3461 + $0x10] sm:$0xff]
    %v3465 = vld [vmem:[%s3461 + $0x18] sm:$0xff]
    %v3466 = vpack.c.bf16 %v3458, %v3458
    %v3467 = vld [vmem:[#allocation18] sm:$0xff]
    %v3468 = vld [vmem:[#allocation18 + $0x8] sm:$0xff]
    %v3469 = vld [vmem:[#allocation18 + $0x10] sm:$0xff]
    %v3470 = vld [vmem:[#allocation18 + $0x18] sm:$0xff]
    %v3471 = vld [vmem:[#allocation18 + $0x20] sm:$0xff]
    %v3472 = vld [vmem:[#allocation18 + $0x28] sm:$0xff]
    %v3473 = vld [vmem:[#allocation18 + $0x30] sm:$0xff]
    %v3474 = vld [vmem:[#allocation18 + $0x38] sm:$0xff]
    %v3475 = vld [vmem:[#allocation18 + $0x40] sm:$0xff]
    %v3476 = vld [vmem:[#allocation18 + $0x48] sm:$0xff]
    %v3477 = vld [vmem:[#allocation18 + $0x50] sm:$0xff]
    %v3478 = vld [vmem:[#allocation18 + $0x58] sm:$0xff]
    %v3479 = vld [vmem:[#allocation18 + $0x60] sm:$0xff]
    %v3480 = vld [vmem:[#allocation18 + $0x68] sm:$0xff]
    %v3481 = vld [vmem:[#allocation18 + $0x70] sm:$0xff]
    %v3482 = vld [vmem:[#allocation18 + $0x78] sm:$0xff]
    %v3483 = vld [vmem:[#allocation18 + $0x80] sm:$0xff]
    %v3484 = vld [vmem:[#allocation18 + $0x88] sm:$0xff]
    %v3485 = vld [vmem:[#allocation18 + $0x90] sm:$0xff]
    %v3486 = vld [vmem:[#allocation18 + $0x98] sm:$0xff]
    %v3487 = vld [vmem:[#allocation18 + $0xa0] sm:$0xff]
    %v3488 = vld [vmem:[#allocation18 + $0xa8] sm:$0xff]
    %v3489 = vld [vmem:[#allocation18 + $0xb0] sm:$0xff]
    %v3490 = vld [vmem:[#allocation18 + $0xb8] sm:$0xff]
    %v3491 = vld [vmem:[#allocation18 + $0xc0] sm:$0xff]
    %v3492 = vld [vmem:[#allocation18 + $0xc8] sm:$0xff]
    %v3493 = vld [vmem:[#allocation18 + $0xd0] sm:$0xff]
    %v3494 = vld [vmem:[#allocation18 + $0xd8] sm:$0xff]
    %v3495 = vld [vmem:[#allocation18 + $0xe0] sm:$0xff]
    %v3496 = vld [vmem:[#allocation18 + $0xe8] sm:$0xff]
    %v3497 = vld [vmem:[#allocation18 + $0xf0] sm:$0xff]
    %v3498 = vld [vmem:[#allocation18 + $0xf8] sm:$0xff]
    %v3531 = vunpack.c.l.b16 %v3467
    %v3532 = vunpack.c.h.b16 %v3467
    %v3533 = vunpack.c.l.b16 %v3468
    %v3534 = vunpack.c.h.b16 %v3468
    %v3535 = vunpack.c.l.b16 %v3469
    %v3536 = vunpack.c.h.b16 %v3469
    %v3537 = vunpack.c.l.b16 %v3470
    %v3538 = vunpack.c.h.b16 %v3470
    %v3539 = vunpack.c.l.b16 %v3471
    %v3540 = vunpack.c.h.b16 %v3471
    %v3541 = vunpack.c.l.b16 %v3472
    %v3542 = vunpack.c.h.b16 %v3472
    %v3543 = vunpack.c.l.b16 %v3473
    %v3544 = vunpack.c.h.b16 %v3473
    %v3545 = vunpack.c.l.b16 %v3474
    %v3546 = vunpack.c.h.b16 %v3474
    %v3547 = vunpack.c.l.b16 %v3475
    %v3548 = vunpack.c.h.b16 %v3475
    %v3549 = vunpack.c.l.b16 %v3476
    %v3550 = vunpack.c.h.b16 %v3476
    %v3551 = vunpack.c.l.b16 %v3477
    %v3552 = vunpack.c.h.b16 %v3477
    %v3553 = vunpack.c.l.b16 %v3478
    %v3554 = vunpack.c.h.b16 %v3478
    %v3555 = vunpack.c.l.b16 %v3479
    %v3556 = vunpack.c.h.b16 %v3479
    %v3557 = vunpack.c.l.b16 %v3480
    %v3558 = vunpack.c.h.b16 %v3480
    %v3559 = vunpack.c.l.b16 %v3481
    %v3560 = vunpack.c.h.b16 %v3481
    %v3561 = vunpack.c.l.b16 %v3482
    %v3562 = vunpack.c.h.b16 %v3482
    %v3563 = vunpack.c.l.b16 %v3483
    %v3564 = vunpack.c.h.b16 %v3483
    %v3565 = vunpack.c.l.b16 %v3484
    %v3566 = vunpack.c.h.b16 %v3484
    %v3567 = vunpack.c.l.b16 %v3485
    %v3568 = vunpack.c.h.b16 %v3485
    %v3569 = vunpack.c.l.b16 %v3486
    %v3570 = vunpack.c.h.b16 %v3486
    %v3571 = vunpack.c.l.b16 %v3487
    %v3572 = vunpack.c.h.b16 %v3487
    %v3573 = vunpack.c.l.b16 %v3488
    %v3574 = vunpack.c.h.b16 %v3488
    %v3575 = vunpack.c.l.b16 %v3489
    %v3576 = vunpack.c.h.b16 %v3489
    %v3577 = vunpack.c.l.b16 %v3490
    %v3578 = vunpack.c.h.b16 %v3490
    %v3579 = vunpack.c.l.b16 %v3491
    %v3580 = vunpack.c.h.b16 %v3491
    %v3581 = vunpack.c.l.b16 %v3492
    %v3582 = vunpack.c.h.b16 %v3492
    %v3583 = vunpack.c.l.b16 %v3493
    %v3584 = vunpack.c.h.b16 %v3493
    %v3585 = vunpack.c.l.b16 %v3494
    %v3586 = vunpack.c.h.b16 %v3494
    %v3587 = vunpack.c.l.b16 %v3495
    %v3588 = vunpack.c.h.b16 %v3495
    %v3589 = vunpack.c.l.b16 %v3496
    %v3590 = vunpack.c.h.b16 %v3496
    %v3591 = vunpack.c.l.b16 %v3497
    %v3592 = vunpack.c.h.b16 %v3497
    %v3593 = vunpack.c.l.b16 %v3498
    %v3594 = vunpack.c.h.b16 %v3498
    %v3595 = vpack.c.b16 %v3535, %v3531
    %v3596 = vpack.c.b16 %v3536, %v3532
    %v3597 = vpack.c.b16 %v3537, %v3533
    %v3598 = vpack.c.b16 %v3538, %v3534
    %v3599 = vpack.c.b16 %v3543, %v3539
    %v3600 = vpack.c.b16 %v3544, %v3540
    %v3601 = vpack.c.b16 %v3545, %v3541
    %v3602 = vpack.c.b16 %v3546, %v3542
    %v3603 = vpack.c.b16 %v3551, %v3547
    %v3604 = vpack.c.b16 %v3552, %v3548
    %v3605 = vpack.c.b16 %v3553, %v3549
    %v3606 = vpack.c.b16 %v3554, %v3550
    %v3607 = vpack.c.b16 %v3559, %v3555
    %v3608 = vpack.c.b16 %v3560, %v3556
    %v3609 = vpack.c.b16 %v3561, %v3557
    %v3610 = vpack.c.b16 %v3562, %v3558
    %v3611 = vpack.c.b16 %v3567, %v3563
    %v3612 = vpack.c.b16 %v3568, %v3564
    %v3613 = vpack.c.b16 %v3569, %v3565
    %v3614 = vpack.c.b16 %v3570, %v3566
    %v3615 = vpack.c.b16 %v3575, %v3571
    %v3616 = vpack.c.b16 %v3576, %v3572
    %v3617 = vpack.c.b16 %v3577, %v3573
    %v3618 = vpack.c.b16 %v3578, %v3574
    %v3619 = vpack.c.b16 %v3583, %v3579
    %v3620 = vpack.c.b16 %v3584, %v3580
    %v3621 = vpack.c.b16 %v3585, %v3581
    %v3622 = vpack.c.b16 %v3586, %v3582
    %v3623 = vpack.c.b16 %v3591, %v3587
    %v3624 = vpack.c.b16 %v3592, %v3588
    %v3625 = vpack.c.b16 %v3593, %v3589
    %v3626 = vpack.c.b16 %v3594, %v3590
    %3659 = vmatprep.subr.bf16.mxu0 %v3596
    %3660 = vmatpush1.bf16.msra.mxu0 %v3595
    %3661 = vmatprep.subr.bf16.mxu0 %v3600
    %3662 = vmatpush1.bf16.msra.mxu0 %v3599
    %3663 = vmatprep.subr.bf16.mxu0 %v3604
    %3664 = vmatpush1.bf16.msra.mxu0 %v3603
    %3665 = vmatprep.subr.bf16.mxu0 %v3608
    %3666 = vmatpush1.bf16.msra.mxu0 %v3607
    %3667 = vmatprep.subr.bf16.mxu0 %v3612
    %3668 = vmatpush1.bf16.msra.mxu0 %v3611
    %3669 = vmatprep.subr.bf16.mxu0 %v3616
    %3670 = vmatpush1.bf16.msra.mxu0 %v3615
    %3671 = vmatprep.subr.bf16.mxu0 %v3620
    %3672 = vmatpush1.bf16.msra.mxu0 %v3619
    %3673 = vmatprep.subr.bf16.mxu0 %v3624
    %3674 = vmatpush1.bf16.msra.mxu0 %v3623
    %3675 = vmatprep.subr.bf16.mxu0 0
    %3676 = vmatpush1.bf16.msra.mxu0 0
    %3677 = vmatprep.subr.bf16.mxu0 0
    %3678 = vmatpush1.bf16.msra.mxu0 0
    %3679 = vmatprep.subr.bf16.mxu0 0
    %3680 = vmatpush1.bf16.msra.mxu0 0
    %3681 = vmatprep.subr.bf16.mxu0 0
    %3682 = vmatpush1.bf16.msra.mxu0 0
    %3683 = vmatprep.subr.bf16.mxu0 0
    %3684 = vmatpush1.bf16.msra.mxu0 0
    %3685 = vmatprep.subr.bf16.mxu0 0
    %3686 = vmatpush1.bf16.msra.mxu0 0
    %3687 = vmatprep.subr.bf16.mxu0 0
    %3688 = vmatpush1.bf16.msra.mxu0 0
    %3689 = vmatprep.subr.bf16.mxu0 0
    %3690 = vmatpush1.bf16.msra.mxu0 0
    %3691 = vmatprep.mubr.bf16.mxu0 0
    %3692 = vmatmul.mubr.bf16.gmra.mrb[0].mxu0 %v3466
    %v3693 = vpop.f32.mrb[0].mxu0
    %v3694 = vadd.f32 0.0, %v3693
    %v3695 = vpop.f32.mrb[0].mxu0
    %v3696 = vadd.f32 0.0, %v3695
    %v3697 = vpop.f32.mrb[0].mxu0
    %v3698 = vpop.f32.mrb[0].mxu0
    %3699 = vdwg.mxu0
    %3700 = vmatprep.subr.bf16.mxu0 %v3598
    %3701 = vmatpush1.bf16.msra.mxu0 %v3597
    %3702 = vmatprep.subr.bf16.mxu0 %v3602
    %3703 = vmatpush1.bf16.msra.mxu0 %v3601
    %3704 = vmatprep.subr.bf16.mxu0 %v3606
    %3705 = vmatpush1.bf16.msra.mxu0 %v3605
    %3706 = vmatprep.subr.bf16.mxu0 %v3610
    %3707 = vmatpush1.bf16.msra.mxu0 %v3609
    %3708 = vmatprep.subr.bf16.mxu0 %v3614
    %3709 = vmatpush1.bf16.msra.mxu0 %v3613
    %3710 = vmatprep.subr.bf16.mxu0 %v3618
    %3711 = vmatpush1.bf16.msra.mxu0 %v3617
    %3712 = vmatprep.subr.bf16.mxu0 %v3622
    %3713 = vmatpush1.bf16.msra.mxu0 %v3621
    %3714 = vmatprep.subr.bf16.mxu0 %v3626
    %3715 = vmatpush1.bf16.msra.mxu0 %v3625
    %3716 = vmatprep.subr.bf16.mxu0 0
    %3717 = vmatpush1.bf16.msra.mxu0 0
    %3718 = vmatprep.subr.bf16.mxu0 0
    %3719 = vmatpush1.bf16.msra.mxu0 0
    %3720 = vmatprep.subr.bf16.mxu0 0
    %3721 = vmatpush1.bf16.msra.mxu0 0
    %3722 = vmatprep.subr.bf16.mxu0 0
    %3723 = vmatpush1.bf16.msra.mxu0 0
    %3724 = vmatprep.subr.bf16.mxu0 0
    %3725 = vmatpush1.bf16.msra.mxu0 0
    %3726 = vmatprep.subr.bf16.mxu0 0
    %3727 = vmatpush1.bf16.msra.mxu0 0
    %3728 = vmatprep.subr.bf16.mxu0 0
    %3729 = vmatpush1.bf16.msra.mxu0 0
    %3730 = vmatprep.subr.bf16.mxu0 0
    %3731 = vmatpush1.bf16.msra.mxu0 0
    %3732 = vmatprep.mubr.bf16.mxu0 0
    %3733 = vmatmul.mubr.bf16.gmra.mrb[0].mxu0 %v3466
    %v3734 = vpop.f32.mrb[0].mxu0
    %v3735 = vadd.f32 0.0, %v3734
    %v3736 = vpop.f32.mrb[0].mxu0
    %v3737 = vadd.f32 0.0, %v3736
    %v3738 = vpop.f32.mrb[0].mxu0
    %v3739 = vpop.f32.mrb[0].mxu0
    %3740 = vdwg.mxu0
    %v3741 = vadd.f32 %v3462, %v3694
    %v3742 = vadd.f32 %v3463, %v3696
    %v3743 = vadd.f32 %v3464, %v3735
    %v3744 = vadd.f32 %v3465, %v3737
    %v3745 = vxor.u32 %v3741, 2147483648
    %v3746 = vmul.f32 %v3745, 1.442695
    %v3747 = vpow.pop %v3746
    %v3748 = vadd.f32 %v3747, 1.0
    %v3749 = vrcp.pop %v3748
    %v3750 = vmul.f32 1.0, %v3749
    %v3751 = vxor.u32 %v3742, 2147483648
    %v3752 = vmul.f32 %v3751, 1.442695
    %v3753 = vpow.pop %v3752
    %v3754 = vadd.f32 %v3753, 1.0
    %v3755 = vrcp.pop %v3754
    %v3756 = vmul.f32 1.0, %v3755
    %v3757 = vtanh.pop %v3743
    %v3758 = vxor.u32 %v3744, 2147483648
    %v3759 = vmul.f32 %v3758, 1.442695
    %v3760 = vpow.pop %v3759
    %v3761 = vadd.f32 %v3760, 1.0
    %v3762 = vrcp.pop %v3761
    %v3763 = vmul.f32 1.0, %v3762
    %v3764 = vmul.f32 %v3756, %v3459
    %v3765 = vmul.f32 %v3750, %v3757
    %v3766 = vadd.f32 %v3764, %v3765
    %v3767 = vtanh.pop %v3766
    %v3768 = vmul.f32 %v3763, %v3767
    %3769 = vst [vmem:[#allocation21] sm:$0xff] %v3768
    %s3770 = smul.addr %s868, 8
    %s3771 = scalar_lea.vmem [#allocation8], %s3770
    %v3772 = vld [vmem:[%s3771] sm:$0xff]
    %v3773 = vld [vmem:[%s3771 + $0x8] sm:$0xff]
    %v3774 = vld [vmem:[%s3771 + $0x10] sm:$0xff]
    %v3775 = vld [vmem:[%s3771 + $0x18] sm:$0xff]
    %v3776 = vpack.c.bf16 %v3768, %v3768
    %v3777 = vld [vmem:[#allocation18] sm:$0xff]
    %v3778 = vld [vmem:[#allocation18 + $0x8] sm:$0xff]
    %v3779 = vld [vmem:[#allocation18 + $0x10] sm:$0xff]
    %v3780 = vld [vmem:[#allocation18 + $0x18] sm:$0xff]
    %v3781 = vld [vmem:[#allocation18 + $0x20] sm:$0xff]
    %v3782 = vld [vmem:[#allocation18 + $0x28] sm:$0xff]
    %v3783 = vld [vmem:[#allocation18 + $0x30] sm:$0xff]
    %v3784 = vld [vmem:[#allocation18 + $0x38] sm:$0xff]
    %v3785 = vld [vmem:[#allocation18 + $0x40] sm:$0xff]
    %v3786 = vld [vmem:[#allocation18 + $0x48] sm:$0xff]
    %v3787 = vld [vmem:[#allocation18 + $0x50] sm:$0xff]
    %v3788 = vld [vmem:[#allocation18 + $0x58] sm:$0xff]
    %v3789 = vld [vmem:[#allocation18 + $0x60] sm:$0xff]
    %v3790 = vld [vmem:[#allocation18 + $0x68] sm:$0xff]
    %v3791 = vld [vmem:[#allocation18 + $0x70] sm:$0xff]
    %v3792 = vld [vmem:[#allocation18 + $0x78] sm:$0xff]
    %v3793 = vld [vmem:[#allocation18 + $0x80] sm:$0xff]
    %v3794 = vld [vmem:[#allocation18 + $0x88] sm:$0xff]
    %v3795 = vld [vmem:[#allocation18 + $0x90] sm:$0xff]
    %v3796 = vld [vmem:[#allocation18 + $0x98] sm:$0xff]
    %v3797 = vld [vmem:[#allocation18 + $0xa0] sm:$0xff]
    %v3798 = vld [vmem:[#allocation18 + $0xa8] sm:$0xff]
    %v3799 = vld [vmem:[#allocation18 + $0xb0] sm:$0xff]
    %v3800 = vld [vmem:[#allocation18 + $0xb8] sm:$0xff]
    %v3801 = vld [vmem:[#allocation18 + $0xc0] sm:$0xff]
    %v3802 = vld [vmem:[#allocation18 + $0xc8] sm:$0xff]
    %v3803 = vld [vmem:[#allocation18 + $0xd0] sm:$0xff]
    %v3804 = vld [vmem:[#allocation18 + $0xd8] sm:$0xff]
    %v3805 = vld [vmem:[#allocation18 + $0xe0] sm:$0xff]
    %v3806 = vld [vmem:[#allocation18 + $0xe8] sm:$0xff]
    %v3807 = vld [vmem:[#allocation18 + $0xf0] sm:$0xff]
    %v3808 = vld [vmem:[#allocation18 + $0xf8] sm:$0xff]
    %v3841 = vunpack.c.l.b16 %v3777
    %v3842 = vunpack.c.h.b16 %v3777
    %v3843 = vunpack.c.l.b16 %v3778
    %v3844 = vunpack.c.h.b16 %v3778
    %v3845 = vunpack.c.l.b16 %v3779
    %v3846 = vunpack.c.h.b16 %v3779
    %v3847 = vunpack.c.l.b16 %v3780
    %v3848 = vunpack.c.h.b16 %v3780
    %v3849 = vunpack.c.l.b16 %v3781
    %v3850 = vunpack.c.h.b16 %v3781
    %v3851 = vunpack.c.l.b16 %v3782
    %v3852 = vunpack.c.h.b16 %v3782
    %v3853 = vunpack.c.l.b16 %v3783
    %v3854 = vunpack.c.h.b16 %v3783
    %v3855 = vunpack.c.l.b16 %v3784
    %v3856 = vunpack.c.h.b16 %v3784
    %v3857 = vunpack.c.l.b16 %v3785
    %v3858 = vunpack.c.h.b16 %v3785
    %v3859 = vunpack.c.l.b16 %v3786
    %v3860 = vunpack.c.h.b16 %v3786
    %v3861 = vunpack.c.l.b16 %v3787
    %v3862 = vunpack.c.h.b16 %v3787
    %v3863 = vunpack.c.l.b16 %v3788
    %v3864 = vunpack.c.h.b16 %v3788
    %v3865 = vunpack.c.l.b16 %v3789
    %v3866 = vunpack.c.h.b16 %v3789
    %v3867 = vunpack.c.l.b16 %v3790
    %v3868 = vunpack.c.h.b16 %v3790
    %v3869 = vunpack.c.l.b16 %v3791
    %v3870 = vunpack.c.h.b16 %v3791
    %v3871 = vunpack.c.l.b16 %v3792
    %v3872 = vunpack.c.h.b16 %v3792
    %v3873 = vunpack.c.l.b16 %v3793
    %v3874 = vunpack.c.h.b16 %v3793
    %v3875 = vunpack.c.l.b16 %v3794
    %v3876 = vunpack.c.h.b16 %v3794
    %v3877 = vunpack.c.l.b16 %v3795
    %v3878 = vunpack.c.h.b16 %v3795
    %v3879 = vunpack.c.l.b16 %v3796
    %v3880 = vunpack.c.h.b16 %v3796
    %v3881 = vunpack.c.l.b16 %v3797
    %v3882 = vunpack.c.h.b16 %v3797
    %v3883 = vunpack.c.l.b16 %v3798
    %v3884 = vunpack.c.h.b16 %v3798
    %v3885 = vunpack.c.l.b16 %v3799
    %v3886 = vunpack.c.h.b16 %v3799
    %v3887 = vunpack.c.l.b16 %v3800
    %v3888 = vunpack.c.h.b16 %v3800
    %v3889 = vunpack.c.l.b16 %v3801
    %v3890 = vunpack.c.h.b16 %v3801
    %v3891 = vunpack.c.l.b16 %v3802
    %v3892 = vunpack.c.h.b16 %v3802
    %v3893 = vunpack.c.l.b16 %v3803
    %v3894 = vunpack.c.h.b16 %v3803
    %v3895 = vunpack.c.l.b16 %v3804
    %v3896 = vunpack.c.h.b16 %v3804
    %v3897 = vunpack.c.l.b16 %v3805
    %v3898 = vunpack.c.h.b16 %v3805
    %v3899 = vunpack.c.l.b16 %v3806
    %v3900 = vunpack.c.h.b16 %v3806
    %v3901 = vunpack.c.l.b16 %v3807
    %v3902 = vunpack.c.h.b16 %v3807
    %v3903 = vunpack.c.l.b16 %v3808
    %v3904 = vunpack.c.h.b16 %v3808
    %v3905 = vpack.c.b16 %v3845, %v3841
    %v3906 = vpack.c.b16 %v3846, %v3842
    %v3907 = vpack.c.b16 %v3847, %v3843
    %v3908 = vpack.c.b16 %v3848, %v3844
    %v3909 = vpack.c.b16 %v3853, %v3849
    %v3910 = vpack.c.b16 %v3854, %v3850
    %v3911 = vpack.c.b16 %v3855, %v3851
    %v3912 = vpack.c.b16 %v3856, %v3852
    %v3913 = vpack.c.b16 %v3861, %v3857
    %v3914 = vpack.c.b16 %v3862, %v3858
    %v3915 = vpack.c.b16 %v3863, %v3859
    %v3916 = vpack.c.b16 %v3864, %v3860
    %v3917 = vpack.c.b16 %v3869, %v3865
    %v3918 = vpack.c.b16 %v3870, %v3866
    %v3919 = vpack.c.b16 %v3871, %v3867
    %v3920 = vpack.c.b16 %v3872, %v3868
    %v3921 = vpack.c.b16 %v3877, %v3873
    %v3922 = vpack.c.b16 %v3878, %v3874
    %v3923 = vpack.c.b16 %v3879, %v3875
    %v3924 = vpack.c.b16 %v3880, %v3876
    %v3925 = vpack.c.b16 %v3885, %v3881
    %v3926 = vpack.c.b16 %v3886, %v3882
    %v3927 = vpack.c.b16 %v3887, %v3883
    %v3928 = vpack.c.b16 %v3888, %v3884
    %v3929 = vpack.c.b16 %v3893, %v3889
    %v3930 = vpack.c.b16 %v3894, %v3890
    %v3931 = vpack.c.b16 %v3895, %v3891
    %v3932 = vpack.c.b16 %v3896, %v3892
    %v3933 = vpack.c.b16 %v3901, %v3897
    %v3934 = vpack.c.b16 %v3902, %v3898
    %v3935 = vpack.c.b16 %v3903, %v3899
    %v3936 = vpack.c.b16 %v3904, %v3900
    %3969 = vmatprep.subr.bf16.mxu0 %v3906
    %3970 = vmatpush1.bf16.msra.mxu0 %v3905
    %3971 = vmatprep.subr.bf16.mxu0 %v3910
    %3972 = vmatpush1.bf16.msra.mxu0 %v3909
    %3973 = vmatprep.subr.bf16.mxu0 %v3914
    %3974 = vmatpush1.bf16.msra.mxu0 %v3913
    %3975 = vmatprep.subr.bf16.mxu0 %v3918
    %3976 = vmatpush1.bf16.msra.mxu0 %v3917
    %3977 = vmatprep.subr.bf16.mxu0 %v3922
    %3978 = vmatpush1.bf16.msra.mxu0 %v3921
    %3979 = vmatprep.subr.bf16.mxu0 %v3926
    %3980 = vmatpush1.bf16.msra.mxu0 %v3925
    %3981 = vmatprep.subr.bf16.mxu0 %v3930
    %3982 = vmatpush1.bf16.msra.mxu0 %v3929
    %3983 = vmatprep.subr.bf16.mxu0 %v3934
    %3984 = vmatpush1.bf16.msra.mxu0 %v3933
    %3985 = vmatprep.subr.bf16.mxu0 0
    %3986 = vmatpush1.bf16.msra.mxu0 0
    %3987 = vmatprep.subr.bf16.mxu0 0
    %3988 = vmatpush1.bf16.msra.mxu0 0
    %3989 = vmatprep.subr.bf16.mxu0 0
    %3990 = vmatpush1.bf16.msra.mxu0 0
    %3991 = vmatprep.subr.bf16.mxu0 0
    %3992 = vmatpush1.bf16.msra.mxu0 0
    %3993 = vmatprep.subr.bf16.mxu0 0
    %3994 = vmatpush1.bf16.msra.mxu0 0
    %3995 = vmatprep.subr.bf16.mxu0 0
    %3996 = vmatpush1.bf16.msra.mxu0 0
    %3997 = vmatprep.subr.bf16.mxu0 0
    %3998 = vmatpush1.bf16.msra.mxu0 0
    %3999 = vmatprep.subr.bf16.mxu0 0
    %4000 = vmatpush1.bf16.msra.mxu0 0
    %4001 = vmatprep.mubr.bf16.mxu0 0
    %4002 = vmatmul.mubr.bf16.gmra.mrb[0].mxu0 %v3776
    %v4003 = vpop.f32.mrb[0].mxu0
    %v4004 = vadd.f32 0.0, %v4003
    %v4005 = vpop.f32.mrb[0].mxu0
    %v4006 = vadd.f32 0.0, %v4005
    %v4007 = vpop.f32.mrb[0].mxu0
    %v4008 = vpop.f32.mrb[0].mxu0
    %4009 = vdwg.mxu0
    %4010 = vmatprep.subr.bf16.mxu0 %v3908
    %4011 = vmatpush1.bf16.msra.mxu0 %v3907
    %4012 = vmatprep.subr.bf16.mxu0 %v3912
    %4013 = vmatpush1.bf16.msra.mxu0 %v3911
    %4014 = vmatprep.subr.bf16.mxu0 %v3916
    %4015 = vmatpush1.bf16.msra.mxu0 %v3915
    %4016 = vmatprep.subr.bf16.mxu0 %v3920
    %4017 = vmatpush1.bf16.msra.mxu0 %v3919
    %4018 = vmatprep.subr.bf16.mxu0 %v3924
    %4019 = vmatpush1.bf16.msra.mxu0 %v3923
    %4020 = vmatprep.subr.bf16.mxu0 %v3928
    %4021 = vmatpush1.bf16.msra.mxu0 %v3927
    %4022 = vmatprep.subr.bf16.mxu0 %v3932
    %4023 = vmatpush1.bf16.msra.mxu0 %v3931
    %4024 = vmatprep.subr.bf16.mxu0 %v3936
    %4025 = vmatpush1.bf16.msra.mxu0 %v3935
    %4026 = vmatprep.subr.bf16.mxu0 0
    %4027 = vmatpush1.bf16.msra.mxu0 0
    %4028 = vmatprep.subr.bf16.mxu0 0
    %4029 = vmatpush1.bf16.msra.mxu0 0
    %4030 = vmatprep.subr.bf16.mxu0 0
    %4031 = vmatpush1.bf16.msra.mxu0 0
    %4032 = vmatprep.subr.bf16.mxu0 0
    %4033 = vmatpush1.bf16.msra.mxu0 0
    %4034 = vmatprep.subr.bf16.mxu0 0
    %4035 = vmatpush1.bf16.msra.mxu0 0
    %4036 = vmatprep.subr.bf16.mxu0 0
    %4037 = vmatpush1.bf16.msra.mxu0 0
    %4038 = vmatprep.subr.bf16.mxu0 0
    %4039 = vmatpush1.bf16.msra.mxu0 0
    %4040 = vmatprep.subr.bf16.mxu0 0
    %4041 = vmatpush1.bf16.msra.mxu0 0
    %4042 = vmatprep.mubr.bf16.mxu0 0
    %4043 = vmatmul.mubr.bf16.gmra.mrb[0].mxu0 %v3776
    %v4044 = vpop.f32.mrb[0].mxu0
    %v4045 = vadd.f32 0.0, %v4044
    %v4046 = vpop.f32.mrb[0].mxu0
    %v4047 = vadd.f32 0.0, %v4046
    %v4048 = vpop.f32.mrb[0].mxu0
    %v4049 = vpop.f32.mrb[0].mxu0
    %4050 = vdwg.mxu0
    %v4051 = vadd.f32 %v3772, %v4004
    %v4052 = vadd.f32 %v3773, %v4006
    %v4053 = vadd.f32 %v3774, %v4045
    %v4054 = vadd.f32 %v3775, %v4047
    %v4055 = vxor.u32 %v4051, 2147483648
    %v4056 = vmul.f32 %v4055, 1.442695
    %v4057 = vpow.pop %v4056
    %v4058 = vadd.f32 %v4057, 1.0
    %v4059 = vrcp.pop %v4058
    %v4060 = vmul.f32 1.0, %v4059
    %v4061 = vxor.u32 %v4052, 2147483648
    %v4062 = vmul.f32 %v4061, 1.442695
    %v4063 = vpow.pop %v4062
    %v4064 = vadd.f32 %v4063, 1.0
    %v4065 = vrcp.pop %v4064
    %v4066 = vmul.f32 1.0, %v4065
    %v4067 = vtanh.pop %v4053
    %v4068 = vxor.u32 %v4054, 2147483648
    %v4069 = vmul.f32 %v4068, 1.442695
    %v4070 = vpow.pop %v4069
    %v4071 = vadd.f32 %v4070, 1.0
    %v4072 = vrcp.pop %v4071
    %v4073 = vmul.f32 1.0, %v4072
    %v4074 = vmul.f32 %v4066, %v3766
    %v4075 = vmul.f32 %v4060, %v4067
    %v4076 = vadd.f32 %v4074, %v4075
    %v4077 = vtanh.pop %v4076
    %v4078 = vmul.f32 %v4073, %v4077
    %s4079 = scalar_lea.vmem [#allocation21], 8
    %4080 = vst [vmem:[%s4079] sm:$0xff] %v4078
    %s4081 = smul.addr %s1180, 8
    %s4082 = scalar_lea.vmem [#allocation8], %s4081
    %v4083 = vld [vmem:[%s4082] sm:$0xff]
    %v4084 = vld [vmem:[%s4082 + $0x8] sm:$0xff]
    %v4085 = vld [vmem:[%s4082 + $0x10] sm:$0xff]
    %v4086 = vld [vmem:[%s4082 + $0x18] sm:$0xff]
    %v4087 = vpack.c.bf16 %v4078, %v4078
    %v4088 = vld [vmem:[#allocation18] sm:$0xff]
    %v4089 = vld [vmem:[#allocation18 + $0x8] sm:$0xff]
    %v4090 = vld [vmem:[#allocation18 + $0x10] sm:$0xff]
    %v4091 = vld [vmem:[#allocation18 + $0x18] sm:$0xff]
    %v4092 = vld [vmem:[#allocation18 + $0x20] sm:$0xff]
    %v4093 = vld [vmem:[#allocation18 + $0x28] sm:$0xff]
    %v4094 = vld [vmem:[#allocation18 + $0x30] sm:$0xff]
    %v4095 = vld [vmem:[#allocation18 + $0x38] sm:$0xff]
    %v4096 = vld [vmem:[#allocation18 + $0x40] sm:$0xff]
    %v4097 = vld [vmem:[#allocation18 + $0x48] sm:$0xff]
    %v4098 = vld [vmem:[#allocation18 + $0x50] sm:$0xff]
    %v4099 = vld [vmem:[#allocation18 + $0x58] sm:$0xff]
    %v4100 = vld [vmem:[#allocation18 + $0x60] sm:$0xff]
    %v4101 = vld [vmem:[#allocation18 + $0x68] sm:$0xff]
    %v4102 = vld [vmem:[#allocation18 + $0x70] sm:$0xff]
    %v4103 = vld [vmem:[#allocation18 + $0x78] sm:$0xff]
    %v4104 = vld [vmem:[#allocation18 + $0x80] sm:$0xff]
    %v4105 = vld [vmem:[#allocation18 + $0x88] sm:$0xff]
    %v4106 = vld [vmem:[#allocation18 + $0x90] sm:$0xff]
    %v4107 = vld [vmem:[#allocation18 + $0x98] sm:$0xff]
    %v4108 = vld [vmem:[#allocation18 + $0xa0] sm:$0xff]
    %v4109 = vld [vmem:[#allocation18 + $0xa8] sm:$0xff]
    %v4110 = vld [vmem:[#allocation18 + $0xb0] sm:$0xff]
    %v4111 = vld [vmem:[#allocation18 + $0xb8] sm:$0xff]
    %v4112 = vld [vmem:[#allocation18 + $0xc0] sm:$0xff]
    %v4113 = vld [vmem:[#allocation18 + $0xc8] sm:$0xff]
    %v4114 = vld [vmem:[#allocation18 + $0xd0] sm:$0xff]
    %v4115 = vld [vmem:[#allocation18 + $0xd8] sm:$0xff]
    %v4116 = vld [vmem:[#allocation18 + $0xe0] sm:$0xff]
    %v4117 = vld [vmem:[#allocation18 + $0xe8] sm:$0xff]
    %v4118 = vld [vmem:[#allocation18 + $0xf0] sm:$0xff]
    %v4119 = vld [vmem:[#allocation18 + $0xf8] sm:$0xff]
    %v4152 = vunpack.c.l.b16 %v4088
    %v4153 = vunpack.c.h.b16 %v4088
    %v4154 = vunpack.c.l.b16 %v4089
    %v4155 = vunpack.c.h.b16 %v4089
    %v4156 = vunpack.c.l.b16 %v4090
    %v4157 = vunpack.c.h.b16 %v4090
    %v4158 = vunpack.c.l.b16 %v4091
    %v4159 = vunpack.c.h.b16 %v4091
    %v4160 = vunpack.c.l.b16 %v4092
    %v4161 = vunpack.c.h.b16 %v4092
    %v4162 = vunpack.c.l.b16 %v4093
    %v4163 = vunpack.c.h.b16 %v4093
    %v4164 = vunpack.c.l.b16 %v4094
    %v4165 = vunpack.c.h.b16 %v4094
    %v4166 = vunpack.c.l.b16 %v4095
    %v4167 = vunpack.c.h.b16 %v4095
    %v4168 = vunpack.c.l.b16 %v4096
    %v4169 = vunpack.c.h.b16 %v4096
    %v4170 = vunpack.c.l.b16 %v4097
    %v4171 = vunpack.c.h.b16 %v4097
    %v4172 = vunpack.c.l.b16 %v4098
    %v4173 = vunpack.c.h.b16 %v4098
    %v4174 = vunpack.c.l.b16 %v4099
    %v4175 = vunpack.c.h.b16 %v4099
    %v4176 = vunpack.c.l.b16 %v4100
    %v4177 = vunpack.c.h.b16 %v4100
    %v4178 = vunpack.c.l.b16 %v4101
    %v4179 = vunpack.c.h.b16 %v4101
    %v4180 = vunpack.c.l.b16 %v4102
    %v4181 = vunpack.c.h.b16 %v4102
    %v4182 = vunpack.c.l.b16 %v4103
    %v4183 = vunpack.c.h.b16 %v4103
    %v4184 = vunpack.c.l.b16 %v4104
    %v4185 = vunpack.c.h.b16 %v4104
    %v4186 = vunpack.c.l.b16 %v4105
    %v4187 = vunpack.c.h.b16 %v4105
    %v4188 = vunpack.c.l.b16 %v4106
    %v4189 = vunpack.c.h.b16 %v4106
    %v4190 = vunpack.c.l.b16 %v4107
    %v4191 = vunpack.c.h.b16 %v4107
    %v4192 = vunpack.c.l.b16 %v4108
    %v4193 = vunpack.c.h.b16 %v4108
    %v4194 = vunpack.c.l.b16 %v4109
    %v4195 = vunpack.c.h.b16 %v4109
    %v4196 = vunpack.c.l.b16 %v4110
    %v4197 = vunpack.c.h.b16 %v4110
    %v4198 = vunpack.c.l.b16 %v4111
    %v4199 = vunpack.c.h.b16 %v4111
    %v4200 = vunpack.c.l.b16 %v4112
    %v4201 = vunpack.c.h.b16 %v4112
    %v4202 = vunpack.c.l.b16 %v4113
    %v4203 = vunpack.c.h.b16 %v4113
    %v4204 = vunpack.c.l.b16 %v4114
    %v4205 = vunpack.c.h.b16 %v4114
    %v4206 = vunpack.c.l.b16 %v4115
    %v4207 = vunpack.c.h.b16 %v4115
    %v4208 = vunpack.c.l.b16 %v4116
    %v4209 = vunpack.c.h.b16 %v4116
    %v4210 = vunpack.c.l.b16 %v4117
    %v4211 = vunpack.c.h.b16 %v4117
    %v4212 = vunpack.c.l.b16 %v4118
    %v4213 = vunpack.c.h.b16 %v4118
    %v4214 = vunpack.c.l.b16 %v4119
    %v4215 = vunpack.c.h.b16 %v4119
    %v4216 = vpack.c.b16 %v4156, %v4152
    %v4217 = vpack.c.b16 %v4157, %v4153
    %v4218 = vpack.c.b16 %v4158, %v4154
    %v4219 = vpack.c.b16 %v4159, %v4155
    %v4220 = vpack.c.b16 %v4164, %v4160
    %v4221 = vpack.c.b16 %v4165, %v4161
    %v4222 = vpack.c.b16 %v4166, %v4162
    %v4223 = vpack.c.b16 %v4167, %v4163
    %v4224 = vpack.c.b16 %v4172, %v4168
    %v4225 = vpack.c.b16 %v4173, %v4169
    %v4226 = vpack.c.b16 %v4174, %v4170
    %v4227 = vpack.c.b16 %v4175, %v4171
    %v4228 = vpack.c.b16 %v4180, %v4176
    %v4229 = vpack.c.b16 %v4181, %v4177
    %v4230 = vpack.c.b16 %v4182, %v4178
    %v4231 = vpack.c.b16 %v4183, %v4179
    %v4232 = vpack.c.b16 %v4188, %v4184
    %v4233 = vpack.c.b16 %v4189, %v4185
    %v4234 = vpack.c.b16 %v4190, %v4186
    %v4235 = vpack.c.b16 %v4191, %v4187
    %v4236 = vpack.c.b16 %v4196, %v4192
    %v4237 = vpack.c.b16 %v4197, %v4193
    %v4238 = vpack.c.b16 %v4198, %v4194
    %v4239 = vpack.c.b16 %v4199, %v4195
    %v4240 = vpack.c.b16 %v4204, %v4200
    %v4241 = vpack.c.b16 %v4205, %v4201
    %v4242 = vpack.c.b16 %v4206, %v4202
    %v4243 = vpack.c.b16 %v4207, %v4203
    %v4244 = vpack.c.b16 %v4212, %v4208
    %v4245 = vpack.c.b16 %v4213, %v4209
    %v4246 = vpack.c.b16 %v4214, %v4210
    %v4247 = vpack.c.b16 %v4215, %v4211
    %4280 = vmatprep.subr.bf16.mxu0 %v4217
    %4281 = vmatpush1.bf16.msra.mxu0 %v4216
    %4282 = vmatprep.subr.bf16.mxu0 %v4221
    %4283 = vmatpush1.bf16.msra.mxu0 %v4220
    %4284 = vmatprep.subr.bf16.mxu0 %v4225
    %4285 = vmatpush1.bf16.msra.mxu0 %v4224
    %4286 = vmatprep.subr.bf16.mxu0 %v4229
    %4287 = vmatpush1.bf16.msra.mxu0 %v4228
    %4288 = vmatprep.subr.bf16.mxu0 %v4233
    %4289 = vmatpush1.bf16.msra.mxu0 %v4232
    %4290 = vmatprep.subr.bf16.mxu0 %v4237
    %4291 = vmatpush1.bf16.msra.mxu0 %v4236
    %4292 = vmatprep.subr.bf16.mxu0 %v4241
    %4293 = vmatpush1.bf16.msra.mxu0 %v4240
    %4294 = vmatprep.subr.bf16.mxu0 %v4245
    %4295 = vmatpush1.bf16.msra.mxu0 %v4244
    %4296 = vmatprep.subr.bf16.mxu0 0
    %4297 = vmatpush1.bf16.msra.mxu0 0
    %4298 = vmatprep.subr.bf16.mxu0 0
    %4299 = vmatpush1.bf16.msra.mxu0 0
    %4300 = vmatprep.subr.bf16.mxu0 0
    %4301 = vmatpush1.bf16.msra.mxu0 0
    %4302 = vmatprep.subr.bf16.mxu0 0
    %4303 = vmatpush1.bf16.msra.mxu0 0
    %4304 = vmatprep.subr.bf16.mxu0 0
    %4305 = vmatpush1.bf16.msra.mxu0 0
    %4306 = vmatprep.subr.bf16.mxu0 0
    %4307 = vmatpush1.bf16.msra.mxu0 0
    %4308 = vmatprep.subr.bf16.mxu0 0
    %4309 = vmatpush1.bf16.msra.mxu0 0
    %4310 = vmatprep.subr.bf16.mxu0 0
    %4311 = vmatpush1.bf16.msra.mxu0 0
    %4312 = vmatprep.mubr.bf16.mxu0 0
    %4313 = vmatmul.mubr.bf16.gmra.mrb[0].mxu0 %v4087
    %v4314 = vpop.f32.mrb[0].mxu0
    %v4315 = vadd.f32 0.0, %v4314
    %v4316 = vpop.f32.mrb[0].mxu0
    %v4317 = vadd.f32 0.0, %v4316
    %v4318 = vpop.f32.mrb[0].mxu0
    %v4319 = vpop.f32.mrb[0].mxu0
    %4320 = vdwg.mxu0
    %4321 = vmatprep.subr.bf16.mxu0 %v4219
    %4322 = vmatpush1.bf16.msra.mxu0 %v4218
    %4323 = vmatprep.subr.bf16.mxu0 %v4223
    %4324 = vmatpush1.bf16.msra.mxu0 %v4222
    %4325 = vmatprep.subr.bf16.mxu0 %v4227
    %4326 = vmatpush1.bf16.msra.mxu0 %v4226
    %4327 = vmatprep.subr.bf16.mxu0 %v4231
    %4328 = vmatpush1.bf16.msra.mxu0 %v4230
    %4329 = vmatprep.subr.bf16.mxu0 %v4235
    %4330 = vmatpush1.bf16.msra.mxu0 %v4234
    %4331 = vmatprep.subr.bf16.mxu0 %v4239
    %4332 = vmatpush1.bf16.msra.mxu0 %v4238
    %4333 = vmatprep.subr.bf16.mxu0 %v4243
    %4334 = vmatpush1.bf16.msra.mxu0 %v4242
    %4335 = vmatprep.subr.bf16.mxu0 %v4247
    %4336 = vmatpush1.bf16.msra.mxu0 %v4246
    %4337 = vmatprep.subr.bf16.mxu0 0
    %4338 = vmatpush1.bf16.msra.mxu0 0
    %4339 = vmatprep.subr.bf16.mxu0 0
    %4340 = vmatpush1.bf16.msra.mxu0 0
    %4341 = vmatprep.subr.bf16.mxu0 0
    %4342 = vmatpush1.bf16.msra.mxu0 0
    %4343 = vmatprep.subr.bf16.mxu0 0
    %4344 = vmatpush1.bf16.msra.mxu0 0
    %4345 = vmatprep.subr.bf16.mxu0 0
    %4346 = vmatpush1.bf16.msra.mxu0 0
    %4347 = vmatprep.subr.bf16.mxu0 0
    %4348 = vmatpush1.bf16.msra.mxu0 0
    %4349 = vmatprep.subr.bf16.mxu0 0
    %4350 = vmatpush1.bf16.msra.mxu0 0
    %4351 = vmatprep.subr.bf16.mxu0 0
    %4352 = vmatpush1.bf16.msra.mxu0 0
    %4353 = vmatprep.mubr.bf16.mxu0 0
    %4354 = vmatmul.mubr.bf16.gmra.mrb[0].mxu0 %v4087
    %v4355 = vpop.f32.mrb[0].mxu0
    %v4356 = vadd.f32 0.0, %v4355
    %v4357 = vpop.f32.mrb[0].mxu0
    %v4358 = vadd.f32 0.0, %v4357
    %v4359 = vpop.f32.mrb[0].mxu0
    %v4360 = vpop.f32.mrb[0].mxu0
    %4361 = vdwg.mxu0
    %v4362 = vadd.f32 %v4083, %v4315
    %v4363 = vadd.f32 %v4084, %v4317
    %v4364 = vadd.f32 %v4085, %v4356
    %v4365 = vadd.f32 %v4086, %v4358
    %v4366 = vxor.u32 %v4362, 2147483648
    %v4367 = vmul.f32 %v4366, 1.442695
    %v4368 = vpow.pop %v4367
    %v4369 = vadd.f32 %v4368, 1.0
    %v4370 = vrcp.pop %v4369
    %v4371 = vmul.f32 1.0, %v4370
    %v4372 = vxor.u32 %v4363, 2147483648
    %v4373 = vmul.f32 %v4372, 1.442695
    %v4374 = vpow.pop %v4373
    %v4375 = vadd.f32 %v4374, 1.0
    %v4376 = vrcp.pop %v4375
    %v4377 = vmul.f32 1.0, %v4376
    %v4378 = vtanh.pop %v4364
    %v4379 = vxor.u32 %v4365, 2147483648
    %v4380 = vmul.f32 %v4379, 1.442695
    %v4381 = vpow.pop %v4380
    %v4382 = vadd.f32 %v4381, 1.0
    %v4383 = vrcp.pop %v4382
    %v4384 = vmul.f32 1.0, %v4383
    %v4385 = vmul.f32 %v4377, %v4076
    %v4386 = vmul.f32 %v4371, %v4378
    %v4387 = vadd.f32 %v4385, %v4386
    %v4388 = vtanh.pop %v4387
    %v4389 = vmul.f32 %v4384, %v4388
    %s4390 = scalar_lea.vmem [#allocation21], 16
    %4391 = vst [vmem:[%s4390] sm:$0xff] %v4389
    %s4392 = smul.addr %s1492, 8
    %s4393 = scalar_lea.vmem [#allocation8], %s4392
    %v4394 = vld [vmem:[%s4393] sm:$0xff]
    %v4395 = vld [vmem:[%s4393 + $0x8] sm:$0xff]
    %v4396 = vld [vmem:[%s4393 + $0x10] sm:$0xff]
    %v4397 = vld [vmem:[%s4393 + $0x18] sm:$0xff]
    %v4398 = vpack.c.bf16 %v4389, %v4389
    %v4399 = vld [vmem:[#allocation18] sm:$0xff]
    %v4400 = vld [vmem:[#allocation18 + $0x8] sm:$0xff]
    %v4401 = vld [vmem:[#allocation18 + $0x10] sm:$0xff]
    %v4402 = vld [vmem:[#allocation18 + $0x18] sm:$0xff]
    %v4403 = vld [vmem:[#allocation18 + $0x20] sm:$0xff]
    %v4404 = vld [vmem:[#allocation18 + $0x28] sm:$0xff]
    %v4405 = vld [vmem:[#allocation18 + $0x30] sm:$0xff]
    %v4406 = vld [vmem:[#allocation18 + $0x38] sm:$0xff]
    %v4407 = vld [vmem:[#allocation18 + $0x40] sm:$0xff]
    %v4408 = vld [vmem:[#allocation18 + $0x48] sm:$0xff]
    %v4409 = vld [vmem:[#allocation18 + $0x50] sm:$0xff]
    %v4410 = vld [vmem:[#allocation18 + $0x58] sm:$0xff]
    %v4411 = vld [vmem:[#allocation18 + $0x60] sm:$0xff]
    %v4412 = vld [vmem:[#allocation18 + $0x68] sm:$0xff]
    %v4413 = vld [vmem:[#allocation18 + $0x70] sm:$0xff]
    %v4414 = vld [vmem:[#allocation18 + $0x78] sm:$0xff]
    %v4415 = vld [vmem:[#allocation18 + $0x80] sm:$0xff]
    %v4416 = vld [vmem:[#allocation18 + $0x88] sm:$0xff]
    %v4417 = vld [vmem:[#allocation18 + $0x90] sm:$0xff]
    %v4418 = vld [vmem:[#allocation18 + $0x98] sm:$0xff]
    %v4419 = vld [vmem:[#allocation18 + $0xa0] sm:$0xff]
    %v4420 = vld [vmem:[#allocation18 + $0xa8] sm:$0xff]
    %v4421 = vld [vmem:[#allocation18 + $0xb0] sm:$0xff]
    %v4422 = vld [vmem:[#allocation18 + $0xb8] sm:$0xff]
    %v4423 = vld [vmem:[#allocation18 + $0xc0] sm:$0xff]
    %v4424 = vld [vmem:[#allocation18 + $0xc8] sm:$0xff]
    %v4425 = vld [vmem:[#allocation18 + $0xd0] sm:$0xff]
    %v4426 = vld [vmem:[#allocation18 + $0xd8] sm:$0xff]
    %v4427 = vld [vmem:[#allocation18 + $0xe0] sm:$0xff]
    %v4428 = vld [vmem:[#allocation18 + $0xe8] sm:$0xff]
    %v4429 = vld [vmem:[#allocation18 + $0xf0] sm:$0xff]
    %v4430 = vld [vmem:[#allocation18 + $0xf8] sm:$0xff]
    %v4463 = vunpack.c.l.b16 %v4399
    %v4464 = vunpack.c.h.b16 %v4399
    %v4465 = vunpack.c.l.b16 %v4400
    %v4466 = vunpack.c.h.b16 %v4400
    %v4467 = vunpack.c.l.b16 %v4401
    %v4468 = vunpack.c.h.b16 %v4401
    %v4469 = vunpack.c.l.b16 %v4402
    %v4470 = vunpack.c.h.b16 %v4402
    %v4471 = vunpack.c.l.b16 %v4403
    %v4472 = vunpack.c.h.b16 %v4403
    %v4473 = vunpack.c.l.b16 %v4404
    %v4474 = vunpack.c.h.b16 %v4404
    %v4475 = vunpack.c.l.b16 %v4405
    %v4476 = vunpack.c.h.b16 %v4405
    %v4477 = vunpack.c.l.b16 %v4406
    %v4478 = vunpack.c.h.b16 %v4406
    %v4479 = vunpack.c.l.b16 %v4407
    %v4480 = vunpack.c.h.b16 %v4407
    %v4481 = vunpack.c.l.b16 %v4408
    %v4482 = vunpack.c.h.b16 %v4408
    %v4483 = vunpack.c.l.b16 %v4409
    %v4484 = vunpack.c.h.b16 %v4409
    %v4485 = vunpack.c.l.b16 %v4410
    %v4486 = vunpack.c.h.b16 %v4410
    %v4487 = vunpack.c.l.b16 %v4411
    %v4488 = vunpack.c.h.b16 %v4411
    %v4489 = vunpack.c.l.b16 %v4412
    %v4490 = vunpack.c.h.b16 %v4412
    %v4491 = vunpack.c.l.b16 %v4413
    %v4492 = vunpack.c.h.b16 %v4413
    %v4493 = vunpack.c.l.b16 %v4414
    %v4494 = vunpack.c.h.b16 %v4414
    %v4495 = vunpack.c.l.b16 %v4415
    %v4496 = vunpack.c.h.b16 %v4415
    %v4497 = vunpack.c.l.b16 %v4416
    %v4498 = vunpack.c.h.b16 %v4416
    %v4499 = vunpack.c.l.b16 %v4417
    %v4500 = vunpack.c.h.b16 %v4417
    %v4501 = vunpack.c.l.b16 %v4418
    %v4502 = vunpack.c.h.b16 %v4418
    %v4503 = vunpack.c.l.b16 %v4419
    %v4504 = vunpack.c.h.b16 %v4419
    %v4505 = vunpack.c.l.b16 %v4420
    %v4506 = vunpack.c.h.b16 %v4420
    %v4507 = vunpack.c.l.b16 %v4421
    %v4508 = vunpack.c.h.b16 %v4421
    %v4509 = vunpack.c.l.b16 %v4422
    %v4510 = vunpack.c.h.b16 %v4422
    %v4511 = vunpack.c.l.b16 %v4423
    %v4512 = vunpack.c.h.b16 %v4423
    %v4513 = vunpack.c.l.b16 %v4424
    %v4514 = vunpack.c.h.b16 %v4424
    %v4515 = vunpack.c.l.b16 %v4425
    %v4516 = vunpack.c.h.b16 %v4425
    %v4517 = vunpack.c.l.b16 %v4426
    %v4518 = vunpack.c.h.b16 %v4426
    %v4519 = vunpack.c.l.b16 %v4427
    %v4520 = vunpack.c.h.b16 %v4427
    %v4521 = vunpack.c.l.b16 %v4428
    %v4522 = vunpack.c.h.b16 %v4428
    %v4523 = vunpack.c.l.b16 %v4429
    %v4524 = vunpack.c.h.b16 %v4429
    %v4525 = vunpack.c.l.b16 %v4430
    %v4526 = vunpack.c.h.b16 %v4430
    %v4527 = vpack.c.b16 %v4467, %v4463
    %v4528 = vpack.c.b16 %v4468, %v4464
    %v4529 = vpack.c.b16 %v4469, %v4465
    %v4530 = vpack.c.b16 %v4470, %v4466
    %v4531 = vpack.c.b16 %v4475, %v4471
    %v4532 = vpack.c.b16 %v4476, %v4472
    %v4533 = vpack.c.b16 %v4477, %v4473
    %v4534 = vpack.c.b16 %v4478, %v4474
    %v4535 = vpack.c.b16 %v4483, %v4479
    %v4536 = vpack.c.b16 %v4484, %v4480
    %v4537 = vpack.c.b16 %v4485, %v4481
    %v4538 = vpack.c.b16 %v4486, %v4482
    %v4539 = vpack.c.b16 %v4491, %v4487
    %v4540 = vpack.c.b16 %v4492, %v4488
    %v4541 = vpack.c.b16 %v4493, %v4489
    %v4542 = vpack.c.b16 %v4494, %v4490
    %v4543 = vpack.c.b16 %v4499, %v4495
    %v4544 = vpack.c.b16 %v4500, %v4496
    %v4545 = vpack.c.b16 %v4501, %v4497
    %v4546 = vpack.c.b16 %v4502, %v4498
    %v4547 = vpack.c.b16 %v4507, %v4503
    %v4548 = vpack.c.b16 %v4508, %v4504
    %v4549 = vpack.c.b16 %v4509, %v4505
    %v4550 = vpack.c.b16 %v4510, %v4506
    %v4551 = vpack.c.b16 %v4515, %v4511
    %v4552 = vpack.c.b16 %v4516, %v4512
    %v4553 = vpack.c.b16 %v4517, %v4513
    %v4554 = vpack.c.b16 %v4518, %v4514
    %v4555 = vpack.c.b16 %v4523, %v4519
    %v4556 = vpack.c.b16 %v4524, %v4520
    %v4557 = vpack.c.b16 %v4525, %v4521
    %v4558 = vpack.c.b16 %v4526, %v4522
    %4591 = vmatprep.subr.bf16.mxu0 %v4528
    %4592 = vmatpush1.bf16.msra.mxu0 %v4527
    %4593 = vmatprep.subr.bf16.mxu0 %v4532
    %4594 = vmatpush1.bf16.msra.mxu0 %v4531
    %4595 = vmatprep.subr.bf16.mxu0 %v4536
    %4596 = vmatpush1.bf16.msra.mxu0 %v4535
    %4597 = vmatprep.subr.bf16.mxu0 %v4540
    %4598 = vmatpush1.bf16.msra.mxu0 %v4539
    %4599 = vmatprep.subr.bf16.mxu0 %v4544
    %4600 = vmatpush1.bf16.msra.mxu0 %v4543
    %4601 = vmatprep.subr.bf16.mxu0 %v4548
    %4602 = vmatpush1.bf16.msra.mxu0 %v4547
    %4603 = vmatprep.subr.bf16.mxu0 %v4552
    %4604 = vmatpush1.bf16.msra.mxu0 %v4551
    %4605 = vmatprep.subr.bf16.mxu0 %v4556
    %4606 = vmatpush1.bf16.msra.mxu0 %v4555
    %4607 = vmatprep.subr.bf16.mxu0 0
    %4608 = vmatpush1.bf16.msra.mxu0 0
    %4609 = vmatprep.subr.bf16.mxu0 0
    %4610 = vmatpush1.bf16.msra.mxu0 0
    %4611 = vmatprep.subr.bf16.mxu0 0
    %4612 = vmatpush1.bf16.msra.mxu0 0
    %4613 = vmatprep.subr.bf16.mxu0 0
    %4614 = vmatpush1.bf16.msra.mxu0 0
    %4615 = vmatprep.subr.bf16.mxu0 0
    %4616 = vmatpush1.bf16.msra.mxu0 0
    %4617 = vmatprep.subr.bf16.mxu0 0
    %4618 = vmatpush1.bf16.msra.mxu0 0
    %4619 = vmatprep.subr.bf16.mxu0 0
    %4620 = vmatpush1.bf16.msra.mxu0 0
    %4621 = vmatprep.subr.bf16.mxu0 0
    %4622 = vmatpush1.bf16.msra.mxu0 0
    %4623 = vmatprep.mubr.bf16.mxu0 0
    %4624 = vmatmul.mubr.bf16.gmra.mrb[0].mxu0 %v4398
    %v4625 = vpop.f32.mrb[0].mxu0
    %v4626 = vadd.f32 0.0, %v4625
    %v4627 = vpop.f32.mrb[0].mxu0
    %v4628 = vadd.f32 0.0, %v4627
    %v4629 = vpop.f32.mrb[0].mxu0
    %v4630 = vpop.f32.mrb[0].mxu0
    %4631 = vdwg.mxu0
    %4632 = vmatprep.subr.bf16.mxu0 %v4530
    %4633 = vmatpush1.bf16.msra.mxu0 %v4529
    %4634 = vmatprep.subr.bf16.mxu0 %v4534
    %4635 = vmatpush1.bf16.msra.mxu0 %v4533
    %4636 = vmatprep.subr.bf16.mxu0 %v4538
    %4637 = vmatpush1.bf16.msra.mxu0 %v4537
    %4638 = vmatprep.subr.bf16.mxu0 %v4542
    %4639 = vmatpush1.bf16.msra.mxu0 %v4541
    %4640 = vmatprep.subr.bf16.mxu0 %v4546
    %4641 = vmatpush1.bf16.msra.mxu0 %v4545
    %4642 = vmatprep.subr.bf16.mxu0 %v4550
    %4643 = vmatpush1.bf16.msra.mxu0 %v4549
    %4644 = vmatprep.subr.bf16.mxu0 %v4554
    %4645 = vmatpush1.bf16.msra.mxu0 %v4553
    %4646 = vmatprep.subr.bf16.mxu0 %v4558
    %4647 = vmatpush1.bf16.msra.mxu0 %v4557
    %4648 = vmatprep.subr.bf16.mxu0 0
    %4649 = vmatpush1.bf16.msra.mxu0 0
    %4650 = vmatprep.subr.bf16.mxu0 0
    %4651 = vmatpush1.bf16.msra.mxu0 0
    %4652 = vmatprep.subr.bf16.mxu0 0
    %4653 = vmatpush1.bf16.msra.mxu0 0
    %4654 = vmatprep.subr.bf16.mxu0 0
    %4655 = vmatpush1.bf16.msra.mxu0 0
    %4656 = vmatprep.subr.bf16.mxu0 0
    %4657 = vmatpush1.bf16.msra.mxu0 0
    %4658 = vmatprep.subr.bf16.mxu0 0
    %4659 = vmatpush1.bf16.msra.mxu0 0
    %4660 = vmatprep.subr.bf16.mxu0 0
    %4661 = vmatpush1.bf16.msra.mxu0 0
    %4662 = vmatprep.subr.bf16.mxu0 0
    %4663 = vmatpush1.bf16.msra.mxu0 0
    %4664 = vmatprep.mubr.bf16.mxu0 0
    %4665 = vmatmul.mubr.bf16.gmra.mrb[0].mxu0 %v4398
    %v4666 = vpop.f32.mrb[0].mxu0
    %v4667 = vadd.f32 0.0, %v4666
    %v4668 = vpop.f32.mrb[0].mxu0
    %v4669 = vadd.f32 0.0, %v4668
    %v4670 = vpop.f32.mrb[0].mxu0
    %v4671 = vpop.f32.mrb[0].mxu0
    %4672 = vdwg.mxu0
    %v4673 = vadd.f32 %v4394, %v4626
    %v4674 = vadd.f32 %v4395, %v4628
    %v4675 = vadd.f32 %v4396, %v4667
    %v4676 = vadd.f32 %v4397, %v4669
    %v4677 = vxor.u32 %v4673, 2147483648
    %v4678 = vmul.f32 %v4677, 1.442695
    %v4679 = vpow.pop %v4678
    %v4680 = vadd.f32 %v4679, 1.0
    %v4681 = vrcp.pop %v4680
    %v4682 = vmul.f32 1.0, %v4681
    %v4683 = vxor.u32 %v4674, 2147483648
    %v4684 = vmul.f32 %v4683, 1.442695
    %v4685 = vpow.pop %v4684
    %v4686 = vadd.f32 %v4685, 1.0
    %v4687 = vrcp.pop %v4686
    %v4688 = vmul.f32 1.0, %v4687
    %v4689 = vtanh.pop %v4675
    %v4690 = vxor.u32 %v4676, 2147483648
    %v4691 = vmul.f32 %v4690, 1.442695
    %v4692 = vpow.pop %v4691
    %v4693 = vadd.f32 %v4692, 1.0
    %v4694 = vrcp.pop %v4693
    %v4695 = vmul.f32 1.0, %v4694
    %v4696 = vmul.f32 %v4688, %v4387
    %v4697 = vmul.f32 %v4682, %v4689
    %v4698 = vadd.f32 %v4696, %v4697
    %v4699 = vtanh.pop %v4698
    %v4700 = vmul.f32 %v4695, %v4699
    %s4701 = scalar_lea.vmem [#allocation21], 24
    %4702 = vst [vmem:[%s4701] sm:$0xff] %v4700
    %s4703 = smul.addr %s1804, 8
    %s4704 = scalar_lea.vmem [#allocation8], %s4703
    %v4705 = vld [vmem:[%s4704] sm:$0xff]
    %v4706 = vld [vmem:[%s4704 + $0x8] sm:$0xff]
    %v4707 = vld [vmem:[%s4704 + $0x10] sm:$0xff]
    %v4708 = vld [vmem:[%s4704 + $0x18] sm:$0xff]
    %v4709 = vpack.c.bf16 %v4700, %v4700
    %v4710 = vld [vmem:[#allocation18] sm:$0xff]
    %v4711 = vld [vmem:[#allocation18 + $0x8] sm:$0xff]
    %v4712 = vld [vmem:[#allocation18 + $0x10] sm:$0xff]
    %v4713 = vld [vmem:[#allocation18 + $0x18] sm:$0xff]
    %v4714 = vld [vmem:[#allocation18 + $0x20] sm:$0xff]
    %v4715 = vld [vmem:[#allocation18 + $0x28] sm:$0xff]
    %v4716 = vld [vmem:[#allocation18 + $0x30] sm:$0xff]
    %v4717 = vld [vmem:[#allocation18 + $0x38] sm:$0xff]
    %v4718 = vld [vmem:[#allocation18 + $0x40] sm:$0xff]
    %v4719 = vld [vmem:[#allocation18 + $0x48] sm:$0xff]
    %v4720 = vld [vmem:[#allocation18 + $0x50] sm:$0xff]
    %v4721 = vld [vmem:[#allocation18 + $0x58] sm:$0xff]
    %v4722 = vld [vmem:[#allocation18 + $0x60] sm:$0xff]
    %v4723 = vld [vmem:[#allocation18 + $0x68] sm:$0xff]
    %v4724 = vld [vmem:[#allocation18 + $0x70] sm:$0xff]
    %v4725 = vld [vmem:[#allocation18 + $0x78] sm:$0xff]
    %v4726 = vld [vmem:[#allocation18 + $0x80] sm:$0xff]
    %v4727 = vld [vmem:[#allocation18 + $0x88] sm:$0xff]
    %v4728 = vld [vmem:[#allocation18 + $0x90] sm:$0xff]
    %v4729 = vld [vmem:[#allocation18 + $0x98] sm:$0xff]
    %v4730 = vld [vmem:[#allocation18 + $0xa0] sm:$0xff]
    %v4731 = vld [vmem:[#allocation18 + $0xa8] sm:$0xff]
    %v4732 = vld [vmem:[#allocation18 + $0xb0] sm:$0xff]
    %v4733 = vld [vmem:[#allocation18 + $0xb8] sm:$0xff]
    %v4734 = vld [vmem:[#allocation18 + $0xc0] sm:$0xff]
    %v4735 = vld [vmem:[#allocation18 + $0xc8] sm:$0xff]
    %v4736 = vld [vmem:[#allocation18 + $0xd0] sm:$0xff]
    %v4737 = vld [vmem:[#allocation18 + $0xd8] sm:$0xff]
    %v4738 = vld [vmem:[#allocation18 + $0xe0] sm:$0xff]
    %v4739 = vld [vmem:[#allocation18 + $0xe8] sm:$0xff]
    %v4740 = vld [vmem:[#allocation18 + $0xf0] sm:$0xff]
    %v4741 = vld [vmem:[#allocation18 + $0xf8] sm:$0xff]
    %v4774 = vunpack.c.l.b16 %v4710
    %v4775 = vunpack.c.h.b16 %v4710
    %v4776 = vunpack.c.l.b16 %v4711
    %v4777 = vunpack.c.h.b16 %v4711
    %v4778 = vunpack.c.l.b16 %v4712
    %v4779 = vunpack.c.h.b16 %v4712
    %v4780 = vunpack.c.l.b16 %v4713
    %v4781 = vunpack.c.h.b16 %v4713
    %v4782 = vunpack.c.l.b16 %v4714
    %v4783 = vunpack.c.h.b16 %v4714
    %v4784 = vunpack.c.l.b16 %v4715
    %v4785 = vunpack.c.h.b16 %v4715
    %v4786 = vunpack.c.l.b16 %v4716
    %v4787 = vunpack.c.h.b16 %v4716
    %v4788 = vunpack.c.l.b16 %v4717
    %v4789 = vunpack.c.h.b16 %v4717
    %v4790 = vunpack.c.l.b16 %v4718
    %v4791 = vunpack.c.h.b16 %v4718
    %v4792 = vunpack.c.l.b16 %v4719
    %v4793 = vunpack.c.h.b16 %v4719
    %v4794 = vunpack.c.l.b16 %v4720
    %v4795 = vunpack.c.h.b16 %v4720
    %v4796 = vunpack.c.l.b16 %v4721
    %v4797 = vunpack.c.h.b16 %v4721
    %v4798 = vunpack.c.l.b16 %v4722
    %v4799 = vunpack.c.h.b16 %v4722
    %v4800 = vunpack.c.l.b16 %v4723
    %v4801 = vunpack.c.h.b16 %v4723
    %v4802 = vunpack.c.l.b16 %v4724
    %v4803 = vunpack.c.h.b16 %v4724
    %v4804 = vunpack.c.l.b16 %v4725
    %v4805 = vunpack.c.h.b16 %v4725
    %v4806 = vunpack.c.l.b16 %v4726
    %v4807 = vunpack.c.h.b16 %v4726
    %v4808 = vunpack.c.l.b16 %v4727
    %v4809 = vunpack.c.h.b16 %v4727
    %v4810 = vunpack.c.l.b16 %v4728
    %v4811 = vunpack.c.h.b16 %v4728
    %v4812 = vunpack.c.l.b16 %v4729
    %v4813 = vunpack.c.h.b16 %v4729
    %v4814 = vunpack.c.l.b16 %v4730
    %v4815 = vunpack.c.h.b16 %v4730
    %v4816 = vunpack.c.l.b16 %v4731
    %v4817 = vunpack.c.h.b16 %v4731
    %v4818 = vunpack.c.l.b16 %v4732
    %v4819 = vunpack.c.h.b16 %v4732
    %v4820 = vunpack.c.l.b16 %v4733
    %v4821 = vunpack.c.h.b16 %v4733
    %v4822 = vunpack.c.l.b16 %v4734
    %v4823 = vunpack.c.h.b16 %v4734
    %v4824 = vunpack.c.l.b16 %v4735
    %v4825 = vunpack.c.h.b16 %v4735
    %v4826 = vunpack.c.l.b16 %v4736
    %v4827 = vunpack.c.h.b16 %v4736
    %v4828 = vunpack.c.l.b16 %v4737
    %v4829 = vunpack.c.h.b16 %v4737
    %v4830 = vunpack.c.l.b16 %v4738
    %v4831 = vunpack.c.h.b16 %v4738
    %v4832 = vunpack.c.l.b16 %v4739
    %v4833 = vunpack.c.h.b16 %v4739
    %v4834 = vunpack.c.l.b16 %v4740
    %v4835 = vunpack.c.h.b16 %v4740
    %v4836 = vunpack.c.l.b16 %v4741
    %v4837 = vunpack.c.h.b16 %v4741
    %v4838 = vpack.c.b16 %v4778, %v4774
    %v4839 = vpack.c.b16 %v4779, %v4775
    %v4840 = vpack.c.b16 %v4780, %v4776
    %v4841 = vpack.c.b16 %v4781, %v4777
    %v4842 = vpack.c.b16 %v4786, %v4782
    %v4843 = vpack.c.b16 %v4787, %v4783
    %v4844 = vpack.c.b16 %v4788, %v4784
    %v4845 = vpack.c.b16 %v4789, %v4785
    %v4846 = vpack.c.b16 %v4794, %v4790
    %v4847 = vpack.c.b16 %v4795, %v4791
    %v4848 = vpack.c.b16 %v4796, %v4792
    %v4849 = vpack.c.b16 %v4797, %v4793
    %v4850 = vpack.c.b16 %v4802, %v4798
    %v4851 = vpack.c.b16 %v4803, %v4799
    %v4852 = vpack.c.b16 %v4804, %v4800
    %v4853 = vpack.c.b16 %v4805, %v4801
    %v4854 = vpack.c.b16 %v4810, %v4806
    %v4855 = vpack.c.b16 %v4811, %v4807
    %v4856 = vpack.c.b16 %v4812, %v4808
    %v4857 = vpack.c.b16 %v4813, %v4809
    %v4858 = vpack.c.b16 %v4818, %v4814
    %v4859 = vpack.c.b16 %v4819, %v4815
    %v4860 = vpack.c.b16 %v4820, %v4816
    %v4861 = vpack.c.b16 %v4821, %v4817
    %v4862 = vpack.c.b16 %v4826, %v4822
    %v4863 = vpack.c.b16 %v4827, %v4823
    %v4864 = vpack.c.b16 %v4828, %v4824
    %v4865 = vpack.c.b16 %v4829, %v4825
    %v4866 = vpack.c.b16 %v4834, %v4830
    %v4867 = vpack.c.b16 %v4835, %v4831
    %v4868 = vpack.c.b16 %v4836, %v4832
    %v4869 = vpack.c.b16 %v4837, %v4833
    %4902 = vmatprep.subr.bf16.mxu0 %v4839
    %4903 = vmatpush1.bf16.msra.mxu0 %v4838
    %4904 = vmatprep.subr.bf16.mxu0 %v4843
    %4905 = vmatpush1.bf16.msra.mxu0 %v4842
    %4906 = vmatprep.subr.bf16.mxu0 %v4847
    %4907 = vmatpush1.bf16.msra.mxu0 %v4846
    %4908 = vmatprep.subr.bf16.mxu0 %v4851
    %4909 = vmatpush1.bf16.msra.mxu0 %v4850
    %4910 = vmatprep.subr.bf16.mxu0 %v4855
    %4911 = vmatpush1.bf16.msra.mxu0 %v4854
    %4912 = vmatprep.subr.bf16.mxu0 %v4859
    %4913 = vmatpush1.bf16.msra.mxu0 %v4858
    %4914 = vmatprep.subr.bf16.mxu0 %v4863
    %4915 = vmatpush1.bf16.msra.mxu0 %v4862
    %4916 = vmatprep.subr.bf16.mxu0 %v4867
    %4917 = vmatpush1.bf16.msra.mxu0 %v4866
    %4918 = vmatprep.subr.bf16.mxu0 0
    %4919 = vmatpush1.bf16.msra.mxu0 0
    %4920 = vmatprep.subr.bf16.mxu0 0
    %4921 = vmatpush1.bf16.msra.mxu0 0
    %4922 = vmatprep.subr.bf16.mxu0 0
    %4923 = vmatpush1.bf16.msra.mxu0 0
    %4924 = vmatprep.subr.bf16.mxu0 0
    %4925 = vmatpush1.bf16.msra.mxu0 0
    %4926 = vmatprep.subr.bf16.mxu0 0
    %4927 = vmatpush1.bf16.msra.mxu0 0
    %4928 = vmatprep.subr.bf16.mxu0 0
    %4929 = vmatpush1.bf16.msra.mxu0 0
    %4930 = vmatprep.subr.bf16.mxu0 0
    %4931 = vmatpush1.bf16.msra.mxu0 0
    %4932 = vmatprep.subr.bf16.mxu0 0
    %4933 = vmatpush1.bf16.msra.mxu0 0
    %4934 = vmatprep.mubr.bf16.mxu0 0
    %4935 = vmatmul.mubr.bf16.gmra.mrb[0].mxu0 %v4709
    %v4936 = vpop.f32.mrb[0].mxu0
    %v4937 = vadd.f32 0.0, %v4936
    %v4938 = vpop.f32.mrb[0].mxu0
    %v4939 = vadd.f32 0.0, %v4938
    %v4940 = vpop.f32.mrb[0].mxu0
    %v4941 = vpop.f32.mrb[0].mxu0
    %4942 = vdwg.mxu0
    %4943 = vmatprep.subr.bf16.mxu0 %v4841
    %4944 = vmatpush1.bf16.msra.mxu0 %v4840
    %4945 = vmatprep.subr.bf16.mxu0 %v4845
    %4946 = vmatpush1.bf16.msra.mxu0 %v4844
    %4947 = vmatprep.subr.bf16.mxu0 %v4849
    %4948 = vmatpush1.bf16.msra.mxu0 %v4848
    %4949 = vmatprep.subr.bf16.mxu0 %v4853
    %4950 = vmatpush1.bf16.msra.mxu0 %v4852
    %4951 = vmatprep.subr.bf16.mxu0 %v4857
    %4952 = vmatpush1.bf16.msra.mxu0 %v4856
    %4953 = vmatprep.subr.bf16.mxu0 %v4861
    %4954 = vmatpush1.bf16.msra.mxu0 %v4860
    %4955 = vmatprep.subr.bf16.mxu0 %v4865
    %4956 = vmatpush1.bf16.msra.mxu0 %v4864
    %4957 = vmatprep.subr.bf16.mxu0 %v4869
    %4958 = vmatpush1.bf16.msra.mxu0 %v4868
    %4959 = vmatprep.subr.bf16.mxu0 0
    %4960 = vmatpush1.bf16.msra.mxu0 0
    %4961 = vmatprep.subr.bf16.mxu0 0
    %4962 = vmatpush1.bf16.msra.mxu0 0
    %4963 = vmatprep.subr.bf16.mxu0 0
    %4964 = vmatpush1.bf16.msra.mxu0 0
    %4965 = vmatprep.subr.bf16.mxu0 0
    %4966 = vmatpush1.bf16.msra.mxu0 0
    %4967 = vmatprep.subr.bf16.mxu0 0
    %4968 = vmatpush1.bf16.msra.mxu0 0
    %4969 = vmatprep.subr.bf16.mxu0 0
    %4970 = vmatpush1.bf16.msra.mxu0 0
    %4971 = vmatprep.subr.bf16.mxu0 0
    %4972 = vmatpush1.bf16.msra.mxu0 0
    %4973 = vmatprep.subr.bf16.mxu0 0
    %4974 = vmatpush1.bf16.msra.mxu0 0
    %4975 = vmatprep.mubr.bf16.mxu0 0
    %4976 = vmatmul.mubr.bf16.gmra.mrb[0].mxu0 %v4709
    %v4977 = vpop.f32.mrb[0].mxu0
    %v4978 = vadd.f32 0.0, %v4977
    %v4979 = vpop.f32.mrb[0].mxu0
    %v4980 = vadd.f32 0.0, %v4979
    %v4981 = vpop.f32.mrb[0].mxu0
    %v4982 = vpop.f32.mrb[0].mxu0
    %4983 = vdwg.mxu0
    %v4984 = vadd.f32 %v4705, %v4937
    %v4985 = vadd.f32 %v4706, %v4939
    %v4986 = vadd.f32 %v4707, %v4978
    %v4987 = vadd.f32 %v4708, %v4980
    %v4988 = vxor.u32 %v4984, 2147483648
    %v4989 = vmul.f32 %v4988, 1.442695
    %v4990 = vpow.pop %v4989
    %v4991 = vadd.f32 %v4990, 1.0
    %v4992 = vrcp.pop %v4991
    %v4993 = vmul.f32 1.0, %v4992
    %v4994 = vxor.u32 %v4985, 2147483648
    %v4995 = vmul.f32 %v4994, 1.442695
    %v4996 = vpow.pop %v4995
    %v4997 = vadd.f32 %v4996, 1.0
    %v4998 = vrcp.pop %v4997
    %v4999 = vmul.f32 1.0, %v4998
    %v5000 = vtanh.pop %v4986
    %v5001 = vxor.u32 %v4987, 2147483648
    %v5002 = vmul.f32 %v5001, 1.442695
    %v5003 = vpow.pop %v5002
    %v5004 = vadd.f32 %v5003, 1.0
    %v5005 = vrcp.pop %v5004
    %v5006 = vmul.f32 1.0, %v5005
    %v5007 = vmul.f32 %v4999, %v4698
    %v5008 = vmul.f32 %v4993, %v5000
    %v5009 = vadd.f32 %v5007, %v5008
    %v5010 = vtanh.pop %v5009
    %v5011 = vmul.f32 %v5006, %v5010
    %s5012 = scalar_lea.vmem [#allocation21], 32
    %5013 = vst [vmem:[%s5012] sm:$0xff] %v5011
    %s5014 = smul.addr %s2116, 8
    %s5015 = scalar_lea.vmem [#allocation8], %s5014
    %v5016 = vld [vmem:[%s5015] sm:$0xff]
    %v5017 = vld [vmem:[%s5015 + $0x8] sm:$0xff]
    %v5018 = vld [vmem:[%s5015 + $0x10] sm:$0xff]
    %v5019 = vld [vmem:[%s5015 + $0x18] sm:$0xff]
    %v5020 = vpack.c.bf16 %v5011, %v5011
    %v5021 = vld [vmem:[#allocation18] sm:$0xff]
    %v5022 = vld [vmem:[#allocation18 + $0x8] sm:$0xff]
    %v5023 = vld [vmem:[#allocation18 + $0x10] sm:$0xff]
    %v5024 = vld [vmem:[#allocation18 + $0x18] sm:$0xff]
    %v5025 = vld [vmem:[#allocation18 + $0x20] sm:$0xff]
    %v5026 = vld [vmem:[#allocation18 + $0x28] sm:$0xff]
    %v5027 = vld [vmem:[#allocation18 + $0x30] sm:$0xff]
    %v5028 = vld [vmem:[#allocation18 + $0x38] sm:$0xff]
    %v5029 = vld [vmem:[#allocation18 + $0x40] sm:$0xff]
    %v5030 = vld [vmem:[#allocation18 + $0x48] sm:$0xff]
    %v5031 = vld [vmem:[#allocation18 + $0x50] sm:$0xff]
    %v5032 = vld [vmem:[#allocation18 + $0x58] sm:$0xff]
    %v5033 = vld [vmem:[#allocation18 + $0x60] sm:$0xff]
    %v5034 = vld [vmem:[#allocation18 + $0x68] sm:$0xff]
    %v5035 = vld [vmem:[#allocation18 + $0x70] sm:$0xff]
    %v5036 = vld [vmem:[#allocation18 + $0x78] sm:$0xff]
    %v5037 = vld [vmem:[#allocation18 + $0x80] sm:$0xff]
    %v5038 = vld [vmem:[#allocation18 + $0x88] sm:$0xff]
    %v5039 = vld [vmem:[#allocation18 + $0x90] sm:$0xff]
    %v5040 = vld [vmem:[#allocation18 + $0x98] sm:$0xff]
    %v5041 = vld [vmem:[#allocation18 + $0xa0] sm:$0xff]
    %v5042 = vld [vmem:[#allocation18 + $0xa8] sm:$0xff]
    %v5043 = vld [vmem:[#allocation18 + $0xb0] sm:$0xff]
    %v5044 = vld [vmem:[#allocation18 + $0xb8] sm:$0xff]
    %v5045 = vld [vmem:[#allocation18 + $0xc0] sm:$0xff]
    %v5046 = vld [vmem:[#allocation18 + $0xc8] sm:$0xff]
    %v5047 = vld [vmem:[#allocation18 + $0xd0] sm:$0xff]
    %v5048 = vld [vmem:[#allocation18 + $0xd8] sm:$0xff]
    %v5049 = vld [vmem:[#allocation18 + $0xe0] sm:$0xff]
    %v5050 = vld [vmem:[#allocation18 + $0xe8] sm:$0xff]
    %v5051 = vld [vmem:[#allocation18 + $0xf0] sm:$0xff]
    %v5052 = vld [vmem:[#allocation18 + $0xf8] sm:$0xff]
    %v5085 = vunpack.c.l.b16 %v5021
    %v5086 = vunpack.c.h.b16 %v5021
    %v5087 = vunpack.c.l.b16 %v5022
    %v5088 = vunpack.c.h.b16 %v5022
    %v5089 = vunpack.c.l.b16 %v5023
    %v5090 = vunpack.c.h.b16 %v5023
    %v5091 = vunpack.c.l.b16 %v5024
    %v5092 = vunpack.c.h.b16 %v5024
    %v5093 = vunpack.c.l.b16 %v5025
    %v5094 = vunpack.c.h.b16 %v5025
    %v5095 = vunpack.c.l.b16 %v5026
    %v5096 = vunpack.c.h.b16 %v5026
    %v5097 = vunpack.c.l.b16 %v5027
    %v5098 = vunpack.c.h.b16 %v5027
    %v5099 = vunpack.c.l.b16 %v5028
    %v5100 = vunpack.c.h.b16 %v5028
    %v5101 = vunpack.c.l.b16 %v5029
    %v5102 = vunpack.c.h.b16 %v5029
    %v5103 = vunpack.c.l.b16 %v5030
    %v5104 = vunpack.c.h.b16 %v5030
    %v5105 = vunpack.c.l.b16 %v5031
    %v5106 = vunpack.c.h.b16 %v5031
    %v5107 = vunpack.c.l.b16 %v5032
    %v5108 = vunpack.c.h.b16 %v5032
    %v5109 = vunpack.c.l.b16 %v5033
    %v5110 = vunpack.c.h.b16 %v5033
    %v5111 = vunpack.c.l.b16 %v5034
    %v5112 = vunpack.c.h.b16 %v5034
    %v5113 = vunpack.c.l.b16 %v5035
    %v5114 = vunpack.c.h.b16 %v5035
    %v5115 = vunpack.c.l.b16 %v5036
    %v5116 = vunpack.c.h.b16 %v5036
    %v5117 = vunpack.c.l.b16 %v5037
    %v5118 = vunpack.c.h.b16 %v5037
    %v5119 = vunpack.c.l.b16 %v5038
    %v5120 = vunpack.c.h.b16 %v5038
    %v5121 = vunpack.c.l.b16 %v5039
    %v5122 = vunpack.c.h.b16 %v5039
    %v5123 = vunpack.c.l.b16 %v5040
    %v5124 = vunpack.c.h.b16 %v5040
    %v5125 = vunpack.c.l.b16 %v5041
    %v5126 = vunpack.c.h.b16 %v5041
    %v5127 = vunpack.c.l.b16 %v5042
    %v5128 = vunpack.c.h.b16 %v5042
    %v5129 = vunpack.c.l.b16 %v5043
    %v5130 = vunpack.c.h.b16 %v5043
    %v5131 = vunpack.c.l.b16 %v5044
    %v5132 = vunpack.c.h.b16 %v5044
    %v5133 = vunpack.c.l.b16 %v5045
    %v5134 = vunpack.c.h.b16 %v5045
    %v5135 = vunpack.c.l.b16 %v5046
    %v5136 = vunpack.c.h.b16 %v5046
    %v5137 = vunpack.c.l.b16 %v5047
    %v5138 = vunpack.c.h.b16 %v5047
    %v5139 = vunpack.c.l.b16 %v5048
    %v5140 = vunpack.c.h.b16 %v5048
    %v5141 = vunpack.c.l.b16 %v5049
    %v5142 = vunpack.c.h.b16 %v5049
    %v5143 = vunpack.c.l.b16 %v5050
    %v5144 = vunpack.c.h.b16 %v5050
    %v5145 = vunpack.c.l.b16 %v5051
    %v5146 = vunpack.c.h.b16 %v5051
    %v5147 = vunpack.c.l.b16 %v5052
    %v5148 = vunpack.c.h.b16 %v5052
    %v5149 = vpack.c.b16 %v5089, %v5085
    %v5150 = vpack.c.b16 %v5090, %v5086
    %v5151 = vpack.c.b16 %v5091, %v5087
    %v5152 = vpack.c.b16 %v5092, %v5088
    %v5153 = vpack.c.b16 %v5097, %v5093
    %v5154 = vpack.c.b16 %v5098, %v5094
    %v5155 = vpack.c.b16 %v5099, %v5095
    %v5156 = vpack.c.b16 %v5100, %v5096
    %v5157 = vpack.c.b16 %v5105, %v5101
    %v5158 = vpack.c.b16 %v5106, %v5102
    %v5159 = vpack.c.b16 %v5107, %v5103
    %v5160 = vpack.c.b16 %v5108, %v5104
    %v5161 = vpack.c.b16 %v5113, %v5109
    %v5162 = vpack.c.b16 %v5114, %v5110
    %v5163 = vpack.c.b16 %v5115, %v5111
    %v5164 = vpack.c.b16 %v5116, %v5112
    %v5165 = vpack.c.b16 %v5121, %v5117
    %v5166 = vpack.c.b16 %v5122, %v5118
    %v5167 = vpack.c.b16 %v5123, %v5119
    %v5168 = vpack.c.b16 %v5124, %v5120
    %v5169 = vpack.c.b16 %v5129, %v5125
    %v5170 = vpack.c.b16 %v5130, %v5126
    %v5171 = vpack.c.b16 %v5131, %v5127
    %v5172 = vpack.c.b16 %v5132, %v5128
    %v5173 = vpack.c.b16 %v5137, %v5133
    %v5174 = vpack.c.b16 %v5138, %v5134
    %v5175 = vpack.c.b16 %v5139, %v5135
    %v5176 = vpack.c.b16 %v5140, %v5136
    %v5177 = vpack.c.b16 %v5145, %v5141
    %v5178 = vpack.c.b16 %v5146, %v5142
    %v5179 = vpack.c.b16 %v5147, %v5143
    %v5180 = vpack.c.b16 %v5148, %v5144
    %5213 = vmatprep.subr.bf16.mxu0 %v5150
    %5214 = vmatpush1.bf16.msra.mxu0 %v5149
    %5215 = vmatprep.subr.bf16.mxu0 %v5154
    %5216 = vmatpush1.bf16.msra.mxu0 %v5153
    %5217 = vmatprep.subr.bf16.mxu0 %v5158
    %5218 = vmatpush1.bf16.msra.mxu0 %v5157
    %5219 = vmatprep.subr.bf16.mxu0 %v5162
    %5220 = vmatpush1.bf16.msra.mxu0 %v5161
    %5221 = vmatprep.subr.bf16.mxu0 %v5166
    %5222 = vmatpush1.bf16.msra.mxu0 %v5165
    %5223 = vmatprep.subr.bf16.mxu0 %v5170
    %5224 = vmatpush1.bf16.msra.mxu0 %v5169
    %5225 = vmatprep.subr.bf16.mxu0 %v5174
    %5226 = vmatpush1.bf16.msra.mxu0 %v5173
    %5227 = vmatprep.subr.bf16.mxu0 %v5178
    %5228 = vmatpush1.bf16.msra.mxu0 %v5177
    %5229 = vmatprep.subr.bf16.mxu0 0
    %5230 = vmatpush1.bf16.msra.mxu0 0
    %5231 = vmatprep.subr.bf16.mxu0 0
    %5232 = vmatpush1.bf16.msra.mxu0 0
    %5233 = vmatprep.subr.bf16.mxu0 0
    %5234 = vmatpush1.bf16.msra.mxu0 0
    %5235 = vmatprep.subr.bf16.mxu0 0
    %5236 = vmatpush1.bf16.msra.mxu0 0
    %5237 = vmatprep.subr.bf16.mxu0 0
    %5238 = vmatpush1.bf16.msra.mxu0 0
    %5239 = vmatprep.subr.bf16.mxu0 0
    %5240 = vmatpush1.bf16.msra.mxu0 0
    %5241 = vmatprep.subr.bf16.mxu0 0
    %5242 = vmatpush1.bf16.msra.mxu0 0
    %5243 = vmatprep.subr.bf16.mxu0 0
    %5244 = vmatpush1.bf16.msra.mxu0 0
    %5245 = vmatprep.mubr.bf16.mxu0 0
    %5246 = vmatmul.mubr.bf16.gmra.mrb[0].mxu0 %v5020
    %v5247 = vpop.f32.mrb[0].mxu0
    %v5248 = vadd.f32 0.0, %v5247
    %v5249 = vpop.f32.mrb[0].mxu0
    %v5250 = vadd.f32 0.0, %v5249
    %v5251 = vpop.f32.mrb[0].mxu0
    %v5252 = vpop.f32.mrb[0].mxu0
    %5253 = vdwg.mxu0
    %5254 = vmatprep.subr.bf16.mxu0 %v5152
    %5255 = vmatpush1.bf16.msra.mxu0 %v5151
    %5256 = vmatprep.subr.bf16.mxu0 %v5156
    %5257 = vmatpush1.bf16.msra.mxu0 %v5155
    %5258 = vmatprep.subr.bf16.mxu0 %v5160
    %5259 = vmatpush1.bf16.msra.mxu0 %v5159
    %5260 = vmatprep.subr.bf16.mxu0 %v5164
    %5261 = vmatpush1.bf16.msra.mxu0 %v5163
    %5262 = vmatprep.subr.bf16.mxu0 %v5168
    %5263 = vmatpush1.bf16.msra.mxu0 %v5167
    %5264 = vmatprep.subr.bf16.mxu0 %v5172
    %5265 = vmatpush1.bf16.msra.mxu0 %v5171
    %5266 = vmatprep.subr.bf16.mxu0 %v5176
    %5267 = vmatpush1.bf16.msra.mxu0 %v5175
    %5268 = vmatprep.subr.bf16.mxu0 %v5180
    %5269 = vmatpush1.bf16.msra.mxu0 %v5179
    %5270 = vmatprep.subr.bf16.mxu0 0
    %5271 = vmatpush1.bf16.msra.mxu0 0
    %5272 = vmatprep.subr.bf16.mxu0 0
    %5273 = vmatpush1.bf16.msra.mxu0 0
    %5274 = vmatprep.subr.bf16.mxu0 0
    %5275 = vmatpush1.bf16.msra.mxu0 0
    %5276 = vmatprep.subr.bf16.mxu0 0
    %5277 = vmatpush1.bf16.msra.mxu0 0
    %5278 = vmatprep.subr.bf16.mxu0 0
    %5279 = vmatpush1.bf16.msra.mxu0 0
    %5280 = vmatprep.subr.bf16.mxu0 0
    %5281 = vmatpush1.bf16.msra.mxu0 0
    %5282 = vmatprep.subr.bf16.mxu0 0
    %5283 = vmatpush1.bf16.msra.mxu0 0
    %5284 = vmatprep.subr.bf16.mxu0 0
    %5285 = vmatpush1.bf16.msra.mxu0 0
    %5286 = vmatprep.mubr.bf16.mxu0 0
    %5287 = vmatmul.mubr.bf16.gmra.mrb[0].mxu0 %v5020
    %v5288 = vpop.f32.mrb[0].mxu0
    %v5289 = vadd.f32 0.0, %v5288
    %v5290 = vpop.f32.mrb[0].mxu0
    %v5291 = vadd.f32 0.0, %v5290
    %v5292 = vpop.f32.mrb[0].mxu0
    %v5293 = vpop.f32.mrb[0].mxu0
    %5294 = vdwg.mxu0
    %v5295 = vadd.f32 %v5016, %v5248
    %v5296 = vadd.f32 %v5017, %v5250
    %v5297 = vadd.f32 %v5018, %v5289
    %v5298 = vadd.f32 %v5019, %v5291
    %v5299 = vxor.u32 %v5295, 2147483648
    %v5300 = vmul.f32 %v5299, 1.442695
    %v5301 = vpow.pop %v5300
    %v5302 = vadd.f32 %v5301, 1.0
    %v5303 = vrcp.pop %v5302
    %v5304 = vmul.f32 1.0, %v5303
    %v5305 = vxor.u32 %v5296, 2147483648
    %v5306 = vmul.f32 %v5305, 1.442695
    %v5307 = vpow.pop %v5306
    %v5308 = vadd.f32 %v5307, 1.0
    %v5309 = vrcp.pop %v5308
    %v5310 = vmul.f32 1.0, %v5309
    %v5311 = vtanh.pop %v5297
    %v5312 = vxor.u32 %v5298, 2147483648
    %v5313 = vmul.f32 %v5312, 1.442695
    %v5314 = vpow.pop %v5313
    %v5315 = vadd.f32 %v5314, 1.0
    %v5316 = vrcp.pop %v5315
    %v5317 = vmul.f32 1.0, %v5316
    %v5318 = vmul.f32 %v5310, %v5009
    %v5319 = vmul.f32 %v5304, %v5311
    %v5320 = vadd.f32 %v5318, %v5319
    %v5321 = vtanh.pop %v5320
    %v5322 = vmul.f32 %v5317, %v5321
    %s5323 = scalar_lea.vmem [#allocation21], 40
    %5324 = vst [vmem:[%s5323] sm:$0xff] %v5322
    %s5325 = smul.addr %s2428, 8
    %s5326 = scalar_lea.vmem [#allocation8], %s5325
    %v5327 = vld [vmem:[%s5326] sm:$0xff]
    %v5328 = vld [vmem:[%s5326 + $0x8] sm:$0xff]
    %v5329 = vld [vmem:[%s5326 + $0x10] sm:$0xff]
    %v5330 = vld [vmem:[%s5326 + $0x18] sm:$0xff]
    %v5331 = vpack.c.bf16 %v5322, %v5322
    %v5332 = vld [vmem:[#allocation18] sm:$0xff]
    %v5333 = vld [vmem:[#allocation18 + $0x8] sm:$0xff]
    %v5334 = vld [vmem:[#allocation18 + $0x10] sm:$0xff]
    %v5335 = vld [vmem:[#allocation18 + $0x18] sm:$0xff]
    %v5336 = vld [vmem:[#allocation18 + $0x20] sm:$0xff]
    %v5337 = vld [vmem:[#allocation18 + $0x28] sm:$0xff]
    %v5338 = vld [vmem:[#allocation18 + $0x30] sm:$0xff]
    %v5339 = vld [vmem:[#allocation18 + $0x38] sm:$0xff]
    %v5340 = vld [vmem:[#allocation18 + $0x40] sm:$0xff]
    %v5341 = vld [vmem:[#allocation18 + $0x48] sm:$0xff]
    %v5342 = vld [vmem:[#allocation18 + $0x50] sm:$0xff]
    %v5343 = vld [vmem:[#allocation18 + $0x58] sm:$0xff]
    %v5344 = vld [vmem:[#allocation18 + $0x60] sm:$0xff]
    %v5345 = vld [vmem:[#allocation18 + $0x68] sm:$0xff]
    %v5346 = vld [vmem:[#allocation18 + $0x70] sm:$0xff]
    %v5347 = vld [vmem:[#allocation18 + $0x78] sm:$0xff]
    %v5348 = vld [vmem:[#allocation18 + $0x80] sm:$0xff]
    %v5349 = vld [vmem:[#allocation18 + $0x88] sm:$0xff]
    %v5350 = vld [vmem:[#allocation18 + $0x90] sm:$0xff]
    %v5351 = vld [vmem:[#allocation18 + $0x98] sm:$0xff]
    %v5352 = vld [vmem:[#allocation18 + $0xa0] sm:$0xff]
    %v5353 = vld [vmem:[#allocation18 + $0xa8] sm:$0xff]
    %v5354 = vld [vmem:[#allocation18 + $0xb0] sm:$0xff]
    %v5355 = vld [vmem:[#allocation18 + $0xb8] sm:$0xff]
    %v5356 = vld [vmem:[#allocation18 + $0xc0] sm:$0xff]
    %v5357 = vld [vmem:[#allocation18 + $0xc8] sm:$0xff]
    %v5358 = vld [vmem:[#allocation18 + $0xd0] sm:$0xff]
    %v5359 = vld [vmem:[#allocation18 + $0xd8] sm:$0xff]
    %v5360 = vld [vmem:[#allocation18 + $0xe0] sm:$0xff]
    %v5361 = vld [vmem:[#allocation18 + $0xe8] sm:$0xff]
    %v5362 = vld [vmem:[#allocation18 + $0xf0] sm:$0xff]
    %v5363 = vld [vmem:[#allocation18 + $0xf8] sm:$0xff]
    %v5396 = vunpack.c.l.b16 %v5332
    %v5397 = vunpack.c.h.b16 %v5332
    %v5398 = vunpack.c.l.b16 %v5333
    %v5399 = vunpack.c.h.b16 %v5333
    %v5400 = vunpack.c.l.b16 %v5334
    %v5401 = vunpack.c.h.b16 %v5334
    %v5402 = vunpack.c.l.b16 %v5335
    %v5403 = vunpack.c.h.b16 %v5335
    %v5404 = vunpack.c.l.b16 %v5336
    %v5405 = vunpack.c.h.b16 %v5336
    %v5406 = vunpack.c.l.b16 %v5337
    %v5407 = vunpack.c.h.b16 %v5337
    %v5408 = vunpack.c.l.b16 %v5338
    %v5409 = vunpack.c.h.b16 %v5338
    %v5410 = vunpack.c.l.b16 %v5339
    %v5411 = vunpack.c.h.b16 %v5339
    %v5412 = vunpack.c.l.b16 %v5340
    %v5413 = vunpack.c.h.b16 %v5340
    %v5414 = vunpack.c.l.b16 %v5341
    %v5415 = vunpack.c.h.b16 %v5341
    %v5416 = vunpack.c.l.b16 %v5342
    %v5417 = vunpack.c.h.b16 %v5342
    %v5418 = vunpack.c.l.b16 %v5343
    %v5419 = vunpack.c.h.b16 %v5343
    %v5420 = vunpack.c.l.b16 %v5344
    %v5421 = vunpack.c.h.b16 %v5344
    %v5422 = vunpack.c.l.b16 %v5345
    %v5423 = vunpack.c.h.b16 %v5345
    %v5424 = vunpack.c.l.b16 %v5346
    %v5425 = vunpack.c.h.b16 %v5346
    %v5426 = vunpack.c.l.b16 %v5347
    %v5427 = vunpack.c.h.b16 %v5347
    %v5428 = vunpack.c.l.b16 %v5348
    %v5429 = vunpack.c.h.b16 %v5348
    %v5430 = vunpack.c.l.b16 %v5349
    %v5431 = vunpack.c.h.b16 %v5349
    %v5432 = vunpack.c.l.b16 %v5350
    %v5433 = vunpack.c.h.b16 %v5350
    %v5434 = vunpack.c.l.b16 %v5351
    %v5435 = vunpack.c.h.b16 %v5351
    %v5436 = vunpack.c.l.b16 %v5352
    %v5437 = vunpack.c.h.b16 %v5352
    %v5438 = vunpack.c.l.b16 %v5353
    %v5439 = vunpack.c.h.b16 %v5353
    %v5440 = vunpack.c.l.b16 %v5354
    %v5441 = vunpack.c.h.b16 %v5354
    %v5442 = vunpack.c.l.b16 %v5355
    %v5443 = vunpack.c.h.b16 %v5355
    %v5444 = vunpack.c.l.b16 %v5356
    %v5445 = vunpack.c.h.b16 %v5356
    %v5446 = vunpack.c.l.b16 %v5357
    %v5447 = vunpack.c.h.b16 %v5357
    %v5448 = vunpack.c.l.b16 %v5358
    %v5449 = vunpack.c.h.b16 %v5358
    %v5450 = vunpack.c.l.b16 %v5359
    %v5451 = vunpack.c.h.b16 %v5359
    %v5452 = vunpack.c.l.b16 %v5360
    %v5453 = vunpack.c.h.b16 %v5360
    %v5454 = vunpack.c.l.b16 %v5361
    %v5455 = vunpack.c.h.b16 %v5361
    %v5456 = vunpack.c.l.b16 %v5362
    %v5457 = vunpack.c.h.b16 %v5362
    %v5458 = vunpack.c.l.b16 %v5363
    %v5459 = vunpack.c.h.b16 %v5363
    %v5460 = vpack.c.b16 %v5400, %v5396
    %v5461 = vpack.c.b16 %v5401, %v5397
    %v5462 = vpack.c.b16 %v5402, %v5398
    %v5463 = vpack.c.b16 %v5403, %v5399
    %v5464 = vpack.c.b16 %v5408, %v5404
    %v5465 = vpack.c.b16 %v5409, %v5405
    %v5466 = vpack.c.b16 %v5410, %v5406
    %v5467 = vpack.c.b16 %v5411, %v5407
    %v5468 = vpack.c.b16 %v5416, %v5412
    %v5469 = vpack.c.b16 %v5417, %v5413
    %v5470 = vpack.c.b16 %v5418, %v5414
    %v5471 = vpack.c.b16 %v5419, %v5415
    %v5472 = vpack.c.b16 %v5424, %v5420
    %v5473 = vpack.c.b16 %v5425, %v5421
    %v5474 = vpack.c.b16 %v5426, %v5422
    %v5475 = vpack.c.b16 %v5427, %v5423
    %v5476 = vpack.c.b16 %v5432, %v5428
    %v5477 = vpack.c.b16 %v5433, %v5429
    %v5478 = vpack.c.b16 %v5434, %v5430
    %v5479 = vpack.c.b16 %v5435, %v5431
    %v5480 = vpack.c.b16 %v5440, %v5436
    %v5481 = vpack.c.b16 %v5441, %v5437
    %v5482 = vpack.c.b16 %v5442, %v5438
    %v5483 = vpack.c.b16 %v5443, %v5439
    %v5484 = vpack.c.b16 %v5448, %v5444
    %v5485 = vpack.c.b16 %v5449, %v5445
    %v5486 = vpack.c.b16 %v5450, %v5446
    %v5487 = vpack.c.b16 %v5451, %v5447
    %v5488 = vpack.c.b16 %v5456, %v5452
    %v5489 = vpack.c.b16 %v5457, %v5453
    %v5490 = vpack.c.b16 %v5458, %v5454
    %v5491 = vpack.c.b16 %v5459, %v5455
    %5524 = vmatprep.subr.bf16.mxu0 %v5461
    %5525 = vmatpush1.bf16.msra.mxu0 %v5460
    %5526 = vmatprep.subr.bf16.mxu0 %v5465
    %5527 = vmatpush1.bf16.msra.mxu0 %v5464
    %5528 = vmatprep.subr.bf16.mxu0 %v5469
    %5529 = vmatpush1.bf16.msra.mxu0 %v5468
    %5530 = vmatprep.subr.bf16.mxu0 %v5473
    %5531 = vmatpush1.bf16.msra.mxu0 %v5472
    %5532 = vmatprep.subr.bf16.mxu0 %v5477
    %5533 = vmatpush1.bf16.msra.mxu0 %v5476
    %5534 = vmatprep.subr.bf16.mxu0 %v5481
    %5535 = vmatpush1.bf16.msra.mxu0 %v5480
    %5536 = vmatprep.subr.bf16.mxu0 %v5485
    %5537 = vmatpush1.bf16.msra.mxu0 %v5484
    %5538 = vmatprep.subr.bf16.mxu0 %v5489
    %5539 = vmatpush1.bf16.msra.mxu0 %v5488
    %5540 = vmatprep.subr.bf16.mxu0 0
    %5541 = vmatpush1.bf16.msra.mxu0 0
    %5542 = vmatprep.subr.bf16.mxu0 0
    %5543 = vmatpush1.bf16.msra.mxu0 0
    %5544 = vmatprep.subr.bf16.mxu0 0
    %5545 = vmatpush1.bf16.msra.mxu0 0
    %5546 = vmatprep.subr.bf16.mxu0 0
    %5547 = vmatpush1.bf16.msra.mxu0 0
    %5548 = vmatprep.subr.bf16.mxu0 0
    %5549 = vmatpush1.bf16.msra.mxu0 0
    %5550 = vmatprep.subr.bf16.mxu0 0
    %5551 = vmatpush1.bf16.msra.mxu0 0
    %5552 = vmatprep.subr.bf16.mxu0 0
    %5553 = vmatpush1.bf16.msra.mxu0 0
    %5554 = vmatprep.subr.bf16.mxu0 0
    %5555 = vmatpush1.bf16.msra.mxu0 0
    %5556 = vmatprep.mubr.bf16.mxu0 0
    %5557 = vmatmul.mubr.bf16.gmra.mrb[0].mxu0 %v5331
    %v5558 = vpop.f32.mrb[0].mxu0
    %v5559 = vadd.f32 0.0, %v5558
    %v5560 = vpop.f32.mrb[0].mxu0
    %v5561 = vadd.f32 0.0, %v5560
    %v5562 = vpop.f32.mrb[0].mxu0
    %v5563 = vpop.f32.mrb[0].mxu0
    %5564 = vdwg.mxu0
    %5565 = vmatprep.subr.bf16.mxu0 %v5463
    %5566 = vmatpush1.bf16.msra.mxu0 %v5462
    %5567 = vmatprep.subr.bf16.mxu0 %v5467
    %5568 = vmatpush1.bf16.msra.mxu0 %v5466
    %5569 = vmatprep.subr.bf16.mxu0 %v5471
    %5570 = vmatpush1.bf16.msra.mxu0 %v5470
    %5571 = vmatprep.subr.bf16.mxu0 %v5475
    %5572 = vmatpush1.bf16.msra.mxu0 %v5474
    %5573 = vmatprep.subr.bf16.mxu0 %v5479
    %5574 = vmatpush1.bf16.msra.mxu0 %v5478
    %5575 = vmatprep.subr.bf16.mxu0 %v5483
    %5576 = vmatpush1.bf16.msra.mxu0 %v5482
    %5577 = vmatprep.subr.bf16.mxu0 %v5487
    %5578 = vmatpush1.bf16.msra.mxu0 %v5486
    %5579 = vmatprep.subr.bf16.mxu0 %v5491
    %5580 = vmatpush1.bf16.msra.mxu0 %v5490
    %5581 = vmatprep.subr.bf16.mxu0 0
    %5582 = vmatpush1.bf16.msra.mxu0 0
    %5583 = vmatprep.subr.bf16.mxu0 0
    %5584 = vmatpush1.bf16.msra.mxu0 0
    %5585 = vmatprep.subr.bf16.mxu0 0
    %5586 = vmatpush1.bf16.msra.mxu0 0
    %5587 = vmatprep.subr.bf16.mxu0 0
    %5588 = vmatpush1.bf16.msra.mxu0 0
    %5589 = vmatprep.subr.bf16.mxu0 0
    %5590 = vmatpush1.bf16.msra.mxu0 0
    %5591 = vmatprep.subr.bf16.mxu0 0
    %5592 = vmatpush1.bf16.msra.mxu0 0
    %5593 = vmatprep.subr.bf16.mxu0 0
    %5594 = vmatpush1.bf16.msra.mxu0 0
    %5595 = vmatprep.subr.bf16.mxu0 0
    %5596 = vmatpush1.bf16.msra.mxu0 0
    %5597 = vmatprep.mubr.bf16.mxu0 0
    %5598 = vmatmul.mubr.bf16.gmra.mrb[0].mxu0 %v5331
    %v5599 = vpop.f32.mrb[0].mxu0
    %v5600 = vadd.f32 0.0, %v5599
    %v5601 = vpop.f32.mrb[0].mxu0
    %v5602 = vadd.f32 0.0, %v5601
    %v5603 = vpop.f32.mrb[0].mxu0
    %v5604 = vpop.f32.mrb[0].mxu0
    %5605 = vdwg.mxu0
    %v5606 = vadd.f32 %v5327, %v5559
    %v5607 = vadd.f32 %v5328, %v5561
    %v5608 = vadd.f32 %v5329, %v5600
    %v5609 = vadd.f32 %v5330, %v5602
    %v5610 = vxor.u32 %v5606, 2147483648
    %v5611 = vmul.f32 %v5610, 1.442695
    %v5612 = vpow.pop %v5611
    %v5613 = vadd.f32 %v5612, 1.0
    %v5614 = vrcp.pop %v5613
    %v5615 = vmul.f32 1.0, %v5614
    %v5616 = vxor.u32 %v5607, 2147483648
    %v5617 = vmul.f32 %v5616, 1.442695
    %v5618 = vpow.pop %v5617
    %v5619 = vadd.f32 %v5618, 1.0
    %v5620 = vrcp.pop %v5619
    %v5621 = vmul.f32 1.0, %v5620
    %v5622 = vtanh.pop %v5608
    %v5623 = vxor.u32 %v5609, 2147483648
    %v5624 = vmul.f32 %v5623, 1.442695
    %v5625 = vpow.pop %v5624
    %v5626 = vadd.f32 %v5625, 1.0
    %v5627 = vrcp.pop %v5626
    %v5628 = vmul.f32 1.0, %v5627
    %v5629 = vmul.f32 %v5621, %v5320
    %v5630 = vmul.f32 %v5615, %v5622
    %v5631 = vadd.f32 %v5629, %v5630
    %v5632 = vtanh.pop %v5631
    %v5633 = vmul.f32 %v5628, %v5632
    %s5634 = scalar_lea.vmem [#allocation21], 48
    %5635 = vst [vmem:[%s5634] sm:$0xff] %v5633
    %s5636 = smul.addr %s2740, 8
    %s5637 = scalar_lea.vmem [#allocation8], %s5636
    %v5638 = vld [vmem:[%s5637] sm:$0xff]
    %v5639 = vld [vmem:[%s5637 + $0x8] sm:$0xff]
    %v5640 = vld [vmem:[%s5637 + $0x10] sm:$0xff]
    %v5641 = vld [vmem:[%s5637 + $0x18] sm:$0xff]
    %v5642 = vpack.c.bf16 %v5633, %v5633
    %v5643 = vld [vmem:[#allocation18] sm:$0xff]
    %v5644 = vld [vmem:[#allocation18 + $0x8] sm:$0xff]
    %v5645 = vld [vmem:[#allocation18 + $0x10] sm:$0xff]
    %v5646 = vld [vmem:[#allocation18 + $0x18] sm:$0xff]
    %v5647 = vld [vmem:[#allocation18 + $0x20] sm:$0xff]
    %v5648 = vld [vmem:[#allocation18 + $0x28] sm:$0xff]
    %v5649 = vld [vmem:[#allocation18 + $0x30] sm:$0xff]
    %v5650 = vld [vmem:[#allocation18 + $0x38] sm:$0xff]
    %v5651 = vld [vmem:[#allocation18 + $0x40] sm:$0xff]
    %v5652 = vld [vmem:[#allocation18 + $0x48] sm:$0xff]
    %v5653 = vld [vmem:[#allocation18 + $0x50] sm:$0xff]
    %v5654 = vld [vmem:[#allocation18 + $0x58] sm:$0xff]
    %v5655 = vld [vmem:[#allocation18 + $0x60] sm:$0xff]
    %v5656 = vld [vmem:[#allocation18 + $0x68] sm:$0xff]
    %v5657 = vld [vmem:[#allocation18 + $0x70] sm:$0xff]
    %v5658 = vld [vmem:[#allocation18 + $0x78] sm:$0xff]
    %v5659 = vld [vmem:[#allocation18 + $0x80] sm:$0xff]
    %v5660 = vld [vmem:[#allocation18 + $0x88] sm:$0xff]
    %v5661 = vld [vmem:[#allocation18 + $0x90] sm:$0xff]
    %v5662 = vld [vmem:[#allocation18 + $0x98] sm:$0xff]
    %v5663 = vld [vmem:[#allocation18 + $0xa0] sm:$0xff]
    %v5664 = vld [vmem:[#allocation18 + $0xa8] sm:$0xff]
    %v5665 = vld [vmem:[#allocation18 + $0xb0] sm:$0xff]
    %v5666 = vld [vmem:[#allocation18 + $0xb8] sm:$0xff]
    %v5667 = vld [vmem:[#allocation18 + $0xc0] sm:$0xff]
    %v5668 = vld [vmem:[#allocation18 + $0xc8] sm:$0xff]
    %v5669 = vld [vmem:[#allocation18 + $0xd0] sm:$0xff]
    %v5670 = vld [vmem:[#allocation18 + $0xd8] sm:$0xff]
    %v5671 = vld [vmem:[#allocation18 + $0xe0] sm:$0xff]
    %v5672 = vld [vmem:[#allocation18 + $0xe8] sm:$0xff]
    %v5673 = vld [vmem:[#allocation18 + $0xf0] sm:$0xff]
    %v5674 = vld [vmem:[#allocation18 + $0xf8] sm:$0xff]
    %v5707 = vunpack.c.l.b16 %v5643
    %v5708 = vunpack.c.h.b16 %v5643
    %v5709 = vunpack.c.l.b16 %v5644
    %v5710 = vunpack.c.h.b16 %v5644
    %v5711 = vunpack.c.l.b16 %v5645
    %v5712 = vunpack.c.h.b16 %v5645
    %v5713 = vunpack.c.l.b16 %v5646
    %v5714 = vunpack.c.h.b16 %v5646
    %v5715 = vunpack.c.l.b16 %v5647
    %v5716 = vunpack.c.h.b16 %v5647
    %v5717 = vunpack.c.l.b16 %v5648
    %v5718 = vunpack.c.h.b16 %v5648
    %v5719 = vunpack.c.l.b16 %v5649
    %v5720 = vunpack.c.h.b16 %v5649
    %v5721 = vunpack.c.l.b16 %v5650
    %v5722 = vunpack.c.h.b16 %v5650
    %v5723 = vunpack.c.l.b16 %v5651
    %v5724 = vunpack.c.h.b16 %v5651
    %v5725 = vunpack.c.l.b16 %v5652
    %v5726 = vunpack.c.h.b16 %v5652
    %v5727 = vunpack.c.l.b16 %v5653
    %v5728 = vunpack.c.h.b16 %v5653
    %v5729 = vunpack.c.l.b16 %v5654
    %v5730 = vunpack.c.h.b16 %v5654
    %v5731 = vunpack.c.l.b16 %v5655
    %v5732 = vunpack.c.h.b16 %v5655
    %v5733 = vunpack.c.l.b16 %v5656
    %v5734 = vunpack.c.h.b16 %v5656
    %v5735 = vunpack.c.l.b16 %v5657
    %v5736 = vunpack.c.h.b16 %v5657
    %v5737 = vunpack.c.l.b16 %v5658
    %v5738 = vunpack.c.h.b16 %v5658
    %v5739 = vunpack.c.l.b16 %v5659
    %v5740 = vunpack.c.h.b16 %v5659
    %v5741 = vunpack.c.l.b16 %v5660
    %v5742 = vunpack.c.h.b16 %v5660
    %v5743 = vunpack.c.l.b16 %v5661
    %v5744 = vunpack.c.h.b16 %v5661
    %v5745 = vunpack.c.l.b16 %v5662
    %v5746 = vunpack.c.h.b16 %v5662
    %v5747 = vunpack.c.l.b16 %v5663
    %v5748 = vunpack.c.h.b16 %v5663
    %v5749 = vunpack.c.l.b16 %v5664
    %v5750 = vunpack.c.h.b16 %v5664
    %v5751 = vunpack.c.l.b16 %v5665
    %v5752 = vunpack.c.h.b16 %v5665
    %v5753 = vunpack.c.l.b16 %v5666
    %v5754 = vunpack.c.h.b16 %v5666
    %v5755 = vunpack.c.l.b16 %v5667
    %v5756 = vunpack.c.h.b16 %v5667
    %v5757 = vunpack.c.l.b16 %v5668
    %v5758 = vunpack.c.h.b16 %v5668
    %v5759 = vunpack.c.l.b16 %v5669
    %v5760 = vunpack.c.h.b16 %v5669
    %v5761 = vunpack.c.l.b16 %v5670
    %v5762 = vunpack.c.h.b16 %v5670
    %v5763 = vunpack.c.l.b16 %v5671
    %v5764 = vunpack.c.h.b16 %v5671
    %v5765 = vunpack.c.l.b16 %v5672
    %v5766 = vunpack.c.h.b16 %v5672
    %v5767 = vunpack.c.l.b16 %v5673
    %v5768 = vunpack.c.h.b16 %v5673
    %v5769 = vunpack.c.l.b16 %v5674
    %v5770 = vunpack.c.h.b16 %v5674
    %v5771 = vpack.c.b16 %v5711, %v5707
    %v5772 = vpack.c.b16 %v5712, %v5708
    %v5773 = vpack.c.b16 %v5713, %v5709
    %v5774 = vpack.c.b16 %v5714, %v5710
    %v5775 = vpack.c.b16 %v5719, %v5715
    %v5776 = vpack.c.b16 %v5720, %v5716
    %v5777 = vpack.c.b16 %v5721, %v5717
    %v5778 = vpack.c.b16 %v5722, %v5718
    %v5779 = vpack.c.b16 %v5727, %v5723
    %v5780 = vpack.c.b16 %v5728, %v5724
    %v5781 = vpack.c.b16 %v5729, %v5725
    %v5782 = vpack.c.b16 %v5730, %v5726
    %v5783 = vpack.c.b16 %v5735, %v5731
    %v5784 = vpack.c.b16 %v5736, %v5732
    %v5785 = vpack.c.b16 %v5737, %v5733
    %v5786 = vpack.c.b16 %v5738, %v5734
    %v5787 = vpack.c.b16 %v5743, %v5739
    %v5788 = vpack.c.b16 %v5744, %v5740
    %v5789 = vpack.c.b16 %v5745, %v5741
    %v5790 = vpack.c.b16 %v5746, %v5742
    %v5791 = vpack.c.b16 %v5751, %v5747
    %v5792 = vpack.c.b16 %v5752, %v5748
    %v5793 = vpack.c.b16 %v5753, %v5749
    %v5794 = vpack.c.b16 %v5754, %v5750
    %v5795 = vpack.c.b16 %v5759, %v5755
    %v5796 = vpack.c.b16 %v5760, %v5756
    %v5797 = vpack.c.b16 %v5761, %v5757
    %v5798 = vpack.c.b16 %v5762, %v5758
    %v5799 = vpack.c.b16 %v5767, %v5763
    %v5800 = vpack.c.b16 %v5768, %v5764
    %v5801 = vpack.c.b16 %v5769, %v5765
    %v5802 = vpack.c.b16 %v5770, %v5766
    %5835 = vmatprep.subr.bf16.mxu0 %v5772
    %5836 = vmatpush1.bf16.msra.mxu0 %v5771
    %5837 = vmatprep.subr.bf16.mxu0 %v5776
    %5838 = vmatpush1.bf16.msra.mxu0 %v5775
    %5839 = vmatprep.subr.bf16.mxu0 %v5780
    %5840 = vmatpush1.bf16.msra.mxu0 %v5779
    %5841 = vmatprep.subr.bf16.mxu0 %v5784
    %5842 = vmatpush1.bf16.msra.mxu0 %v5783
    %5843 = vmatprep.subr.bf16.mxu0 %v5788
    %5844 = vmatpush1.bf16.msra.mxu0 %v5787
    %5845 = vmatprep.subr.bf16.mxu0 %v5792
    %5846 = vmatpush1.bf16.msra.mxu0 %v5791
    %5847 = vmatprep.subr.bf16.mxu0 %v5796
    %5848 = vmatpush1.bf16.msra.mxu0 %v5795
    %5849 = vmatprep.subr.bf16.mxu0 %v5800
    %5850 = vmatpush1.bf16.msra.mxu0 %v5799
    %5851 = vmatprep.subr.bf16.mxu0 0
    %5852 = vmatpush1.bf16.msra.mxu0 0
    %5853 = vmatprep.subr.bf16.mxu0 0
    %5854 = vmatpush1.bf16.msra.mxu0 0
    %5855 = vmatprep.subr.bf16.mxu0 0
    %5856 = vmatpush1.bf16.msra.mxu0 0
    %5857 = vmatprep.subr.bf16.mxu0 0
    %5858 = vmatpush1.bf16.msra.mxu0 0
    %5859 = vmatprep.subr.bf16.mxu0 0
    %5860 = vmatpush1.bf16.msra.mxu0 0
    %5861 = vmatprep.subr.bf16.mxu0 0
    %5862 = vmatpush1.bf16.msra.mxu0 0
    %5863 = vmatprep.subr.bf16.mxu0 0
    %5864 = vmatpush1.bf16.msra.mxu0 0
    %5865 = vmatprep.subr.bf16.mxu0 0
    %5866 = vmatpush1.bf16.msra.mxu0 0
    %5867 = vmatprep.mubr.bf16.mxu0 0
    %5868 = vmatmul.mubr.bf16.gmra.mrb[0].mxu0 %v5642
    %v5869 = vpop.f32.mrb[0].mxu0
    %v5870 = vadd.f32 0.0, %v5869
    %v5871 = vpop.f32.mrb[0].mxu0
    %v5872 = vadd.f32 0.0, %v5871
    %v5873 = vpop.f32.mrb[0].mxu0
    %v5874 = vpop.f32.mrb[0].mxu0
    %5875 = vdwg.mxu0
    %5876 = vmatprep.subr.bf16.mxu0 %v5774
    %5877 = vmatpush1.bf16.msra.mxu0 %v5773
    %5878 = vmatprep.subr.bf16.mxu0 %v5778
    %5879 = vmatpush1.bf16.msra.mxu0 %v5777
    %5880 = vmatprep.subr.bf16.mxu0 %v5782
    %5881 = vmatpush1.bf16.msra.mxu0 %v5781
    %5882 = vmatprep.subr.bf16.mxu0 %v5786
    %5883 = vmatpush1.bf16.msra.mxu0 %v5785
    %5884 = vmatprep.subr.bf16.mxu0 %v5790
    %5885 = vmatpush1.bf16.msra.mxu0 %v5789
    %5886 = vmatprep.subr.bf16.mxu0 %v5794
    %5887 = vmatpush1.bf16.msra.mxu0 %v5793
    %5888 = vmatprep.subr.bf16.mxu0 %v5798
    %5889 = vmatpush1.bf16.msra.mxu0 %v5797
    %5890 = vmatprep.subr.bf16.mxu0 %v5802
    %5891 = vmatpush1.bf16.msra.mxu0 %v5801
    %5892 = vmatprep.subr.bf16.mxu0 0
    %5893 = vmatpush1.bf16.msra.mxu0 0
    %5894 = vmatprep.subr.bf16.mxu0 0
    %5895 = vmatpush1.bf16.msra.mxu0 0
    %5896 = vmatprep.subr.bf16.mxu0 0
    %5897 = vmatpush1.bf16.msra.mxu0 0
    %5898 = vmatprep.subr.bf16.mxu0 0
    %5899 = vmatpush1.bf16.msra.mxu0 0
    %5900 = vmatprep.subr.bf16.mxu0 0
    %5901 = vmatpush1.bf16.msra.mxu0 0
    %5902 = vmatprep.subr.bf16.mxu0 0
    %5903 = vmatpush1.bf16.msra.mxu0 0
    %5904 = vmatprep.subr.bf16.mxu0 0
    %5905 = vmatpush1.bf16.msra.mxu0 0
    %5906 = vmatprep.subr.bf16.mxu0 0
    %5907 = vmatpush1.bf16.msra.mxu0 0
    %5908 = vmatprep.mubr.bf16.mxu0 0
    %5909 = vmatmul.mubr.bf16.gmra.mrb[0].mxu0 %v5642
    %v5910 = vpop.f32.mrb[0].mxu0
    %v5911 = vadd.f32 0.0, %v5910
    %v5912 = vpop.f32.mrb[0].mxu0
    %v5913 = vadd.f32 0.0, %v5912
    %v5914 = vpop.f32.mrb[0].mxu0
    %v5915 = vpop.f32.mrb[0].mxu0
    %5916 = vdwg.mxu0
    %v5917 = vadd.f32 %v5638, %v5870
    %v5918 = vadd.f32 %v5639, %v5872
    %v5919 = vadd.f32 %v5640, %v5911
    %v5920 = vadd.f32 %v5641, %v5913
    %v5921 = vxor.u32 %v5917, 2147483648
    %v5922 = vmul.f32 %v5921, 1.442695
    %v5923 = vpow.pop %v5922
    %v5924 = vadd.f32 %v5923, 1.0
    %v5925 = vrcp.pop %v5924
    %v5926 = vmul.f32 1.0, %v5925
    %v5927 = vxor.u32 %v5918, 2147483648
    %v5928 = vmul.f32 %v5927, 1.442695
    %v5929 = vpow.pop %v5928
    %v5930 = vadd.f32 %v5929, 1.0
    %v5931 = vrcp.pop %v5930
    %v5932 = vmul.f32 1.0, %v5931
    %v5933 = vtanh.pop %v5919
    %v5934 = vxor.u32 %v5920, 2147483648
    %v5935 = vmul.f32 %v5934, 1.442695
    %v5936 = vpow.pop %v5935
    %v5937 = vadd.f32 %v5936, 1.0
    %v5938 = vrcp.pop %v5937
    %v5939 = vmul.f32 1.0, %v5938
    %v5940 = vmul.f32 %v5932, %v5631
    %v5941 = vmul.f32 %v5926, %v5933
    %v5942 = vadd.f32 %v5940, %v5941
    %v5943 = vtanh.pop %v5942
    %v5944 = vmul.f32 %v5939, %v5943
    %s5945 = scalar_lea.vmem [#allocation21], 56
    %5946 = vst [vmem:[%s5945] sm:$0xff] %v5944
    %5947 = vst [vmem:[#allocation4] sm:$0xff] %v5944
    %5948 = vst [vmem:[#allocation5] sm:$0xff] %v5942
    // Predicated region
    $region62: #{decoder_forward.1} parent=1 // pred_check
      %p5949 = pneg %p122
    $region63: #{decoder_forward.1} parent=1 // pred_check_branch
      %5951 = sbr.rel (%p5949) target = $region65
    $region64: #{decoder_forward.1} parent=1 // pred_region
      %v5952 = vld [vmem:[#allocation5] sm:$0xff]
      %5953 = vst [vmem:[#allocation22] sm:$0xff] %v5952
    $region65: #{decoder_forward.1} parent=1 // pred_fallthru
      _
    // Predicated region
    $region66: #{decoder_forward.1} parent=1 // pred_check
      _
    $region67: #{decoder_forward.1} parent=1 // pred_check_branch
      %5955 = sbr.rel (0) target = $region69
    $region68: #{decoder_forward.1} parent=1 // pred_region
      %s5957 = ssub.s32 1024, 1024
      %5958 = vsyncadd [#allocation11], %s5957
      %s5959 = sshll.u32 [#allocation21], 4
      %s5960 = int_to_ptr.vmem [resolvable:$true] %s5959
      %5965 = dma.vmem_to_hbm [thread:$0]  %s5960, 1024, %s7, [#allocation11], 128, 128, 8
    $region69: #{decoder_forward.1} parent=1 // pred_fallthru
      _
    // Predicated region
    $region70: #{decoder_forward.1} parent=1 // pred_check
      _
    $region71: #{decoder_forward.1} parent=1 // pred_check_branch
      %5967 = sbr.rel (0) target = $region73
    $region72: #{decoder_forward.1} parent=1 // pred_region
      %s5969 = ssub.s32 128, 128
      %5970 = vsyncadd [#allocation23], %s5969
      %s5972 = sshll.u32 [#allocation22], 4
      %s5973 = int_to_ptr.vmem [resolvable:$true] %s5972
      %5975 = dma.vmem_to_hbm [thread:$0]  %s5973, 128, %s8, [#allocation23]
    $region73: #{decoder_forward.1} parent=1 // pred_fallthru
      _
    // Predicated region
    $region74: #{decoder_forward.1} parent=1 // pred_check
      _
    $region75: #{decoder_forward.1} parent=1 // pred_check_branch
      %5977 = sbr.rel (0) target = $region77
    $region76: #{decoder_forward.1} parent=1 // pred_region
      %5978 = dma.done [#allocation11], 1024
    $region77: #{decoder_forward.1} parent=1 // pred_fallthru
      _
    // Predicated region
    $region78: #{decoder_forward.1} parent=1 // pred_check
      _
    $region79: #{decoder_forward.1} parent=1 // pred_check_branch
      %5980 = sbr.rel (0) target = $region81
    $region80: #{decoder_forward.1} parent=1 // pred_region
      %5981 = dma.done [#allocation23], 128
    $region81: #{decoder_forward.1} parent=1 // pred_fallthru
      _
    %5982 = vsyncpa [#allocation10], 1
    %5983 = vsyncpa [#allocation13], 1
    %5984 = vsyncpa [#allocation16], 1
    %5985 = vsyncpa [#allocation19], 1
    %5986 = vsyncpa [#allocation11], 1
    %5987 = vsyncpa [#allocation23], 1

</llo_original>
